<compile_context>
chip_gen: v7x
topology: tpu7x:2x2x1
jax: 0.10.0
libtpu: 0.0.40
codegen_flags: <defaults>
</compile_context>

<pallas_src>
import jax
import jax.numpy as jnp
import numpy as np
from jax.experimental import pallas as pl
from jax.experimental.pallas import tpu as pltpu

BN_EPS = 1e-5
_LANE = 128                           # lane width / channel-padding granularity
_CO_TILE = 128                        # output-channel tile (lane-dense stores)
_VMEM_LIMIT = 32 * 1024 * 1024        # explicit scoped-VMEM budget; safe on v5e/v6e/v7x


def _round_up(x, m):
    return (x + m - 1) // m * m


# ---------------------------------------------------------------------------------------------
# Conv kernel: 3x3 conv as 9 shifted matmuls + optional fused input BN+ReLU + BN partial stats.
# ---------------------------------------------------------------------------------------------
def _make_conv_kernel(hh, ww, c_in, co_t, norm_input, out_dtype):
    """Specialised kernel.

    Inputs : x    (1, hh, ww, c_in)   un-padded NHWC image block (one batch element)
             w    (9, c_in, co_t)     bf16 taps, tap index t = 3*dy + dx
             [sc, sh]                 (1, c_in) BN scale/shift of the PREVIOUS block (fused)
    Outputs: y    (1, hh, ww, co_t)   conv result (out_dtype, typically bf16)
             st   (1, 8, co_t)        row0 = sum(y), row1 = sum(y^2) over hh*ww (f32)
    Scratch: xpad (1, hh+2, ww+2, c_in) f32 -- zero-halo padded (and BN+ReLU'd) input.
    """
    hp, wp = hh + 2, ww + 2

    def kernel(*refs):
        if norm_input:
            x_ref, w_ref, sc_ref, sh_ref, y_ref, st_ref, xpad_ref = refs
        else:
            x_ref, w_ref, y_ref, st_ref, xpad_ref = refs

        # Fill the zero-halo padded f32 scratch once per batch element.  co (grid axis 1) is
        # the innermost, sequential ("arbitrary") axis and the scratch persists across it.
        @pl.when(pl.program_id(1) == 0)
        def _():
            xb = x_ref[...].astype(jnp.float32)
            if norm_input:
                # Fused BN (precomputed scale/shift) + ReLU of the previous block's output.
                sc = sc_ref[...].reshape(1, 1, 1, c_in)
                sh = sh_ref[...].reshape(1, 1, 1, c_in)
                xb = jnp.maximum(xb * sc + sh, 0.0)
            xpad_ref[...] = jnp.zeros((1, hp, wp, c_in), jnp.float32)
            xpad_ref[0, 1:hh + 1, 1:ww + 1, :] = xb[0]

        xb_p = xpad_ref[...]                              # (1, hp, wp, c_in) f32, exact-zero halo
        wk = w_ref[...]                                   # (9, c_in, co_t) bf16
        acc = jnp.zeros((hh * ww, co_t), jnp.float32)
        for dy in range(3):
            for dx in range(3):
                lhs = xb_p[0, dy:dy + hh, dx:dx + ww, :].reshape(hh * ww, c_in)
                acc = acc + jnp.dot(lhs.astype(jnp.bfloat16), wk[3 * dy + dx],
                                    preferred_element_type=jnp.float32)

        # Single-sweep partial BatchNorm statistics for this (batch element, cout tile).
        s = jnp.sum(acc, axis=0, keepdims=True)           # (1, co_t)
        ss = jnp.sum(acc * acc, axis=0, keepdims=True)    # (1, co_t)
        st_ref[...] = jnp.concatenate(
            [s, ss, jnp.zeros((6, co_t), jnp.float32)], axis=0).reshape(1, 8, co_t)

        y_ref[...] = acc.reshape(1, hh, ww, co_t).astype(out_dtype)

    return kernel


def _conv_block(x, w_k, scale=None, shift=None, *, out_dtype):
    """Run the conv(+stats) kernel over grid (batch, cout_tiles)."""
    n, hh, ww, c_in = x.shape
    c_pad = w_k.shape[-1]
    n_co = c_pad // _CO_TILE
    norm_input = scale is not None

    kernel = _make_conv_kernel(hh, ww, c_in, _CO_TILE, norm_input, out_dtype)

    in_specs = [
        pl.BlockSpec((1, hh, ww, c_in), lambda b, co: (b, 0, 0, 0)),
        pl.BlockSpec((9, c_in, _CO_TILE), lambda b, co: (0, 0, co)),
    ]
    args = [x, w_k]
    if norm_input:
        in_specs += [
            pl.BlockSpec((1, c_in), lambda b, co: (0, 0)),
            pl.BlockSpec((1, c_in), lambda b, co: (0, 0)),
        ]
        args += [scale, shift]

    y, stats = pl.pallas_call(
        kernel,
        out_shape=(jax.ShapeDtypeStruct((n, hh, ww, c_pad), out_dtype),
                   jax.ShapeDtypeStruct((n, 8, c_pad), jnp.float32)),
        grid=(n, n_co),
        in_specs=in_specs,
        out_specs=(pl.BlockSpec((1, hh, ww, _CO_TILE), lambda b, co: (b, 0, 0, co)),
                   pl.BlockSpec((1, 8, _CO_TILE), lambda b, co: (b, 0, co))),
        scratch_shapes=[pltpu.VMEM((1, hh + 2, ww + 2, c_in), jnp.float32)],
        compiler_params=pltpu.CompilerParams(
            # batch axis parallel (megacore); cout axis "arbitrary" so the per-batch scratch
            # fill at co == 0 is never split across cores.
            dimension_semantics=("parallel", "arbitrary"),
            vmem_limit_bytes=_VMEM_LIMIT),
    )(*args)
    return y, stats


# ---------------------------------------------------------------------------------------------
# Pointwise BN apply (scale/shift) + ReLU for the final block output.
# ---------------------------------------------------------------------------------------------
def _bn_relu_kernel(y_ref, sc_ref, sh_ref, o_ref):
    yb = y_ref[...].astype(jnp.float32)
    sc = sc_ref[...].reshape(1, 1, 1, -1)
    sh = sh_ref[...].reshape(1, 1, 1, -1)
    o_ref[...] = jnp.maximum(yb * sc + sh, 0.0)


def _bn_relu_apply(y, scale, shift):
    n, hh, ww, c_pad = y.shape
    n_co = c_pad // _CO_TILE
    return pl.pallas_call(
        _bn_relu_kernel,
        out_shape=jax.ShapeDtypeStruct((n, hh, ww, c_pad), jnp.float32),
        grid=(n, n_co),
        in_specs=[pl.BlockSpec((1, hh, ww, _CO_TILE), lambda b, co: (b, 0, 0, co)),
                  pl.BlockSpec((1, _CO_TILE), lambda b, co: (0, co)),
                  pl.BlockSpec((1, _CO_TILE), lambda b, co: (0, co))],
        out_specs=pl.BlockSpec((1, hh, ww, _CO_TILE), lambda b, co: (b, 0, 0, co)),
        compiler_params=pltpu.CompilerParams(
            dimension_semantics=("parallel", "parallel"),
            vmem_limit_bytes=_VMEM_LIMIT),
    )(y, scale, shift)


# ---------------------------------------------------------------------------------------------
# Glue: weight/param prep, BN stats -> scale/shift, layout at the API boundary.
# ---------------------------------------------------------------------------------------------
def _prep_weight(w_oihw, c_in_pad, c_out_pad):
    """PyTorch Conv2d weight (O, I, 3, 3) -> (9, I_pad, O_pad) bf16, tap index t = 3*dy + dx."""
    o, i, kh, kw = w_oihw.shape
    wk = jnp.transpose(w_oihw, (2, 3, 1, 0)).reshape(kh * kw, i, o)
    wk = jnp.pad(wk, ((0, 0), (0, c_in_pad - i), (0, c_out_pad - o)))
    return wk.astype(jnp.bfloat16)


def _pad_vec(v, c_pad):
    return jnp.pad(v.astype(jnp.float32), (0, c_pad - v.shape[0]))


def _bn_scale_shift(stats, gamma_p, beta_p, count):
    """stats: (N, 8, C_pad) with row0=sum, row1=sumsq per batch element.  Biased variance."""
    s = jnp.sum(stats[:, 0, :], axis=0)
    ss = jnp.sum(stats[:, 1, :], axis=0)
    mean = s / count
    var = ss / count - mean * mean
    inv = jax.lax.rsqrt(var + BN_EPS)
    scale = gamma_p * inv                       # zero for padded channels (gamma padded with 0)
    shift = beta_p - mean * scale
    return scale.reshape(1, -1), shift.reshape(1, -1)


@jax.jit
def double_conv_forward(x_nchw, w1, g1, b1, w2, g2, b2):
    n, c_in, h, w = x_nchw.shape
    c_mid, c_out = w1.shape[0], w2.shape[0]
    c_in_p = _round_up(c_in, 8)                 # cheap sublane-friendly pad of the raw input
    c_mid_p = _round_up(c_mid, _LANE)
    c_out_p = _round_up(c_out, _LANE)
    count = float(n * h * w)

    # NHWC throughout; transpose only at the API boundary.  Only channel padding in HBM —
    # the 1-pixel spatial halo is created inside the kernels (VMEM scratch, exact zeros).
    x = jnp.transpose(x_nchw, (0, 2, 3, 1))
    x_c = jnp.pad(x, ((0, 0), (0, 0), (0, 0), (0, c_in_p - c_in)))

    w1k = _prep_weight(w1, c_in_p, c_mid_p)
    w2k = _prep_weight(w2, c_mid_p, c_out_p)

    # Block 1: conv1 (bf16 intermediate) + BN partial stats.
    y1, st1 = _conv_block(x_c, w1k, out_dtype=jnp.bfloat16)
    sc1, sh1 = _bn_scale_shift(st1, _pad_vec(g1, c_mid_p), _pad_vec(b1, c_mid_p), count)

    # Block 2: fused BN1+ReLU (in the scratch fill) -> conv2 -> y2 + BN partial stats.
    y2, st2 = _conv_block(y1, w2k, sc1, sh1, out_dtype=jnp.bfloat16)
    sc2, sh2 = _bn_scale_shift(st2, _pad_vec(g2, c_out_p), _pad_vec(b2, c_out_p), count)

    # Final pointwise BN2 + ReLU; drop channel padding; restore NCHW.
    out = _bn_relu_apply(y2, sc2, sh2)
    return jnp.transpose(out[..., :c_out], (0, 3, 1, 2))


# ---------------------------------------------------------------------------------------------
# Pure-JAX reference (same semantics as the PyTorch module in train() mode).
# ---------------------------------------------------------------------------------------------
def _ref_block(x, w, g, b):
    y = jax.lax.conv_general_dilated(
        x, w, window_strides=(1, 1), padding=((1, 1), (1, 1)),
        dimension_numbers=("NCHW", "OIHW", "NCHW"),
        precision=jax.lax.Precision.HIGHEST)
    mean = jnp.mean(y, axis=(0, 2, 3), keepdims=True)
    var = jnp.mean(jnp.square(y - mean), axis=(0, 2, 3), keepdims=True)
    y_hat = (y - mean) * jax.lax.rsqrt(var + BN_EPS)
    out = y_hat * g.reshape(1, -1, 1, 1) + b.reshape(1, -1, 1, 1)
    return jnp.maximum(out, 0.0)


def ref_forward(x, w1, g1, b1, w2, g2, b2):
    return _ref_block(_ref_block(x, w1, g1, b1), w2, g2, b2)


# ---------------------------------------------------------------------------------------------
if __name__ == "__main__":
    key = jax.random.PRNGKey(0)
    N, C_IN, C_OUT, H, W = 2, 4, 8, 16, 16
    C_MID = C_OUT  # mid_channels defaults to out_channels

    k = jax.random.split(key, 7)
    x = jax.random.normal(k[0], (N, C_IN, H, W), jnp.float32)
    w1 = jax.random.normal(k[1], (C_MID, C_IN, 3, 3), jnp.float32) * 0.2
    w2 = jax.random.normal(k[2], (C_OUT, C_MID, 3, 3), jnp.float32) * 0.2
    g1 = 1.0 + 0.1 * jax.random.normal(k[3], (C_MID,), jnp.float32)
    b1 = 0.1 * jax.random.normal(k[4], (C_MID,), jnp.float32)
    g2 = 1.0 + 0.1 * jax.random.normal(k[5], (C_OUT,), jnp.float32)
    b2 = 0.1 * jax.random.normal(k[6], (C_OUT,), jnp.float32)

    out = jax.block_until_ready(double_conv_forward(x, w1, g1, b1, w2, g2, b2))
    ref = jax.block_until_ready(ref_forward(x, w1, g1, b1, w2, g2, b2))

    # bf16 MXU operands + bf16 HBM intermediates -> ~1% relative error vs the full-f32
    # HIGHEST-precision reference, compounded over two conv+BN blocks.
    np.testing.assert_allclose(np.asarray(out), np.asarray(ref), rtol=1.5e-2, atol=4e-2)
    assert out.shape == (N, C_OUT, H, W) and out.dtype == jnp.float32

    print("KERNEL_OK")
</pallas_src>

<mosaic_0001>
module attributes {stable_mosaic.version = 11 : i64} {
  func.func @kernel(%arg0: i32, %arg1: i32, %arg2: memref<1x16x16x8xf32, #tpu.memory_space<vmem>>, %arg3: memref<9x8x128xbf16, #tpu.memory_space<vmem>>, %arg4: memref<1x16x16x128xbf16, #tpu.memory_space<vmem>>, %arg5: memref<1x8x128xf32, #tpu.memory_space<vmem>>, %arg6: memref<1x18x18x8xf32, #tpu.memory_space<vmem>>) attributes {dimension_semantics = [#tpu.dimension_semantics<parallel>, #tpu.dimension_semantics<arbitrary>], iteration_bounds = array<i64: 2, 1>, scalar_prefetch = 0 : i64, scratch_operands = 1 : i64, tpu.core_type = #tpu.core_type<tc>, window_params = [{transform_indices = @transform_0, window_bounds = array<i64: 1, 16, 16, 8>}, {transform_indices = @transform_1, window_bounds = array<i64: 9, 8, 128>}, {transform_indices = @transform_2, window_bounds = array<i64: 1, 16, 16, 128>}, {transform_indices = @transform_3, window_bounds = array<i64: 1, 8, 128>}]} {
    %c0_i32 = arith.constant 0 : i32
    %0 = arith.cmpi eq, %arg1, %c0_i32 : i32
    %1 = arith.extui %0 : i1 to i32
    %c0_i32_0 = arith.constant 0 : i32
    %2 = arith.cmpi ne, %1, %c0_i32_0 : i32
    scf.if %2 {
      %c0_26 = arith.constant 0 : index
      %c0_27 = arith.constant 0 : index
      %c0_28 = arith.constant 0 : index
      %c0_29 = arith.constant 0 : index
      %90 = vector.load %arg2[%c0_26, %c0_27, %c0_28, %c0_29] : memref<1x16x16x8xf32, #tpu.memory_space<vmem>>, vector<1x16x16x8xf32>
      %cst_30 = arith.constant 0.000000e+00 : f32
      %91 = vector.broadcast %cst_30 : f32 to vector<1x18x18x8xf32>
      %c0_31 = arith.constant 0 : index
      %c0_32 = arith.constant 0 : index
      %c0_33 = arith.constant 0 : index
      %c0_34 = arith.constant 0 : index
      %92 = vector.load %arg6[%c0_31, %c0_32, %c0_33, %c0_34] : memref<1x18x18x8xf32, #tpu.memory_space<vmem>>, vector<1x18x18x8xf32>
      tpu.vector_store %arg6[%c0_31, %c0_32, %c0_33, %c0_34], %91 {strides = array<i32>} : memref<1x18x18x8xf32, #tpu.memory_space<vmem>>, vector<1x18x18x8xf32>,
      %93 = vector.shape_cast %90 : vector<1x16x16x8xf32> to vector<16x16x8xf32>
      %c0_35 = arith.constant 0 : index
      %c1 = arith.constant 1 : index
      %c1_36 = arith.constant 1 : index
      %c0_37 = arith.constant 0 : index
      %94 = vector.load %arg6[%c0_35, %c1, %c1_36, %c0_37] : memref<1x18x18x8xf32, #tpu.memory_space<vmem>>, vector<1x16x16x8xf32>
      %95 = vector.shape_cast %94 : vector<1x16x16x8xf32> to vector<16x16x8xf32>
      %96 = vector.shape_cast %93 : vector<16x16x8xf32> to vector<1x16x16x8xf32>
      tpu.vector_store %arg6[%c0_35, %c1, %c1_36, %c0_37], %96 {strides = array<i32>} : memref<1x18x18x8xf32, #tpu.memory_space<vmem>>, vector<1x16x16x8xf32>,
    } else {
    }
    %c0 = arith.constant 0 : index
    %c0_1 = arith.constant 0 : index
    %c0_2 = arith.constant 0 : index
    %c0_3 = arith.constant 0 : index
    %3 = vector.load %arg6[%c0, %c0_1, %c0_2, %c0_3] : memref<1x18x18x8xf32, #tpu.memory_space<vmem>>, vector<1x18x18x8xf32>
    %c0_4 = arith.constant 0 : index
    %c0_5 = arith.constant 0 : index
    %c0_6 = arith.constant 0 : index
    %4 = vector.load %arg3[%c0_4, %c0_5, %c0_6] : memref<9x8x128xbf16, #tpu.memory_space<vmem>>, vector<9x8x128xbf16>
    %cst = arith.constant 0.000000e+00 : f32
    %5 = vector.broadcast %cst : f32 to vector<256x128xf32>
    %6 = vector.extract_strided_slice %3 {offsets = [0, 0, 0, 0], sizes = [1, 16, 16, 8], strides = [1, 1, 1, 1]} : vector<1x18x18x8xf32> to vector<1x16x16x8xf32>
    %7 = vector.shape_cast %6 : vector<1x16x16x8xf32> to vector<16x16x8xf32>
    %8 = vector.shape_cast %7 : vector<16x16x8xf32> to vector<256x8xf32>
    %9 = arith.truncf %8 : vector<256x8xf32> to vector<256x8xbf16>
    %10 = vector.extract_strided_slice %4 {offsets = [0, 0, 0], sizes = [1, 8, 128], strides = [1, 1, 1]} : vector<9x8x128xbf16> to vector<1x8x128xbf16>
    %11 = vector.shape_cast %10 : vector<1x8x128xbf16> to vector<8x128xbf16>
    %cst_7 = arith.constant dense<0.000000e+00> : vector<256x128xf32>
    %12 = tpu.matmul %9, %11, %cst_7 {dimension_numbers = #tpu.dot_dimension_numbers<[1], [0], [0], [1], [0, 0, 1, 1], [], []>} : vector<256x8xbf16>, vector<8x128xbf16>, vector<256x128xf32> -> vector<256x128xf32>
    %13 = arith.addf %5, %12 : vector<256x128xf32>
    %14 = vector.extract_strided_slice %3 {offsets = [0, 0, 1, 0], sizes = [1, 16, 16, 8], strides = [1, 1, 1, 1]} : vector<1x18x18x8xf32> to vector<1x16x16x8xf32>
    %15 = vector.shape_cast %14 : vector<1x16x16x8xf32> to vector<16x16x8xf32>
    %16 = vector.shape_cast %15 : vector<16x16x8xf32> to vector<256x8xf32>
    %17 = arith.truncf %16 : vector<256x8xf32> to vector<256x8xbf16>
    %18 = vector.extract_strided_slice %4 {offsets = [1, 0, 0], sizes = [1, 8, 128], strides = [1, 1, 1]} : vector<9x8x128xbf16> to vector<1x8x128xbf16>
    %19 = vector.shape_cast %18 : vector<1x8x128xbf16> to vector<8x128xbf16>
    %cst_8 = arith.constant dense<0.000000e+00> : vector<256x128xf32>
    %20 = tpu.matmul %17, %19, %cst_8 {dimension_numbers = #tpu.dot_dimension_numbers<[1], [0], [0], [1], [0, 0, 1, 1], [], []>} : vector<256x8xbf16>, vector<8x128xbf16>, vector<256x128xf32> -> vector<256x128xf32>
    %21 = arith.addf %13, %20 : vector<256x128xf32>
    %22 = vector.extract_strided_slice %3 {offsets = [0, 0, 2, 0], sizes = [1, 16, 16, 8], strides = [1, 1, 1, 1]} : vector<1x18x18x8xf32> to vector<1x16x16x8xf32>
    %23 = vector.shape_cast %22 : vector<1x16x16x8xf32> to vector<16x16x8xf32>
    %24 = vector.shape_cast %23 : vector<16x16x8xf32> to vector<256x8xf32>
    %25 = arith.truncf %24 : vector<256x8xf32> to vector<256x8xbf16>
    %26 = vector.extract_strided_slice %4 {offsets = [2, 0, 0], sizes = [1, 8, 128], strides = [1, 1, 1]} : vector<9x8x128xbf16> to vector<1x8x128xbf16>
    %27 = vector.shape_cast %26 : vector<1x8x128xbf16> to vector<8x128xbf16>
    %cst_9 = arith.constant dense<0.000000e+00> : vector<256x128xf32>
    %28 = tpu.matmul %25, %27, %cst_9 {dimension_numbers = #tpu.dot_dimension_numbers<[1], [0], [0], [1], [0, 0, 1, 1], [], []>} : vector<256x8xbf16>, vector<8x128xbf16>, vector<256x128xf32> -> vector<256x128xf32>
    %29 = arith.addf %21, %28 : vector<256x128xf32>
    %30 = vector.extract_strided_slice %3 {offsets = [0, 1, 0, 0], sizes = [1, 16, 16, 8], strides = [1, 1, 1, 1]} : vector<1x18x18x8xf32> to vector<1x16x16x8xf32>
    %31 = vector.shape_cast %30 : vector<1x16x16x8xf32> to vector<16x16x8xf32>
    %32 = vector.shape_cast %31 : vector<16x16x8xf32> to vector<256x8xf32>
    %33 = arith.truncf %32 : vector<256x8xf32> to vector<256x8xbf16>
    %34 = vector.extract_strided_slice %4 {offsets = [3, 0, 0], sizes = [1, 8, 128], strides = [1, 1, 1]} : vector<9x8x128xbf16> to vector<1x8x128xbf16>
    %35 = vector.shape_cast %34 : vector<1x8x128xbf16> to vector<8x128xbf16>
    %cst_10 = arith.constant dense<0.000000e+00> : vector<256x128xf32>
    %36 = tpu.matmul %33, %35, %cst_10 {dimension_numbers = #tpu.dot_dimension_numbers<[1], [0], [0], [1], [0, 0, 1, 1], [], []>} : vector<256x8xbf16>, vector<8x128xbf16>, vector<256x128xf32> -> vector<256x128xf32>
    %37 = arith.addf %29, %36 : vector<256x128xf32>
    %38 = vector.extract_strided_slice %3 {offsets = [0, 1, 1, 0], sizes = [1, 16, 16, 8], strides = [1, 1, 1, 1]} : vector<1x18x18x8xf32> to vector<1x16x16x8xf32>
    %39 = vector.shape_cast %38 : vector<1x16x16x8xf32> to vector<16x16x8xf32>
    %40 = vector.shape_cast %39 : vector<16x16x8xf32> to vector<256x8xf32>
    %41 = arith.truncf %40 : vector<256x8xf32> to vector<256x8xbf16>
    %42 = vector.extract_strided_slice %4 {offsets = [4, 0, 0], sizes = [1, 8, 128], strides = [1, 1, 1]} : vector<9x8x128xbf16> to vector<1x8x128xbf16>
    %43 = vector.shape_cast %42 : vector<1x8x128xbf16> to vector<8x128xbf16>
    %cst_11 = arith.constant dense<0.000000e+00> : vector<256x128xf32>
    %44 = tpu.matmul %41, %43, %cst_11 {dimension_numbers = #tpu.dot_dimension_numbers<[1], [0], [0], [1], [0, 0, 1, 1], [], []>} : vector<256x8xbf16>, vector<8x128xbf16>, vector<256x128xf32> -> vector<256x128xf32>
    %45 = arith.addf %37, %44 : vector<256x128xf32>
    %46 = vector.extract_strided_slice %3 {offsets = [0, 1, 2, 0], sizes = [1, 16, 16, 8], strides = [1, 1, 1, 1]} : vector<1x18x18x8xf32> to vector<1x16x16x8xf32>
    %47 = vector.shape_cast %46 : vector<1x16x16x8xf32> to vector<16x16x8xf32>
    %48 = vector.shape_cast %47 : vector<16x16x8xf32> to vector<256x8xf32>
    %49 = arith.truncf %48 : vector<256x8xf32> to vector<256x8xbf16>
    %50 = vector.extract_strided_slice %4 {offsets = [5, 0, 0], sizes = [1, 8, 128], strides = [1, 1, 1]} : vector<9x8x128xbf16> to vector<1x8x128xbf16>
    %51 = vector.shape_cast %50 : vector<1x8x128xbf16> to vector<8x128xbf16>
    %cst_12 = arith.constant dense<0.000000e+00> : vector<256x128xf32>
    %52 = tpu.matmul %49, %51, %cst_12 {dimension_numbers = #tpu.dot_dimension_numbers<[1], [0], [0], [1], [0, 0, 1, 1], [], []>} : vector<256x8xbf16>, vector<8x128xbf16>, vector<256x128xf32> -> vector<256x128xf32>
    %53 = arith.addf %45, %52 : vector<256x128xf32>
    %54 = vector.extract_strided_slice %3 {offsets = [0, 2, 0, 0], sizes = [1, 16, 16, 8], strides = [1, 1, 1, 1]} : vector<1x18x18x8xf32> to vector<1x16x16x8xf32>
    %55 = vector.shape_cast %54 : vector<1x16x16x8xf32> to vector<16x16x8xf32>
    %56 = vector.shape_cast %55 : vector<16x16x8xf32> to vector<256x8xf32>
    %57 = arith.truncf %56 : vector<256x8xf32> to vector<256x8xbf16>
    %58 = vector.extract_strided_slice %4 {offsets = [6, 0, 0], sizes = [1, 8, 128], strides = [1, 1, 1]} : vector<9x8x128xbf16> to vector<1x8x128xbf16>
    %59 = vector.shape_cast %58 : vector<1x8x128xbf16> to vector<8x128xbf16>
    %cst_13 = arith.constant dense<0.000000e+00> : vector<256x128xf32>
    %60 = tpu.matmul %57, %59, %cst_13 {dimension_numbers = #tpu.dot_dimension_numbers<[1], [0], [0], [1], [0, 0, 1, 1], [], []>} : vector<256x8xbf16>, vector<8x128xbf16>, vector<256x128xf32> -> vector<256x128xf32>
    %61 = arith.addf %53, %60 : vector<256x128xf32>
    %62 = vector.extract_strided_slice %3 {offsets = [0, 2, 1, 0], sizes = [1, 16, 16, 8], strides = [1, 1, 1, 1]} : vector<1x18x18x8xf32> to vector<1x16x16x8xf32>
    %63 = vector.shape_cast %62 : vector<1x16x16x8xf32> to vector<16x16x8xf32>
    %64 = vector.shape_cast %63 : vector<16x16x8xf32> to vector<256x8xf32>
    %65 = arith.truncf %64 : vector<256x8xf32> to vector<256x8xbf16>
    %66 = vector.extract_strided_slice %4 {offsets = [7, 0, 0], sizes = [1, 8, 128], strides = [1, 1, 1]} : vector<9x8x128xbf16> to vector<1x8x128xbf16>
    %67 = vector.shape_cast %66 : vector<1x8x128xbf16> to vector<8x128xbf16>
    %cst_14 = arith.constant dense<0.000000e+00> : vector<256x128xf32>
    %68 = tpu.matmul %65, %67, %cst_14 {dimension_numbers = #tpu.dot_dimension_numbers<[1], [0], [0], [1], [0, 0, 1, 1], [], []>} : vector<256x8xbf16>, vector<8x128xbf16>, vector<256x128xf32> -> vector<256x128xf32>
    %69 = arith.addf %61, %68 : vector<256x128xf32>
    %70 = vector.extract_strided_slice %3 {offsets = [0, 2, 2, 0], sizes = [1, 16, 16, 8], strides = [1, 1, 1, 1]} : vector<1x18x18x8xf32> to vector<1x16x16x8xf32>
    %71 = vector.shape_cast %70 : vector<1x16x16x8xf32> to vector<16x16x8xf32>
    %72 = vector.shape_cast %71 : vector<16x16x8xf32> to vector<256x8xf32>
    %73 = arith.truncf %72 : vector<256x8xf32> to vector<256x8xbf16>
    %74 = vector.extract_strided_slice %4 {offsets = [8, 0, 0], sizes = [1, 8, 128], strides = [1, 1, 1]} : vector<9x8x128xbf16> to vector<1x8x128xbf16>
    %75 = vector.shape_cast %74 : vector<1x8x128xbf16> to vector<8x128xbf16>
    %cst_15 = arith.constant dense<0.000000e+00> : vector<256x128xf32>
    %76 = tpu.matmul %73, %75, %cst_15 {dimension_numbers = #tpu.dot_dimension_numbers<[1], [0], [0], [1], [0, 0, 1, 1], [], []>} : vector<256x8xbf16>, vector<8x128xbf16>, vector<256x128xf32> -> vector<256x128xf32>
    %77 = arith.addf %69, %76 : vector<256x128xf32>
    %cst_16 = arith.constant dense<0.000000e+00> : vector<128xf32>
    %78 = vector.multi_reduction <add>, %77, %cst_16 [0] : vector<256x128xf32> to vector<128xf32>
    %79 = vector.shape_cast %78 : vector<128xf32> to vector<1x128xf32>
    %80 = arith.mulf %77, %77 : vector<256x128xf32>
    %cst_17 = arith.constant dense<0.000000e+00> : vector<128xf32>
    %81 = vector.multi_reduction <add>, %80, %cst_17 [0] : vector<256x128xf32> to vector<128xf32>
    %82 = vector.shape_cast %81 : vector<128xf32> to vector<1x128xf32>
    %cst_18 = arith.constant 0.000000e+00 : f32
    %83 = vector.broadcast %cst_18 : f32 to vector<6x128xf32>
    %84 = tpu.concatenate %79, %82, %83 in 0 : vector<1x128xf32>, vector<1x128xf32>, vector<6x128xf32> -> vector<8x128xf32>
    %85 = vector.shape_cast %84 : vector<8x128xf32> to vector<1x8x128xf32>
    %c0_19 = arith.constant 0 : index
    %c0_20 = arith.constant 0 : index
    %c0_21 = arith.constant 0 : index
    %86 = vector.load %arg5[%c0_19, %c0_20, %c0_21] : memref<1x8x128xf32, #tpu.memory_space<vmem>>, vector<1x8x128xf32>
    tpu.vector_store %arg5[%c0_19, %c0_20, %c0_21], %85 {strides = array<i32>} : memref<1x8x128xf32, #tpu.memory_space<vmem>>, vector<1x8x128xf32>,
    %87 = vector.shape_cast %77 : vector<256x128xf32> to vector<1x16x16x128xf32>
    %88 = arith.truncf %87 : vector<1x16x16x128xf32> to vector<1x16x16x128xbf16>
    %c0_22 = arith.constant 0 : index
    %c0_23 = arith.constant 0 : index
    %c0_24 = arith.constant 0 : index
    %c0_25 = arith.constant 0 : index
    %89 = vector.load %arg4[%c0_22, %c0_23, %c0_24, %c0_25] : memref<1x16x16x128xbf16, #tpu.memory_space<vmem>>, vector<1x16x16x128xbf16>
    tpu.vector_store %arg4[%c0_22, %c0_23, %c0_24, %c0_25], %88 {strides = array<i32>} : memref<1x16x16x128xbf16, #tpu.memory_space<vmem>>, vector<1x16x16x128xbf16>,
    return
  }
  func.func @transform_0(%arg0: i32, %arg1: i32) -> (i32, i32, i32, i32) {
    %c0_i32 = arith.constant 0 : i32
    %c0_i32_0 = arith.constant 0 : i32
    %c0_i32_1 = arith.constant 0 : i32
    %c0_i32_2 = arith.constant 0 : i32
    return %arg0, %c0_i32, %c0_i32_0, %c0_i32_1 : i32, i32, i32, i32
  }
  func.func @transform_1(%arg0: i32, %arg1: i32) -> (i32, i32, i32) {
    %c0_i32 = arith.constant 0 : i32
    %c0_i32_0 = arith.constant 0 : i32
    %c0_i32_1 = arith.constant 0 : i32
    return %c0_i32, %c0_i32_0, %arg1 : i32, i32, i32
  }
  func.func @transform_2(%arg0: i32, %arg1: i32) -> (i32, i32, i32, i32) {
    %c0_i32 = arith.constant 0 : i32
    %c0_i32_0 = arith.constant 0 : i32
    %c0_i32_1 = arith.constant 0 : i32
    return %arg0, %c0_i32, %c0_i32_0, %arg1 : i32, i32, i32, i32
  }
  func.func @transform_3(%arg0: i32, %arg1: i32) -> (i32, i32, i32) {
    %c0_i32 = arith.constant 0 : i32
    %c0_i32_0 = arith.constant 0 : i32
    return %arg0, %c0_i32, %arg1 : i32, i32, i32
  }
}

module attributes {stable_mosaic.version = 11 : i64} {
  func.func @kernel(%arg0: i32, %arg1: i32, %arg2: memref<1x16x16x128xbf16, #tpu.memory_space<vmem>>, %arg3: memref<9x128x128xbf16, #tpu.memory_space<vmem>>, %arg4: memref<1x128xf32, #tpu.memory_space<vmem>>, %arg5: memref<1x128xf32, #tpu.memory_space<vmem>>, %arg6: memref<1x16x16x128xbf16, #tpu.memory_space<vmem>>, %arg7: memref<1x8x128xf32, #tpu.memory_space<vmem>>, %arg8: memref<1x18x18x128xf32, #tpu.memory_space<vmem>>) attributes {dimension_semantics = [#tpu.dimension_semantics<parallel>, #tpu.dimension_semantics<arbitrary>], iteration_bounds = array<i64: 2, 1>, scalar_prefetch = 0 : i64, scratch_operands = 1 : i64, tpu.core_type = #tpu.core_type<tc>, window_params = [{transform_indices = @transform_0, window_bounds = array<i64: 1, 16, 16, 128>}, {transform_indices = @transform_1, window_bounds = array<i64: 9, 128, 128>}, {pipeline_mode = #tpu.pipeline_mode<synchronous>, transform_indices = @transform_2, window_bounds = array<i64: 1, 128>}, {pipeline_mode = #tpu.pipeline_mode<synchronous>, transform_indices = @transform_3, window_bounds = array<i64: 1, 128>}, {transform_indices = @transform_4, window_bounds = array<i64: 1, 16, 16, 128>}, {transform_indices = @transform_5, window_bounds = array<i64: 1, 8, 128>}]} {
    %c0_i32 = arith.constant 0 : i32
    %0 = arith.cmpi eq, %arg1, %c0_i32 : i32
    %1 = arith.extui %0 : i1 to i32
    %c0_i32_0 = arith.constant 0 : i32
    %2 = arith.cmpi ne, %1, %c0_i32_0 : i32
    scf.if %2 {
      %c0_26 = arith.constant 0 : index
      %c0_27 = arith.constant 0 : index
      %c0_28 = arith.constant 0 : index
      %c0_29 = arith.constant 0 : index
      %90 = vector.load %arg2[%c0_26, %c0_27, %c0_28, %c0_29] : memref<1x16x16x128xbf16, #tpu.memory_space<vmem>>, vector<1x16x16x128xbf16>
      %91 = arith.extf %90 : vector<1x16x16x128xbf16> to vector<1x16x16x128xf32>
      %c0_30 = arith.constant 0 : index
      %c0_31 = arith.constant 0 : index
      %92 = vector.load %arg4[%c0_30, %c0_31] : memref<1x128xf32, #tpu.memory_space<vmem>>, vector<1x128xf32>
      %93 = vector.shape_cast %92 : vector<1x128xf32> to vector<1x1x1x128xf32>
      %c0_32 = arith.constant 0 : index
      %c0_33 = arith.constant 0 : index
      %94 = vector.load %arg5[%c0_32, %c0_33] : memref<1x128xf32, #tpu.memory_space<vmem>>, vector<1x128xf32>
      %95 = vector.shape_cast %94 : vector<1x128xf32> to vector<1x1x1x128xf32>
      %96 = vector.broadcast %93 : vector<1x1x1x128xf32> to vector<1x16x16x128xf32>
      %97 = arith.mulf %91, %96 : vector<1x16x16x128xf32>
      %98 = vector.broadcast %95 : vector<1x1x1x128xf32> to vector<1x16x16x128xf32>
      %99 = arith.addf %97, %98 : vector<1x16x16x128xf32>
      %cst_34 = arith.constant 0.000000e+00 : f32
      %100 = vector.broadcast %cst_34 : f32 to vector<1x16x16x128xf32>
      %101 = arith.maximumf %99, %100 : vector<1x16x16x128xf32>
      %cst_35 = arith.constant 0.000000e+00 : f32
      %102 = vector.broadcast %cst_35 : f32 to vector<1x18x18x128xf32>
      %c0_36 = arith.constant 0 : index
      %c0_37 = arith.constant 0 : index
      %c0_38 = arith.constant 0 : index
      %c0_39 = arith.constant 0 : index
      %103 = vector.load %arg8[%c0_36, %c0_37, %c0_38, %c0_39] : memref<1x18x18x128xf32, #tpu.memory_space<vmem>>, vector<1x18x18x128xf32>
      tpu.vector_store %arg8[%c0_36, %c0_37, %c0_38, %c0_39], %102 {strides = array<i32>} : memref<1x18x18x128xf32, #tpu.memory_space<vmem>>, vector<1x18x18x128xf32>,
      %104 = vector.shape_cast %101 : vector<1x16x16x128xf32> to vector<16x16x128xf32>
      %c0_40 = arith.constant 0 : index
      %c1 = arith.constant 1 : index
      %c1_41 = arith.constant 1 : index
      %c0_42 = arith.constant 0 : index
      %105 = vector.load %arg8[%c0_40, %c1, %c1_41, %c0_42] : memref<1x18x18x128xf32, #tpu.memory_space<vmem>>, vector<1x16x16x128xf32>
      %106 = vector.shape_cast %105 : vector<1x16x16x128xf32> to vector<16x16x128xf32>
      %107 = vector.shape_cast %104 : vector<16x16x128xf32> to vector<1x16x16x128xf32>
      tpu.vector_store %arg8[%c0_40, %c1, %c1_41, %c0_42], %107 {strides = array<i32>} : memref<1x18x18x128xf32, #tpu.memory_space<vmem>>, vector<1x16x16x128xf32>,
    } else {
    }
    %c0 = arith.constant 0 : index
    %c0_1 = arith.constant 0 : index
    %c0_2 = arith.constant 0 : index
    %c0_3 = arith.constant 0 : index
    %3 = vector.load %arg8[%c0, %c0_1, %c0_2, %c0_3] : memref<1x18x18x128xf32, #tpu.memory_space<vmem>>, vector<1x18x18x128xf32>
    %c0_4 = arith.constant 0 : index
    %c0_5 = arith.constant 0 : index
    %c0_6 = arith.constant 0 : index
    %4 = vector.load %arg3[%c0_4, %c0_5, %c0_6] : memref<9x128x128xbf16, #tpu.memory_space<vmem>>, vector<9x128x128xbf16>
    %cst = arith.constant 0.000000e+00 : f32
    %5 = vector.broadcast %cst : f32 to vector<256x128xf32>
    %6 = vector.extract_strided_slice %3 {offsets = [0, 0, 0, 0], sizes = [1, 16, 16, 128], strides = [1, 1, 1, 1]} : vector<1x18x18x128xf32> to vector<1x16x16x128xf32>
    %7 = vector.shape_cast %6 : vector<1x16x16x128xf32> to vector<16x16x128xf32>
    %8 = vector.shape_cast %7 : vector<16x16x128xf32> to vector<256x128xf32>
    %9 = arith.truncf %8 : vector<256x128xf32> to vector<256x128xbf16>
    %10 = vector.extract_strided_slice %4 {offsets = [0, 0, 0], sizes = [1, 128, 128], strides = [1, 1, 1]} : vector<9x128x128xbf16> to vector<1x128x128xbf16>
    %11 = vector.shape_cast %10 : vector<1x128x128xbf16> to vector<128x128xbf16>
    %cst_7 = arith.constant dense<0.000000e+00> : vector<256x128xf32>
    %12 = tpu.matmul %9, %11, %cst_7 {dimension_numbers = #tpu.dot_dimension_numbers<[1], [0], [0], [1], [0, 0, 1, 1], [], []>} : vector<256x128xbf16>, vector<128x128xbf16>, vector<256x128xf32> -> vector<256x128xf32>
    %13 = arith.addf %5, %12 : vector<256x128xf32>
    %14 = vector.extract_strided_slice %3 {offsets = [0, 0, 1, 0], sizes = [1, 16, 16, 128], strides = [1, 1, 1, 1]} : vector<1x18x18x128xf32> to vector<1x16x16x128xf32>
    %15 = vector.shape_cast %14 : vector<1x16x16x128xf32> to vector<16x16x128xf32>
    %16 = vector.shape_cast %15 : vector<16x16x128xf32> to vector<256x128xf32>
    %17 = arith.truncf %16 : vector<256x128xf32> to vector<256x128xbf16>
    %18 = vector.extract_strided_slice %4 {offsets = [1, 0, 0], sizes = [1, 128, 128], strides = [1, 1, 1]} : vector<9x128x128xbf16> to vector<1x128x128xbf16>
    %19 = vector.shape_cast %18 : vector<1x128x128xbf16> to vector<128x128xbf16>
    %cst_8 = arith.constant dense<0.000000e+00> : vector<256x128xf32>
    %20 = tpu.matmul %17, %19, %cst_8 {dimension_numbers = #tpu.dot_dimension_numbers<[1], [0], [0], [1], [0, 0, 1, 1], [], []>} : vector<256x128xbf16>, vector<128x128xbf16>, vector<256x128xf32> -> vector<256x128xf32>
    %21 = arith.addf %13, %20 : vector<256x128xf32>
    %22 = vector.extract_strided_slice %3 {offsets = [0, 0, 2, 0], sizes = [1, 16, 16, 128], strides = [1, 1, 1, 1]} : vector<1x18x18x128xf32> to vector<1x16x16x128xf32>
    %23 = vector.shape_cast %22 : vector<1x16x16x128xf32> to vector<16x16x128xf32>
    %24 = vector.shape_cast %23 : vector<16x16x128xf32> to vector<256x128xf32>
    %25 = arith.truncf %24 : vector<256x128xf32> to vector<256x128xbf16>
    %26 = vector.extract_strided_slice %4 {offsets = [2, 0, 0], sizes = [1, 128, 128], strides = [1, 1, 1]} : vector<9x128x128xbf16> to vector<1x128x128xbf16>
    %27 = vector.shape_cast %26 : vector<1x128x128xbf16> to vector<128x128xbf16>
    %cst_9 = arith.constant dense<0.000000e+00> : vector<256x128xf32>
    %28 = tpu.matmul %25, %27, %cst_9 {dimension_numbers = #tpu.dot_dimension_numbers<[1], [0], [0], [1], [0, 0, 1, 1], [], []>} : vector<256x128xbf16>, vector<128x128xbf16>, vector<256x128xf32> -> vector<256x128xf32>
    %29 = arith.addf %21, %28 : vector<256x128xf32>
    %30 = vector.extract_strided_slice %3 {offsets = [0, 1, 0, 0], sizes = [1, 16, 16, 128], strides = [1, 1, 1, 1]} : vector<1x18x18x128xf32> to vector<1x16x16x128xf32>
    %31 = vector.shape_cast %30 : vector<1x16x16x128xf32> to vector<16x16x128xf32>
    %32 = vector.shape_cast %31 : vector<16x16x128xf32> to vector<256x128xf32>
    %33 = arith.truncf %32 : vector<256x128xf32> to vector<256x128xbf16>
    %34 = vector.extract_strided_slice %4 {offsets = [3, 0, 0], sizes = [1, 128, 128], strides = [1, 1, 1]} : vector<9x128x128xbf16> to vector<1x128x128xbf16>
    %35 = vector.shape_cast %34 : vector<1x128x128xbf16> to vector<128x128xbf16>
    %cst_10 = arith.constant dense<0.000000e+00> : vector<256x128xf32>
    %36 = tpu.matmul %33, %35, %cst_10 {dimension_numbers = #tpu.dot_dimension_numbers<[1], [0], [0], [1], [0, 0, 1, 1], [], []>} : vector<256x128xbf16>, vector<128x128xbf16>, vector<256x128xf32> -> vector<256x128xf32>
    %37 = arith.addf %29, %36 : vector<256x128xf32>
    %38 = vector.extract_strided_slice %3 {offsets = [0, 1, 1, 0], sizes = [1, 16, 16, 128], strides = [1, 1, 1, 1]} : vector<1x18x18x128xf32> to vector<1x16x16x128xf32>
    %39 = vector.shape_cast %38 : vector<1x16x16x128xf32> to vector<16x16x128xf32>
    %40 = vector.shape_cast %39 : vector<16x16x128xf32> to vector<256x128xf32>
    %41 = arith.truncf %40 : vector<256x128xf32> to vector<256x128xbf16>
    %42 = vector.extract_strided_slice %4 {offsets = [4, 0, 0], sizes = [1, 128, 128], strides = [1, 1, 1]} : vector<9x128x128xbf16> to vector<1x128x128xbf16>
    %43 = vector.shape_cast %42 : vector<1x128x128xbf16> to vector<128x128xbf16>
    %cst_11 = arith.constant dense<0.000000e+00> : vector<256x128xf32>
    %44 = tpu.matmul %41, %43, %cst_11 {dimension_numbers = #tpu.dot_dimension_numbers<[1], [0], [0], [1], [0, 0, 1, 1], [], []>} : vector<256x128xbf16>, vector<128x128xbf16>, vector<256x128xf32> -> vector<256x128xf32>
    %45 = arith.addf %37, %44 : vector<256x128xf32>
    %46 = vector.extract_strided_slice %3 {offsets = [0, 1, 2, 0], sizes = [1, 16, 16, 128], strides = [1, 1, 1, 1]} : vector<1x18x18x128xf32> to vector<1x16x16x128xf32>
    %47 = vector.shape_cast %46 : vector<1x16x16x128xf32> to vector<16x16x128xf32>
    %48 = vector.shape_cast %47 : vector<16x16x128xf32> to vector<256x128xf32>
    %49 = arith.truncf %48 : vector<256x128xf32> to vector<256x128xbf16>
    %50 = vector.extract_strided_slice %4 {offsets = [5, 0, 0], sizes = [1, 128, 128], strides = [1, 1, 1]} : vector<9x128x128xbf16> to vector<1x128x128xbf16>
    %51 = vector.shape_cast %50 : vector<1x128x128xbf16> to vector<128x128xbf16>
    %cst_12 = arith.constant dense<0.000000e+00> : vector<256x128xf32>
    %52 = tpu.matmul %49, %51, %cst_12 {dimension_numbers = #tpu.dot_dimension_numbers<[1], [0], [0], [1], [0, 0, 1, 1], [], []>} : vector<256x128xbf16>, vector<128x128xbf16>, vector<256x128xf32> -> vector<256x128xf32>
    %53 = arith.addf %45, %52 : vector<256x128xf32>
    %54 = vector.extract_strided_slice %3 {offsets = [0, 2, 0, 0], sizes = [1, 16, 16, 128], strides = [1, 1, 1, 1]} : vector<1x18x18x128xf32> to vector<1x16x16x128xf32>
    %55 = vector.shape_cast %54 : vector<1x16x16x128xf32> to vector<16x16x128xf32>
    %56 = vector.shape_cast %55 : vector<16x16x128xf32> to vector<256x128xf32>
    %57 = arith.truncf %56 : vector<256x128xf32> to vector<256x128xbf16>
    %58 = vector.extract_strided_slice %4 {offsets = [6, 0, 0], sizes = [1, 128, 128], strides = [1, 1, 1]} : vector<9x128x128xbf16> to vector<1x128x128xbf16>
    %59 = vector.shape_cast %58 : vector<1x128x128xbf16> to vector<128x128xbf16>
    %cst_13 = arith.constant dense<0.000000e+00> : vector<256x128xf32>
    %60 = tpu.matmul %57, %59, %cst_13 {dimension_numbers = #tpu.dot_dimension_numbers<[1], [0], [0], [1], [0, 0, 1, 1], [], []>} : vector<256x128xbf16>, vector<128x128xbf16>, vector<256x128xf32> -> vector<256x128xf32>
    %61 = arith.addf %53, %60 : vector<256x128xf32>
    %62 = vector.extract_strided_slice %3 {offsets = [0, 2, 1, 0], sizes = [1, 16, 16, 128], strides = [1, 1, 1, 1]} : vector<1x18x18x128xf32> to vector<1x16x16x128xf32>
    %63 = vector.shape_cast %62 : vector<1x16x16x128xf32> to vector<16x16x128xf32>
    %64 = vector.shape_cast %63 : vector<16x16x128xf32> to vector<256x128xf32>
    %65 = arith.truncf %64 : vector<256x128xf32> to vector<256x128xbf16>
    %66 = vector.extract_strided_slice %4 {offsets = [7, 0, 0], sizes = [1, 128, 128], strides = [1, 1, 1]} : vector<9x128x128xbf16> to vector<1x128x128xbf16>
    %67 = vector.shape_cast %66 : vector<1x128x128xbf16> to vector<128x128xbf16>
    %cst_14 = arith.constant dense<0.000000e+00> : vector<256x128xf32>
    %68 = tpu.matmul %65, %67, %cst_14 {dimension_numbers = #tpu.dot_dimension_numbers<[1], [0], [0], [1], [0, 0, 1, 1], [], []>} : vector<256x128xbf16>, vector<128x128xbf16>, vector<256x128xf32> -> vector<256x128xf32>
    %69 = arith.addf %61, %68 : vector<256x128xf32>
    %70 = vector.extract_strided_slice %3 {offsets = [0, 2, 2, 0], sizes = [1, 16, 16, 128], strides = [1, 1, 1, 1]} : vector<1x18x18x128xf32> to vector<1x16x16x128xf32>
    %71 = vector.shape_cast %70 : vector<1x16x16x128xf32> to vector<16x16x128xf32>
    %72 = vector.shape_cast %71 : vector<16x16x128xf32> to vector<256x128xf32>
    %73 = arith.truncf %72 : vector<256x128xf32> to vector<256x128xbf16>
    %74 = vector.extract_strided_slice %4 {offsets = [8, 0, 0], sizes = [1, 128, 128], strides = [1, 1, 1]} : vector<9x128x128xbf16> to vector<1x128x128xbf16>
    %75 = vector.shape_cast %74 : vector<1x128x128xbf16> to vector<128x128xbf16>
    %cst_15 = arith.constant dense<0.000000e+00> : vector<256x128xf32>
    %76 = tpu.matmul %73, %75, %cst_15 {dimension_numbers = #tpu.dot_dimension_numbers<[1], [0], [0], [1], [0, 0, 1, 1], [], []>} : vector<256x128xbf16>, vector<128x128xbf16>, vector<256x128xf32> -> vector<256x128xf32>
    %77 = arith.addf %69, %76 : vector<256x128xf32>
    %cst_16 = arith.constant dense<0.000000e+00> : vector<128xf32>
    %78 = vector.multi_reduction <add>, %77, %cst_16 [0] : vector<256x128xf32> to vector<128xf32>
    %79 = vector.shape_cast %78 : vector<128xf32> to vector<1x128xf32>
    %80 = arith.mulf %77, %77 : vector<256x128xf32>
    %cst_17 = arith.constant dense<0.000000e+00> : vector<128xf32>
    %81 = vector.multi_reduction <add>, %80, %cst_17 [0] : vector<256x128xf32> to vector<128xf32>
    %82 = vector.shape_cast %81 : vector<128xf32> to vector<1x128xf32>
    %cst_18 = arith.constant 0.000000e+00 : f32
    %83 = vector.broadcast %cst_18 : f32 to vector<6x128xf32>
    %84 = tpu.concatenate %79, %82, %83 in 0 : vector<1x128xf32>, vector<1x128xf32>, vector<6x128xf32> -> vector<8x128xf32>
    %85 = vector.shape_cast %84 : vector<8x128xf32> to vector<1x8x128xf32>
    %c0_19 = arith.constant 0 : index
    %c0_20 = arith.constant 0 : index
    %c0_21 = arith.constant 0 : index
    %86 = vector.load %arg7[%c0_19, %c0_20, %c0_21] : memref<1x8x128xf32, #tpu.memory_space<vmem>>, vector<1x8x128xf32>
    tpu.vector_store %arg7[%c0_19, %c0_20, %c0_21], %85 {strides = array<i32>} : memref<1x8x128xf32, #tpu.memory_space<vmem>>, vector<1x8x128xf32>,
    %87 = vector.shape_cast %77 : vector<256x128xf32> to vector<1x16x16x128xf32>
    %88 = arith.truncf %87 : vector<1x16x16x128xf32> to vector<1x16x16x128xbf16>
    %c0_22 = arith.constant 0 : index
    %c0_23 = arith.constant 0 : index
    %c0_24 = arith.constant 0 : index
    %c0_25 = arith.constant 0 : index
    %89 = vector.load %arg6[%c0_22, %c0_23, %c0_24, %c0_25] : memref<1x16x16x128xbf16, #tpu.memory_space<vmem>>, vector<1x16x16x128xbf16>
    tpu.vector_store %arg6[%c0_22, %c0_23, %c0_24, %c0_25], %88 {strides = array<i32>} : memref<1x16x16x128xbf16, #tpu.memory_space<vmem>>, vector<1x16x16x128xbf16>,
    return
  }
  func.func @transform_0(%arg0: i32, %arg1: i32) -> (i32, i32, i32, i32) {
    %c0_i32 = arith.constant 0 : i32
    %c0_i32_0 = arith.constant 0 : i32
    %c0_i32_1 = arith.constant 0 : i32
    %c0_i32_2 = arith.constant 0 : i32
    return %arg0, %c0_i32, %c0_i32_0, %c0_i32_1 : i32, i32, i32, i32
  }
  func.func @transform_1(%arg0: i32, %arg1: i32) -> (i32, i32, i32) {
    %c0_i32 = arith.constant 0 : i32
    %c0_i32_0 = arith.constant 0 : i32
    %c0_i32_1 = arith.constant 0 : i32
    return %c0_i32, %c0_i32_0, %arg1 : i32, i32, i32
  }
  func.func @transform_2(%arg0: i32, %arg1: i32) -> (i32, i32) {
    %c0_i32 = arith.constant 0 : i32
    %c0_i32_0 = arith.constant 0 : i32
    %c0_i32_1 = arith.constant 0 : i32
    return %c0_i32, %c0_i32_0 : i32, i32
  }
  func.func @transform_3(%arg0: i32, %arg1: i32) -> (i32, i32) {
    %c0_i32 = arith.constant 0 : i32
    %c0_i32_0 = arith.constant 0 : i32
    %c0_i32_1 = arith.constant 0 : i32
    return %c0_i32, %c0_i32_0 : i32, i32
  }
  func.func @transform_4(%arg0: i32, %arg1: i32) -> (i32, i32, i32, i32) {
    %c0_i32 = arith.constant 0 : i32
    %c0_i32_0 = arith.constant 0 : i32
    %c0_i32_1 = arith.constant 0 : i32
    return %arg0, %c0_i32, %c0_i32_0, %arg1 : i32, i32, i32, i32
  }
  func.func @transform_5(%arg0: i32, %arg1: i32) -> (i32, i32, i32) {
    %c0_i32 = arith.constant 0 : i32
    %c0_i32_0 = arith.constant 0 : i32
    return %arg0, %c0_i32, %arg1 : i32, i32, i32
  }
}

module attributes {stable_mosaic.version = 11 : i64} {
  func.func @_bn_relu_kernel(%arg0: i32, %arg1: i32, %arg2: memref<1x16x16x128xbf16, #tpu.memory_space<vmem>>, %arg3: memref<1x128xf32, #tpu.memory_space<vmem>>, %arg4: memref<1x128xf32, #tpu.memory_space<vmem>>, %arg5: memref<1x16x16x128xf32, #tpu.memory_space<vmem>>) attributes {dimension_semantics = [#tpu.dimension_semantics<parallel>, #tpu.dimension_semantics<parallel>], iteration_bounds = array<i64: 2, 1>, scalar_prefetch = 0 : i64, scratch_operands = 0 : i64, tpu.core_type = #tpu.core_type<tc>, window_params = [{transform_indices = @transform_0, window_bounds = array<i64: 1, 16, 16, 128>}, {transform_indices = @transform_1, window_bounds = array<i64: 1, 128>}, {transform_indices = @transform_2, window_bounds = array<i64: 1, 128>}, {transform_indices = @transform_3, window_bounds = array<i64: 1, 16, 16, 128>}]} {
    %c0 = arith.constant 0 : index
    %c0_0 = arith.constant 0 : index
    %c0_1 = arith.constant 0 : index
    %c0_2 = arith.constant 0 : index
    %0 = vector.load %arg2[%c0, %c0_0, %c0_1, %c0_2] : memref<1x16x16x128xbf16, #tpu.memory_space<vmem>>, vector<1x16x16x128xbf16>
    %1 = arith.extf %0 : vector<1x16x16x128xbf16> to vector<1x16x16x128xf32>
    %c0_3 = arith.constant 0 : index
    %c0_4 = arith.constant 0 : index
    %2 = vector.load %arg3[%c0_3, %c0_4] : memref<1x128xf32, #tpu.memory_space<vmem>>, vector<1x128xf32>
    %3 = vector.shape_cast %2 : vector<1x128xf32> to vector<1x1x1x128xf32>
    %c0_5 = arith.constant 0 : index
    %c0_6 = arith.constant 0 : index
    %4 = vector.load %arg4[%c0_5, %c0_6] : memref<1x128xf32, #tpu.memory_space<vmem>>, vector<1x128xf32>
    %5 = vector.shape_cast %4 : vector<1x128xf32> to vector<1x1x1x128xf32>
    %6 = vector.broadcast %3 : vector<1x1x1x128xf32> to vector<1x16x16x128xf32>
    %7 = arith.mulf %1, %6 : vector<1x16x16x128xf32>
    %8 = vector.broadcast %5 : vector<1x1x1x128xf32> to vector<1x16x16x128xf32>
    %9 = arith.addf %7, %8 : vector<1x16x16x128xf32>
    %cst = arith.constant 0.000000e+00 : f32
    %10 = vector.broadcast %cst : f32 to vector<1x16x16x128xf32>
    %11 = arith.maximumf %9, %10 : vector<1x16x16x128xf32>
    %c0_7 = arith.constant 0 : index
    %c0_8 = arith.constant 0 : index
    %c0_9 = arith.constant 0 : index
    %c0_10 = arith.constant 0 : index
    %12 = vector.load %arg5[%c0_7, %c0_8, %c0_9, %c0_10] : memref<1x16x16x128xf32, #tpu.memory_space<vmem>>, vector<1x16x16x128xf32>
    tpu.vector_store %arg5[%c0_7, %c0_8, %c0_9, %c0_10], %11 {strides = array<i32>} : memref<1x16x16x128xf32, #tpu.memory_space<vmem>>, vector<1x16x16x128xf32>,
    return
  }
  func.func @transform_0(%arg0: i32, %arg1: i32) -> (i32, i32, i32, i32) {
    %c0_i32 = arith.constant 0 : i32
    %c0_i32_0 = arith.constant 0 : i32
    %c0_i32_1 = arith.constant 0 : i32
    return %arg0, %c0_i32, %c0_i32_0, %arg1 : i32, i32, i32, i32
  }
  func.func @transform_1(%arg0: i32, %arg1: i32) -> (i32, i32) {
    %c0_i32 = arith.constant 0 : i32
    %c0_i32_0 = arith.constant 0 : i32
    return %c0_i32, %arg1 : i32, i32
  }
  func.func @transform_2(%arg0: i32, %arg1: i32) -> (i32, i32) {
    %c0_i32 = arith.constant 0 : i32
    %c0_i32_0 = arith.constant 0 : i32
    return %c0_i32, %arg1 : i32, i32
  }
  func.func @transform_3(%arg0: i32, %arg1: i32) -> (i32, i32, i32, i32) {
    %c0_i32 = arith.constant 0 : i32
    %c0_i32_0 = arith.constant 0 : i32
    %c0_i32_1 = arith.constant 0 : i32
    return %arg0, %c0_i32, %c0_i32_0, %arg1 : i32, i32, i32, i32
  }
}

</mosaic_0001>

<llo_original>
// kernel: double_conv_forward.5
$region0: #{double_conv_forward.5}
  #allocation0 [shape = 'u32[]', space=smem, size = 0x4, offset = 0x4, fixed_abs, tag = 'smem constant byte address 0x4 - core index']
  #allocation1 [shape = 'u32[144,128]{1,0:T(1,128)}', space=vmem, size = 0x12000, scoped, tag = 'internal scratch']
  %s0 = inlined_call_operand.vmem [shape: bf16[2,16,16,128], index: 0, kind: input, shape index: {}]
  %s1 = inlined_call_operand.vmem [shape: f32[1,128], index: 1, kind: input, shape index: {}]
  %s2 = inlined_call_operand.vmem [shape: f32[1,128], index: 2, kind: input, shape index: {}]
  %s3 = inlined_call_operand.vmem [shape: f32[2,16,16,128], index: 3, kind: output, shape index: {}]
  %s4 = sld [smem:[#allocation0]]
  $region45: #{double_conv_forward.5} parent=0
    _
  %s6 = ssub.s32 1, %s4
  %s7 = scalar_select 0, %s6, %s4
  loop: start=0, step=1, limit=4
  $region2: #{double_conv_forward.5} parent=0 // loop_pre_header
    _
  $region3: #{double_conv_forward.5} parent=0 // loop_header
    %s9 = sphi 0, %s13
    %p10 = scmp.ge.s32.totalorder %s9, 4
    %s16 = sphi 0, %s28
    %s17 = sphi 0, %s24
    %s18 = sphi 0, %s16
    %s19 = sphi 0, %s17
    %s20 = sphi 0, %s18
    %s21 = sphi 0, %s19
    %s33 = sphi 0, %s35
    %s36 = sphi 0, %s33
    %s37 = sphi 0, %s36
    %s53 = sphi 0, %s37
    %s59 = sphi 0, %s61
    %s62 = sphi 0, %s59
    %s63 = sphi 0, %s62
    %s79 = sphi 0, %s63
    %s85 = sphi 0, %s87
    %s88 = sphi 0, %s85
    %s89 = sphi 0, %s88
    %s105 = sphi 0, %s89
    %s113 = sphi 0, %s115
    %s116 = sphi 0, %s113
    %s117 = sphi 0, %s116
    %s133 = sphi 0, %s117
  $region4: #{double_conv_forward.5} parent=0 // loop_header_branch
    %12 = sbr.rel (%p10) target = $region8
  $region5: #{double_conv_forward.5} parent=0 // loop_body
    %s14 = ssub.s32 %s9, 1
    %s15 = ssub.s32 %s9, 2
    %s22 = sadd.s32 1, %s17
    %p23 = scmp.ge.s32.totalorder %s22, 1
    %s24 = scalar_select %p23, 0, %s22
    %s25 = sadd.s32 1, %s16
    %s26 = scalar_select %p23, %s25, %s16
    %p27 = scmp.ge.s32.totalorder %s26, 2
    %s28 = scalar_select %p27, 0, %s26
    %s29 = ssub.s32 %s16, %s28
    %s30 = ssub.s32 %s17, %s24
    %s31 = sor.u32 %s29, %s30
    %p32 = scmp.eq.s32.totalorder %s31, 0
    %s34 = sadd.s32 %s33, 1
    %s35 = scalar_select %p32, %s33, %s34
    %p38 = pneg %p32
    %p39 = scmp.eq.s32.totalorder %s9, 1
    %p40 = por %p38, %p39
    %p41 = scmp.ne.s32.totalorder %s33, %s36
    %p42 = scmp.eq.s32.totalorder %s9, 0
    %p43 = por %p41, %p42
    %p44 = scmp.ne.s32.totalorder %s33, %s36
    %p45 = scmp.eq.s32.totalorder %s14, 1
    %p46 = por %p44, %p45
    %p47 = scmp.ne.s32.totalorder %s36, %s37
    %p48 = scmp.eq.s32.totalorder %s14, 0
    %p49 = por %p47, %p48
    %p50 = scmp.ne.s32.totalorder %s36, %s37
    %p51 = scmp.eq.s32.totalorder %s15, 1
    %p52 = por %p50, %p51
    %p54 = scmp.ne.s32.totalorder %s37, %s53
    %p55 = scmp.eq.s32.totalorder %s15, 0
    %p56 = por %p54, %p55
    %s57 = ssub.s32 %s17, %s24
    %p58 = scmp.eq.s32.totalorder %s57, 0
    %s60 = sadd.s32 %s59, 1
    %s61 = scalar_select %p58, %s59, %s60
    %p64 = pneg %p58
    %p65 = scmp.eq.s32.totalorder %s9, 1
    %p66 = por %p64, %p65
    %p67 = scmp.ne.s32.totalorder %s59, %s62
    %p68 = scmp.eq.s32.totalorder %s9, 0
    %p69 = por %p67, %p68
    %p70 = scmp.ne.s32.totalorder %s59, %s62
    %p71 = scmp.eq.s32.totalorder %s14, 1
    %p72 = por %p70, %p71
    %p73 = scmp.ne.s32.totalorder %s62, %s63
    %p74 = scmp.eq.s32.totalorder %s14, 0
    %p75 = por %p73, %p74
    %p76 = scmp.ne.s32.totalorder %s62, %s63
    %p77 = scmp.eq.s32.totalorder %s15, 1
    %p78 = por %p76, %p77
    %p80 = scmp.ne.s32.totalorder %s63, %s79
    %p81 = scmp.eq.s32.totalorder %s15, 0
    %p82 = por %p80, %p81
    %s83 = ssub.s32 %s17, %s24
    %p84 = scmp.eq.s32.totalorder %s83, 0
    %s86 = sadd.s32 %s85, 1
    %s87 = scalar_select %p84, %s85, %s86
    %p90 = pneg %p84
    %p91 = scmp.eq.s32.totalorder %s9, 1
    %p92 = por %p90, %p91
    %p93 = scmp.ne.s32.totalorder %s85, %s88
    %p94 = scmp.eq.s32.totalorder %s9, 0
    %p95 = por %p93, %p94
    %p96 = scmp.ne.s32.totalorder %s85, %s88
    %p97 = scmp.eq.s32.totalorder %s14, 1
    %p98 = por %p96, %p97
    %p99 = scmp.ne.s32.totalorder %s88, %s89
    %p100 = scmp.eq.s32.totalorder %s14, 0
    %p101 = por %p99, %p100
    %p102 = scmp.ne.s32.totalorder %s88, %s89
    %p103 = scmp.eq.s32.totalorder %s15, 1
    %p104 = por %p102, %p103
    %p106 = scmp.ne.s32.totalorder %s89, %s105
    %p107 = scmp.eq.s32.totalorder %s15, 0
    %p108 = por %p106, %p107
    %s109 = ssub.s32 %s16, %s28
    %s110 = ssub.s32 %s17, %s24
    %s111 = sor.u32 %s109, %s110
    %p112 = scmp.eq.s32.totalorder %s111, 0
    %s114 = sadd.s32 %s113, 1
    %s115 = scalar_select %p112, %s113, %s114
    %p118 = pneg %p112
    %p119 = scmp.eq.s32.totalorder %s9, 1
    %p120 = por %p118, %p119
    %p121 = scmp.ne.s32.totalorder %s113, %s116
    %p122 = scmp.eq.s32.totalorder %s9, 0
    %p123 = por %p121, %p122
    %p124 = scmp.ne.s32.totalorder %s113, %s116
    %p125 = scmp.eq.s32.totalorder %s14, 1
    %p126 = por %p124, %p125
    %p127 = scmp.ne.s32.totalorder %s116, %s117
    %p128 = scmp.eq.s32.totalorder %s14, 0
    %p129 = por %p127, %p128
    %p130 = scmp.ne.s32.totalorder %s116, %s117
    %p131 = scmp.eq.s32.totalorder %s15, 1
    %p132 = por %p130, %p131
    %p134 = scmp.ne.s32.totalorder %s117, %s133
    %p135 = scmp.eq.s32.totalorder %s15, 0
    %p136 = por %p134, %p135
    %p137 = scmp.le.s32.totalorder 1, %s9
    %p138 = scmp.lt.s32.totalorder %s9, 3
    %p139 = pnand %p137, %p138
    %p140 = pneg %p139
    // Predicated region
    $region9: #{double_conv_forward.5} parent=5 // pred_check
      _
    $region10: #{double_conv_forward.5} parent=5 // pred_check_branch
      %142 = sbr.rel (%p139) target = $region12
    $region11: #{double_conv_forward.5} parent=5 // pred_region
      %s143 = ssub.s32 %s9, 1
      // Predicated region
      $region13: #{double_conv_forward.5} parent=11 // pred_check
        %p144 = pneg %p75
      $region14: #{double_conv_forward.5} parent=11 // pred_check_branch
        %146 = sbr.rel (%p144) target = $region16
      $region15: #{double_conv_forward.5} parent=11 // pred_region
        %p147 = scmp.lt.s32.totalorder %s19, 0
        %s148 = scalar_select %p147, %s19, 0
        %s149 = scalar_lea.vmem %s1, %s148
      $region16: #{double_conv_forward.5} parent=11 // pred_fallthru
        _
      // Predicated region
      $region17: #{double_conv_forward.5} parent=11 // pred_check
        %p150 = pneg %p101
      $region18: #{double_conv_forward.5} parent=11 // pred_check_branch
        %152 = sbr.rel (%p150) target = $region20
      $region19: #{double_conv_forward.5} parent=11 // pred_region
        %p153 = scmp.lt.s32.totalorder %s19, 0
        %s154 = scalar_select %p153, %s19, 0
        %s155 = scalar_lea.vmem %s2, %s154
      $region20: #{double_conv_forward.5} parent=11 // pred_fallthru
        _
    $region12: #{double_conv_forward.5} parent=5 // pred_fallthru
      _
    %p156 = scmp.lt.s32.totalorder %s9, 2
    // Predicated region
    $region21: #{double_conv_forward.5} parent=5 // pred_check
      %p157 = pneg %p156
    $region22: #{double_conv_forward.5} parent=5 // pred_check_branch
      %159 = sbr.rel (%p157) target = $region24
    $region23: #{double_conv_forward.5} parent=5 // pred_region
      // Predicated region
      $region25: #{double_conv_forward.5} parent=23 // pred_check
        %p160 = pneg %p43
      $region26: #{double_conv_forward.5} parent=23 // pred_check_branch
        %162 = sbr.rel (%p160) target = $region28
      $region27: #{double_conv_forward.5} parent=23 // pred_region
        %p163 = scmp.lt.s32.totalorder %s16, 1
        %s164 = scalar_select %p163, %s16, 1
        %p165 = scmp.lt.s32.totalorder %s17, 0
        %s166 = scalar_select %p165, %s17, 0
        %s167 = smul.addr %s164, 32
        %s168 = sadd.s32 %s166, %s167
        %s169 = smul.addr %s168, 4
        %s170 = scalar_lea.vmem %s0, %s169
      $region28: #{double_conv_forward.5} parent=23 // pred_fallthru
        _
    $region24: #{double_conv_forward.5} parent=5 // pred_fallthru
      _
    %p171 = scmp.le.s32.totalorder 1, %s9
    %p172 = scmp.lt.s32.totalorder %s9, 3
    %p173 = pnand %p171, %p172
    %p174 = pneg %p173
    // Predicated region
    $region29: #{double_conv_forward.5} parent=5 // pred_check
      _
    $region30: #{double_conv_forward.5} parent=5 // pred_check_branch
      %176 = sbr.rel (%p173) target = $region32
    $region31: #{double_conv_forward.5} parent=5 // pred_region
      %s177 = ssub.s32 %s9, 1
      %p178 = scmp.lt.s32.totalorder %s18, 1
      %s179 = scalar_select %p178, %s18, 1
      %p180 = scmp.lt.s32.totalorder %s19, 0
      %s181 = scalar_select %p180, %s19, 0
      %s182 = smul.addr %s179, 32
      %s183 = sadd.s32 %s181, %s182
      %s184 = smul.addr %s183, 4
      %s185 = scalar_lea.vmem %s0, %s184
      %p186 = pneg %p49
      %p187 = pneg %p46
      %p188 = scmp.lt.s32.totalorder %s19, 0
      %s189 = scalar_select %p188, %s19, 0
      %s190 = scalar_lea.vmem %s1, %s189
      %p191 = pneg %p75
      %p192 = pneg %p72
      %p193 = scmp.lt.s32.totalorder %s19, 0
      %s194 = scalar_select %p193, %s19, 0
      %s195 = scalar_lea.vmem %s2, %s194
      %p196 = pneg %p101
      %p197 = pneg %p98
      %p198 = pneg %p129
      %p199 = pneg %p126
      %p200 = scmp.lt.s32.totalorder %s18, 1
      %s201 = scalar_select %p200, %s18, 1
      %p202 = scmp.lt.s32.totalorder %s19, 0
      %s203 = scalar_select %p202, %s19, 0
      %s204 = smul.addr %s201, 32
      %s205 = sadd.s32 %s203, %s204
      %s206 = smul.addr %s205, 8
      %s207 = scalar_lea.vmem %s3, %s206
      %p208 = scmp.lt.s32.totalorder %s18, 1
      %s209 = scalar_select %p208, %s18, 1
      %p210 = scmp.lt.s32.totalorder %s19, 0
      %s211 = scalar_select %p210, %s19, 0
      %s212 = smul.addr %s209, 32
      %s213 = sadd.s32 %s211, %s212
      %s214 = smul.addr %s213, 4
      %s215 = scalar_lea.vmem %s0, %s214
      %p216 = scmp.lt.s32.totalorder %s19, 0
      %s217 = scalar_select %p216, %s19, 0
      %s218 = scalar_lea.vmem %s1, %s217
      %p219 = scmp.lt.s32.totalorder %s19, 0
      %s220 = scalar_select %p219, %s19, 0
      %s221 = scalar_lea.vmem %s2, %s220
      %p222 = scmp.lt.s32.totalorder %s18, 1
      %s223 = scalar_select %p222, %s18, 1
      %p224 = scmp.lt.s32.totalorder %s19, 0
      %s225 = scalar_select %p224, %s19, 0
      %s226 = smul.addr %s223, 32
      %s227 = sadd.s32 %s225, %s226
      %s228 = smul.addr %s227, 8
      %s229 = scalar_lea.vmem %s3, %s228
      %v230 = vld [vmem:[%s215] sm:$0xf]
      %v231 = vld [vmem:[%s215 + $0x4] sm:$0xf]
      %v232 = vld [vmem:[%s215 + $0x8] sm:$0xf]
      %v233 = vld [vmem:[%s215 + $0xc] sm:$0xf]
      %v234 = vld [vmem:[%s215 + $0x10] sm:$0xf]
      %v235 = vld [vmem:[%s215 + $0x14] sm:$0xf]
      %v236 = vld [vmem:[%s215 + $0x18] sm:$0xf]
      %v237 = vld [vmem:[%s215 + $0x1c] sm:$0xf]
      %v238 = vld [vmem:[%s215 + $0x20] sm:$0xf]
      %v239 = vld [vmem:[%s215 + $0x24] sm:$0xf]
      %v240 = vld [vmem:[%s215 + $0x28] sm:$0xf]
      %v241 = vld [vmem:[%s215 + $0x2c] sm:$0xf]
      %v242 = vld [vmem:[%s215 + $0x30] sm:$0xf]
      %v243 = vld [vmem:[%s215 + $0x34] sm:$0xf]
      %v244 = vld [vmem:[%s215 + $0x38] sm:$0xf]
      %v245 = vld [vmem:[%s215 + $0x3c] sm:$0xf]
      %v246 = vld [vmem:[%s215 + $0x40] sm:$0xf]
      %v247 = vld [vmem:[%s215 + $0x44] sm:$0xf]
      %v248 = vld [vmem:[%s215 + $0x48] sm:$0xf]
      %v249 = vld [vmem:[%s215 + $0x4c] sm:$0xf]
      %v250 = vld [vmem:[%s215 + $0x50] sm:$0xf]
      %v251 = vld [vmem:[%s215 + $0x54] sm:$0xf]
      %v252 = vld [vmem:[%s215 + $0x58] sm:$0xf]
      %v253 = vld [vmem:[%s215 + $0x5c] sm:$0xf]
      %v254 = vld [vmem:[%s215 + $0x60] sm:$0xf]
      %v255 = vld [vmem:[%s215 + $0x64] sm:$0xf]
      %v256 = vld [vmem:[%s215 + $0x68] sm:$0xf]
      %v257 = vld [vmem:[%s215 + $0x6c] sm:$0xf]
      %v258 = vld [vmem:[%s215 + $0x70] sm:$0xf]
      %v259 = vld [vmem:[%s215 + $0x74] sm:$0xf]
      %v260 = vld [vmem:[%s215 + $0x78] sm:$0xf]
      %v261 = vld [vmem:[%s215 + $0x7c] sm:$0xf]
      %v262 = vunpack.c.l.bf16 %v230
      %v263 = vunpack.c.l.bf16 %v231
      %v264 = vunpack.c.l.bf16 %v232
      %v265 = vunpack.c.l.bf16 %v233
      %v266 = vunpack.c.l.bf16 %v234
      %v267 = vunpack.c.l.bf16 %v235
      %v268 = vunpack.c.l.bf16 %v236
      %v269 = vunpack.c.l.bf16 %v237
      %v270 = vunpack.c.l.bf16 %v238
      %v271 = vunpack.c.l.bf16 %v239
      %v272 = vunpack.c.l.bf16 %v240
      %v273 = vunpack.c.l.bf16 %v241
      %v274 = vunpack.c.l.bf16 %v242
      %v275 = vunpack.c.l.bf16 %v243
      %v276 = vunpack.c.l.bf16 %v244
      %v277 = vunpack.c.l.bf16 %v245
      %v278 = vunpack.c.l.bf16 %v246
      %v279 = vunpack.c.l.bf16 %v247
      %v280 = vunpack.c.l.bf16 %v248
      %v281 = vunpack.c.l.bf16 %v249
      %v282 = vunpack.c.l.bf16 %v250
      %v283 = vunpack.c.l.bf16 %v251
      %v284 = vunpack.c.l.bf16 %v252
      %v285 = vunpack.c.l.bf16 %v253
      %v286 = vunpack.c.l.bf16 %v254
      %v287 = vunpack.c.l.bf16 %v255
      %v288 = vunpack.c.l.bf16 %v256
      %v289 = vunpack.c.l.bf16 %v257
      %v290 = vunpack.c.l.bf16 %v258
      %v291 = vunpack.c.l.bf16 %v259
      %v292 = vunpack.c.l.bf16 %v260
      %v293 = vunpack.c.l.bf16 %v261
      %v294 = vld [vmem:[%s218] sm:$0x1]
      %v295 = vld [vmem:[%s221] sm:$0x1]
      %v297 = vlaneseq
      %v298 = vshrl.u32 %v297, 7
      %v299 = vsub.s32 0, %v298
      %v300 = vrot.slane %v294, %v299
      %v302 = vmul.f32 %v262, %v300
      %v303 = vmul.f32 %v263, %v300
      %v304 = vmul.f32 %v264, %v300
      %v305 = vmul.f32 %v265, %v300
      %v306 = vmul.f32 %v266, %v300
      %v307 = vmul.f32 %v267, %v300
      %v308 = vmul.f32 %v268, %v300
      %v309 = vmul.f32 %v269, %v300
      %v310 = vmul.f32 %v270, %v300
      %v311 = vmul.f32 %v271, %v300
      %v312 = vmul.f32 %v272, %v300
      %v313 = vmul.f32 %v273, %v300
      %v314 = vmul.f32 %v274, %v300
      %v315 = vmul.f32 %v275, %v300
      %v316 = vmul.f32 %v276, %v300
      %v317 = vmul.f32 %v277, %v300
      %v318 = vmul.f32 %v278, %v300
      %v319 = vmul.f32 %v279, %v300
      %v320 = vmul.f32 %v280, %v300
      %v321 = vmul.f32 %v281, %v300
      %v322 = vmul.f32 %v282, %v300
      %v323 = vmul.f32 %v283, %v300
      %v324 = vmul.f32 %v284, %v300
      %v325 = vmul.f32 %v285, %v300
      %v326 = vmul.f32 %v286, %v300
      %v327 = vmul.f32 %v287, %v300
      %v328 = vmul.f32 %v288, %v300
      %v329 = vmul.f32 %v289, %v300
      %v330 = vmul.f32 %v290, %v300
      %v331 = vmul.f32 %v291, %v300
      %v332 = vmul.f32 %v292, %v300
      %v333 = vmul.f32 %v293, %v300
      %v335 = vlaneseq
      %v336 = vshrl.u32 %v335, 7
      %v337 = vsub.s32 0, %v336
      %v338 = vrot.slane %v295, %v337
      %v340 = vadd.f32 %v302, %v338
      %v341 = vadd.f32 %v303, %v338
      %v342 = vadd.f32 %v304, %v338
      %v343 = vadd.f32 %v305, %v338
      %v344 = vadd.f32 %v306, %v338
      %v345 = vadd.f32 %v307, %v338
      %v346 = vadd.f32 %v308, %v338
      %v347 = vadd.f32 %v309, %v338
      %v348 = vadd.f32 %v310, %v338
      %v349 = vadd.f32 %v311, %v338
      %v350 = vadd.f32 %v312, %v338
      %v351 = vadd.f32 %v313, %v338
      %v352 = vadd.f32 %v314, %v338
      %v353 = vadd.f32 %v315, %v338
      %v354 = vadd.f32 %v316, %v338
      %v355 = vadd.f32 %v317, %v338
      %v356 = vadd.f32 %v318, %v338
      %v357 = vadd.f32 %v319, %v338
      %v358 = vadd.f32 %v320, %v338
      %v359 = vadd.f32 %v321, %v338
      %v360 = vadd.f32 %v322, %v338
      %v361 = vadd.f32 %v323, %v338
      %v362 = vadd.f32 %v324, %v338
      %v363 = vadd.f32 %v325, %v338
      %v364 = vadd.f32 %v326, %v338
      %v365 = vadd.f32 %v327, %v338
      %v366 = vadd.f32 %v328, %v338
      %v367 = vadd.f32 %v329, %v338
      %v368 = vadd.f32 %v330, %v338
      %v369 = vadd.f32 %v331, %v338
      %v370 = vadd.f32 %v332, %v338
      %v371 = vadd.f32 %v333, %v338
      %v372 = vmax.f32 %v340, 0.0
      %v373 = vmax.f32 %v341, 0.0
      %v374 = vmax.f32 %v342, 0.0
      %v375 = vmax.f32 %v343, 0.0
      %v376 = vmax.f32 %v344, 0.0
      %v377 = vmax.f32 %v345, 0.0
      %v378 = vmax.f32 %v346, 0.0
      %v379 = vmax.f32 %v347, 0.0
      %v380 = vmax.f32 %v348, 0.0
      %v381 = vmax.f32 %v349, 0.0
      %v382 = vmax.f32 %v350, 0.0
      %v383 = vmax.f32 %v351, 0.0
      %v384 = vmax.f32 %v352, 0.0
      %v385 = vmax.f32 %v353, 0.0
      %v386 = vmax.f32 %v354, 0.0
      %v387 = vmax.f32 %v355, 0.0
      %v388 = vmax.f32 %v356, 0.0
      %v389 = vmax.f32 %v357, 0.0
      %v390 = vmax.f32 %v358, 0.0
      %v391 = vmax.f32 %v359, 0.0
      %v392 = vmax.f32 %v360, 0.0
      %v393 = vmax.f32 %v361, 0.0
      %v394 = vmax.f32 %v362, 0.0
      %v395 = vmax.f32 %v363, 0.0
      %v396 = vmax.f32 %v364, 0.0
      %v397 = vmax.f32 %v365, 0.0
      %v398 = vmax.f32 %v366, 0.0
      %v399 = vmax.f32 %v367, 0.0
      %v400 = vmax.f32 %v368, 0.0
      %v401 = vmax.f32 %v369, 0.0
      %v402 = vmax.f32 %v370, 0.0
      %v403 = vmax.f32 %v371, 0.0
      %404 = vst [vmem:[%s229] sm:$0xff] %v372
      %405 = vst [vmem:[%s229 + $0x8] sm:$0xff] %v373
      %406 = vst [vmem:[%s229 + $0x10] sm:$0xff] %v374
      %407 = vst [vmem:[%s229 + $0x18] sm:$0xff] %v375
      %408 = vst [vmem:[%s229 + $0x20] sm:$0xff] %v376
      %409 = vst [vmem:[%s229 + $0x28] sm:$0xff] %v377
      %410 = vst [vmem:[%s229 + $0x30] sm:$0xff] %v378
      %411 = vst [vmem:[%s229 + $0x38] sm:$0xff] %v379
      %412 = vst [vmem:[%s229 + $0x40] sm:$0xff] %v380
      %413 = vst [vmem:[%s229 + $0x48] sm:$0xff] %v381
      %414 = vst [vmem:[%s229 + $0x50] sm:$0xff] %v382
      %415 = vst [vmem:[%s229 + $0x58] sm:$0xff] %v383
      %416 = vst [vmem:[%s229 + $0x60] sm:$0xff] %v384
      %417 = vst [vmem:[%s229 + $0x68] sm:$0xff] %v385
      %418 = vst [vmem:[%s229 + $0x70] sm:$0xff] %v386
      %419 = vst [vmem:[%s229 + $0x78] sm:$0xff] %v387
      %420 = vst [vmem:[%s229 + $0x80] sm:$0xff] %v388
      %421 = vst [vmem:[%s229 + $0x88] sm:$0xff] %v389
      %422 = vst [vmem:[%s229 + $0x90] sm:$0xff] %v390
      %423 = vst [vmem:[%s229 + $0x98] sm:$0xff] %v391
      %424 = vst [vmem:[%s229 + $0xa0] sm:$0xff] %v392
      %425 = vst [vmem:[%s229 + $0xa8] sm:$0xff] %v393
      %426 = vst [vmem:[%s229 + $0xb0] sm:$0xff] %v394
      %427 = vst [vmem:[%s229 + $0xb8] sm:$0xff] %v395
      %428 = vst [vmem:[%s229 + $0xc0] sm:$0xff] %v396
      %429 = vst [vmem:[%s229 + $0xc8] sm:$0xff] %v397
      %430 = vst [vmem:[%s229 + $0xd0] sm:$0xff] %v398
      %431 = vst [vmem:[%s229 + $0xd8] sm:$0xff] %v399
      %432 = vst [vmem:[%s229 + $0xe0] sm:$0xff] %v400
      %433 = vst [vmem:[%s229 + $0xe8] sm:$0xff] %v401
      %434 = vst [vmem:[%s229 + $0xf0] sm:$0xff] %v402
      %435 = vst [vmem:[%s229 + $0xf8] sm:$0xff] %v403
      %p436 = scmp.lt.s32.totalorder %s18, 1
      %s437 = scalar_select %p436, %s18, 1
      %p438 = scmp.lt.s32.totalorder %s19, 0
      %s439 = scalar_select %p438, %s19, 0
      %s440 = smul.addr %s437, 32
      %s441 = sadd.s32 %s439, %s440
      %s442 = smul.addr %s441, 8
      %s443 = scalar_lea.vmem %s3, %s442
      // Predicated region
      $region33: #{double_conv_forward.5} parent=31 // pred_check
        %p444 = pneg %p126
      $region34: #{double_conv_forward.5} parent=31 // pred_check_branch
        %446 = sbr.rel (%p444) target = $region36
      $region35: #{double_conv_forward.5} parent=31 // pred_region
        _
      $region36: #{double_conv_forward.5} parent=31 // pred_fallthru
        _
    $region32: #{double_conv_forward.5} parent=5 // pred_fallthru
      _
    %p447 = scmp.le.s32.totalorder 2, %s9
    // Predicated region
    $region37: #{double_conv_forward.5} parent=5 // pred_check
      %p448 = pneg %p447
    $region38: #{double_conv_forward.5} parent=5 // pred_check_branch
      %450 = sbr.rel (%p448) target = $region40
    $region39: #{double_conv_forward.5} parent=5 // pred_region
      %s451 = ssub.s32 %s9, 2
      // Predicated region
      $region41: #{double_conv_forward.5} parent=39 // pred_check
        %p452 = pneg %p132
      $region42: #{double_conv_forward.5} parent=39 // pred_check_branch
        %454 = sbr.rel (%p452) target = $region44
      $region43: #{double_conv_forward.5} parent=39 // pred_region
        %p455 = scmp.lt.s32.totalorder %s20, 1
        %s456 = scalar_select %p455, %s20, 1
        %p457 = scmp.lt.s32.totalorder %s21, 0
        %s458 = scalar_select %p457, %s21, 0
        %s459 = smul.addr %s456, 32
        %s460 = sadd.s32 %s458, %s459
        %s461 = smul.addr %s460, 8
        %s462 = scalar_lea.vmem %s3, %s461
      $region44: #{double_conv_forward.5} parent=39 // pred_fallthru
        _
    $region40: #{double_conv_forward.5} parent=5 // pred_fallthru
      _
  $region6: #{double_conv_forward.5} parent=0 // loop_footer
    %s13 = sadd.s32 1, %s9
  $region7: #{double_conv_forward.5} parent=0 // loop_footer_branch
    %8 = sbr.rel target = $region3
  $region8: #{double_conv_forward.5} parent=0 // loop_exit
    _

// kernel: double_conv_forward.3
$region0: #{double_conv_forward.3}
  #allocation0 [shape = 'u32[]', space=smem, size = 0x4, offset = 0x4, fixed_abs, tag = 'smem constant byte address 0x4 - core index']
  #allocation1 [shape = 'u32[144,128]{1,0:T(1,128)}', space=vmem, size = 0x12000, scoped, tag = 'internal scratch']
  #allocation2 [shape = 'f32[1,18,18,8]{3,2,1,0:T(8,128)}', space=vmem, size = 0x36000, scoped, tag = 'scratch operand']
  %s0 = inlined_call_operand.vmem [shape: f32[2,16,16,8], index: 0, kind: input, shape index: {}]
  %s1 = inlined_call_operand.vmem [shape: bf16[9,8,128], index: 1, kind: input, shape index: {}]
  %s2 = inlined_call_operand.vmem [shape: bf16[2,16,16,128], index: 2, kind: output, shape index: {0}]
  %s3 = inlined_call_operand.vmem [shape: f32[2,8,128], index: 3, kind: output, shape index: {1}]
  %4 = xla_tuple %s2, %s3
  %s5 = sld [smem:[#allocation0]]
  $region53: #{double_conv_forward.3} parent=0
    _
  %s7 = ssub.s32 1, %s5
  %s8 = scalar_select 0, %s7, %s5
  loop: start=0, step=1, limit=4
  $region2: #{double_conv_forward.3} parent=0 // loop_pre_header
    _
  $region3: #{double_conv_forward.3} parent=0 // loop_header
    %s10 = sphi 0, %s14
    %p11 = scmp.ge.s32.totalorder %s10, 4
    %s17 = sphi 0, %s29
    %s18 = sphi 0, %s25
    %s19 = sphi 0, %s17
    %s20 = sphi 0, %s18
    %s21 = sphi 0, %s19
    %s22 = sphi 0, %s20
    %s32 = sphi 0, %s34
    %s35 = sphi 0, %s32
    %s36 = sphi 0, %s35
    %s52 = sphi 0, %s36
    %s58 = sphi 0, %s60
    %s61 = sphi 0, %s58
    %s62 = sphi 0, %s61
    %s78 = sphi 0, %s62
    %s86 = sphi 0, %s88
    %s89 = sphi 0, %s86
    %s90 = sphi 0, %s89
    %s106 = sphi 0, %s90
    %s114 = sphi 0, %s116
    %s117 = sphi 0, %s114
    %s118 = sphi 0, %s117
    %s134 = sphi 0, %s118
  $region4: #{double_conv_forward.3} parent=0 // loop_header_branch
    %13 = sbr.rel (%p11) target = $region8
  $region5: #{double_conv_forward.3} parent=0 // loop_body
    %s15 = ssub.s32 %s10, 1
    %s16 = ssub.s32 %s10, 2
    %s23 = sadd.s32 1, %s18
    %p24 = scmp.ge.s32.totalorder %s23, 1
    %s25 = scalar_select %p24, 0, %s23
    %s26 = sadd.s32 1, %s17
    %s27 = scalar_select %p24, %s26, %s17
    %p28 = scmp.ge.s32.totalorder %s27, 2
    %s29 = scalar_select %p28, 0, %s27
    %s30 = ssub.s32 %s17, %s29
    %p31 = scmp.eq.s32.totalorder %s30, 0
    %s33 = sadd.s32 %s32, 1
    %s34 = scalar_select %p31, %s32, %s33
    %p37 = pneg %p31
    %p38 = scmp.eq.s32.totalorder %s10, 1
    %p39 = por %p37, %p38
    %p40 = scmp.ne.s32.totalorder %s32, %s35
    %p41 = scmp.eq.s32.totalorder %s10, 0
    %p42 = por %p40, %p41
    %p43 = scmp.ne.s32.totalorder %s32, %s35
    %p44 = scmp.eq.s32.totalorder %s15, 1
    %p45 = por %p43, %p44
    %p46 = scmp.ne.s32.totalorder %s35, %s36
    %p47 = scmp.eq.s32.totalorder %s15, 0
    %p48 = por %p46, %p47
    %p49 = scmp.ne.s32.totalorder %s35, %s36
    %p50 = scmp.eq.s32.totalorder %s16, 1
    %p51 = por %p49, %p50
    %p53 = scmp.ne.s32.totalorder %s36, %s52
    %p54 = scmp.eq.s32.totalorder %s16, 0
    %p55 = por %p53, %p54
    %s56 = ssub.s32 %s18, %s25
    %p57 = scmp.eq.s32.totalorder %s56, 0
    %s59 = sadd.s32 %s58, 1
    %s60 = scalar_select %p57, %s58, %s59
    %p63 = pneg %p57
    %p64 = scmp.eq.s32.totalorder %s10, 1
    %p65 = por %p63, %p64
    %p66 = scmp.ne.s32.totalorder %s58, %s61
    %p67 = scmp.eq.s32.totalorder %s10, 0
    %p68 = por %p66, %p67
    %p69 = scmp.ne.s32.totalorder %s58, %s61
    %p70 = scmp.eq.s32.totalorder %s15, 1
    %p71 = por %p69, %p70
    %p72 = scmp.ne.s32.totalorder %s61, %s62
    %p73 = scmp.eq.s32.totalorder %s15, 0
    %p74 = por %p72, %p73
    %p75 = scmp.ne.s32.totalorder %s61, %s62
    %p76 = scmp.eq.s32.totalorder %s16, 1
    %p77 = por %p75, %p76
    %p79 = scmp.ne.s32.totalorder %s62, %s78
    %p80 = scmp.eq.s32.totalorder %s16, 0
    %p81 = por %p79, %p80
    %s82 = ssub.s32 %s17, %s29
    %s83 = ssub.s32 %s18, %s25
    %s84 = sor.u32 %s82, %s83
    %p85 = scmp.eq.s32.totalorder %s84, 0
    %s87 = sadd.s32 %s86, 1
    %s88 = scalar_select %p85, %s86, %s87
    %p91 = pneg %p85
    %p92 = scmp.eq.s32.totalorder %s10, 1
    %p93 = por %p91, %p92
    %p94 = scmp.ne.s32.totalorder %s86, %s89
    %p95 = scmp.eq.s32.totalorder %s10, 0
    %p96 = por %p94, %p95
    %p97 = scmp.ne.s32.totalorder %s86, %s89
    %p98 = scmp.eq.s32.totalorder %s15, 1
    %p99 = por %p97, %p98
    %p100 = scmp.ne.s32.totalorder %s89, %s90
    %p101 = scmp.eq.s32.totalorder %s15, 0
    %p102 = por %p100, %p101
    %p103 = scmp.ne.s32.totalorder %s89, %s90
    %p104 = scmp.eq.s32.totalorder %s16, 1
    %p105 = por %p103, %p104
    %p107 = scmp.ne.s32.totalorder %s90, %s106
    %p108 = scmp.eq.s32.totalorder %s16, 0
    %p109 = por %p107, %p108
    %s110 = ssub.s32 %s17, %s29
    %s111 = ssub.s32 %s18, %s25
    %s112 = sor.u32 %s110, %s111
    %p113 = scmp.eq.s32.totalorder %s112, 0
    %s115 = sadd.s32 %s114, 1
    %s116 = scalar_select %p113, %s114, %s115
    %p119 = pneg %p113
    %p120 = scmp.eq.s32.totalorder %s10, 1
    %p121 = por %p119, %p120
    %p122 = scmp.ne.s32.totalorder %s114, %s117
    %p123 = scmp.eq.s32.totalorder %s10, 0
    %p124 = por %p122, %p123
    %p125 = scmp.ne.s32.totalorder %s114, %s117
    %p126 = scmp.eq.s32.totalorder %s15, 1
    %p127 = por %p125, %p126
    %p128 = scmp.ne.s32.totalorder %s117, %s118
    %p129 = scmp.eq.s32.totalorder %s15, 0
    %p130 = por %p128, %p129
    %p131 = scmp.ne.s32.totalorder %s117, %s118
    %p132 = scmp.eq.s32.totalorder %s16, 1
    %p133 = por %p131, %p132
    %p135 = scmp.ne.s32.totalorder %s118, %s134
    %p136 = scmp.eq.s32.totalorder %s16, 0
    %p137 = por %p135, %p136
    %p138 = scmp.le.s32.totalorder 1, %s10
    %p139 = scmp.lt.s32.totalorder %s10, 3
    %p140 = pnand %p138, %p139
    %p141 = pneg %p140
    // Predicated region
    $region9: #{double_conv_forward.3} parent=5 // pred_check
      _
    $region10: #{double_conv_forward.3} parent=5 // pred_check_branch
      %143 = sbr.rel (%p140) target = $region12
    $region11: #{double_conv_forward.3} parent=5 // pred_region
      %s144 = ssub.s32 %s10, 1
      // Predicated region
      $region13: #{double_conv_forward.3} parent=11 // pred_check
        %p145 = pneg %p74
      $region14: #{double_conv_forward.3} parent=11 // pred_check_branch
        %147 = sbr.rel (%p145) target = $region16
      $region15: #{double_conv_forward.3} parent=11 // pred_region
        %p148 = scmp.lt.s32.totalorder %s20, 0
        %s149 = scalar_select %p148, %s20, 0
        %s150 = smul.addr %s149, 4
        %s151 = scalar_lea.vmem %s1, %s150
      $region16: #{double_conv_forward.3} parent=11 // pred_fallthru
        _
    $region12: #{double_conv_forward.3} parent=5 // pred_fallthru
      _
    %p152 = scmp.lt.s32.totalorder %s10, 2
    // Predicated region
    $region17: #{double_conv_forward.3} parent=5 // pred_check
      %p153 = pneg %p152
    $region18: #{double_conv_forward.3} parent=5 // pred_check_branch
      %155 = sbr.rel (%p153) target = $region20
    $region19: #{double_conv_forward.3} parent=5 // pred_region
      // Predicated region
      $region21: #{double_conv_forward.3} parent=19 // pred_check
        %p156 = pneg %p42
      $region22: #{double_conv_forward.3} parent=19 // pred_check_branch
        %158 = sbr.rel (%p156) target = $region24
      $region23: #{double_conv_forward.3} parent=19 // pred_region
        %p159 = scmp.lt.s32.totalorder %s17, 1
        %s160 = scalar_select %p159, %s17, 1
        %s161 = smul.addr %s160, 32
        %s162 = smul.addr %s161, 8
        %s163 = scalar_lea.vmem %s0, %s162
      $region24: #{double_conv_forward.3} parent=19 // pred_fallthru
        _
    $region20: #{double_conv_forward.3} parent=5 // pred_fallthru
      _
    %p164 = scmp.le.s32.totalorder 1, %s10
    %p165 = scmp.lt.s32.totalorder %s10, 3
    %p166 = pnand %p164, %p165
    %p167 = pneg %p166
    // Predicated region
    $region25: #{double_conv_forward.3} parent=5 // pred_check
      _
    $region26: #{double_conv_forward.3} parent=5 // pred_check_branch
      %169 = sbr.rel (%p166) target = $region28
    $region27: #{double_conv_forward.3} parent=5 // pred_region
      %s170 = ssub.s32 %s10, 1
      %p171 = scmp.lt.s32.totalorder %s19, 1
      %s172 = scalar_select %p171, %s19, 1
      %s173 = smul.addr %s172, 32
      %s174 = smul.addr %s173, 8
      %s175 = scalar_lea.vmem %s0, %s174
      %p176 = pneg %p48
      %p177 = pneg %p45
      %p178 = scmp.lt.s32.totalorder %s20, 0
      %s179 = scalar_select %p178, %s20, 0
      %s180 = smul.addr %s179, 4
      %s181 = scalar_lea.vmem %s1, %s180
      %p182 = pneg %p74
      %p183 = pneg %p71
      %p184 = pneg %p102
      %p185 = pneg %p99
      %p186 = scmp.lt.s32.totalorder %s19, 1
      %s187 = scalar_select %p186, %s19, 1
      %p188 = scmp.lt.s32.totalorder %s20, 0
      %s189 = scalar_select %p188, %s20, 0
      %s190 = smul.addr %s187, 32
      %s191 = sadd.s32 %s189, %s190
      %s192 = smul.addr %s191, 4
      %s193 = scalar_lea.vmem %s2, %s192
      %p194 = pneg %p130
      %p195 = pneg %p127
      %p196 = scmp.lt.s32.totalorder %s19, 1
      %s197 = scalar_select %p196, %s19, 1
      %p198 = scmp.lt.s32.totalorder %s20, 0
      %s199 = scalar_select %p198, %s20, 0
      %s200 = sadd.s32 %s199, %s197
      %s201 = smul.addr %s200, 8
      %s202 = scalar_lea.vmem %s3, %s201
      %p203 = scmp.lt.s32.totalorder %s19, 1
      %s204 = scalar_select %p203, %s19, 1
      %s205 = smul.addr %s204, 32
      %s206 = smul.addr %s205, 8
      %s207 = scalar_lea.vmem %s0, %s206
      %p208 = scmp.lt.s32.totalorder %s20, 0
      %s209 = scalar_select %p208, %s20, 0
      %s210 = smul.addr %s209, 4
      %s211 = scalar_lea.vmem %s1, %s210
      %p212 = scmp.lt.s32.totalorder %s19, 1
      %s213 = scalar_select %p212, %s19, 1
      %p214 = scmp.lt.s32.totalorder %s20, 0
      %s215 = scalar_select %p214, %s20, 0
      %s216 = smul.addr %s213, 32
      %s217 = sadd.s32 %s215, %s216
      %s218 = smul.addr %s217, 4
      %s219 = scalar_lea.vmem %s2, %s218
      %p220 = scmp.lt.s32.totalorder %s19, 1
      %s221 = scalar_select %p220, %s19, 1
      %p222 = scmp.lt.s32.totalorder %s20, 0
      %s223 = scalar_select %p222, %s20, 0
      %s224 = sadd.s32 %s223, %s221
      %s225 = smul.addr %s224, 8
      %s226 = scalar_lea.vmem %s3, %s225
      %p228 = scmp.eq.s32.totalorder %s20, 0
      // Predicated region
      $region29: #{double_conv_forward.3} parent=27 // pred_check
        %p229 = pneg %p228
      $region30: #{double_conv_forward.3} parent=27 // pred_check_branch
        %231 = sbr.rel (%p229) target = $region32
      $region31: #{double_conv_forward.3} parent=27 // pred_region
        %v232 = vld [vmem:[%s207] sm:$0xff]
        %v233 = vld [vmem:[%s207 + $0x8] sm:$0xff]
        %v234 = vld [vmem:[%s207 + $0x10] sm:$0xff]
        %v235 = vld [vmem:[%s207 + $0x18] sm:$0xff]
        %v236 = vld [vmem:[%s207 + $0x20] sm:$0xff]
        %v237 = vld [vmem:[%s207 + $0x28] sm:$0xff]
        %v238 = vld [vmem:[%s207 + $0x30] sm:$0xff]
        %v239 = vld [vmem:[%s207 + $0x38] sm:$0xff]
        %v240 = vld [vmem:[%s207 + $0x40] sm:$0xff]
        %v241 = vld [vmem:[%s207 + $0x48] sm:$0xff]
        %v242 = vld [vmem:[%s207 + $0x50] sm:$0xff]
        %v243 = vld [vmem:[%s207 + $0x58] sm:$0xff]
        %v244 = vld [vmem:[%s207 + $0x60] sm:$0xff]
        %v245 = vld [vmem:[%s207 + $0x68] sm:$0xff]
        %v246 = vld [vmem:[%s207 + $0x70] sm:$0xff]
        %v247 = vld [vmem:[%s207 + $0x78] sm:$0xff]
        %v248 = vld [vmem:[%s207 + $0x80] sm:$0xff]
        %v249 = vld [vmem:[%s207 + $0x88] sm:$0xff]
        %v250 = vld [vmem:[%s207 + $0x90] sm:$0xff]
        %v251 = vld [vmem:[%s207 + $0x98] sm:$0xff]
        %v252 = vld [vmem:[%s207 + $0xa0] sm:$0xff]
        %v253 = vld [vmem:[%s207 + $0xa8] sm:$0xff]
        %v254 = vld [vmem:[%s207 + $0xb0] sm:$0xff]
        %v255 = vld [vmem:[%s207 + $0xb8] sm:$0xff]
        %v256 = vld [vmem:[%s207 + $0xc0] sm:$0xff]
        %v257 = vld [vmem:[%s207 + $0xc8] sm:$0xff]
        %v258 = vld [vmem:[%s207 + $0xd0] sm:$0xff]
        %v259 = vld [vmem:[%s207 + $0xd8] sm:$0xff]
        %v260 = vld [vmem:[%s207 + $0xe0] sm:$0xff]
        %v261 = vld [vmem:[%s207 + $0xe8] sm:$0xff]
        %v262 = vld [vmem:[%s207 + $0xf0] sm:$0xff]
        %v263 = vld [vmem:[%s207 + $0xf8] sm:$0xff]
        %vm264 = vcmask 64512
        %265 = vst.msk [vmem:[#allocation2] sm:$0xff] %vm264, 0.0
        %266 = vst.msk [vmem:[#allocation2 + $0x8] sm:$0xff] %vm264, 0.0
        %vm267 = vcmask 58368
        %268 = vst.msk [vmem:[#allocation2 + $0x10] sm:$0x3] %vm267, 0.0
        %269 = vst.msk [vmem:[#allocation2 + $0x18] sm:$0xff] %vm264, 0.0
        %270 = vst.msk [vmem:[#allocation2 + $0x20] sm:$0xff] %vm264, 0.0
        %271 = vst.msk [vmem:[#allocation2 + $0x28] sm:$0x3] %vm267, 0.0
        %272 = vst.msk [vmem:[#allocation2 + $0x30] sm:$0xff] %vm264, 0.0
        %273 = vst.msk [vmem:[#allocation2 + $0x38] sm:$0xff] %vm264, 0.0
        %274 = vst.msk [vmem:[#allocation2 + $0x40] sm:$0x3] %vm267, 0.0
        %275 = vst.msk [vmem:[#allocation2 + $0x48] sm:$0xff] %vm264, 0.0
        %276 = vst.msk [vmem:[#allocation2 + $0x50] sm:$0xff] %vm264, 0.0
        %277 = vst.msk [vmem:[#allocation2 + $0x58] sm:$0x3] %vm267, 0.0
        %278 = vst.msk [vmem:[#allocation2 + $0x60] sm:$0xff] %vm264, 0.0
        %279 = vst.msk [vmem:[#allocation2 + $0x68] sm:$0xff] %vm264, 0.0
        %280 = vst.msk [vmem:[#allocation2 + $0x70] sm:$0x3] %vm267, 0.0
        %281 = vst.msk [vmem:[#allocation2 + $0x78] sm:$0xff] %vm264, 0.0
        %282 = vst.msk [vmem:[#allocation2 + $0x80] sm:$0xff] %vm264, 0.0
        %283 = vst.msk [vmem:[#allocation2 + $0x88] sm:$0x3] %vm267, 0.0
        %284 = vst.msk [vmem:[#allocation2 + $0x90] sm:$0xff] %vm264, 0.0
        %285 = vst.msk [vmem:[#allocation2 + $0x98] sm:$0xff] %vm264, 0.0
        %286 = vst.msk [vmem:[#allocation2 + $0xa0] sm:$0x3] %vm267, 0.0
        %287 = vst.msk [vmem:[#allocation2 + $0xa8] sm:$0xff] %vm264, 0.0
        %288 = vst.msk [vmem:[#allocation2 + $0xb0] sm:$0xff] %vm264, 0.0
        %289 = vst.msk [vmem:[#allocation2 + $0xb8] sm:$0x3] %vm267, 0.0
        %290 = vst.msk [vmem:[#allocation2 + $0xc0] sm:$0xff] %vm264, 0.0
        %291 = vst.msk [vmem:[#allocation2 + $0xc8] sm:$0xff] %vm264, 0.0
        %292 = vst.msk [vmem:[#allocation2 + $0xd0] sm:$0x3] %vm267, 0.0
        %293 = vst.msk [vmem:[#allocation2 + $0xd8] sm:$0xff] %vm264, 0.0
        %294 = vst.msk [vmem:[#allocation2 + $0xe0] sm:$0xff] %vm264, 0.0
        %295 = vst.msk [vmem:[#allocation2 + $0xe8] sm:$0x3] %vm267, 0.0
        %296 = vst.msk [vmem:[#allocation2 + $0xf0] sm:$0xff] %vm264, 0.0
        %297 = vst.msk [vmem:[#allocation2 + $0xf8] sm:$0xff] %vm264, 0.0
        %298 = vst.msk [vmem:[#allocation2 + $0x100] sm:$0x3] %vm267, 0.0
        %299 = vst.msk [vmem:[#allocation2 + $0x108] sm:$0xff] %vm264, 0.0
        %300 = vst.msk [vmem:[#allocation2 + $0x110] sm:$0xff] %vm264, 0.0
        %301 = vst.msk [vmem:[#allocation2 + $0x118] sm:$0x3] %vm267, 0.0
        %302 = vst.msk [vmem:[#allocation2 + $0x120] sm:$0xff] %vm264, 0.0
        %303 = vst.msk [vmem:[#allocation2 + $0x128] sm:$0xff] %vm264, 0.0
        %304 = vst.msk [vmem:[#allocation2 + $0x130] sm:$0x3] %vm267, 0.0
        %305 = vst.msk [vmem:[#allocation2 + $0x138] sm:$0xff] %vm264, 0.0
        %306 = vst.msk [vmem:[#allocation2 + $0x140] sm:$0xff] %vm264, 0.0
        %307 = vst.msk [vmem:[#allocation2 + $0x148] sm:$0x3] %vm267, 0.0
        %308 = vst.msk [vmem:[#allocation2 + $0x150] sm:$0xff] %vm264, 0.0
        %309 = vst.msk [vmem:[#allocation2 + $0x158] sm:$0xff] %vm264, 0.0
        %310 = vst.msk [vmem:[#allocation2 + $0x160] sm:$0x3] %vm267, 0.0
        %311 = vst.msk [vmem:[#allocation2 + $0x168] sm:$0xff] %vm264, 0.0
        %312 = vst.msk [vmem:[#allocation2 + $0x170] sm:$0xff] %vm264, 0.0
        %313 = vst.msk [vmem:[#allocation2 + $0x178] sm:$0x3] %vm267, 0.0
        %314 = vst.msk [vmem:[#allocation2 + $0x180] sm:$0xff] %vm264, 0.0
        %315 = vst.msk [vmem:[#allocation2 + $0x188] sm:$0xff] %vm264, 0.0
        %316 = vst.msk [vmem:[#allocation2 + $0x190] sm:$0x3] %vm267, 0.0
        %317 = vst.msk [vmem:[#allocation2 + $0x198] sm:$0xff] %vm264, 0.0
        %318 = vst.msk [vmem:[#allocation2 + $0x1a0] sm:$0xff] %vm264, 0.0
        %319 = vst.msk [vmem:[#allocation2 + $0x1a8] sm:$0x3] %vm267, 0.0
        %s320 = scalar_lea.vmem [#allocation2], 24
        %321 = vst.msk [vmem:[%s320 + $0x1] sm:$0xff] %vm264, %v232
        %322 = vst.msk [vmem:[%s320 + $0x9] sm:$0xff] %vm264, %v233
        %323 = vst.msk [vmem:[%s320 + $0x19] sm:$0xff] %vm264, %v234
        %324 = vst.msk [vmem:[%s320 + $0x21] sm:$0xff] %vm264, %v235
        %325 = vst.msk [vmem:[%s320 + $0x31] sm:$0xff] %vm264, %v236
        %326 = vst.msk [vmem:[%s320 + $0x39] sm:$0xff] %vm264, %v237
        %327 = vst.msk [vmem:[%s320 + $0x49] sm:$0xff] %vm264, %v238
        %328 = vst.msk [vmem:[%s320 + $0x51] sm:$0xff] %vm264, %v239
        %329 = vst.msk [vmem:[%s320 + $0x61] sm:$0xff] %vm264, %v240
        %330 = vst.msk [vmem:[%s320 + $0x69] sm:$0xff] %vm264, %v241
        %331 = vst.msk [vmem:[%s320 + $0x79] sm:$0xff] %vm264, %v242
        %332 = vst.msk [vmem:[%s320 + $0x81] sm:$0xff] %vm264, %v243
        %333 = vst.msk [vmem:[%s320 + $0x91] sm:$0xff] %vm264, %v244
        %334 = vst.msk [vmem:[%s320 + $0x99] sm:$0xff] %vm264, %v245
        %335 = vst.msk [vmem:[%s320 + $0xa9] sm:$0xff] %vm264, %v246
        %336 = vst.msk [vmem:[%s320 + $0xb1] sm:$0xff] %vm264, %v247
        %337 = vst.msk [vmem:[%s320 + $0xc1] sm:$0xff] %vm264, %v248
        %338 = vst.msk [vmem:[%s320 + $0xc9] sm:$0xff] %vm264, %v249
        %339 = vst.msk [vmem:[%s320 + $0xd9] sm:$0xff] %vm264, %v250
        %340 = vst.msk [vmem:[%s320 + $0xe1] sm:$0xff] %vm264, %v251
        %341 = vst.msk [vmem:[%s320 + $0xf1] sm:$0xff] %vm264, %v252
        %342 = vst.msk [vmem:[%s320 + $0xf9] sm:$0xff] %vm264, %v253
        %343 = vst.msk [vmem:[%s320 + $0x109] sm:$0xff] %vm264, %v254
        %344 = vst.msk [vmem:[%s320 + $0x111] sm:$0xff] %vm264, %v255
        %345 = vst.msk [vmem:[%s320 + $0x121] sm:$0xff] %vm264, %v256
        %346 = vst.msk [vmem:[%s320 + $0x129] sm:$0xff] %vm264, %v257
        %347 = vst.msk [vmem:[%s320 + $0x139] sm:$0xff] %vm264, %v258
        %348 = vst.msk [vmem:[%s320 + $0x141] sm:$0xff] %vm264, %v259
        %349 = vst.msk [vmem:[%s320 + $0x151] sm:$0xff] %vm264, %v260
        %350 = vst.msk [vmem:[%s320 + $0x159] sm:$0xff] %vm264, %v261
        %351 = vst.msk [vmem:[%s320 + $0x169] sm:$0xff] %vm264, %v262
        %352 = vst.msk [vmem:[%s320 + $0x171] sm:$0xff] %vm264, %v263
      $region32: #{double_conv_forward.3} parent=27 // pred_fallthru
        _
      %v353 = vld [vmem:[#allocation2] sm:$0xff]
      %v354 = vld [vmem:[#allocation2 + $0x8] sm:$0xff]
      %v355 = vld [vmem:[#allocation2 + $0x10] sm:$0x3]
      %v356 = vld [vmem:[#allocation2 + $0x18] sm:$0xff]
      %v357 = vld [vmem:[#allocation2 + $0x20] sm:$0xff]
      %v358 = vld [vmem:[#allocation2 + $0x28] sm:$0x3]
      %v359 = vld [vmem:[#allocation2 + $0x30] sm:$0xff]
      %v360 = vld [vmem:[#allocation2 + $0x38] sm:$0xff]
      %v361 = vld [vmem:[#allocation2 + $0x40] sm:$0x3]
      %v362 = vld [vmem:[#allocation2 + $0x48] sm:$0xff]
      %v363 = vld [vmem:[#allocation2 + $0x50] sm:$0xff]
      %v364 = vld [vmem:[#allocation2 + $0x58] sm:$0x3]
      %v365 = vld [vmem:[#allocation2 + $0x60] sm:$0xff]
      %v366 = vld [vmem:[#allocation2 + $0x68] sm:$0xff]
      %v367 = vld [vmem:[#allocation2 + $0x70] sm:$0x3]
      %v368 = vld [vmem:[#allocation2 + $0x78] sm:$0xff]
      %v369 = vld [vmem:[#allocation2 + $0x80] sm:$0xff]
      %v370 = vld [vmem:[#allocation2 + $0x88] sm:$0x3]
      %v371 = vld [vmem:[#allocation2 + $0x90] sm:$0xff]
      %v372 = vld [vmem:[#allocation2 + $0x98] sm:$0xff]
      %v373 = vld [vmem:[#allocation2 + $0xa0] sm:$0x3]
      %v374 = vld [vmem:[#allocation2 + $0xa8] sm:$0xff]
      %v375 = vld [vmem:[#allocation2 + $0xb0] sm:$0xff]
      %v376 = vld [vmem:[#allocation2 + $0xb8] sm:$0x3]
      %v377 = vld [vmem:[#allocation2 + $0xc0] sm:$0xff]
      %v378 = vld [vmem:[#allocation2 + $0xc8] sm:$0xff]
      %v379 = vld [vmem:[#allocation2 + $0xd0] sm:$0x3]
      %v380 = vld [vmem:[#allocation2 + $0xd8] sm:$0xff]
      %v381 = vld [vmem:[#allocation2 + $0xe0] sm:$0xff]
      %v382 = vld [vmem:[#allocation2 + $0xe8] sm:$0x3]
      %v383 = vld [vmem:[#allocation2 + $0xf0] sm:$0xff]
      %v384 = vld [vmem:[#allocation2 + $0xf8] sm:$0xff]
      %v385 = vld [vmem:[#allocation2 + $0x100] sm:$0x3]
      %v386 = vld [vmem:[#allocation2 + $0x108] sm:$0xff]
      %v387 = vld [vmem:[#allocation2 + $0x110] sm:$0xff]
      %v388 = vld [vmem:[#allocation2 + $0x118] sm:$0x3]
      %v389 = vld [vmem:[#allocation2 + $0x120] sm:$0xff]
      %v390 = vld [vmem:[#allocation2 + $0x128] sm:$0xff]
      %v391 = vld [vmem:[#allocation2 + $0x130] sm:$0x3]
      %v392 = vld [vmem:[#allocation2 + $0x138] sm:$0xff]
      %v393 = vld [vmem:[#allocation2 + $0x140] sm:$0xff]
      %v394 = vld [vmem:[#allocation2 + $0x148] sm:$0x3]
      %v395 = vld [vmem:[#allocation2 + $0x150] sm:$0xff]
      %v396 = vld [vmem:[#allocation2 + $0x158] sm:$0xff]
      %v397 = vld [vmem:[#allocation2 + $0x160] sm:$0x3]
      %v398 = vld [vmem:[#allocation2 + $0x168] sm:$0xff]
      %v399 = vld [vmem:[#allocation2 + $0x170] sm:$0xff]
      %v400 = vld [vmem:[#allocation2 + $0x178] sm:$0x3]
      %v401 = vld [vmem:[#allocation2 + $0x180] sm:$0xff]
      %v402 = vld [vmem:[#allocation2 + $0x188] sm:$0xff]
      %v403 = vld [vmem:[#allocation2 + $0x190] sm:$0x3]
      %v404 = vld [vmem:[#allocation2 + $0x198] sm:$0xff]
      %v405 = vld [vmem:[#allocation2 + $0x1a0] sm:$0xff]
      %v406 = vld [vmem:[#allocation2 + $0x1a8] sm:$0x3]
      %v407 = vld [vmem:[%s211] sm:$0xf]
      %v408 = vld [vmem:[%s211 + $0x4] sm:$0xf]
      %v409 = vld [vmem:[%s211 + $0x8] sm:$0xf]
      %v410 = vld [vmem:[%s211 + $0xc] sm:$0xf]
      %v411 = vld [vmem:[%s211 + $0x10] sm:$0xf]
      %v412 = vld [vmem:[%s211 + $0x14] sm:$0xf]
      %v413 = vld [vmem:[%s211 + $0x18] sm:$0xf]
      %v414 = vld [vmem:[%s211 + $0x1c] sm:$0xf]
      %v415 = vld [vmem:[%s211 + $0x20] sm:$0xf]
      %v416 = vpack.c.bf16 %v354, %v353
      %v417 = vpack.c.bf16 %v357, %v356
      %v418 = vpack.c.bf16 %v360, %v359
      %v419 = vpack.c.bf16 %v363, %v362
      %v420 = vpack.c.bf16 %v366, %v365
      %v421 = vpack.c.bf16 %v369, %v368
      %v422 = vpack.c.bf16 %v372, %v371
      %v423 = vpack.c.bf16 %v375, %v374
      %v424 = vpack.c.bf16 %v378, %v377
      %v425 = vpack.c.bf16 %v381, %v380
      %v426 = vpack.c.bf16 %v384, %v383
      %v427 = vpack.c.bf16 %v387, %v386
      %v428 = vpack.c.bf16 %v390, %v389
      %v429 = vpack.c.bf16 %v393, %v392
      %v430 = vpack.c.bf16 %v396, %v395
      %v431 = vpack.c.bf16 %v399, %v398
      %vm480 = vcmask 1046528
      %v481 = vrot.slane %v353, 1
      %v482 = vrot.slane %v354, 1
      %v483 = vsel %vm480, %v481, %v482
      %v484 = vrot.slane %v355, 1
      %v485 = vsel %vm480, %v482, %v484
      %v486 = vrot.slane %v356, 1
      %v487 = vrot.slane %v357, 1
      %v488 = vsel %vm480, %v486, %v487
      %v489 = vrot.slane %v358, 1
      %v490 = vsel %vm480, %v487, %v489
      %v491 = vrot.slane %v359, 1
      %v492 = vrot.slane %v360, 1
      %v493 = vsel %vm480, %v491, %v492
      %v494 = vrot.slane %v361, 1
      %v495 = vsel %vm480, %v492, %v494
      %v496 = vrot.slane %v362, 1
      %v497 = vrot.slane %v363, 1
      %v498 = vsel %vm480, %v496, %v497
      %v499 = vrot.slane %v364, 1
      %v500 = vsel %vm480, %v497, %v499
      %v501 = vrot.slane %v365, 1
      %v502 = vrot.slane %v366, 1
      %v503 = vsel %vm480, %v501, %v502
      %v504 = vrot.slane %v367, 1
      %v505 = vsel %vm480, %v502, %v504
      %v506 = vrot.slane %v368, 1
      %v507 = vrot.slane %v369, 1
      %v508 = vsel %vm480, %v506, %v507
      %v509 = vrot.slane %v370, 1
      %v510 = vsel %vm480, %v507, %v509
      %v511 = vrot.slane %v371, 1
      %v512 = vrot.slane %v372, 1
      %v513 = vsel %vm480, %v511, %v512
      %v514 = vrot.slane %v373, 1
      %v515 = vsel %vm480, %v512, %v514
      %v516 = vrot.slane %v374, 1
      %v517 = vrot.slane %v375, 1
      %v518 = vsel %vm480, %v516, %v517
      %v519 = vrot.slane %v376, 1
      %v520 = vsel %vm480, %v517, %v519
      %v521 = vrot.slane %v377, 1
      %v522 = vrot.slane %v378, 1
      %v523 = vsel %vm480, %v521, %v522
      %v524 = vrot.slane %v379, 1
      %v525 = vsel %vm480, %v522, %v524
      %v526 = vrot.slane %v380, 1
      %v527 = vrot.slane %v381, 1
      %v528 = vsel %vm480, %v526, %v527
      %v529 = vrot.slane %v382, 1
      %v530 = vsel %vm480, %v527, %v529
      %v531 = vrot.slane %v383, 1
      %v532 = vrot.slane %v384, 1
      %v533 = vsel %vm480, %v531, %v532
      %v534 = vrot.slane %v385, 1
      %v535 = vsel %vm480, %v532, %v534
      %v536 = vrot.slane %v386, 1
      %v537 = vrot.slane %v387, 1
      %v538 = vsel %vm480, %v536, %v537
      %v539 = vrot.slane %v388, 1
      %v540 = vsel %vm480, %v537, %v539
      %v541 = vrot.slane %v389, 1
      %v542 = vrot.slane %v390, 1
      %v543 = vsel %vm480, %v541, %v542
      %v544 = vrot.slane %v391, 1
      %v545 = vsel %vm480, %v542, %v544
      %v546 = vrot.slane %v392, 1
      %v547 = vrot.slane %v393, 1
      %v548 = vsel %vm480, %v546, %v547
      %v549 = vrot.slane %v394, 1
      %v550 = vsel %vm480, %v547, %v549
      %v551 = vrot.slane %v395, 1
      %v552 = vrot.slane %v396, 1
      %v553 = vsel %vm480, %v551, %v552
      %v554 = vrot.slane %v397, 1
      %v555 = vsel %vm480, %v552, %v554
      %v556 = vrot.slane %v398, 1
      %v557 = vrot.slane %v399, 1
      %v558 = vsel %vm480, %v556, %v557
      %v559 = vrot.slane %v400, 1
      %v560 = vsel %vm480, %v557, %v559
      %v593 = vpack.c.bf16 %v485, %v483
      %v594 = vpack.c.bf16 %v490, %v488
      %v595 = vpack.c.bf16 %v495, %v493
      %v596 = vpack.c.bf16 %v500, %v498
      %v597 = vpack.c.bf16 %v505, %v503
      %v598 = vpack.c.bf16 %v510, %v508
      %v599 = vpack.c.bf16 %v515, %v513
      %v600 = vpack.c.bf16 %v520, %v518
      %v601 = vpack.c.bf16 %v525, %v523
      %v602 = vpack.c.bf16 %v530, %v528
      %v603 = vpack.c.bf16 %v535, %v533
      %v604 = vpack.c.bf16 %v540, %v538
      %v605 = vpack.c.bf16 %v545, %v543
      %v606 = vpack.c.bf16 %v550, %v548
      %v607 = vpack.c.bf16 %v555, %v553
      %v608 = vpack.c.bf16 %v560, %v558
      %vm609 = vcmask 64512
      %v611 = vsel %vm609, %v593, 0
      %v614 = vsel %vm609, %v594, 0
      %v617 = vsel %vm609, %v595, 0
      %v620 = vsel %vm609, %v596, 0
      %v623 = vsel %vm609, %v597, 0
      %v626 = vsel %vm609, %v598, 0
      %v629 = vsel %vm609, %v599, 0
      %v632 = vsel %vm609, %v600, 0
      %v635 = vsel %vm609, %v601, 0
      %v638 = vsel %vm609, %v602, 0
      %v641 = vsel %vm609, %v603, 0
      %v644 = vsel %vm609, %v604, 0
      %v647 = vsel %vm609, %v605, 0
      %v650 = vsel %vm609, %v606, 0
      %v653 = vsel %vm609, %v607, 0
      %v656 = vsel %vm609, %v608, 0
      %vm658 = vcmask 1043456
      %v660 = vsel %vm658, %v408, 0
      %662 = vmatprep.subr.bf16.mxu0 0
      %663 = vmatpush1.bf16.msra.mxu0 %v660
      %664 = vmatprep.subr.bf16.mxu0 0
      %665 = vmatpush1.bf16.msra.mxu0 0
      %666 = vmatprep.subr.bf16.mxu0 0
      %667 = vmatpush1.bf16.msra.mxu0 0
      %668 = vmatprep.subr.bf16.mxu0 0
      %669 = vmatpush1.bf16.msra.mxu0 0
      %670 = vmatprep.subr.bf16.mxu0 0
      %671 = vmatpush1.bf16.msra.mxu0 0
      %672 = vmatprep.subr.bf16.mxu0 0
      %673 = vmatpush1.bf16.msra.mxu0 0
      %674 = vmatprep.subr.bf16.mxu0 0
      %675 = vmatpush1.bf16.msra.mxu0 0
      %676 = vmatprep.subr.bf16.mxu0 0
      %677 = vmatpush1.bf16.msra.mxu0 0
      %678 = vmatprep.subr.bf16.mxu0 0
      %679 = vmatpush1.bf16.msra.mxu0 0
      %680 = vmatprep.subr.bf16.mxu0 0
      %681 = vmatpush1.bf16.msra.mxu0 0
      %682 = vmatprep.subr.bf16.mxu0 0
      %683 = vmatpush1.bf16.msra.mxu0 0
      %684 = vmatprep.subr.bf16.mxu0 0
      %685 = vmatpush1.bf16.msra.mxu0 0
      %686 = vmatprep.subr.bf16.mxu0 0
      %687 = vmatpush1.bf16.msra.mxu0 0
      %688 = vmatprep.subr.bf16.mxu0 0
      %689 = vmatpush1.bf16.msra.mxu0 0
      %690 = vmatprep.subr.bf16.mxu0 0
      %691 = vmatpush1.bf16.msra.mxu0 0
      %692 = vmatprep.subr.bf16.mxu0 0
      %693 = vmatpush1.bf16.msra.mxu0 0
      %694 = vmatprep.mubr.bf16.mxu0 0
      %695 = vmatmul.mubr.bf16.gmra.mrb[0].mxu0 %v611
      %v696 = vpop.f32.mrb[0].mxu0
      %v697 = vadd.f32 0.0, %v696
      %v698 = vpop.f32.mrb[0].mxu0
      %v699 = vpop.f32.mrb[0].mxu0
      %v700 = vadd.f32 0.0, %v699
      %v701 = vpop.f32.mrb[0].mxu0
      %702 = vmatprep.mubr.bf16.mxu0 0
      %703 = vmatmul.mubr.bf16.gmra.mrb[0].mxu0 %v614
      %v704 = vpop.f32.mrb[0].mxu0
      %v705 = vadd.f32 0.0, %v704
      %v706 = vpop.f32.mrb[0].mxu0
      %v707 = vpop.f32.mrb[0].mxu0
      %v708 = vadd.f32 0.0, %v707
      %v709 = vpop.f32.mrb[0].mxu0
      %710 = vmatprep.mubr.bf16.mxu0 0
      %711 = vmatmul.mubr.bf16.gmra.mrb[0].mxu0 %v617
      %v712 = vpop.f32.mrb[0].mxu0
      %v713 = vadd.f32 0.0, %v712
      %v714 = vpop.f32.mrb[0].mxu0
      %v715 = vpop.f32.mrb[0].mxu0
      %v716 = vadd.f32 0.0, %v715
      %v717 = vpop.f32.mrb[0].mxu0
      %718 = vmatprep.mubr.bf16.mxu0 0
      %719 = vmatmul.mubr.bf16.gmra.mrb[0].mxu0 %v620
      %v720 = vpop.f32.mrb[0].mxu0
      %v721 = vadd.f32 0.0, %v720
      %v722 = vpop.f32.mrb[0].mxu0
      %v723 = vpop.f32.mrb[0].mxu0
      %v724 = vadd.f32 0.0, %v723
      %v725 = vpop.f32.mrb[0].mxu0
      %726 = vmatprep.mubr.bf16.mxu0 0
      %727 = vmatmul.mubr.bf16.gmra.mrb[0].mxu0 %v623
      %v728 = vpop.f32.mrb[0].mxu0
      %v729 = vadd.f32 0.0, %v728
      %v730 = vpop.f32.mrb[0].mxu0
      %v731 = vpop.f32.mrb[0].mxu0
      %v732 = vadd.f32 0.0, %v731
      %v733 = vpop.f32.mrb[0].mxu0
      %734 = vmatprep.mubr.bf16.mxu0 0
      %735 = vmatmul.mubr.bf16.gmra.mrb[0].mxu0 %v626
      %v736 = vpop.f32.mrb[0].mxu0
      %v737 = vadd.f32 0.0, %v736
      %v738 = vpop.f32.mrb[0].mxu0
      %v739 = vpop.f32.mrb[0].mxu0
      %v740 = vadd.f32 0.0, %v739
      %v741 = vpop.f32.mrb[0].mxu0
      %742 = vmatprep.mubr.bf16.mxu0 0
      %743 = vmatmul.mubr.bf16.gmra.mrb[0].mxu0 %v629
      %v744 = vpop.f32.mrb[0].mxu0
      %v745 = vadd.f32 0.0, %v744
      %v746 = vpop.f32.mrb[0].mxu0
      %v747 = vpop.f32.mrb[0].mxu0
      %v748 = vadd.f32 0.0, %v747
      %v749 = vpop.f32.mrb[0].mxu0
      %750 = vmatprep.mubr.bf16.mxu0 0
      %751 = vmatmul.mubr.bf16.gmra.mrb[0].mxu0 %v632
      %v752 = vpop.f32.mrb[0].mxu0
      %v753 = vadd.f32 0.0, %v752
      %v754 = vpop.f32.mrb[0].mxu0
      %v755 = vpop.f32.mrb[0].mxu0
      %v756 = vadd.f32 0.0, %v755
      %v757 = vpop.f32.mrb[0].mxu0
      %758 = vmatprep.mubr.bf16.mxu0 0
      %759 = vmatmul.mubr.bf16.gmra.mrb[0].mxu0 %v635
      %v760 = vpop.f32.mrb[0].mxu0
      %v761 = vadd.f32 0.0, %v760
      %v762 = vpop.f32.mrb[0].mxu0
      %v763 = vpop.f32.mrb[0].mxu0
      %v764 = vadd.f32 0.0, %v763
      %v765 = vpop.f32.mrb[0].mxu0
      %766 = vmatprep.mubr.bf16.mxu0 0
      %767 = vmatmul.mubr.bf16.gmra.mrb[0].mxu0 %v638
      %v768 = vpop.f32.mrb[0].mxu0
      %v769 = vadd.f32 0.0, %v768
      %v770 = vpop.f32.mrb[0].mxu0
      %v771 = vpop.f32.mrb[0].mxu0
      %v772 = vadd.f32 0.0, %v771
      %v773 = vpop.f32.mrb[0].mxu0
      %774 = vmatprep.mubr.bf16.mxu0 0
      %775 = vmatmul.mubr.bf16.gmra.mrb[0].mxu0 %v641
      %v776 = vpop.f32.mrb[0].mxu0
      %v777 = vadd.f32 0.0, %v776
      %v778 = vpop.f32.mrb[0].mxu0
      %v779 = vpop.f32.mrb[0].mxu0
      %v780 = vadd.f32 0.0, %v779
      %v781 = vpop.f32.mrb[0].mxu0
      %782 = vmatprep.mubr.bf16.mxu0 0
      %783 = vmatmul.mubr.bf16.gmra.mrb[0].mxu0 %v644
      %v784 = vpop.f32.mrb[0].mxu0
      %v785 = vadd.f32 0.0, %v784
      %v786 = vpop.f32.mrb[0].mxu0
      %v787 = vpop.f32.mrb[0].mxu0
      %v788 = vadd.f32 0.0, %v787
      %v789 = vpop.f32.mrb[0].mxu0
      %790 = vmatprep.mubr.bf16.mxu0 0
      %791 = vmatmul.mubr.bf16.gmra.mrb[0].mxu0 %v647
      %v792 = vpop.f32.mrb[0].mxu0
      %v793 = vadd.f32 0.0, %v792
      %v794 = vpop.f32.mrb[0].mxu0
      %v795 = vpop.f32.mrb[0].mxu0
      %v796 = vadd.f32 0.0, %v795
      %v797 = vpop.f32.mrb[0].mxu0
      %798 = vmatprep.mubr.bf16.mxu0 0
      %799 = vmatmul.mubr.bf16.gmra.mrb[0].mxu0 %v650
      %v800 = vpop.f32.mrb[0].mxu0
      %v801 = vadd.f32 0.0, %v800
      %v802 = vpop.f32.mrb[0].mxu0
      %v803 = vpop.f32.mrb[0].mxu0
      %v804 = vadd.f32 0.0, %v803
      %v805 = vpop.f32.mrb[0].mxu0
      %806 = vmatprep.mubr.bf16.mxu0 0
      %807 = vmatmul.mubr.bf16.gmra.mrb[0].mxu0 %v653
      %v808 = vpop.f32.mrb[0].mxu0
      %v809 = vadd.f32 0.0, %v808
      %v810 = vpop.f32.mrb[0].mxu0
      %v811 = vpop.f32.mrb[0].mxu0
      %v812 = vadd.f32 0.0, %v811
      %v813 = vpop.f32.mrb[0].mxu0
      %814 = vmatprep.mubr.bf16.mxu0 0
      %815 = vmatmul.mubr.bf16.gmra.mrb[0].mxu0 %v656
      %v816 = vpop.f32.mrb[0].mxu0
      %v817 = vadd.f32 0.0, %v816
      %v818 = vpop.f32.mrb[0].mxu0
      %v819 = vpop.f32.mrb[0].mxu0
      %v820 = vadd.f32 0.0, %v819
      %v821 = vpop.f32.mrb[0].mxu0
      %822 = vdwg.mxu0
      %v824 = vsel %vm609, %v416, 0
      %v827 = vsel %vm609, %v417, 0
      %v830 = vsel %vm609, %v418, 0
      %v833 = vsel %vm609, %v419, 0
      %v836 = vsel %vm609, %v420, 0
      %v839 = vsel %vm609, %v421, 0
      %v842 = vsel %vm609, %v422, 0
      %v845 = vsel %vm609, %v423, 0
      %v848 = vsel %vm609, %v424, 0
      %v851 = vsel %vm609, %v425, 0
      %v854 = vsel %vm609, %v426, 0
      %v857 = vsel %vm609, %v427, 0
      %v860 = vsel %vm609, %v428, 0
      %v863 = vsel %vm609, %v429, 0
      %v866 = vsel %vm609, %v430, 0
      %v869 = vsel %vm609, %v431, 0
      %v872 = vsel %vm658, %v407, 0
      %874 = vmatprep.subr.bf16.mxu0 0
      %875 = vmatpush1.bf16.msra.mxu0 %v872
      %876 = vmatprep.subr.bf16.mxu0 0
      %877 = vmatpush1.bf16.msra.mxu0 0
      %878 = vmatprep.subr.bf16.mxu0 0
      %879 = vmatpush1.bf16.msra.mxu0 0
      %880 = vmatprep.subr.bf16.mxu0 0
      %881 = vmatpush1.bf16.msra.mxu0 0
      %882 = vmatprep.subr.bf16.mxu0 0
      %883 = vmatpush1.bf16.msra.mxu0 0
      %884 = vmatprep.subr.bf16.mxu0 0
      %885 = vmatpush1.bf16.msra.mxu0 0
      %886 = vmatprep.subr.bf16.mxu0 0
      %887 = vmatpush1.bf16.msra.mxu0 0
      %888 = vmatprep.subr.bf16.mxu0 0
      %889 = vmatpush1.bf16.msra.mxu0 0
      %890 = vmatprep.subr.bf16.mxu0 0
      %891 = vmatpush1.bf16.msra.mxu0 0
      %892 = vmatprep.subr.bf16.mxu0 0
      %893 = vmatpush1.bf16.msra.mxu0 0
      %894 = vmatprep.subr.bf16.mxu0 0
      %895 = vmatpush1.bf16.msra.mxu0 0
      %896 = vmatprep.subr.bf16.mxu0 0
      %897 = vmatpush1.bf16.msra.mxu0 0
      %898 = vmatprep.subr.bf16.mxu0 0
      %899 = vmatpush1.bf16.msra.mxu0 0
      %900 = vmatprep.subr.bf16.mxu0 0
      %901 = vmatpush1.bf16.msra.mxu0 0
      %902 = vmatprep.subr.bf16.mxu0 0
      %903 = vmatpush1.bf16.msra.mxu0 0
      %904 = vmatprep.subr.bf16.mxu0 0
      %905 = vmatpush1.bf16.msra.mxu0 0
      %906 = vmatprep.mubr.bf16.mxu0 0
      %907 = vmatmul.mubr.bf16.gmra.mrb[0].mxu0 %v824
      %v908 = vpop.f32.mrb[0].mxu0
      %v909 = vadd.f32 %v697, %v908
      %v910 = vpop.f32.mrb[0].mxu0
      %v911 = vpop.f32.mrb[0].mxu0
      %v912 = vadd.f32 %v700, %v911
      %v913 = vpop.f32.mrb[0].mxu0
      %914 = vmatprep.mubr.bf16.mxu0 0
      %915 = vmatmul.mubr.bf16.gmra.mrb[0].mxu0 %v827
      %v916 = vpop.f32.mrb[0].mxu0
      %v917 = vadd.f32 %v705, %v916
      %v918 = vpop.f32.mrb[0].mxu0
      %v919 = vpop.f32.mrb[0].mxu0
      %v920 = vadd.f32 %v708, %v919
      %v921 = vpop.f32.mrb[0].mxu0
      %922 = vmatprep.mubr.bf16.mxu0 0
      %923 = vmatmul.mubr.bf16.gmra.mrb[0].mxu0 %v830
      %v924 = vpop.f32.mrb[0].mxu0
      %v925 = vadd.f32 %v713, %v924
      %v926 = vpop.f32.mrb[0].mxu0
      %v927 = vpop.f32.mrb[0].mxu0
      %v928 = vadd.f32 %v716, %v927
      %v929 = vpop.f32.mrb[0].mxu0
      %930 = vmatprep.mubr.bf16.mxu0 0
      %931 = vmatmul.mubr.bf16.gmra.mrb[0].mxu0 %v833
      %v932 = vpop.f32.mrb[0].mxu0
      %v933 = vadd.f32 %v721, %v932
      %v934 = vpop.f32.mrb[0].mxu0
      %v935 = vpop.f32.mrb[0].mxu0
      %v936 = vadd.f32 %v724, %v935
      %v937 = vpop.f32.mrb[0].mxu0
      %938 = vmatprep.mubr.bf16.mxu0 0
      %939 = vmatmul.mubr.bf16.gmra.mrb[0].mxu0 %v836
      %v940 = vpop.f32.mrb[0].mxu0
      %v941 = vadd.f32 %v729, %v940
      %v942 = vpop.f32.mrb[0].mxu0
      %v943 = vpop.f32.mrb[0].mxu0
      %v944 = vadd.f32 %v732, %v943
      %v945 = vpop.f32.mrb[0].mxu0
      %946 = vmatprep.mubr.bf16.mxu0 0
      %947 = vmatmul.mubr.bf16.gmra.mrb[0].mxu0 %v839
      %v948 = vpop.f32.mrb[0].mxu0
      %v949 = vadd.f32 %v737, %v948
      %v950 = vpop.f32.mrb[0].mxu0
      %v951 = vpop.f32.mrb[0].mxu0
      %v952 = vadd.f32 %v740, %v951
      %v953 = vpop.f32.mrb[0].mxu0
      %954 = vmatprep.mubr.bf16.mxu0 0
      %955 = vmatmul.mubr.bf16.gmra.mrb[0].mxu0 %v842
      %v956 = vpop.f32.mrb[0].mxu0
      %v957 = vadd.f32 %v745, %v956
      %v958 = vpop.f32.mrb[0].mxu0
      %v959 = vpop.f32.mrb[0].mxu0
      %v960 = vadd.f32 %v748, %v959
      %v961 = vpop.f32.mrb[0].mxu0
      %962 = vmatprep.mubr.bf16.mxu0 0
      %963 = vmatmul.mubr.bf16.gmra.mrb[0].mxu0 %v845
      %v964 = vpop.f32.mrb[0].mxu0
      %v965 = vadd.f32 %v753, %v964
      %v966 = vpop.f32.mrb[0].mxu0
      %v967 = vpop.f32.mrb[0].mxu0
      %v968 = vadd.f32 %v756, %v967
      %v969 = vpop.f32.mrb[0].mxu0
      %970 = vmatprep.mubr.bf16.mxu0 0
      %971 = vmatmul.mubr.bf16.gmra.mrb[0].mxu0 %v848
      %v972 = vpop.f32.mrb[0].mxu0
      %v973 = vadd.f32 %v761, %v972
      %v974 = vpop.f32.mrb[0].mxu0
      %v975 = vpop.f32.mrb[0].mxu0
      %v976 = vadd.f32 %v764, %v975
      %v977 = vpop.f32.mrb[0].mxu0
      %978 = vmatprep.mubr.bf16.mxu0 0
      %979 = vmatmul.mubr.bf16.gmra.mrb[0].mxu0 %v851
      %v980 = vpop.f32.mrb[0].mxu0
      %v981 = vadd.f32 %v769, %v980
      %v982 = vpop.f32.mrb[0].mxu0
      %v983 = vpop.f32.mrb[0].mxu0
      %v984 = vadd.f32 %v772, %v983
      %v985 = vpop.f32.mrb[0].mxu0
      %986 = vmatprep.mubr.bf16.mxu0 0
      %987 = vmatmul.mubr.bf16.gmra.mrb[0].mxu0 %v854
      %v988 = vpop.f32.mrb[0].mxu0
      %v989 = vadd.f32 %v777, %v988
      %v990 = vpop.f32.mrb[0].mxu0
      %v991 = vpop.f32.mrb[0].mxu0
      %v992 = vadd.f32 %v780, %v991
      %v993 = vpop.f32.mrb[0].mxu0
      %994 = vmatprep.mubr.bf16.mxu0 0
      %995 = vmatmul.mubr.bf16.gmra.mrb[0].mxu0 %v857
      %v996 = vpop.f32.mrb[0].mxu0
      %v997 = vadd.f32 %v785, %v996
      %v998 = vpop.f32.mrb[0].mxu0
      %v999 = vpop.f32.mrb[0].mxu0
      %v1000 = vadd.f32 %v788, %v999
      %v1001 = vpop.f32.mrb[0].mxu0
      %1002 = vmatprep.mubr.bf16.mxu0 0
      %1003 = vmatmul.mubr.bf16.gmra.mrb[0].mxu0 %v860
      %v1004 = vpop.f32.mrb[0].mxu0
      %v1005 = vadd.f32 %v793, %v1004
      %v1006 = vpop.f32.mrb[0].mxu0
      %v1007 = vpop.f32.mrb[0].mxu0
      %v1008 = vadd.f32 %v796, %v1007
      %v1009 = vpop.f32.mrb[0].mxu0
      %1010 = vmatprep.mubr.bf16.mxu0 0
      %1011 = vmatmul.mubr.bf16.gmra.mrb[0].mxu0 %v863
      %v1012 = vpop.f32.mrb[0].mxu0
      %v1013 = vadd.f32 %v801, %v1012
      %v1014 = vpop.f32.mrb[0].mxu0
      %v1015 = vpop.f32.mrb[0].mxu0
      %v1016 = vadd.f32 %v804, %v1015
      %v1017 = vpop.f32.mrb[0].mxu0
      %1018 = vmatprep.mubr.bf16.mxu0 0
      %1019 = vmatmul.mubr.bf16.gmra.mrb[0].mxu0 %v866
      %v1020 = vpop.f32.mrb[0].mxu0
      %v1021 = vadd.f32 %v809, %v1020
      %v1022 = vpop.f32.mrb[0].mxu0
      %v1023 = vpop.f32.mrb[0].mxu0
      %v1024 = vadd.f32 %v812, %v1023
      %v1025 = vpop.f32.mrb[0].mxu0
      %1026 = vmatprep.mubr.bf16.mxu0 0
      %1027 = vmatmul.mubr.bf16.gmra.mrb[0].mxu0 %v869
      %v1028 = vpop.f32.mrb[0].mxu0
      %v1029 = vadd.f32 %v817, %v1028
      %v1030 = vpop.f32.mrb[0].mxu0
      %v1031 = vpop.f32.mrb[0].mxu0
      %v1032 = vadd.f32 %v820, %v1031
      %v1033 = vpop.f32.mrb[0].mxu0
      %1034 = vdwg.mxu0
      %vm1035 = vcmask 1045504
      %v1036 = vrot.slane %v353, 2
      %v1037 = vrot.slane %v354, 2
      %v1038 = vsel %vm1035, %v1036, %v1037
      %v1039 = vrot.slane %v355, 2
      %v1040 = vsel %vm1035, %v1037, %v1039
      %v1041 = vrot.slane %v356, 2
      %v1042 = vrot.slane %v357, 2
      %v1043 = vsel %vm1035, %v1041, %v1042
      %v1044 = vrot.slane %v358, 2
      %v1045 = vsel %vm1035, %v1042, %v1044
      %v1046 = vrot.slane %v359, 2
      %v1047 = vrot.slane %v360, 2
      %v1048 = vsel %vm1035, %v1046, %v1047
      %v1049 = vrot.slane %v361, 2
      %v1050 = vsel %vm1035, %v1047, %v1049
      %v1051 = vrot.slane %v362, 2
      %v1052 = vrot.slane %v363, 2
      %v1053 = vsel %vm1035, %v1051, %v1052
      %v1054 = vrot.slane %v364, 2
      %v1055 = vsel %vm1035, %v1052, %v1054
      %v1056 = vrot.slane %v365, 2
      %v1057 = vrot.slane %v366, 2
      %v1058 = vsel %vm1035, %v1056, %v1057
      %v1059 = vrot.slane %v367, 2
      %v1060 = vsel %vm1035, %v1057, %v1059
      %v1061 = vrot.slane %v368, 2
      %v1062 = vrot.slane %v369, 2
      %v1063 = vsel %vm1035, %v1061, %v1062
      %v1064 = vrot.slane %v370, 2
      %v1065 = vsel %vm1035, %v1062, %v1064
      %v1066 = vrot.slane %v371, 2
      %v1067 = vrot.slane %v372, 2
      %v1068 = vsel %vm1035, %v1066, %v1067
      %v1069 = vrot.slane %v373, 2
      %v1070 = vsel %vm1035, %v1067, %v1069
      %v1071 = vrot.slane %v374, 2
      %v1072 = vrot.slane %v375, 2
      %v1073 = vsel %vm1035, %v1071, %v1072
      %v1074 = vrot.slane %v376, 2
      %v1075 = vsel %vm1035, %v1072, %v1074
      %v1076 = vrot.slane %v377, 2
      %v1077 = vrot.slane %v378, 2
      %v1078 = vsel %vm1035, %v1076, %v1077
      %v1079 = vrot.slane %v379, 2
      %v1080 = vsel %vm1035, %v1077, %v1079
      %v1081 = vrot.slane %v380, 2
      %v1082 = vrot.slane %v381, 2
      %v1083 = vsel %vm1035, %v1081, %v1082
      %v1084 = vrot.slane %v382, 2
      %v1085 = vsel %vm1035, %v1082, %v1084
      %v1086 = vrot.slane %v383, 2
      %v1087 = vrot.slane %v384, 2
      %v1088 = vsel %vm1035, %v1086, %v1087
      %v1089 = vrot.slane %v385, 2
      %v1090 = vsel %vm1035, %v1087, %v1089
      %v1091 = vrot.slane %v386, 2
      %v1092 = vrot.slane %v387, 2
      %v1093 = vsel %vm1035, %v1091, %v1092
      %v1094 = vrot.slane %v388, 2
      %v1095 = vsel %vm1035, %v1092, %v1094
      %v1096 = vrot.slane %v389, 2
      %v1097 = vrot.slane %v390, 2
      %v1098 = vsel %vm1035, %v1096, %v1097
      %v1099 = vrot.slane %v391, 2
      %v1100 = vsel %vm1035, %v1097, %v1099
      %v1101 = vrot.slane %v392, 2
      %v1102 = vrot.slane %v393, 2
      %v1103 = vsel %vm1035, %v1101, %v1102
      %v1104 = vrot.slane %v394, 2
      %v1105 = vsel %vm1035, %v1102, %v1104
      %v1106 = vrot.slane %v395, 2
      %v1107 = vrot.slane %v396, 2
      %v1108 = vsel %vm1035, %v1106, %v1107
      %v1109 = vrot.slane %v397, 2
      %v1110 = vsel %vm1035, %v1107, %v1109
      %v1111 = vrot.slane %v398, 2
      %v1112 = vrot.slane %v399, 2
      %v1113 = vsel %vm1035, %v1111, %v1112
      %v1114 = vrot.slane %v400, 2
      %v1115 = vsel %vm1035, %v1112, %v1114
      %v1148 = vpack.c.bf16 %v1040, %v1038
      %v1149 = vpack.c.bf16 %v1045, %v1043
      %v1150 = vpack.c.bf16 %v1050, %v1048
      %v1151 = vpack.c.bf16 %v1055, %v1053
      %v1152 = vpack.c.bf16 %v1060, %v1058
      %v1153 = vpack.c.bf16 %v1065, %v1063
      %v1154 = vpack.c.bf16 %v1070, %v1068
      %v1155 = vpack.c.bf16 %v1075, %v1073
      %v1156 = vpack.c.bf16 %v1080, %v1078
      %v1157 = vpack.c.bf16 %v1085, %v1083
      %v1158 = vpack.c.bf16 %v1090, %v1088
      %v1159 = vpack.c.bf16 %v1095, %v1093
      %v1160 = vpack.c.bf16 %v1100, %v1098
      %v1161 = vpack.c.bf16 %v1105, %v1103
      %v1162 = vpack.c.bf16 %v1110, %v1108
      %v1163 = vpack.c.bf16 %v1115, %v1113
      %v1165 = vsel %vm609, %v1148, 0
      %v1168 = vsel %vm609, %v1149, 0
      %v1171 = vsel %vm609, %v1150, 0
      %v1174 = vsel %vm609, %v1151, 0
      %v1177 = vsel %vm609, %v1152, 0
      %v1180 = vsel %vm609, %v1153, 0
      %v1183 = vsel %vm609, %v1154, 0
      %v1186 = vsel %vm609, %v1155, 0
      %v1189 = vsel %vm609, %v1156, 0
      %v1192 = vsel %vm609, %v1157, 0
      %v1195 = vsel %vm609, %v1158, 0
      %v1198 = vsel %vm609, %v1159, 0
      %v1201 = vsel %vm609, %v1160, 0
      %v1204 = vsel %vm609, %v1161, 0
      %v1207 = vsel %vm609, %v1162, 0
      %v1210 = vsel %vm609, %v1163, 0
      %v1213 = vsel %vm658, %v409, 0
      %1215 = vmatprep.subr.bf16.mxu0 0
      %1216 = vmatpush1.bf16.msra.mxu0 %v1213
      %1217 = vmatprep.subr.bf16.mxu0 0
      %1218 = vmatpush1.bf16.msra.mxu0 0
      %1219 = vmatprep.subr.bf16.mxu0 0
      %1220 = vmatpush1.bf16.msra.mxu0 0
      %1221 = vmatprep.subr.bf16.mxu0 0
      %1222 = vmatpush1.bf16.msra.mxu0 0
      %1223 = vmatprep.subr.bf16.mxu0 0
      %1224 = vmatpush1.bf16.msra.mxu0 0
      %1225 = vmatprep.subr.bf16.mxu0 0
      %1226 = vmatpush1.bf16.msra.mxu0 0
      %1227 = vmatprep.subr.bf16.mxu0 0
      %1228 = vmatpush1.bf16.msra.mxu0 0
      %1229 = vmatprep.subr.bf16.mxu0 0
      %1230 = vmatpush1.bf16.msra.mxu0 0
      %1231 = vmatprep.subr.bf16.mxu0 0
      %1232 = vmatpush1.bf16.msra.mxu0 0
      %1233 = vmatprep.subr.bf16.mxu0 0
      %1234 = vmatpush1.bf16.msra.mxu0 0
      %1235 = vmatprep.subr.bf16.mxu0 0
      %1236 = vmatpush1.bf16.msra.mxu0 0
      %1237 = vmatprep.subr.bf16.mxu0 0
      %1238 = vmatpush1.bf16.msra.mxu0 0
      %1239 = vmatprep.subr.bf16.mxu0 0
      %1240 = vmatpush1.bf16.msra.mxu0 0
      %1241 = vmatprep.subr.bf16.mxu0 0
      %1242 = vmatpush1.bf16.msra.mxu0 0
      %1243 = vmatprep.subr.bf16.mxu0 0
      %1244 = vmatpush1.bf16.msra.mxu0 0
      %1245 = vmatprep.subr.bf16.mxu0 0
      %1246 = vmatpush1.bf16.msra.mxu0 0
      %1247 = vmatprep.mubr.bf16.mxu0 0
      %1248 = vmatmul.mubr.bf16.gmra.mrb[0].mxu0 %v1165
      %v1249 = vpop.f32.mrb[0].mxu0
      %v1250 = vadd.f32 0.0, %v1249
      %v1251 = vpop.f32.mrb[0].mxu0
      %v1252 = vpop.f32.mrb[0].mxu0
      %v1253 = vadd.f32 0.0, %v1252
      %v1254 = vpop.f32.mrb[0].mxu0
      %1255 = vmatprep.mubr.bf16.mxu0 0
      %1256 = vmatmul.mubr.bf16.gmra.mrb[0].mxu0 %v1168
      %v1257 = vpop.f32.mrb[0].mxu0
      %v1258 = vadd.f32 0.0, %v1257
      %v1259 = vpop.f32.mrb[0].mxu0
      %v1260 = vpop.f32.mrb[0].mxu0
      %v1261 = vadd.f32 0.0, %v1260
      %v1262 = vpop.f32.mrb[0].mxu0
      %1263 = vmatprep.mubr.bf16.mxu0 0
      %1264 = vmatmul.mubr.bf16.gmra.mrb[0].mxu0 %v1171
      %v1265 = vpop.f32.mrb[0].mxu0
      %v1266 = vadd.f32 0.0, %v1265
      %v1267 = vpop.f32.mrb[0].mxu0
      %v1268 = vpop.f32.mrb[0].mxu0
      %v1269 = vadd.f32 0.0, %v1268
      %v1270 = vpop.f32.mrb[0].mxu0
      %1271 = vmatprep.mubr.bf16.mxu0 0
      %1272 = vmatmul.mubr.bf16.gmra.mrb[0].mxu0 %v1174
      %v1273 = vpop.f32.mrb[0].mxu0
      %v1274 = vadd.f32 0.0, %v1273
      %v1275 = vpop.f32.mrb[0].mxu0
      %v1276 = vpop.f32.mrb[0].mxu0
      %v1277 = vadd.f32 0.0, %v1276
      %v1278 = vpop.f32.mrb[0].mxu0
      %1279 = vmatprep.mubr.bf16.mxu0 0
      %1280 = vmatmul.mubr.bf16.gmra.mrb[0].mxu0 %v1177
      %v1281 = vpop.f32.mrb[0].mxu0
      %v1282 = vadd.f32 0.0, %v1281
      %v1283 = vpop.f32.mrb[0].mxu0
      %v1284 = vpop.f32.mrb[0].mxu0
      %v1285 = vadd.f32 0.0, %v1284
      %v1286 = vpop.f32.mrb[0].mxu0
      %1287 = vmatprep.mubr.bf16.mxu0 0
      %1288 = vmatmul.mubr.bf16.gmra.mrb[0].mxu0 %v1180
      %v1289 = vpop.f32.mrb[0].mxu0
      %v1290 = vadd.f32 0.0, %v1289
      %v1291 = vpop.f32.mrb[0].mxu0
      %v1292 = vpop.f32.mrb[0].mxu0
      %v1293 = vadd.f32 0.0, %v1292
      %v1294 = vpop.f32.mrb[0].mxu0
      %1295 = vmatprep.mubr.bf16.mxu0 0
      %1296 = vmatmul.mubr.bf16.gmra.mrb[0].mxu0 %v1183
      %v1297 = vpop.f32.mrb[0].mxu0
      %v1298 = vadd.f32 0.0, %v1297
      %v1299 = vpop.f32.mrb[0].mxu0
      %v1300 = vpop.f32.mrb[0].mxu0
      %v1301 = vadd.f32 0.0, %v1300
      %v1302 = vpop.f32.mrb[0].mxu0
      %1303 = vmatprep.mubr.bf16.mxu0 0
      %1304 = vmatmul.mubr.bf16.gmra.mrb[0].mxu0 %v1186
      %v1305 = vpop.f32.mrb[0].mxu0
      %v1306 = vadd.f32 0.0, %v1305
      %v1307 = vpop.f32.mrb[0].mxu0
      %v1308 = vpop.f32.mrb[0].mxu0
      %v1309 = vadd.f32 0.0, %v1308
      %v1310 = vpop.f32.mrb[0].mxu0
      %1311 = vmatprep.mubr.bf16.mxu0 0
      %1312 = vmatmul.mubr.bf16.gmra.mrb[0].mxu0 %v1189
      %v1313 = vpop.f32.mrb[0].mxu0
      %v1314 = vadd.f32 0.0, %v1313
      %v1315 = vpop.f32.mrb[0].mxu0
      %v1316 = vpop.f32.mrb[0].mxu0
      %v1317 = vadd.f32 0.0, %v1316
      %v1318 = vpop.f32.mrb[0].mxu0
      %1319 = vmatprep.mubr.bf16.mxu0 0
      %1320 = vmatmul.mubr.bf16.gmra.mrb[0].mxu0 %v1192
      %v1321 = vpop.f32.mrb[0].mxu0
      %v1322 = vadd.f32 0.0, %v1321
      %v1323 = vpop.f32.mrb[0].mxu0
      %v1324 = vpop.f32.mrb[0].mxu0
      %v1325 = vadd.f32 0.0, %v1324
      %v1326 = vpop.f32.mrb[0].mxu0
      %1327 = vmatprep.mubr.bf16.mxu0 0
      %1328 = vmatmul.mubr.bf16.gmra.mrb[0].mxu0 %v1195
      %v1329 = vpop.f32.mrb[0].mxu0
      %v1330 = vadd.f32 0.0, %v1329
      %v1331 = vpop.f32.mrb[0].mxu0
      %v1332 = vpop.f32.mrb[0].mxu0
      %v1333 = vadd.f32 0.0, %v1332
      %v1334 = vpop.f32.mrb[0].mxu0
      %1335 = vmatprep.mubr.bf16.mxu0 0
      %1336 = vmatmul.mubr.bf16.gmra.mrb[0].mxu0 %v1198
      %v1337 = vpop.f32.mrb[0].mxu0
      %v1338 = vadd.f32 0.0, %v1337
      %v1339 = vpop.f32.mrb[0].mxu0
      %v1340 = vpop.f32.mrb[0].mxu0
      %v1341 = vadd.f32 0.0, %v1340
      %v1342 = vpop.f32.mrb[0].mxu0
      %1343 = vmatprep.mubr.bf16.mxu0 0
      %1344 = vmatmul.mubr.bf16.gmra.mrb[0].mxu0 %v1201
      %v1345 = vpop.f32.mrb[0].mxu0
      %v1346 = vadd.f32 0.0, %v1345
      %v1347 = vpop.f32.mrb[0].mxu0
      %v1348 = vpop.f32.mrb[0].mxu0
      %v1349 = vadd.f32 0.0, %v1348
      %v1350 = vpop.f32.mrb[0].mxu0
      %1351 = vmatprep.mubr.bf16.mxu0 0
      %1352 = vmatmul.mubr.bf16.gmra.mrb[0].mxu0 %v1204
      %v1353 = vpop.f32.mrb[0].mxu0
      %v1354 = vadd.f32 0.0, %v1353
      %v1355 = vpop.f32.mrb[0].mxu0
      %v1356 = vpop.f32.mrb[0].mxu0
      %v1357 = vadd.f32 0.0, %v1356
      %v1358 = vpop.f32.mrb[0].mxu0
      %1359 = vmatprep.mubr.bf16.mxu0 0
      %1360 = vmatmul.mubr.bf16.gmra.mrb[0].mxu0 %v1207
      %v1361 = vpop.f32.mrb[0].mxu0
      %v1362 = vadd.f32 0.0, %v1361
      %v1363 = vpop.f32.mrb[0].mxu0
      %v1364 = vpop.f32.mrb[0].mxu0
      %v1365 = vadd.f32 0.0, %v1364
      %v1366 = vpop.f32.mrb[0].mxu0
      %1367 = vmatprep.mubr.bf16.mxu0 0
      %1368 = vmatmul.mubr.bf16.gmra.mrb[0].mxu0 %v1210
      %v1369 = vpop.f32.mrb[0].mxu0
      %v1370 = vadd.f32 0.0, %v1369
      %v1371 = vpop.f32.mrb[0].mxu0
      %v1372 = vpop.f32.mrb[0].mxu0
      %v1373 = vadd.f32 0.0, %v1372
      %v1374 = vpop.f32.mrb[0].mxu0
      %1375 = vdwg.mxu0
      %v1376 = vadd.f32 %v909, %v1250
      %v1377 = vadd.f32 %v912, %v1253
      %v1378 = vadd.f32 %v917, %v1258
      %v1379 = vadd.f32 %v920, %v1261
      %v1380 = vadd.f32 %v925, %v1266
      %v1381 = vadd.f32 %v928, %v1269
      %v1382 = vadd.f32 %v933, %v1274
      %v1383 = vadd.f32 %v936, %v1277
      %v1384 = vadd.f32 %v941, %v1282
      %v1385 = vadd.f32 %v944, %v1285
      %v1386 = vadd.f32 %v949, %v1290
      %v1387 = vadd.f32 %v952, %v1293
      %v1388 = vadd.f32 %v957, %v1298
      %v1389 = vadd.f32 %v960, %v1301
      %v1390 = vadd.f32 %v965, %v1306
      %v1391 = vadd.f32 %v968, %v1309
      %v1392 = vadd.f32 %v973, %v1314
      %v1393 = vadd.f32 %v976, %v1317
      %v1394 = vadd.f32 %v981, %v1322
      %v1395 = vadd.f32 %v984, %v1325
      %v1396 = vadd.f32 %v989, %v1330
      %v1397 = vadd.f32 %v992, %v1333
      %v1398 = vadd.f32 %v997, %v1338
      %v1399 = vadd.f32 %v1000, %v1341
      %v1400 = vadd.f32 %v1005, %v1346
      %v1401 = vadd.f32 %v1008, %v1349
      %v1402 = vadd.f32 %v1013, %v1354
      %v1403 = vadd.f32 %v1016, %v1357
      %v1404 = vadd.f32 %v1021, %v1362
      %v1405 = vadd.f32 %v1024, %v1365
      %v1406 = vadd.f32 %v1029, %v1370
      %v1407 = vadd.f32 %v1032, %v1373
      %v1408 = vpack.c.bf16 %v402, %v401
      %v1410 = vsel %vm609, %v1408, 0
      %v1413 = vsel %vm658, %v410, 0
      %1415 = vmatprep.subr.bf16.mxu0 0
      %1416 = vmatpush1.bf16.msra.mxu0 %v1413
      %1417 = vmatprep.subr.bf16.mxu0 0
      %1418 = vmatpush1.bf16.msra.mxu0 0
      %1419 = vmatprep.subr.bf16.mxu0 0
      %1420 = vmatpush1.bf16.msra.mxu0 0
      %1421 = vmatprep.subr.bf16.mxu0 0
      %1422 = vmatpush1.bf16.msra.mxu0 0
      %1423 = vmatprep.subr.bf16.mxu0 0
      %1424 = vmatpush1.bf16.msra.mxu0 0
      %1425 = vmatprep.subr.bf16.mxu0 0
      %1426 = vmatpush1.bf16.msra.mxu0 0
      %1427 = vmatprep.subr.bf16.mxu0 0
      %1428 = vmatpush1.bf16.msra.mxu0 0
      %1429 = vmatprep.subr.bf16.mxu0 0
      %1430 = vmatpush1.bf16.msra.mxu0 0
      %1431 = vmatprep.subr.bf16.mxu0 0
      %1432 = vmatpush1.bf16.msra.mxu0 0
      %1433 = vmatprep.subr.bf16.mxu0 0
      %1434 = vmatpush1.bf16.msra.mxu0 0
      %1435 = vmatprep.subr.bf16.mxu0 0
      %1436 = vmatpush1.bf16.msra.mxu0 0
      %1437 = vmatprep.subr.bf16.mxu0 0
      %1438 = vmatpush1.bf16.msra.mxu0 0
      %1439 = vmatprep.subr.bf16.mxu0 0
      %1440 = vmatpush1.bf16.msra.mxu0 0
      %1441 = vmatprep.subr.bf16.mxu0 0
      %1442 = vmatpush1.bf16.msra.mxu0 0
      %1443 = vmatprep.subr.bf16.mxu0 0
      %1444 = vmatpush1.bf16.msra.mxu0 0
      %1445 = vmatprep.subr.bf16.mxu0 0
      %1446 = vmatpush1.bf16.msra.mxu0 0
      %1447 = vmatprep.mubr.bf16.mxu0 0
      %1448 = vmatmul.mubr.bf16.gmra.mrb[0].mxu0 %v827
      %v1449 = vpop.f32.mrb[0].mxu0
      %v1450 = vadd.f32 0.0, %v1449
      %v1451 = vpop.f32.mrb[0].mxu0
      %v1452 = vpop.f32.mrb[0].mxu0
      %v1453 = vadd.f32 0.0, %v1452
      %v1454 = vpop.f32.mrb[0].mxu0
      %1455 = vmatprep.mubr.bf16.mxu0 0
      %1456 = vmatmul.mubr.bf16.gmra.mrb[0].mxu0 %v830
      %v1457 = vpop.f32.mrb[0].mxu0
      %v1458 = vadd.f32 0.0, %v1457
      %v1459 = vpop.f32.mrb[0].mxu0
      %v1460 = vpop.f32.mrb[0].mxu0
      %v1461 = vadd.f32 0.0, %v1460
      %v1462 = vpop.f32.mrb[0].mxu0
      %1463 = vmatprep.mubr.bf16.mxu0 0
      %1464 = vmatmul.mubr.bf16.gmra.mrb[0].mxu0 %v833
      %v1465 = vpop.f32.mrb[0].mxu0
      %v1466 = vadd.f32 0.0, %v1465
      %v1467 = vpop.f32.mrb[0].mxu0
      %v1468 = vpop.f32.mrb[0].mxu0
      %v1469 = vadd.f32 0.0, %v1468
      %v1470 = vpop.f32.mrb[0].mxu0
      %1471 = vmatprep.mubr.bf16.mxu0 0
      %1472 = vmatmul.mubr.bf16.gmra.mrb[0].mxu0 %v836
      %v1473 = vpop.f32.mrb[0].mxu0
      %v1474 = vadd.f32 0.0, %v1473
      %v1475 = vpop.f32.mrb[0].mxu0
      %v1476 = vpop.f32.mrb[0].mxu0
      %v1477 = vadd.f32 0.0, %v1476
      %v1478 = vpop.f32.mrb[0].mxu0
      %1479 = vmatprep.mubr.bf16.mxu0 0
      %1480 = vmatmul.mubr.bf16.gmra.mrb[0].mxu0 %v839
      %v1481 = vpop.f32.mrb[0].mxu0
      %v1482 = vadd.f32 0.0, %v1481
      %v1483 = vpop.f32.mrb[0].mxu0
      %v1484 = vpop.f32.mrb[0].mxu0
      %v1485 = vadd.f32 0.0, %v1484
      %v1486 = vpop.f32.mrb[0].mxu0
      %1487 = vmatprep.mubr.bf16.mxu0 0
      %1488 = vmatmul.mubr.bf16.gmra.mrb[0].mxu0 %v842
      %v1489 = vpop.f32.mrb[0].mxu0
      %v1490 = vadd.f32 0.0, %v1489
      %v1491 = vpop.f32.mrb[0].mxu0
      %v1492 = vpop.f32.mrb[0].mxu0
      %v1493 = vadd.f32 0.0, %v1492
      %v1494 = vpop.f32.mrb[0].mxu0
      %1495 = vmatprep.mubr.bf16.mxu0 0
      %1496 = vmatmul.mubr.bf16.gmra.mrb[0].mxu0 %v845
      %v1497 = vpop.f32.mrb[0].mxu0
      %v1498 = vadd.f32 0.0, %v1497
      %v1499 = vpop.f32.mrb[0].mxu0
      %v1500 = vpop.f32.mrb[0].mxu0
      %v1501 = vadd.f32 0.0, %v1500
      %v1502 = vpop.f32.mrb[0].mxu0
      %1503 = vmatprep.mubr.bf16.mxu0 0
      %1504 = vmatmul.mubr.bf16.gmra.mrb[0].mxu0 %v848
      %v1505 = vpop.f32.mrb[0].mxu0
      %v1506 = vadd.f32 0.0, %v1505
      %v1507 = vpop.f32.mrb[0].mxu0
      %v1508 = vpop.f32.mrb[0].mxu0
      %v1509 = vadd.f32 0.0, %v1508
      %v1510 = vpop.f32.mrb[0].mxu0
      %1511 = vmatprep.mubr.bf16.mxu0 0
      %1512 = vmatmul.mubr.bf16.gmra.mrb[0].mxu0 %v851
      %v1513 = vpop.f32.mrb[0].mxu0
      %v1514 = vadd.f32 0.0, %v1513
      %v1515 = vpop.f32.mrb[0].mxu0
      %v1516 = vpop.f32.mrb[0].mxu0
      %v1517 = vadd.f32 0.0, %v1516
      %v1518 = vpop.f32.mrb[0].mxu0
      %1519 = vmatprep.mubr.bf16.mxu0 0
      %1520 = vmatmul.mubr.bf16.gmra.mrb[0].mxu0 %v854
      %v1521 = vpop.f32.mrb[0].mxu0
      %v1522 = vadd.f32 0.0, %v1521
      %v1523 = vpop.f32.mrb[0].mxu0
      %v1524 = vpop.f32.mrb[0].mxu0
      %v1525 = vadd.f32 0.0, %v1524
      %v1526 = vpop.f32.mrb[0].mxu0
      %1527 = vmatprep.mubr.bf16.mxu0 0
      %1528 = vmatmul.mubr.bf16.gmra.mrb[0].mxu0 %v857
      %v1529 = vpop.f32.mrb[0].mxu0
      %v1530 = vadd.f32 0.0, %v1529
      %v1531 = vpop.f32.mrb[0].mxu0
      %v1532 = vpop.f32.mrb[0].mxu0
      %v1533 = vadd.f32 0.0, %v1532
      %v1534 = vpop.f32.mrb[0].mxu0
      %1535 = vmatprep.mubr.bf16.mxu0 0
      %1536 = vmatmul.mubr.bf16.gmra.mrb[0].mxu0 %v860
      %v1537 = vpop.f32.mrb[0].mxu0
      %v1538 = vadd.f32 0.0, %v1537
      %v1539 = vpop.f32.mrb[0].mxu0
      %v1540 = vpop.f32.mrb[0].mxu0
      %v1541 = vadd.f32 0.0, %v1540
      %v1542 = vpop.f32.mrb[0].mxu0
      %1543 = vmatprep.mubr.bf16.mxu0 0
      %1544 = vmatmul.mubr.bf16.gmra.mrb[0].mxu0 %v863
      %v1545 = vpop.f32.mrb[0].mxu0
      %v1546 = vadd.f32 0.0, %v1545
      %v1547 = vpop.f32.mrb[0].mxu0
      %v1548 = vpop.f32.mrb[0].mxu0
      %v1549 = vadd.f32 0.0, %v1548
      %v1550 = vpop.f32.mrb[0].mxu0
      %1551 = vmatprep.mubr.bf16.mxu0 0
      %1552 = vmatmul.mubr.bf16.gmra.mrb[0].mxu0 %v866
      %v1553 = vpop.f32.mrb[0].mxu0
      %v1554 = vadd.f32 0.0, %v1553
      %v1555 = vpop.f32.mrb[0].mxu0
      %v1556 = vpop.f32.mrb[0].mxu0
      %v1557 = vadd.f32 0.0, %v1556
      %v1558 = vpop.f32.mrb[0].mxu0
      %1559 = vmatprep.mubr.bf16.mxu0 0
      %1560 = vmatmul.mubr.bf16.gmra.mrb[0].mxu0 %v869
      %v1561 = vpop.f32.mrb[0].mxu0
      %v1562 = vadd.f32 0.0, %v1561
      %v1563 = vpop.f32.mrb[0].mxu0
      %v1564 = vpop.f32.mrb[0].mxu0
      %v1565 = vadd.f32 0.0, %v1564
      %v1566 = vpop.f32.mrb[0].mxu0
      %1567 = vmatprep.mubr.bf16.mxu0 0
      %1568 = vmatmul.mubr.bf16.gmra.mrb[0].mxu0 %v1410
      %v1569 = vpop.f32.mrb[0].mxu0
      %v1570 = vadd.f32 0.0, %v1569
      %v1571 = vpop.f32.mrb[0].mxu0
      %v1572 = vpop.f32.mrb[0].mxu0
      %v1573 = vadd.f32 0.0, %v1572
      %v1574 = vpop.f32.mrb[0].mxu0
      %1575 = vdwg.mxu0
      %v1576 = vadd.f32 %v1376, %v1450
      %v1577 = vadd.f32 %v1377, %v1453
      %v1578 = vadd.f32 %v1378, %v1458
      %v1579 = vadd.f32 %v1379, %v1461
      %v1580 = vadd.f32 %v1380, %v1466
      %v1581 = vadd.f32 %v1381, %v1469
      %v1582 = vadd.f32 %v1382, %v1474
      %v1583 = vadd.f32 %v1383, %v1477
      %v1584 = vadd.f32 %v1384, %v1482
      %v1585 = vadd.f32 %v1385, %v1485
      %v1586 = vadd.f32 %v1386, %v1490
      %v1587 = vadd.f32 %v1387, %v1493
      %v1588 = vadd.f32 %v1388, %v1498
      %v1589 = vadd.f32 %v1389, %v1501
      %v1590 = vadd.f32 %v1390, %v1506
      %v1591 = vadd.f32 %v1391, %v1509
      %v1592 = vadd.f32 %v1392, %v1514
      %v1593 = vadd.f32 %v1393, %v1517
      %v1594 = vadd.f32 %v1394, %v1522
      %v1595 = vadd.f32 %v1395, %v1525
      %v1596 = vadd.f32 %v1396, %v1530
      %v1597 = vadd.f32 %v1397, %v1533
      %v1598 = vadd.f32 %v1398, %v1538
      %v1599 = vadd.f32 %v1399, %v1541
      %v1600 = vadd.f32 %v1400, %v1546
      %v1601 = vadd.f32 %v1401, %v1549
      %v1602 = vadd.f32 %v1402, %v1554
      %v1603 = vadd.f32 %v1403, %v1557
      %v1604 = vadd.f32 %v1404, %v1562
      %v1605 = vadd.f32 %v1405, %v1565
      %v1606 = vadd.f32 %v1406, %v1570
      %v1607 = vadd.f32 %v1407, %v1573
      %v1611 = vrot.slane %v401, 1
      %v1612 = vrot.slane %v402, 1
      %v1613 = vsel %vm480, %v1611, %v1612
      %v1614 = vrot.slane %v403, 1
      %v1615 = vsel %vm480, %v1612, %v1614
      %v1618 = vpack.c.bf16 %v1615, %v1613
      %v1620 = vsel %vm609, %v1618, 0
      %v1623 = vsel %vm658, %v411, 0
      %1625 = vmatprep.subr.bf16.mxu0 0
      %1626 = vmatpush1.bf16.msra.mxu0 %v1623
      %1627 = vmatprep.subr.bf16.mxu0 0
      %1628 = vmatpush1.bf16.msra.mxu0 0
      %1629 = vmatprep.subr.bf16.mxu0 0
      %1630 = vmatpush1.bf16.msra.mxu0 0
      %1631 = vmatprep.subr.bf16.mxu0 0
      %1632 = vmatpush1.bf16.msra.mxu0 0
      %1633 = vmatprep.subr.bf16.mxu0 0
      %1634 = vmatpush1.bf16.msra.mxu0 0
      %1635 = vmatprep.subr.bf16.mxu0 0
      %1636 = vmatpush1.bf16.msra.mxu0 0
      %1637 = vmatprep.subr.bf16.mxu0 0
      %1638 = vmatpush1.bf16.msra.mxu0 0
      %1639 = vmatprep.subr.bf16.mxu0 0
      %1640 = vmatpush1.bf16.msra.mxu0 0
      %1641 = vmatprep.subr.bf16.mxu0 0
      %1642 = vmatpush1.bf16.msra.mxu0 0
      %1643 = vmatprep.subr.bf16.mxu0 0
      %1644 = vmatpush1.bf16.msra.mxu0 0
      %1645 = vmatprep.subr.bf16.mxu0 0
      %1646 = vmatpush1.bf16.msra.mxu0 0
      %1647 = vmatprep.subr.bf16.mxu0 0
      %1648 = vmatpush1.bf16.msra.mxu0 0
      %1649 = vmatprep.subr.bf16.mxu0 0
      %1650 = vmatpush1.bf16.msra.mxu0 0
      %1651 = vmatprep.subr.bf16.mxu0 0
      %1652 = vmatpush1.bf16.msra.mxu0 0
      %1653 = vmatprep.subr.bf16.mxu0 0
      %1654 = vmatpush1.bf16.msra.mxu0 0
      %1655 = vmatprep.subr.bf16.mxu0 0
      %1656 = vmatpush1.bf16.msra.mxu0 0
      %1657 = vmatprep.mubr.bf16.mxu0 0
      %1658 = vmatmul.mubr.bf16.gmra.mrb[0].mxu0 %v614
      %v1659 = vpop.f32.mrb[0].mxu0
      %v1660 = vadd.f32 0.0, %v1659
      %v1661 = vpop.f32.mrb[0].mxu0
      %v1662 = vpop.f32.mrb[0].mxu0
      %v1663 = vadd.f32 0.0, %v1662
      %v1664 = vpop.f32.mrb[0].mxu0
      %1665 = vmatprep.mubr.bf16.mxu0 0
      %1666 = vmatmul.mubr.bf16.gmra.mrb[0].mxu0 %v617
      %v1667 = vpop.f32.mrb[0].mxu0
      %v1668 = vadd.f32 0.0, %v1667
      %v1669 = vpop.f32.mrb[0].mxu0
      %v1670 = vpop.f32.mrb[0].mxu0
      %v1671 = vadd.f32 0.0, %v1670
      %v1672 = vpop.f32.mrb[0].mxu0
      %1673 = vmatprep.mubr.bf16.mxu0 0
      %1674 = vmatmul.mubr.bf16.gmra.mrb[0].mxu0 %v620
      %v1675 = vpop.f32.mrb[0].mxu0
      %v1676 = vadd.f32 0.0, %v1675
      %v1677 = vpop.f32.mrb[0].mxu0
      %v1678 = vpop.f32.mrb[0].mxu0
      %v1679 = vadd.f32 0.0, %v1678
      %v1680 = vpop.f32.mrb[0].mxu0
      %1681 = vmatprep.mubr.bf16.mxu0 0
      %1682 = vmatmul.mubr.bf16.gmra.mrb[0].mxu0 %v623
      %v1683 = vpop.f32.mrb[0].mxu0
      %v1684 = vadd.f32 0.0, %v1683
      %v1685 = vpop.f32.mrb[0].mxu0
      %v1686 = vpop.f32.mrb[0].mxu0
      %v1687 = vadd.f32 0.0, %v1686
      %v1688 = vpop.f32.mrb[0].mxu0
      %1689 = vmatprep.mubr.bf16.mxu0 0
      %1690 = vmatmul.mubr.bf16.gmra.mrb[0].mxu0 %v626
      %v1691 = vpop.f32.mrb[0].mxu0
      %v1692 = vadd.f32 0.0, %v1691
      %v1693 = vpop.f32.mrb[0].mxu0
      %v1694 = vpop.f32.mrb[0].mxu0
      %v1695 = vadd.f32 0.0, %v1694
      %v1696 = vpop.f32.mrb[0].mxu0
      %1697 = vmatprep.mubr.bf16.mxu0 0
      %1698 = vmatmul.mubr.bf16.gmra.mrb[0].mxu0 %v629
      %v1699 = vpop.f32.mrb[0].mxu0
      %v1700 = vadd.f32 0.0, %v1699
      %v1701 = vpop.f32.mrb[0].mxu0
      %v1702 = vpop.f32.mrb[0].mxu0
      %v1703 = vadd.f32 0.0, %v1702
      %v1704 = vpop.f32.mrb[0].mxu0
      %1705 = vmatprep.mubr.bf16.mxu0 0
      %1706 = vmatmul.mubr.bf16.gmra.mrb[0].mxu0 %v632
      %v1707 = vpop.f32.mrb[0].mxu0
      %v1708 = vadd.f32 0.0, %v1707
      %v1709 = vpop.f32.mrb[0].mxu0
      %v1710 = vpop.f32.mrb[0].mxu0
      %v1711 = vadd.f32 0.0, %v1710
      %v1712 = vpop.f32.mrb[0].mxu0
      %1713 = vmatprep.mubr.bf16.mxu0 0
      %1714 = vmatmul.mubr.bf16.gmra.mrb[0].mxu0 %v635
      %v1715 = vpop.f32.mrb[0].mxu0
      %v1716 = vadd.f32 0.0, %v1715
      %v1717 = vpop.f32.mrb[0].mxu0
      %v1718 = vpop.f32.mrb[0].mxu0
      %v1719 = vadd.f32 0.0, %v1718
      %v1720 = vpop.f32.mrb[0].mxu0
      %1721 = vmatprep.mubr.bf16.mxu0 0
      %1722 = vmatmul.mubr.bf16.gmra.mrb[0].mxu0 %v638
      %v1723 = vpop.f32.mrb[0].mxu0
      %v1724 = vadd.f32 0.0, %v1723
      %v1725 = vpop.f32.mrb[0].mxu0
      %v1726 = vpop.f32.mrb[0].mxu0
      %v1727 = vadd.f32 0.0, %v1726
      %v1728 = vpop.f32.mrb[0].mxu0
      %1729 = vmatprep.mubr.bf16.mxu0 0
      %1730 = vmatmul.mubr.bf16.gmra.mrb[0].mxu0 %v641
      %v1731 = vpop.f32.mrb[0].mxu0
      %v1732 = vadd.f32 0.0, %v1731
      %v1733 = vpop.f32.mrb[0].mxu0
      %v1734 = vpop.f32.mrb[0].mxu0
      %v1735 = vadd.f32 0.0, %v1734
      %v1736 = vpop.f32.mrb[0].mxu0
      %1737 = vmatprep.mubr.bf16.mxu0 0
      %1738 = vmatmul.mubr.bf16.gmra.mrb[0].mxu0 %v644
      %v1739 = vpop.f32.mrb[0].mxu0
      %v1740 = vadd.f32 0.0, %v1739
      %v1741 = vpop.f32.mrb[0].mxu0
      %v1742 = vpop.f32.mrb[0].mxu0
      %v1743 = vadd.f32 0.0, %v1742
      %v1744 = vpop.f32.mrb[0].mxu0
      %1745 = vmatprep.mubr.bf16.mxu0 0
      %1746 = vmatmul.mubr.bf16.gmra.mrb[0].mxu0 %v647
      %v1747 = vpop.f32.mrb[0].mxu0
      %v1748 = vadd.f32 0.0, %v1747
      %v1749 = vpop.f32.mrb[0].mxu0
      %v1750 = vpop.f32.mrb[0].mxu0
      %v1751 = vadd.f32 0.0, %v1750
      %v1752 = vpop.f32.mrb[0].mxu0
      %1753 = vmatprep.mubr.bf16.mxu0 0
      %1754 = vmatmul.mubr.bf16.gmra.mrb[0].mxu0 %v650
      %v1755 = vpop.f32.mrb[0].mxu0
      %v1756 = vadd.f32 0.0, %v1755
      %v1757 = vpop.f32.mrb[0].mxu0
      %v1758 = vpop.f32.mrb[0].mxu0
      %v1759 = vadd.f32 0.0, %v1758
      %v1760 = vpop.f32.mrb[0].mxu0
      %1761 = vmatprep.mubr.bf16.mxu0 0
      %1762 = vmatmul.mubr.bf16.gmra.mrb[0].mxu0 %v653
      %v1763 = vpop.f32.mrb[0].mxu0
      %v1764 = vadd.f32 0.0, %v1763
      %v1765 = vpop.f32.mrb[0].mxu0
      %v1766 = vpop.f32.mrb[0].mxu0
      %v1767 = vadd.f32 0.0, %v1766
      %v1768 = vpop.f32.mrb[0].mxu0
      %1769 = vmatprep.mubr.bf16.mxu0 0
      %1770 = vmatmul.mubr.bf16.gmra.mrb[0].mxu0 %v656
      %v1771 = vpop.f32.mrb[0].mxu0
      %v1772 = vadd.f32 0.0, %v1771
      %v1773 = vpop.f32.mrb[0].mxu0
      %v1774 = vpop.f32.mrb[0].mxu0
      %v1775 = vadd.f32 0.0, %v1774
      %v1776 = vpop.f32.mrb[0].mxu0
      %1777 = vmatprep.mubr.bf16.mxu0 0
      %1778 = vmatmul.mubr.bf16.gmra.mrb[0].mxu0 %v1620
      %v1779 = vpop.f32.mrb[0].mxu0
      %v1780 = vadd.f32 0.0, %v1779
      %v1781 = vpop.f32.mrb[0].mxu0
      %v1782 = vpop.f32.mrb[0].mxu0
      %v1783 = vadd.f32 0.0, %v1782
      %v1784 = vpop.f32.mrb[0].mxu0
      %1785 = vdwg.mxu0
      %v1786 = vadd.f32 %v1576, %v1660
      %v1787 = vadd.f32 %v1577, %v1663
      %v1788 = vadd.f32 %v1578, %v1668
      %v1789 = vadd.f32 %v1579, %v1671
      %v1790 = vadd.f32 %v1580, %v1676
      %v1791 = vadd.f32 %v1581, %v1679
      %v1792 = vadd.f32 %v1582, %v1684
      %v1793 = vadd.f32 %v1583, %v1687
      %v1794 = vadd.f32 %v1584, %v1692
      %v1795 = vadd.f32 %v1585, %v1695
      %v1796 = vadd.f32 %v1586, %v1700
      %v1797 = vadd.f32 %v1587, %v1703
      %v1798 = vadd.f32 %v1588, %v1708
      %v1799 = vadd.f32 %v1589, %v1711
      %v1800 = vadd.f32 %v1590, %v1716
      %v1801 = vadd.f32 %v1591, %v1719
      %v1802 = vadd.f32 %v1592, %v1724
      %v1803 = vadd.f32 %v1593, %v1727
      %v1804 = vadd.f32 %v1594, %v1732
      %v1805 = vadd.f32 %v1595, %v1735
      %v1806 = vadd.f32 %v1596, %v1740
      %v1807 = vadd.f32 %v1597, %v1743
      %v1808 = vadd.f32 %v1598, %v1748
      %v1809 = vadd.f32 %v1599, %v1751
      %v1810 = vadd.f32 %v1600, %v1756
      %v1811 = vadd.f32 %v1601, %v1759
      %v1812 = vadd.f32 %v1602, %v1764
      %v1813 = vadd.f32 %v1603, %v1767
      %v1814 = vadd.f32 %v1604, %v1772
      %v1815 = vadd.f32 %v1605, %v1775
      %v1816 = vadd.f32 %v1606, %v1780
      %v1817 = vadd.f32 %v1607, %v1783
      %v1818 = vrot.slane %v401, 2
      %v1819 = vrot.slane %v402, 2
      %v1820 = vsel %vm1035, %v1818, %v1819
      %v1821 = vrot.slane %v403, 2
      %v1822 = vsel %vm1035, %v1819, %v1821
      %v1825 = vpack.c.bf16 %v1822, %v1820
      %v1827 = vsel %vm609, %v1825, 0
      %v1830 = vsel %vm658, %v412, 0
      %1832 = vmatprep.subr.bf16.mxu0 0
      %1833 = vmatpush1.bf16.msra.mxu0 %v1830
      %1834 = vmatprep.subr.bf16.mxu0 0
      %1835 = vmatpush1.bf16.msra.mxu0 0
      %1836 = vmatprep.subr.bf16.mxu0 0
      %1837 = vmatpush1.bf16.msra.mxu0 0
      %1838 = vmatprep.subr.bf16.mxu0 0
      %1839 = vmatpush1.bf16.msra.mxu0 0
      %1840 = vmatprep.subr.bf16.mxu0 0
      %1841 = vmatpush1.bf16.msra.mxu0 0
      %1842 = vmatprep.subr.bf16.mxu0 0
      %1843 = vmatpush1.bf16.msra.mxu0 0
      %1844 = vmatprep.subr.bf16.mxu0 0
      %1845 = vmatpush1.bf16.msra.mxu0 0
      %1846 = vmatprep.subr.bf16.mxu0 0
      %1847 = vmatpush1.bf16.msra.mxu0 0
      %1848 = vmatprep.subr.bf16.mxu0 0
      %1849 = vmatpush1.bf16.msra.mxu0 0
      %1850 = vmatprep.subr.bf16.mxu0 0
      %1851 = vmatpush1.bf16.msra.mxu0 0
      %1852 = vmatprep.subr.bf16.mxu0 0
      %1853 = vmatpush1.bf16.msra.mxu0 0
      %1854 = vmatprep.subr.bf16.mxu0 0
      %1855 = vmatpush1.bf16.msra.mxu0 0
      %1856 = vmatprep.subr.bf16.mxu0 0
      %1857 = vmatpush1.bf16.msra.mxu0 0
      %1858 = vmatprep.subr.bf16.mxu0 0
      %1859 = vmatpush1.bf16.msra.mxu0 0
      %1860 = vmatprep.subr.bf16.mxu0 0
      %1861 = vmatpush1.bf16.msra.mxu0 0
      %1862 = vmatprep.subr.bf16.mxu0 0
      %1863 = vmatpush1.bf16.msra.mxu0 0
      %1864 = vmatprep.mubr.bf16.mxu0 0
      %1865 = vmatmul.mubr.bf16.gmra.mrb[0].mxu0 %v1168
      %v1866 = vpop.f32.mrb[0].mxu0
      %v1867 = vadd.f32 0.0, %v1866
      %v1868 = vpop.f32.mrb[0].mxu0
      %v1869 = vpop.f32.mrb[0].mxu0
      %v1870 = vadd.f32 0.0, %v1869
      %v1871 = vpop.f32.mrb[0].mxu0
      %1872 = vmatprep.mubr.bf16.mxu0 0
      %1873 = vmatmul.mubr.bf16.gmra.mrb[0].mxu0 %v1171
      %v1874 = vpop.f32.mrb[0].mxu0
      %v1875 = vadd.f32 0.0, %v1874
      %v1876 = vpop.f32.mrb[0].mxu0
      %v1877 = vpop.f32.mrb[0].mxu0
      %v1878 = vadd.f32 0.0, %v1877
      %v1879 = vpop.f32.mrb[0].mxu0
      %1880 = vmatprep.mubr.bf16.mxu0 0
      %1881 = vmatmul.mubr.bf16.gmra.mrb[0].mxu0 %v1174
      %v1882 = vpop.f32.mrb[0].mxu0
      %v1883 = vadd.f32 0.0, %v1882
      %v1884 = vpop.f32.mrb[0].mxu0
      %v1885 = vpop.f32.mrb[0].mxu0
      %v1886 = vadd.f32 0.0, %v1885
      %v1887 = vpop.f32.mrb[0].mxu0
      %1888 = vmatprep.mubr.bf16.mxu0 0
      %1889 = vmatmul.mubr.bf16.gmra.mrb[0].mxu0 %v1177
      %v1890 = vpop.f32.mrb[0].mxu0
      %v1891 = vadd.f32 0.0, %v1890
      %v1892 = vpop.f32.mrb[0].mxu0
      %v1893 = vpop.f32.mrb[0].mxu0
      %v1894 = vadd.f32 0.0, %v1893
      %v1895 = vpop.f32.mrb[0].mxu0
      %1896 = vmatprep.mubr.bf16.mxu0 0
      %1897 = vmatmul.mubr.bf16.gmra.mrb[0].mxu0 %v1180
      %v1898 = vpop.f32.mrb[0].mxu0
      %v1899 = vadd.f32 0.0, %v1898
      %v1900 = vpop.f32.mrb[0].mxu0
      %v1901 = vpop.f32.mrb[0].mxu0
      %v1902 = vadd.f32 0.0, %v1901
      %v1903 = vpop.f32.mrb[0].mxu0
      %1904 = vmatprep.mubr.bf16.mxu0 0
      %1905 = vmatmul.mubr.bf16.gmra.mrb[0].mxu0 %v1183
      %v1906 = vpop.f32.mrb[0].mxu0
      %v1907 = vadd.f32 0.0, %v1906
      %v1908 = vpop.f32.mrb[0].mxu0
      %v1909 = vpop.f32.mrb[0].mxu0
      %v1910 = vadd.f32 0.0, %v1909
      %v1911 = vpop.f32.mrb[0].mxu0
      %1912 = vmatprep.mubr.bf16.mxu0 0
      %1913 = vmatmul.mubr.bf16.gmra.mrb[0].mxu0 %v1186
      %v1914 = vpop.f32.mrb[0].mxu0
      %v1915 = vadd.f32 0.0, %v1914
      %v1916 = vpop.f32.mrb[0].mxu0
      %v1917 = vpop.f32.mrb[0].mxu0
      %v1918 = vadd.f32 0.0, %v1917
      %v1919 = vpop.f32.mrb[0].mxu0
      %1920 = vmatprep.mubr.bf16.mxu0 0
      %1921 = vmatmul.mubr.bf16.gmra.mrb[0].mxu0 %v1189
      %v1922 = vpop.f32.mrb[0].mxu0
      %v1923 = vadd.f32 0.0, %v1922
      %v1924 = vpop.f32.mrb[0].mxu0
      %v1925 = vpop.f32.mrb[0].mxu0
      %v1926 = vadd.f32 0.0, %v1925
      %v1927 = vpop.f32.mrb[0].mxu0
      %1928 = vmatprep.mubr.bf16.mxu0 0
      %1929 = vmatmul.mubr.bf16.gmra.mrb[0].mxu0 %v1192
      %v1930 = vpop.f32.mrb[0].mxu0
      %v1931 = vadd.f32 0.0, %v1930
      %v1932 = vpop.f32.mrb[0].mxu0
      %v1933 = vpop.f32.mrb[0].mxu0
      %v1934 = vadd.f32 0.0, %v1933
      %v1935 = vpop.f32.mrb[0].mxu0
      %1936 = vmatprep.mubr.bf16.mxu0 0
      %1937 = vmatmul.mubr.bf16.gmra.mrb[0].mxu0 %v1195
      %v1938 = vpop.f32.mrb[0].mxu0
      %v1939 = vadd.f32 0.0, %v1938
      %v1940 = vpop.f32.mrb[0].mxu0
      %v1941 = vpop.f32.mrb[0].mxu0
      %v1942 = vadd.f32 0.0, %v1941
      %v1943 = vpop.f32.mrb[0].mxu0
      %1944 = vmatprep.mubr.bf16.mxu0 0
      %1945 = vmatmul.mubr.bf16.gmra.mrb[0].mxu0 %v1198
      %v1946 = vpop.f32.mrb[0].mxu0
      %v1947 = vadd.f32 0.0, %v1946
      %v1948 = vpop.f32.mrb[0].mxu0
      %v1949 = vpop.f32.mrb[0].mxu0
      %v1950 = vadd.f32 0.0, %v1949
      %v1951 = vpop.f32.mrb[0].mxu0
      %1952 = vmatprep.mubr.bf16.mxu0 0
      %1953 = vmatmul.mubr.bf16.gmra.mrb[0].mxu0 %v1201
      %v1954 = vpop.f32.mrb[0].mxu0
      %v1955 = vadd.f32 0.0, %v1954
      %v1956 = vpop.f32.mrb[0].mxu0
      %v1957 = vpop.f32.mrb[0].mxu0
      %v1958 = vadd.f32 0.0, %v1957
      %v1959 = vpop.f32.mrb[0].mxu0
      %1960 = vmatprep.mubr.bf16.mxu0 0
      %1961 = vmatmul.mubr.bf16.gmra.mrb[0].mxu0 %v1204
      %v1962 = vpop.f32.mrb[0].mxu0
      %v1963 = vadd.f32 0.0, %v1962
      %v1964 = vpop.f32.mrb[0].mxu0
      %v1965 = vpop.f32.mrb[0].mxu0
      %v1966 = vadd.f32 0.0, %v1965
      %v1967 = vpop.f32.mrb[0].mxu0
      %1968 = vmatprep.mubr.bf16.mxu0 0
      %1969 = vmatmul.mubr.bf16.gmra.mrb[0].mxu0 %v1207
      %v1970 = vpop.f32.mrb[0].mxu0
      %v1971 = vadd.f32 0.0, %v1970
      %v1972 = vpop.f32.mrb[0].mxu0
      %v1973 = vpop.f32.mrb[0].mxu0
      %v1974 = vadd.f32 0.0, %v1973
      %v1975 = vpop.f32.mrb[0].mxu0
      %1976 = vmatprep.mubr.bf16.mxu0 0
      %1977 = vmatmul.mubr.bf16.gmra.mrb[0].mxu0 %v1210
      %v1978 = vpop.f32.mrb[0].mxu0
      %v1979 = vadd.f32 0.0, %v1978
      %v1980 = vpop.f32.mrb[0].mxu0
      %v1981 = vpop.f32.mrb[0].mxu0
      %v1982 = vadd.f32 0.0, %v1981
      %v1983 = vpop.f32.mrb[0].mxu0
      %1984 = vmatprep.mubr.bf16.mxu0 0
      %1985 = vmatmul.mubr.bf16.gmra.mrb[0].mxu0 %v1827
      %v1986 = vpop.f32.mrb[0].mxu0
      %v1987 = vadd.f32 0.0, %v1986
      %v1988 = vpop.f32.mrb[0].mxu0
      %v1989 = vpop.f32.mrb[0].mxu0
      %v1990 = vadd.f32 0.0, %v1989
      %v1991 = vpop.f32.mrb[0].mxu0
      %1992 = vdwg.mxu0
      %v1993 = vadd.f32 %v1786, %v1867
      %v1994 = vadd.f32 %v1787, %v1870
      %v1995 = vadd.f32 %v1788, %v1875
      %v1996 = vadd.f32 %v1789, %v1878
      %v1997 = vadd.f32 %v1790, %v1883
      %v1998 = vadd.f32 %v1791, %v1886
      %v1999 = vadd.f32 %v1792, %v1891
      %v2000 = vadd.f32 %v1793, %v1894
      %v2001 = vadd.f32 %v1794, %v1899
      %v2002 = vadd.f32 %v1795, %v1902
      %v2003 = vadd.f32 %v1796, %v1907
      %v2004 = vadd.f32 %v1797, %v1910
      %v2005 = vadd.f32 %v1798, %v1915
      %v2006 = vadd.f32 %v1799, %v1918
      %v2007 = vadd.f32 %v1800, %v1923
      %v2008 = vadd.f32 %v1801, %v1926
      %v2009 = vadd.f32 %v1802, %v1931
      %v2010 = vadd.f32 %v1803, %v1934
      %v2011 = vadd.f32 %v1804, %v1939
      %v2012 = vadd.f32 %v1805, %v1942
      %v2013 = vadd.f32 %v1806, %v1947
      %v2014 = vadd.f32 %v1807, %v1950
      %v2015 = vadd.f32 %v1808, %v1955
      %v2016 = vadd.f32 %v1809, %v1958
      %v2017 = vadd.f32 %v1810, %v1963
      %v2018 = vadd.f32 %v1811, %v1966
      %v2019 = vadd.f32 %v1812, %v1971
      %v2020 = vadd.f32 %v1813, %v1974
      %v2021 = vadd.f32 %v1814, %v1979
      %v2022 = vadd.f32 %v1815, %v1982
      %v2023 = vadd.f32 %v1816, %v1987
      %v2024 = vadd.f32 %v1817, %v1990
      %v2025 = vpack.c.bf16 %v405, %v404
      %v2027 = vsel %vm609, %v2025, 0
      %v2030 = vsel %vm658, %v413, 0
      %2032 = vmatprep.subr.bf16.mxu0 0
      %2033 = vmatpush1.bf16.msra.mxu0 %v2030
      %2034 = vmatprep.subr.bf16.mxu0 0
      %2035 = vmatpush1.bf16.msra.mxu0 0
      %2036 = vmatprep.subr.bf16.mxu0 0
      %2037 = vmatpush1.bf16.msra.mxu0 0
      %2038 = vmatprep.subr.bf16.mxu0 0
      %2039 = vmatpush1.bf16.msra.mxu0 0
      %2040 = vmatprep.subr.bf16.mxu0 0
      %2041 = vmatpush1.bf16.msra.mxu0 0
      %2042 = vmatprep.subr.bf16.mxu0 0
      %2043 = vmatpush1.bf16.msra.mxu0 0
      %2044 = vmatprep.subr.bf16.mxu0 0
      %2045 = vmatpush1.bf16.msra.mxu0 0
      %2046 = vmatprep.subr.bf16.mxu0 0
      %2047 = vmatpush1.bf16.msra.mxu0 0
      %2048 = vmatprep.subr.bf16.mxu0 0
      %2049 = vmatpush1.bf16.msra.mxu0 0
      %2050 = vmatprep.subr.bf16.mxu0 0
      %2051 = vmatpush1.bf16.msra.mxu0 0
      %2052 = vmatprep.subr.bf16.mxu0 0
      %2053 = vmatpush1.bf16.msra.mxu0 0
      %2054 = vmatprep.subr.bf16.mxu0 0
      %2055 = vmatpush1.bf16.msra.mxu0 0
      %2056 = vmatprep.subr.bf16.mxu0 0
      %2057 = vmatpush1.bf16.msra.mxu0 0
      %2058 = vmatprep.subr.bf16.mxu0 0
      %2059 = vmatpush1.bf16.msra.mxu0 0
      %2060 = vmatprep.subr.bf16.mxu0 0
      %2061 = vmatpush1.bf16.msra.mxu0 0
      %2062 = vmatprep.subr.bf16.mxu0 0
      %2063 = vmatpush1.bf16.msra.mxu0 0
      %2064 = vmatprep.mubr.bf16.mxu0 0
      %2065 = vmatmul.mubr.bf16.gmra.mrb[0].mxu0 %v830
      %v2066 = vpop.f32.mrb[0].mxu0
      %v2067 = vadd.f32 0.0, %v2066
      %v2068 = vpop.f32.mrb[0].mxu0
      %v2069 = vpop.f32.mrb[0].mxu0
      %v2070 = vadd.f32 0.0, %v2069
      %v2071 = vpop.f32.mrb[0].mxu0
      %2072 = vmatprep.mubr.bf16.mxu0 0
      %2073 = vmatmul.mubr.bf16.gmra.mrb[0].mxu0 %v833
      %v2074 = vpop.f32.mrb[0].mxu0
      %v2075 = vadd.f32 0.0, %v2074
      %v2076 = vpop.f32.mrb[0].mxu0
      %v2077 = vpop.f32.mrb[0].mxu0
      %v2078 = vadd.f32 0.0, %v2077
      %v2079 = vpop.f32.mrb[0].mxu0
      %2080 = vmatprep.mubr.bf16.mxu0 0
      %2081 = vmatmul.mubr.bf16.gmra.mrb[0].mxu0 %v836
      %v2082 = vpop.f32.mrb[0].mxu0
      %v2083 = vadd.f32 0.0, %v2082
      %v2084 = vpop.f32.mrb[0].mxu0
      %v2085 = vpop.f32.mrb[0].mxu0
      %v2086 = vadd.f32 0.0, %v2085
      %v2087 = vpop.f32.mrb[0].mxu0
      %2088 = vmatprep.mubr.bf16.mxu0 0
      %2089 = vmatmul.mubr.bf16.gmra.mrb[0].mxu0 %v839
      %v2090 = vpop.f32.mrb[0].mxu0
      %v2091 = vadd.f32 0.0, %v2090
      %v2092 = vpop.f32.mrb[0].mxu0
      %v2093 = vpop.f32.mrb[0].mxu0
      %v2094 = vadd.f32 0.0, %v2093
      %v2095 = vpop.f32.mrb[0].mxu0
      %2096 = vmatprep.mubr.bf16.mxu0 0
      %2097 = vmatmul.mubr.bf16.gmra.mrb[0].mxu0 %v842
      %v2098 = vpop.f32.mrb[0].mxu0
      %v2099 = vadd.f32 0.0, %v2098
      %v2100 = vpop.f32.mrb[0].mxu0
      %v2101 = vpop.f32.mrb[0].mxu0
      %v2102 = vadd.f32 0.0, %v2101
      %v2103 = vpop.f32.mrb[0].mxu0
      %2104 = vmatprep.mubr.bf16.mxu0 0
      %2105 = vmatmul.mubr.bf16.gmra.mrb[0].mxu0 %v845
      %v2106 = vpop.f32.mrb[0].mxu0
      %v2107 = vadd.f32 0.0, %v2106
      %v2108 = vpop.f32.mrb[0].mxu0
      %v2109 = vpop.f32.mrb[0].mxu0
      %v2110 = vadd.f32 0.0, %v2109
      %v2111 = vpop.f32.mrb[0].mxu0
      %2112 = vmatprep.mubr.bf16.mxu0 0
      %2113 = vmatmul.mubr.bf16.gmra.mrb[0].mxu0 %v848
      %v2114 = vpop.f32.mrb[0].mxu0
      %v2115 = vadd.f32 0.0, %v2114
      %v2116 = vpop.f32.mrb[0].mxu0
      %v2117 = vpop.f32.mrb[0].mxu0
      %v2118 = vadd.f32 0.0, %v2117
      %v2119 = vpop.f32.mrb[0].mxu0
      %2120 = vmatprep.mubr.bf16.mxu0 0
      %2121 = vmatmul.mubr.bf16.gmra.mrb[0].mxu0 %v851
      %v2122 = vpop.f32.mrb[0].mxu0
      %v2123 = vadd.f32 0.0, %v2122
      %v2124 = vpop.f32.mrb[0].mxu0
      %v2125 = vpop.f32.mrb[0].mxu0
      %v2126 = vadd.f32 0.0, %v2125
      %v2127 = vpop.f32.mrb[0].mxu0
      %2128 = vmatprep.mubr.bf16.mxu0 0
      %2129 = vmatmul.mubr.bf16.gmra.mrb[0].mxu0 %v854
      %v2130 = vpop.f32.mrb[0].mxu0
      %v2131 = vadd.f32 0.0, %v2130
      %v2132 = vpop.f32.mrb[0].mxu0
      %v2133 = vpop.f32.mrb[0].mxu0
      %v2134 = vadd.f32 0.0, %v2133
      %v2135 = vpop.f32.mrb[0].mxu0
      %2136 = vmatprep.mubr.bf16.mxu0 0
      %2137 = vmatmul.mubr.bf16.gmra.mrb[0].mxu0 %v857
      %v2138 = vpop.f32.mrb[0].mxu0
      %v2139 = vadd.f32 0.0, %v2138
      %v2140 = vpop.f32.mrb[0].mxu0
      %v2141 = vpop.f32.mrb[0].mxu0
      %v2142 = vadd.f32 0.0, %v2141
      %v2143 = vpop.f32.mrb[0].mxu0
      %2144 = vmatprep.mubr.bf16.mxu0 0
      %2145 = vmatmul.mubr.bf16.gmra.mrb[0].mxu0 %v860
      %v2146 = vpop.f32.mrb[0].mxu0
      %v2147 = vadd.f32 0.0, %v2146
      %v2148 = vpop.f32.mrb[0].mxu0
      %v2149 = vpop.f32.mrb[0].mxu0
      %v2150 = vadd.f32 0.0, %v2149
      %v2151 = vpop.f32.mrb[0].mxu0
      %2152 = vmatprep.mubr.bf16.mxu0 0
      %2153 = vmatmul.mubr.bf16.gmra.mrb[0].mxu0 %v863
      %v2154 = vpop.f32.mrb[0].mxu0
      %v2155 = vadd.f32 0.0, %v2154
      %v2156 = vpop.f32.mrb[0].mxu0
      %v2157 = vpop.f32.mrb[0].mxu0
      %v2158 = vadd.f32 0.0, %v2157
      %v2159 = vpop.f32.mrb[0].mxu0
      %2160 = vmatprep.mubr.bf16.mxu0 0
      %2161 = vmatmul.mubr.bf16.gmra.mrb[0].mxu0 %v866
      %v2162 = vpop.f32.mrb[0].mxu0
      %v2163 = vadd.f32 0.0, %v2162
      %v2164 = vpop.f32.mrb[0].mxu0
      %v2165 = vpop.f32.mrb[0].mxu0
      %v2166 = vadd.f32 0.0, %v2165
      %v2167 = vpop.f32.mrb[0].mxu0
      %2168 = vmatprep.mubr.bf16.mxu0 0
      %2169 = vmatmul.mubr.bf16.gmra.mrb[0].mxu0 %v869
      %v2170 = vpop.f32.mrb[0].mxu0
      %v2171 = vadd.f32 0.0, %v2170
      %v2172 = vpop.f32.mrb[0].mxu0
      %v2173 = vpop.f32.mrb[0].mxu0
      %v2174 = vadd.f32 0.0, %v2173
      %v2175 = vpop.f32.mrb[0].mxu0
      %2176 = vmatprep.mubr.bf16.mxu0 0
      %2177 = vmatmul.mubr.bf16.gmra.mrb[0].mxu0 %v1410
      %v2178 = vpop.f32.mrb[0].mxu0
      %v2179 = vadd.f32 0.0, %v2178
      %v2180 = vpop.f32.mrb[0].mxu0
      %v2181 = vpop.f32.mrb[0].mxu0
      %v2182 = vadd.f32 0.0, %v2181
      %v2183 = vpop.f32.mrb[0].mxu0
      %2184 = vmatprep.mubr.bf16.mxu0 0
      %2185 = vmatmul.mubr.bf16.gmra.mrb[0].mxu0 %v2027
      %v2186 = vpop.f32.mrb[0].mxu0
      %v2187 = vadd.f32 0.0, %v2186
      %v2188 = vpop.f32.mrb[0].mxu0
      %v2189 = vpop.f32.mrb[0].mxu0
      %v2190 = vadd.f32 0.0, %v2189
      %v2191 = vpop.f32.mrb[0].mxu0
      %2192 = vdwg.mxu0
      %v2193 = vadd.f32 %v1993, %v2067
      %v2194 = vadd.f32 %v1994, %v2070
      %v2195 = vadd.f32 %v1995, %v2075
      %v2196 = vadd.f32 %v1996, %v2078
      %v2197 = vadd.f32 %v1997, %v2083
      %v2198 = vadd.f32 %v1998, %v2086
      %v2199 = vadd.f32 %v1999, %v2091
      %v2200 = vadd.f32 %v2000, %v2094
      %v2201 = vadd.f32 %v2001, %v2099
      %v2202 = vadd.f32 %v2002, %v2102
      %v2203 = vadd.f32 %v2003, %v2107
      %v2204 = vadd.f32 %v2004, %v2110
      %v2205 = vadd.f32 %v2005, %v2115
      %v2206 = vadd.f32 %v2006, %v2118
      %v2207 = vadd.f32 %v2007, %v2123
      %v2208 = vadd.f32 %v2008, %v2126
      %v2209 = vadd.f32 %v2009, %v2131
      %v2210 = vadd.f32 %v2010, %v2134
      %v2211 = vadd.f32 %v2011, %v2139
      %v2212 = vadd.f32 %v2012, %v2142
      %v2213 = vadd.f32 %v2013, %v2147
      %v2214 = vadd.f32 %v2014, %v2150
      %v2215 = vadd.f32 %v2015, %v2155
      %v2216 = vadd.f32 %v2016, %v2158
      %v2217 = vadd.f32 %v2017, %v2163
      %v2218 = vadd.f32 %v2018, %v2166
      %v2219 = vadd.f32 %v2019, %v2171
      %v2220 = vadd.f32 %v2020, %v2174
      %v2221 = vadd.f32 %v2021, %v2179
      %v2222 = vadd.f32 %v2022, %v2182
      %v2223 = vadd.f32 %v2023, %v2187
      %v2224 = vadd.f32 %v2024, %v2190
      %v2228 = vrot.slane %v404, 1
      %v2229 = vrot.slane %v405, 1
      %v2230 = vsel %vm480, %v2228, %v2229
      %v2231 = vrot.slane %v406, 1
      %v2232 = vsel %vm480, %v2229, %v2231
      %v2235 = vpack.c.bf16 %v2232, %v2230
      %v2237 = vsel %vm609, %v2235, 0
      %v2240 = vsel %vm658, %v414, 0
      %2242 = vmatprep.subr.bf16.mxu0 0
      %2243 = vmatpush1.bf16.msra.mxu0 %v2240
      %2244 = vmatprep.subr.bf16.mxu0 0
      %2245 = vmatpush1.bf16.msra.mxu0 0
      %2246 = vmatprep.subr.bf16.mxu0 0
      %2247 = vmatpush1.bf16.msra.mxu0 0
      %2248 = vmatprep.subr.bf16.mxu0 0
      %2249 = vmatpush1.bf16.msra.mxu0 0
      %2250 = vmatprep.subr.bf16.mxu0 0
      %2251 = vmatpush1.bf16.msra.mxu0 0
      %2252 = vmatprep.subr.bf16.mxu0 0
      %2253 = vmatpush1.bf16.msra.mxu0 0
      %2254 = vmatprep.subr.bf16.mxu0 0
      %2255 = vmatpush1.bf16.msra.mxu0 0
      %2256 = vmatprep.subr.bf16.mxu0 0
      %2257 = vmatpush1.bf16.msra.mxu0 0
      %2258 = vmatprep.subr.bf16.mxu0 0
      %2259 = vmatpush1.bf16.msra.mxu0 0
      %2260 = vmatprep.subr.bf16.mxu0 0
      %2261 = vmatpush1.bf16.msra.mxu0 0
      %2262 = vmatprep.subr.bf16.mxu0 0
      %2263 = vmatpush1.bf16.msra.mxu0 0
      %2264 = vmatprep.subr.bf16.mxu0 0
      %2265 = vmatpush1.bf16.msra.mxu0 0
      %2266 = vmatprep.subr.bf16.mxu0 0
      %2267 = vmatpush1.bf16.msra.mxu0 0
      %2268 = vmatprep.subr.bf16.mxu0 0
      %2269 = vmatpush1.bf16.msra.mxu0 0
      %2270 = vmatprep.subr.bf16.mxu0 0
      %2271 = vmatpush1.bf16.msra.mxu0 0
      %2272 = vmatprep.subr.bf16.mxu0 0
      %2273 = vmatpush1.bf16.msra.mxu0 0
      %2274 = vmatprep.mubr.bf16.mxu0 0
      %2275 = vmatmul.mubr.bf16.gmra.mrb[0].mxu0 %v617
      %v2276 = vpop.f32.mrb[0].mxu0
      %v2277 = vadd.f32 0.0, %v2276
      %v2278 = vpop.f32.mrb[0].mxu0
      %v2279 = vpop.f32.mrb[0].mxu0
      %v2280 = vadd.f32 0.0, %v2279
      %v2281 = vpop.f32.mrb[0].mxu0
      %2282 = vmatprep.mubr.bf16.mxu0 0
      %2283 = vmatmul.mubr.bf16.gmra.mrb[0].mxu0 %v620
      %v2284 = vpop.f32.mrb[0].mxu0
      %v2285 = vadd.f32 0.0, %v2284
      %v2286 = vpop.f32.mrb[0].mxu0
      %v2287 = vpop.f32.mrb[0].mxu0
      %v2288 = vadd.f32 0.0, %v2287
      %v2289 = vpop.f32.mrb[0].mxu0
      %2290 = vmatprep.mubr.bf16.mxu0 0
      %2291 = vmatmul.mubr.bf16.gmra.mrb[0].mxu0 %v623
      %v2292 = vpop.f32.mrb[0].mxu0
      %v2293 = vadd.f32 0.0, %v2292
      %v2294 = vpop.f32.mrb[0].mxu0
      %v2295 = vpop.f32.mrb[0].mxu0
      %v2296 = vadd.f32 0.0, %v2295
      %v2297 = vpop.f32.mrb[0].mxu0
      %2298 = vmatprep.mubr.bf16.mxu0 0
      %2299 = vmatmul.mubr.bf16.gmra.mrb[0].mxu0 %v626
      %v2300 = vpop.f32.mrb[0].mxu0
      %v2301 = vadd.f32 0.0, %v2300
      %v2302 = vpop.f32.mrb[0].mxu0
      %v2303 = vpop.f32.mrb[0].mxu0
      %v2304 = vadd.f32 0.0, %v2303
      %v2305 = vpop.f32.mrb[0].mxu0
      %2306 = vmatprep.mubr.bf16.mxu0 0
      %2307 = vmatmul.mubr.bf16.gmra.mrb[0].mxu0 %v629
      %v2308 = vpop.f32.mrb[0].mxu0
      %v2309 = vadd.f32 0.0, %v2308
      %v2310 = vpop.f32.mrb[0].mxu0
      %v2311 = vpop.f32.mrb[0].mxu0
      %v2312 = vadd.f32 0.0, %v2311
      %v2313 = vpop.f32.mrb[0].mxu0
      %2314 = vmatprep.mubr.bf16.mxu0 0
      %2315 = vmatmul.mubr.bf16.gmra.mrb[0].mxu0 %v632
      %v2316 = vpop.f32.mrb[0].mxu0
      %v2317 = vadd.f32 0.0, %v2316
      %v2318 = vpop.f32.mrb[0].mxu0
      %v2319 = vpop.f32.mrb[0].mxu0
      %v2320 = vadd.f32 0.0, %v2319
      %v2321 = vpop.f32.mrb[0].mxu0
      %2322 = vmatprep.mubr.bf16.mxu0 0
      %2323 = vmatmul.mubr.bf16.gmra.mrb[0].mxu0 %v635
      %v2324 = vpop.f32.mrb[0].mxu0
      %v2325 = vadd.f32 0.0, %v2324
      %v2326 = vpop.f32.mrb[0].mxu0
      %v2327 = vpop.f32.mrb[0].mxu0
      %v2328 = vadd.f32 0.0, %v2327
      %v2329 = vpop.f32.mrb[0].mxu0
      %2330 = vmatprep.mubr.bf16.mxu0 0
      %2331 = vmatmul.mubr.bf16.gmra.mrb[0].mxu0 %v638
      %v2332 = vpop.f32.mrb[0].mxu0
      %v2333 = vadd.f32 0.0, %v2332
      %v2334 = vpop.f32.mrb[0].mxu0
      %v2335 = vpop.f32.mrb[0].mxu0
      %v2336 = vadd.f32 0.0, %v2335
      %v2337 = vpop.f32.mrb[0].mxu0
      %2338 = vmatprep.mubr.bf16.mxu0 0
      %2339 = vmatmul.mubr.bf16.gmra.mrb[0].mxu0 %v641
      %v2340 = vpop.f32.mrb[0].mxu0
      %v2341 = vadd.f32 0.0, %v2340
      %v2342 = vpop.f32.mrb[0].mxu0
      %v2343 = vpop.f32.mrb[0].mxu0
      %v2344 = vadd.f32 0.0, %v2343
      %v2345 = vpop.f32.mrb[0].mxu0
      %2346 = vmatprep.mubr.bf16.mxu0 0
      %2347 = vmatmul.mubr.bf16.gmra.mrb[0].mxu0 %v644
      %v2348 = vpop.f32.mrb[0].mxu0
      %v2349 = vadd.f32 0.0, %v2348
      %v2350 = vpop.f32.mrb[0].mxu0
      %v2351 = vpop.f32.mrb[0].mxu0
      %v2352 = vadd.f32 0.0, %v2351
      %v2353 = vpop.f32.mrb[0].mxu0
      %2354 = vmatprep.mubr.bf16.mxu0 0
      %2355 = vmatmul.mubr.bf16.gmra.mrb[0].mxu0 %v647
      %v2356 = vpop.f32.mrb[0].mxu0
      %v2357 = vadd.f32 0.0, %v2356
      %v2358 = vpop.f32.mrb[0].mxu0
      %v2359 = vpop.f32.mrb[0].mxu0
      %v2360 = vadd.f32 0.0, %v2359
      %v2361 = vpop.f32.mrb[0].mxu0
      %2362 = vmatprep.mubr.bf16.mxu0 0
      %2363 = vmatmul.mubr.bf16.gmra.mrb[0].mxu0 %v650
      %v2364 = vpop.f32.mrb[0].mxu0
      %v2365 = vadd.f32 0.0, %v2364
      %v2366 = vpop.f32.mrb[0].mxu0
      %v2367 = vpop.f32.mrb[0].mxu0
      %v2368 = vadd.f32 0.0, %v2367
      %v2369 = vpop.f32.mrb[0].mxu0
      %2370 = vmatprep.mubr.bf16.mxu0 0
      %2371 = vmatmul.mubr.bf16.gmra.mrb[0].mxu0 %v653
      %v2372 = vpop.f32.mrb[0].mxu0
      %v2373 = vadd.f32 0.0, %v2372
      %v2374 = vpop.f32.mrb[0].mxu0
      %v2375 = vpop.f32.mrb[0].mxu0
      %v2376 = vadd.f32 0.0, %v2375
      %v2377 = vpop.f32.mrb[0].mxu0
      %2378 = vmatprep.mubr.bf16.mxu0 0
      %2379 = vmatmul.mubr.bf16.gmra.mrb[0].mxu0 %v656
      %v2380 = vpop.f32.mrb[0].mxu0
      %v2381 = vadd.f32 0.0, %v2380
      %v2382 = vpop.f32.mrb[0].mxu0
      %v2383 = vpop.f32.mrb[0].mxu0
      %v2384 = vadd.f32 0.0, %v2383
      %v2385 = vpop.f32.mrb[0].mxu0
      %2386 = vmatprep.mubr.bf16.mxu0 0
      %2387 = vmatmul.mubr.bf16.gmra.mrb[0].mxu0 %v1620
      %v2388 = vpop.f32.mrb[0].mxu0
      %v2389 = vadd.f32 0.0, %v2388
      %v2390 = vpop.f32.mrb[0].mxu0
      %v2391 = vpop.f32.mrb[0].mxu0
      %v2392 = vadd.f32 0.0, %v2391
      %v2393 = vpop.f32.mrb[0].mxu0
      %2394 = vmatprep.mubr.bf16.mxu0 0
      %2395 = vmatmul.mubr.bf16.gmra.mrb[0].mxu0 %v2237
      %v2396 = vpop.f32.mrb[0].mxu0
      %v2397 = vadd.f32 0.0, %v2396
      %v2398 = vpop.f32.mrb[0].mxu0
      %v2399 = vpop.f32.mrb[0].mxu0
      %v2400 = vadd.f32 0.0, %v2399
      %v2401 = vpop.f32.mrb[0].mxu0
      %2402 = vdwg.mxu0
      %v2403 = vadd.f32 %v2193, %v2277
      %v2404 = vadd.f32 %v2194, %v2280
      %v2405 = vadd.f32 %v2195, %v2285
      %v2406 = vadd.f32 %v2196, %v2288
      %v2407 = vadd.f32 %v2197, %v2293
      %v2408 = vadd.f32 %v2198, %v2296
      %v2409 = vadd.f32 %v2199, %v2301
      %v2410 = vadd.f32 %v2200, %v2304
      %v2411 = vadd.f32 %v2201, %v2309
      %v2412 = vadd.f32 %v2202, %v2312
      %v2413 = vadd.f32 %v2203, %v2317
      %v2414 = vadd.f32 %v2204, %v2320
      %v2415 = vadd.f32 %v2205, %v2325
      %v2416 = vadd.f32 %v2206, %v2328
      %v2417 = vadd.f32 %v2207, %v2333
      %v2418 = vadd.f32 %v2208, %v2336
      %v2419 = vadd.f32 %v2209, %v2341
      %v2420 = vadd.f32 %v2210, %v2344
      %v2421 = vadd.f32 %v2211, %v2349
      %v2422 = vadd.f32 %v2212, %v2352
      %v2423 = vadd.f32 %v2213, %v2357
      %v2424 = vadd.f32 %v2214, %v2360
      %v2425 = vadd.f32 %v2215, %v2365
      %v2426 = vadd.f32 %v2216, %v2368
      %v2427 = vadd.f32 %v2217, %v2373
      %v2428 = vadd.f32 %v2218, %v2376
      %v2429 = vadd.f32 %v2219, %v2381
      %v2430 = vadd.f32 %v2220, %v2384
      %v2431 = vadd.f32 %v2221, %v2389
      %v2432 = vadd.f32 %v2222, %v2392
      %v2433 = vadd.f32 %v2223, %v2397
      %v2434 = vadd.f32 %v2224, %v2400
      %v2435 = vrot.slane %v404, 2
      %v2436 = vrot.slane %v405, 2
      %v2437 = vsel %vm1035, %v2435, %v2436
      %v2438 = vrot.slane %v406, 2
      %v2439 = vsel %vm1035, %v2436, %v2438
      %v2442 = vpack.c.bf16 %v2439, %v2437
      %v2444 = vsel %vm609, %v2442, 0
      %v2447 = vsel %vm658, %v415, 0
      %2449 = vmatprep.subr.bf16.mxu0 0
      %2450 = vmatpush1.bf16.msra.mxu0 %v2447
      %2451 = vmatprep.subr.bf16.mxu0 0
      %2452 = vmatpush1.bf16.msra.mxu0 0
      %2453 = vmatprep.subr.bf16.mxu0 0
      %2454 = vmatpush1.bf16.msra.mxu0 0
      %2455 = vmatprep.subr.bf16.mxu0 0
      %2456 = vmatpush1.bf16.msra.mxu0 0
      %2457 = vmatprep.subr.bf16.mxu0 0
      %2458 = vmatpush1.bf16.msra.mxu0 0
      %2459 = vmatprep.subr.bf16.mxu0 0
      %2460 = vmatpush1.bf16.msra.mxu0 0
      %2461 = vmatprep.subr.bf16.mxu0 0
      %2462 = vmatpush1.bf16.msra.mxu0 0
      %2463 = vmatprep.subr.bf16.mxu0 0
      %2464 = vmatpush1.bf16.msra.mxu0 0
      %2465 = vmatprep.subr.bf16.mxu0 0
      %2466 = vmatpush1.bf16.msra.mxu0 0
      %2467 = vmatprep.subr.bf16.mxu0 0
      %2468 = vmatpush1.bf16.msra.mxu0 0
      %2469 = vmatprep.subr.bf16.mxu0 0
      %2470 = vmatpush1.bf16.msra.mxu0 0
      %2471 = vmatprep.subr.bf16.mxu0 0
      %2472 = vmatpush1.bf16.msra.mxu0 0
      %2473 = vmatprep.subr.bf16.mxu0 0
      %2474 = vmatpush1.bf16.msra.mxu0 0
      %2475 = vmatprep.subr.bf16.mxu0 0
      %2476 = vmatpush1.bf16.msra.mxu0 0
      %2477 = vmatprep.subr.bf16.mxu0 0
      %2478 = vmatpush1.bf16.msra.mxu0 0
      %2479 = vmatprep.subr.bf16.mxu0 0
      %2480 = vmatpush1.bf16.msra.mxu0 0
      %2481 = vmatprep.mubr.bf16.mxu0 0
      %2482 = vmatmul.mubr.bf16.gmra.mrb[0].mxu0 %v1171
      %v2483 = vpop.f32.mrb[0].mxu0
      %v2484 = vadd.f32 0.0, %v2483
      %v2485 = vpop.f32.mrb[0].mxu0
      %v2486 = vpop.f32.mrb[0].mxu0
      %v2487 = vadd.f32 0.0, %v2486
      %v2488 = vpop.f32.mrb[0].mxu0
      %2489 = vmatprep.mubr.bf16.mxu0 0
      %2490 = vmatmul.mubr.bf16.gmra.mrb[0].mxu0 %v1174
      %v2491 = vpop.f32.mrb[0].mxu0
      %v2492 = vadd.f32 0.0, %v2491
      %v2493 = vpop.f32.mrb[0].mxu0
      %v2494 = vpop.f32.mrb[0].mxu0
      %v2495 = vadd.f32 0.0, %v2494
      %v2496 = vpop.f32.mrb[0].mxu0
      %2497 = vmatprep.mubr.bf16.mxu0 0
      %2498 = vmatmul.mubr.bf16.gmra.mrb[0].mxu0 %v1177
      %v2499 = vpop.f32.mrb[0].mxu0
      %v2500 = vadd.f32 0.0, %v2499
      %v2501 = vpop.f32.mrb[0].mxu0
      %v2502 = vpop.f32.mrb[0].mxu0
      %v2503 = vadd.f32 0.0, %v2502
      %v2504 = vpop.f32.mrb[0].mxu0
      %2505 = vmatprep.mubr.bf16.mxu0 0
      %2506 = vmatmul.mubr.bf16.gmra.mrb[0].mxu0 %v1180
      %v2507 = vpop.f32.mrb[0].mxu0
      %v2508 = vadd.f32 0.0, %v2507
      %v2509 = vpop.f32.mrb[0].mxu0
      %v2510 = vpop.f32.mrb[0].mxu0
      %v2511 = vadd.f32 0.0, %v2510
      %v2512 = vpop.f32.mrb[0].mxu0
      %2513 = vmatprep.mubr.bf16.mxu0 0
      %2514 = vmatmul.mubr.bf16.gmra.mrb[0].mxu0 %v1183
      %v2515 = vpop.f32.mrb[0].mxu0
      %v2516 = vadd.f32 0.0, %v2515
      %v2517 = vpop.f32.mrb[0].mxu0
      %v2518 = vpop.f32.mrb[0].mxu0
      %v2519 = vadd.f32 0.0, %v2518
      %v2520 = vpop.f32.mrb[0].mxu0
      %2521 = vmatprep.mubr.bf16.mxu0 0
      %2522 = vmatmul.mubr.bf16.gmra.mrb[0].mxu0 %v1186
      %v2523 = vpop.f32.mrb[0].mxu0
      %v2524 = vadd.f32 0.0, %v2523
      %v2525 = vpop.f32.mrb[0].mxu0
      %v2526 = vpop.f32.mrb[0].mxu0
      %v2527 = vadd.f32 0.0, %v2526
      %v2528 = vpop.f32.mrb[0].mxu0
      %2529 = vmatprep.mubr.bf16.mxu0 0
      %2530 = vmatmul.mubr.bf16.gmra.mrb[0].mxu0 %v1189
      %v2531 = vpop.f32.mrb[0].mxu0
      %v2532 = vadd.f32 0.0, %v2531
      %v2533 = vpop.f32.mrb[0].mxu0
      %v2534 = vpop.f32.mrb[0].mxu0
      %v2535 = vadd.f32 0.0, %v2534
      %v2536 = vpop.f32.mrb[0].mxu0
      %2537 = vmatprep.mubr.bf16.mxu0 0
      %2538 = vmatmul.mubr.bf16.gmra.mrb[0].mxu0 %v1192
      %v2539 = vpop.f32.mrb[0].mxu0
      %v2540 = vadd.f32 0.0, %v2539
      %v2541 = vpop.f32.mrb[0].mxu0
      %v2542 = vpop.f32.mrb[0].mxu0
      %v2543 = vadd.f32 0.0, %v2542
      %v2544 = vpop.f32.mrb[0].mxu0
      %2545 = vmatprep.mubr.bf16.mxu0 0
      %2546 = vmatmul.mubr.bf16.gmra.mrb[0].mxu0 %v1195
      %v2547 = vpop.f32.mrb[0].mxu0
      %v2548 = vadd.f32 0.0, %v2547
      %v2549 = vpop.f32.mrb[0].mxu0
      %v2550 = vpop.f32.mrb[0].mxu0
      %v2551 = vadd.f32 0.0, %v2550
      %v2552 = vpop.f32.mrb[0].mxu0
      %2553 = vmatprep.mubr.bf16.mxu0 0
      %2554 = vmatmul.mubr.bf16.gmra.mrb[0].mxu0 %v1198
      %v2555 = vpop.f32.mrb[0].mxu0
      %v2556 = vadd.f32 0.0, %v2555
      %v2557 = vpop.f32.mrb[0].mxu0
      %v2558 = vpop.f32.mrb[0].mxu0
      %v2559 = vadd.f32 0.0, %v2558
      %v2560 = vpop.f32.mrb[0].mxu0
      %2561 = vmatprep.mubr.bf16.mxu0 0
      %2562 = vmatmul.mubr.bf16.gmra.mrb[0].mxu0 %v1201
      %v2563 = vpop.f32.mrb[0].mxu0
      %v2564 = vadd.f32 0.0, %v2563
      %v2565 = vpop.f32.mrb[0].mxu0
      %v2566 = vpop.f32.mrb[0].mxu0
      %v2567 = vadd.f32 0.0, %v2566
      %v2568 = vpop.f32.mrb[0].mxu0
      %2569 = vmatprep.mubr.bf16.mxu0 0
      %2570 = vmatmul.mubr.bf16.gmra.mrb[0].mxu0 %v1204
      %v2571 = vpop.f32.mrb[0].mxu0
      %v2572 = vadd.f32 0.0, %v2571
      %v2573 = vpop.f32.mrb[0].mxu0
      %v2574 = vpop.f32.mrb[0].mxu0
      %v2575 = vadd.f32 0.0, %v2574
      %v2576 = vpop.f32.mrb[0].mxu0
      %2577 = vmatprep.mubr.bf16.mxu0 0
      %2578 = vmatmul.mubr.bf16.gmra.mrb[0].mxu0 %v1207
      %v2579 = vpop.f32.mrb[0].mxu0
      %v2580 = vadd.f32 0.0, %v2579
      %v2581 = vpop.f32.mrb[0].mxu0
      %v2582 = vpop.f32.mrb[0].mxu0
      %v2583 = vadd.f32 0.0, %v2582
      %v2584 = vpop.f32.mrb[0].mxu0
      %2585 = vmatprep.mubr.bf16.mxu0 0
      %2586 = vmatmul.mubr.bf16.gmra.mrb[0].mxu0 %v1210
      %v2587 = vpop.f32.mrb[0].mxu0
      %v2588 = vadd.f32 0.0, %v2587
      %v2589 = vpop.f32.mrb[0].mxu0
      %v2590 = vpop.f32.mrb[0].mxu0
      %v2591 = vadd.f32 0.0, %v2590
      %v2592 = vpop.f32.mrb[0].mxu0
      %2593 = vmatprep.mubr.bf16.mxu0 0
      %2594 = vmatmul.mubr.bf16.gmra.mrb[0].mxu0 %v1827
      %v2595 = vpop.f32.mrb[0].mxu0
      %v2596 = vadd.f32 0.0, %v2595
      %v2597 = vpop.f32.mrb[0].mxu0
      %v2598 = vpop.f32.mrb[0].mxu0
      %v2599 = vadd.f32 0.0, %v2598
      %v2600 = vpop.f32.mrb[0].mxu0
      %2601 = vmatprep.mubr.bf16.mxu0 0
      %2602 = vmatmul.mubr.bf16.gmra.mrb[0].mxu0 %v2444
      %v2603 = vpop.f32.mrb[0].mxu0
      %v2604 = vadd.f32 0.0, %v2603
      %v2605 = vpop.f32.mrb[0].mxu0
      %v2606 = vpop.f32.mrb[0].mxu0
      %v2607 = vadd.f32 0.0, %v2606
      %v2608 = vpop.f32.mrb[0].mxu0
      %2609 = vdwg.mxu0
      %v2610 = vadd.f32 %v2403, %v2484
      %v2611 = vadd.f32 %v2404, %v2487
      %v2612 = vadd.f32 %v2405, %v2492
      %v2613 = vadd.f32 %v2406, %v2495
      %v2614 = vadd.f32 %v2407, %v2500
      %v2615 = vadd.f32 %v2408, %v2503
      %v2616 = vadd.f32 %v2409, %v2508
      %v2617 = vadd.f32 %v2410, %v2511
      %v2618 = vadd.f32 %v2411, %v2516
      %v2619 = vadd.f32 %v2412, %v2519
      %v2620 = vadd.f32 %v2413, %v2524
      %v2621 = vadd.f32 %v2414, %v2527
      %v2622 = vadd.f32 %v2415, %v2532
      %v2623 = vadd.f32 %v2416, %v2535
      %v2624 = vadd.f32 %v2417, %v2540
      %v2625 = vadd.f32 %v2418, %v2543
      %v2626 = vadd.f32 %v2419, %v2548
      %v2627 = vadd.f32 %v2420, %v2551
      %v2628 = vadd.f32 %v2421, %v2556
      %v2629 = vadd.f32 %v2422, %v2559
      %v2630 = vadd.f32 %v2423, %v2564
      %v2631 = vadd.f32 %v2424, %v2567
      %v2632 = vadd.f32 %v2425, %v2572
      %v2633 = vadd.f32 %v2426, %v2575
      %v2634 = vadd.f32 %v2427, %v2580
      %v2635 = vadd.f32 %v2428, %v2583
      %v2636 = vadd.f32 %v2429, %v2588
      %v2637 = vadd.f32 %v2430, %v2591
      %v2638 = vadd.f32 %v2431, %v2596
      %v2639 = vadd.f32 %v2432, %v2599
      %v2640 = vadd.f32 %v2433, %v2604
      %v2641 = vadd.f32 %v2434, %v2607
      %v2642 = vadd.f32 %v2610, %v2611
      %v2643 = vadd.f32 %v2642, %v2612
      %v2644 = vadd.f32 %v2643, %v2613
      %v2645 = vadd.f32 %v2644, %v2614
      %v2646 = vadd.f32 %v2645, %v2615
      %v2647 = vadd.f32 %v2646, %v2616
      %v2648 = vadd.f32 %v2647, %v2617
      %v2649 = vadd.f32 %v2648, %v2618
      %v2650 = vadd.f32 %v2649, %v2619
      %v2651 = vadd.f32 %v2650, %v2620
      %v2652 = vadd.f32 %v2651, %v2621
      %v2653 = vadd.f32 %v2652, %v2622
      %v2654 = vadd.f32 %v2653, %v2623
      %v2655 = vadd.f32 %v2654, %v2624
      %v2656 = vadd.f32 %v2655, %v2625
      %v2657 = vadd.f32 %v2656, %v2626
      %v2658 = vadd.f32 %v2657, %v2627
      %v2659 = vadd.f32 %v2658, %v2628
      %v2660 = vadd.f32 %v2659, %v2629
      %v2661 = vadd.f32 %v2660, %v2630
      %v2662 = vadd.f32 %v2661, %v2631
      %v2663 = vadd.f32 %v2662, %v2632
      %v2664 = vadd.f32 %v2663, %v2633
      %v2665 = vadd.f32 %v2664, %v2634
      %v2666 = vadd.f32 %v2665, %v2635
      %v2667 = vadd.f32 %v2666, %v2636
      %v2668 = vadd.f32 %v2667, %v2637
      %v2669 = vadd.f32 %v2668, %v2638
      %v2670 = vadd.f32 %v2669, %v2639
      %v2671 = vadd.f32 %v2670, %v2640
      %v2672 = vadd.f32 %v2671, %v2641
      %v2673 = vrot.slane %v2672, 4
      %v2674 = vadd.f32 %v2672, %v2673
      %v2675 = vrot.slane %v2674, 2
      %v2676 = vadd.f32 %v2674, %v2675
      %v2677 = vrot.slane %v2676, 1
      %v2678 = vadd.f32 %v2676, %v2677
      %v2679 = vmul.f32 %v2610, %v2610
      %v2680 = vmul.f32 %v2611, %v2611
      %v2681 = vmul.f32 %v2612, %v2612
      %v2682 = vmul.f32 %v2613, %v2613
      %v2683 = vmul.f32 %v2614, %v2614
      %v2684 = vmul.f32 %v2615, %v2615
      %v2685 = vmul.f32 %v2616, %v2616
      %v2686 = vmul.f32 %v2617, %v2617
      %v2687 = vmul.f32 %v2618, %v2618
      %v2688 = vmul.f32 %v2619, %v2619
      %v2689 = vmul.f32 %v2620, %v2620
      %v2690 = vmul.f32 %v2621, %v2621
      %v2691 = vmul.f32 %v2622, %v2622
      %v2692 = vmul.f32 %v2623, %v2623
      %v2693 = vmul.f32 %v2624, %v2624
      %v2694 = vmul.f32 %v2625, %v2625
      %v2695 = vmul.f32 %v2626, %v2626
      %v2696 = vmul.f32 %v2627, %v2627
      %v2697 = vmul.f32 %v2628, %v2628
      %v2698 = vmul.f32 %v2629, %v2629
      %v2699 = vmul.f32 %v2630, %v2630
      %v2700 = vmul.f32 %v2631, %v2631
      %v2701 = vmul.f32 %v2632, %v2632
      %v2702 = vmul.f32 %v2633, %v2633
      %v2703 = vmul.f32 %v2634, %v2634
      %v2704 = vmul.f32 %v2635, %v2635
      %v2705 = vmul.f32 %v2636, %v2636
      %v2706 = vmul.f32 %v2637, %v2637
      %v2707 = vmul.f32 %v2638, %v2638
      %v2708 = vmul.f32 %v2639, %v2639
      %v2709 = vmul.f32 %v2640, %v2640
      %v2710 = vmul.f32 %v2641, %v2641
      %v2711 = vadd.f32 %v2679, %v2680
      %v2712 = vadd.f32 %v2711, %v2681
      %v2713 = vadd.f32 %v2712, %v2682
      %v2714 = vadd.f32 %v2713, %v2683
      %v2715 = vadd.f32 %v2714, %v2684
      %v2716 = vadd.f32 %v2715, %v2685
      %v2717 = vadd.f32 %v2716, %v2686
      %v2718 = vadd.f32 %v2717, %v2687
      %v2719 = vadd.f32 %v2718, %v2688
      %v2720 = vadd.f32 %v2719, %v2689
      %v2721 = vadd.f32 %v2720, %v2690
      %v2722 = vadd.f32 %v2721, %v2691
      %v2723 = vadd.f32 %v2722, %v2692
      %v2724 = vadd.f32 %v2723, %v2693
      %v2725 = vadd.f32 %v2724, %v2694
      %v2726 = vadd.f32 %v2725, %v2695
      %v2727 = vadd.f32 %v2726, %v2696
      %v2728 = vadd.f32 %v2727, %v2697
      %v2729 = vadd.f32 %v2728, %v2698
      %v2730 = vadd.f32 %v2729, %v2699
      %v2731 = vadd.f32 %v2730, %v2700
      %v2732 = vadd.f32 %v2731, %v2701
      %v2733 = vadd.f32 %v2732, %v2702
      %v2734 = vadd.f32 %v2733, %v2703
      %v2735 = vadd.f32 %v2734, %v2704
      %v2736 = vadd.f32 %v2735, %v2705
      %v2737 = vadd.f32 %v2736, %v2706
      %v2738 = vadd.f32 %v2737, %v2707
      %v2739 = vadd.f32 %v2738, %v2708
      %v2740 = vadd.f32 %v2739, %v2709
      %v2741 = vadd.f32 %v2740, %v2710
      %v2742 = vrot.slane %v2741, 4
      %v2743 = vadd.f32 %v2741, %v2742
      %v2744 = vrot.slane %v2743, 2
      %v2745 = vadd.f32 %v2743, %v2744
      %v2746 = vrot.slane %v2745, 1
      %v2747 = vadd.f32 %v2745, %v2746
      %vm2748 = vcmask 1040384
      %v2749 = vsel %vm2748, %v2678, %v2747
      %vm2750 = vcmask 1041408
      %v2751 = vsel %vm2750, %v2749, 0.0
      %2752 = vst [vmem:[%s226] sm:$0xff] %v2751
      %v2753 = vpack.c.bf16 %v2611, %v2610
      %v2754 = vpack.c.bf16 %v2613, %v2612
      %v2755 = vpack.c.bf16 %v2615, %v2614
      %v2756 = vpack.c.bf16 %v2617, %v2616
      %v2757 = vpack.c.bf16 %v2619, %v2618
      %v2758 = vpack.c.bf16 %v2621, %v2620
      %v2759 = vpack.c.bf16 %v2623, %v2622
      %v2760 = vpack.c.bf16 %v2625, %v2624
      %v2761 = vpack.c.bf16 %v2627, %v2626
      %v2762 = vpack.c.bf16 %v2629, %v2628
      %v2763 = vpack.c.bf16 %v2631, %v2630
      %v2764 = vpack.c.bf16 %v2633, %v2632
      %v2765 = vpack.c.bf16 %v2635, %v2634
      %v2766 = vpack.c.bf16 %v2637, %v2636
      %v2767 = vpack.c.bf16 %v2639, %v2638
      %v2768 = vpack.c.bf16 %v2641, %v2640
      %v2785 = vunpack.c.l.b16 %v2753
      %v2786 = vunpack.c.h.b16 %v2753
      %v2787 = vunpack.c.l.b16 %v2754
      %v2788 = vunpack.c.h.b16 %v2754
      %v2789 = vunpack.c.l.b16 %v2755
      %v2790 = vunpack.c.h.b16 %v2755
      %v2791 = vunpack.c.l.b16 %v2756
      %v2792 = vunpack.c.h.b16 %v2756
      %v2793 = vunpack.c.l.b16 %v2757
      %v2794 = vunpack.c.h.b16 %v2757
      %v2795 = vunpack.c.l.b16 %v2758
      %v2796 = vunpack.c.h.b16 %v2758
      %v2797 = vunpack.c.l.b16 %v2759
      %v2798 = vunpack.c.h.b16 %v2759
      %v2799 = vunpack.c.l.b16 %v2760
      %v2800 = vunpack.c.h.b16 %v2760
      %v2801 = vunpack.c.l.b16 %v2761
      %v2802 = vunpack.c.h.b16 %v2761
      %v2803 = vunpack.c.l.b16 %v2762
      %v2804 = vunpack.c.h.b16 %v2762
      %v2805 = vunpack.c.l.b16 %v2763
      %v2806 = vunpack.c.h.b16 %v2763
      %v2807 = vunpack.c.l.b16 %v2764
      %v2808 = vunpack.c.h.b16 %v2764
      %v2809 = vunpack.c.l.b16 %v2765
      %v2810 = vunpack.c.h.b16 %v2765
      %v2811 = vunpack.c.l.b16 %v2766
      %v2812 = vunpack.c.h.b16 %v2766
      %v2813 = vunpack.c.l.b16 %v2767
      %v2814 = vunpack.c.h.b16 %v2767
      %v2815 = vunpack.c.l.b16 %v2768
      %v2816 = vunpack.c.h.b16 %v2768
      %v2817 = vpack.c.b16 %v2785, %v2785
      %v2818 = vpack.c.b16 %v2786, %v2786
      %v2819 = vpack.c.b16 %v2787, %v2787
      %v2820 = vpack.c.b16 %v2788, %v2788
      %v2821 = vpack.c.b16 %v2789, %v2789
      %v2822 = vpack.c.b16 %v2790, %v2790
      %v2823 = vpack.c.b16 %v2791, %v2791
      %v2824 = vpack.c.b16 %v2792, %v2792
      %v2825 = vpack.c.b16 %v2793, %v2793
      %v2826 = vpack.c.b16 %v2794, %v2794
      %v2827 = vpack.c.b16 %v2795, %v2795
      %v2828 = vpack.c.b16 %v2796, %v2796
      %v2829 = vpack.c.b16 %v2797, %v2797
      %v2830 = vpack.c.b16 %v2798, %v2798
      %v2831 = vpack.c.b16 %v2799, %v2799
      %v2832 = vpack.c.b16 %v2800, %v2800
      %v2833 = vpack.c.b16 %v2801, %v2801
      %v2834 = vpack.c.b16 %v2802, %v2802
      %v2835 = vpack.c.b16 %v2803, %v2803
      %v2836 = vpack.c.b16 %v2804, %v2804
      %v2837 = vpack.c.b16 %v2805, %v2805
      %v2838 = vpack.c.b16 %v2806, %v2806
      %v2839 = vpack.c.b16 %v2807, %v2807
      %v2840 = vpack.c.b16 %v2808, %v2808
      %v2841 = vpack.c.b16 %v2809, %v2809
      %v2842 = vpack.c.b16 %v2810, %v2810
      %v2843 = vpack.c.b16 %v2811, %v2811
      %v2844 = vpack.c.b16 %v2812, %v2812
      %v2845 = vpack.c.b16 %v2813, %v2813
      %v2846 = vpack.c.b16 %v2814, %v2814
      %v2847 = vpack.c.b16 %v2815, %v2815
      %v2848 = vpack.c.b16 %v2816, %v2816
      %2881 = vst [vmem:[%s219] sm:$0xf] %v2817
      %2882 = vst [vmem:[%s219 + $0x4] sm:$0xf] %v2818
      %2883 = vst [vmem:[%s219 + $0x8] sm:$0xf] %v2819
      %2884 = vst [vmem:[%s219 + $0xc] sm:$0xf] %v2820
      %2885 = vst [vmem:[%s219 + $0x10] sm:$0xf] %v2821
      %2886 = vst [vmem:[%s219 + $0x14] sm:$0xf] %v2822
      %2887 = vst [vmem:[%s219 + $0x18] sm:$0xf] %v2823
      %2888 = vst [vmem:[%s219 + $0x1c] sm:$0xf] %v2824
      %2889 = vst [vmem:[%s219 + $0x20] sm:$0xf] %v2825
      %2890 = vst [vmem:[%s219 + $0x24] sm:$0xf] %v2826
      %2891 = vst [vmem:[%s219 + $0x28] sm:$0xf] %v2827
      %2892 = vst [vmem:[%s219 + $0x2c] sm:$0xf] %v2828
      %2893 = vst [vmem:[%s219 + $0x30] sm:$0xf] %v2829
      %2894 = vst [vmem:[%s219 + $0x34] sm:$0xf] %v2830
      %2895 = vst [vmem:[%s219 + $0x38] sm:$0xf] %v2831
      %2896 = vst [vmem:[%s219 + $0x3c] sm:$0xf] %v2832
      %2897 = vst [vmem:[%s219 + $0x40] sm:$0xf] %v2833
      %2898 = vst [vmem:[%s219 + $0x44] sm:$0xf] %v2834
      %2899 = vst [vmem:[%s219 + $0x48] sm:$0xf] %v2835
      %2900 = vst [vmem:[%s219 + $0x4c] sm:$0xf] %v2836
      %2901 = vst [vmem:[%s219 + $0x50] sm:$0xf] %v2837
      %2902 = vst [vmem:[%s219 + $0x54] sm:$0xf] %v2838
      %2903 = vst [vmem:[%s219 + $0x58] sm:$0xf] %v2839
      %2904 = vst [vmem:[%s219 + $0x5c] sm:$0xf] %v2840
      %2905 = vst [vmem:[%s219 + $0x60] sm:$0xf] %v2841
      %2906 = vst [vmem:[%s219 + $0x64] sm:$0xf] %v2842
      %2907 = vst [vmem:[%s219 + $0x68] sm:$0xf] %v2843
      %2908 = vst [vmem:[%s219 + $0x6c] sm:$0xf] %v2844
      %2909 = vst [vmem:[%s219 + $0x70] sm:$0xf] %v2845
      %2910 = vst [vmem:[%s219 + $0x74] sm:$0xf] %v2846
      %2911 = vst [vmem:[%s219 + $0x78] sm:$0xf] %v2847
      %2912 = vst [vmem:[%s219 + $0x7c] sm:$0xf] %v2848
      %p2913 = scmp.lt.s32.totalorder %s19, 1
      %s2914 = scalar_select %p2913, %s19, 1
      %p2915 = scmp.lt.s32.totalorder %s20, 0
      %s2916 = scalar_select %p2915, %s20, 0
      %s2917 = smul.addr %s2914, 32
      %s2918 = sadd.s32 %s2916, %s2917
      %s2919 = smul.addr %s2918, 4
      %s2920 = scalar_lea.vmem %s2, %s2919
      %p2921 = scmp.lt.s32.totalorder %s19, 1
      %s2922 = scalar_select %p2921, %s19, 1
      %p2923 = scmp.lt.s32.totalorder %s20, 0
      %s2924 = scalar_select %p2923, %s20, 0
      %s2925 = sadd.s32 %s2924, %s2922
      %s2926 = smul.addr %s2925, 8
      %s2927 = scalar_lea.vmem %s3, %s2926
      // Predicated region
      $region33: #{double_conv_forward.3} parent=27 // pred_check
        %p2928 = pneg %p99
      $region34: #{double_conv_forward.3} parent=27 // pred_check_branch
        %2930 = sbr.rel (%p2928) target = $region36
      $region35: #{double_conv_forward.3} parent=27 // pred_region
        _
      $region36: #{double_conv_forward.3} parent=27 // pred_fallthru
        _
      // Predicated region
      $region37: #{double_conv_forward.3} parent=27 // pred_check
        %p2931 = pneg %p127
      $region38: #{double_conv_forward.3} parent=27 // pred_check_branch
        %2933 = sbr.rel (%p2931) target = $region40
      $region39: #{double_conv_forward.3} parent=27 // pred_region
        _
      $region40: #{double_conv_forward.3} parent=27 // pred_fallthru
        _
    $region28: #{double_conv_forward.3} parent=5 // pred_fallthru
      _
    %p2934 = scmp.le.s32.totalorder 2, %s10
    // Predicated region
    $region41: #{double_conv_forward.3} parent=5 // pred_check
      %p2935 = pneg %p2934
    $region42: #{double_conv_forward.3} parent=5 // pred_check_branch
      %2937 = sbr.rel (%p2935) target = $region44
    $region43: #{double_conv_forward.3} parent=5 // pred_region
      %s2938 = ssub.s32 %s10, 2
      // Predicated region
      $region45: #{double_conv_forward.3} parent=43 // pred_check
        %p2939 = pneg %p105
      $region46: #{double_conv_forward.3} parent=43 // pred_check_branch
        %2941 = sbr.rel (%p2939) target = $region48
      $region47: #{double_conv_forward.3} parent=43 // pred_region
        %p2942 = scmp.lt.s32.totalorder %s21, 1
        %s2943 = scalar_select %p2942, %s21, 1
        %p2944 = scmp.lt.s32.totalorder %s22, 0
        %s2945 = scalar_select %p2944, %s22, 0
        %s2946 = smul.addr %s2943, 32
        %s2947 = sadd.s32 %s2945, %s2946
        %s2948 = smul.addr %s2947, 4
        %s2949 = scalar_lea.vmem %s2, %s2948
      $region48: #{double_conv_forward.3} parent=43 // pred_fallthru
        _
      // Predicated region
      $region49: #{double_conv_forward.3} parent=43 // pred_check
        %p2950 = pneg %p133
      $region50: #{double_conv_forward.3} parent=43 // pred_check_branch
        %2952 = sbr.rel (%p2950) target = $region52
      $region51: #{double_conv_forward.3} parent=43 // pred_region
        %p2953 = scmp.lt.s32.totalorder %s21, 1
        %s2954 = scalar_select %p2953, %s21, 1
        %p2955 = scmp.lt.s32.totalorder %s22, 0
        %s2956 = scalar_select %p2955, %s22, 0
        %s2957 = sadd.s32 %s2956, %s2954
        %s2958 = smul.addr %s2957, 8
        %s2959 = scalar_lea.vmem %s3, %s2958
      $region52: #{double_conv_forward.3} parent=43 // pred_fallthru
        _
    $region44: #{double_conv_forward.3} parent=5 // pred_fallthru
      _
  $region6: #{double_conv_forward.3} parent=0 // loop_footer
    %s14 = sadd.s32 1, %s10
  $region7: #{double_conv_forward.3} parent=0 // loop_footer_branch
    %9 = sbr.rel target = $region3
  $region8: #{double_conv_forward.3} parent=0 // loop_exit
    _

// kernel: double_conv_forward.4
$region0: #{double_conv_forward.4}
  #allocation0 [shape = 'u32[]', space=smem, size = 0x4, offset = 0x4, fixed_abs, tag = 'smem constant byte address 0x4 - core index']
  #allocation1 [shape = 'u32[144,128]{1,0:T(1,128)}', space=vmem, size = 0x12000, scoped, tag = 'internal scratch']
  #allocation2 [shape = 'f32[1,18,18,128]{3,2,1,0:T(8,128)}', space=vmem, size = 0x36000, scoped, tag = 'scratch operand']
  %s0 = inlined_call_operand.vmem [shape: bf16[2,16,16,128], index: 0, kind: input, shape index: {}]
  %s1 = inlined_call_operand.vmem [shape: bf16[9,128,128], index: 1, kind: input, shape index: {}]
  %s2 = inlined_call_operand.vmem [shape: f32[1,128], index: 2, kind: input, shape index: {}]
  %s3 = inlined_call_operand.vmem [shape: f32[1,128], index: 3, kind: input, shape index: {}]
  %s4 = inlined_call_operand.vmem [shape: bf16[2,16,16,128], index: 4, kind: output, shape index: {0}]
  %s5 = inlined_call_operand.vmem [shape: f32[2,8,128], index: 5, kind: output, shape index: {1}]
  %6 = xla_tuple %s4, %s5
  %s7 = sld [smem:[#allocation0]]
  $region61: #{double_conv_forward.4} parent=0
    _
  %s9 = ssub.s32 1, %s7
  %s10 = scalar_select 0, %s9, %s7
  loop: start=0, step=1, limit=4
  $region2: #{double_conv_forward.4} parent=0 // loop_pre_header
    _
  $region3: #{double_conv_forward.4} parent=0 // loop_header
    %s12 = sphi 0, %s16
    %p13 = scmp.ge.s32.totalorder %s12, 4
    %s19 = sphi 0, %s31
    %s20 = sphi 0, %s27
    %s21 = sphi 0, %s19
    %s22 = sphi 0, %s20
    %s23 = sphi 0, %s21
    %s24 = sphi 0, %s22
    %s34 = sphi 0, %s36
    %s37 = sphi 0, %s34
    %s38 = sphi 0, %s37
    %s54 = sphi 0, %s38
    %s60 = sphi 0, %s62
    %s63 = sphi 0, %s60
    %s64 = sphi 0, %s63
    %s80 = sphi 0, %s64
    %s84 = sphi 0, %s84
    %s86 = sphi 0, %s84
    %s87 = sphi 0, %s86
    %s101 = sphi 0, %s87
    %s105 = sphi 0, %s105
    %s107 = sphi 0, %s105
    %s108 = sphi 0, %s107
    %s122 = sphi 0, %s108
    %s130 = sphi 0, %s132
    %s133 = sphi 0, %s130
    %s134 = sphi 0, %s133
    %s150 = sphi 0, %s134
    %s158 = sphi 0, %s160
    %s161 = sphi 0, %s158
    %s162 = sphi 0, %s161
    %s178 = sphi 0, %s162
  $region4: #{double_conv_forward.4} parent=0 // loop_header_branch
    %15 = sbr.rel (%p13) target = $region8
  $region5: #{double_conv_forward.4} parent=0 // loop_body
    %s17 = ssub.s32 %s12, 1
    %s18 = ssub.s32 %s12, 2
    %s25 = sadd.s32 1, %s20
    %p26 = scmp.ge.s32.totalorder %s25, 1
    %s27 = scalar_select %p26, 0, %s25
    %s28 = sadd.s32 1, %s19
    %s29 = scalar_select %p26, %s28, %s19
    %p30 = scmp.ge.s32.totalorder %s29, 2
    %s31 = scalar_select %p30, 0, %s29
    %s32 = ssub.s32 %s19, %s31
    %p33 = scmp.eq.s32.totalorder %s32, 0
    %s35 = sadd.s32 %s34, 1
    %s36 = scalar_select %p33, %s34, %s35
    %p39 = pneg %p33
    %p40 = scmp.eq.s32.totalorder %s12, 1
    %p41 = por %p39, %p40
    %p42 = scmp.ne.s32.totalorder %s34, %s37
    %p43 = scmp.eq.s32.totalorder %s12, 0
    %p44 = por %p42, %p43
    %p45 = scmp.ne.s32.totalorder %s34, %s37
    %p46 = scmp.eq.s32.totalorder %s17, 1
    %p47 = por %p45, %p46
    %p48 = scmp.ne.s32.totalorder %s37, %s38
    %p49 = scmp.eq.s32.totalorder %s17, 0
    %p50 = por %p48, %p49
    %p51 = scmp.ne.s32.totalorder %s37, %s38
    %p52 = scmp.eq.s32.totalorder %s18, 1
    %p53 = por %p51, %p52
    %p55 = scmp.ne.s32.totalorder %s38, %s54
    %p56 = scmp.eq.s32.totalorder %s18, 0
    %p57 = por %p55, %p56
    %s58 = ssub.s32 %s20, %s27
    %p59 = scmp.eq.s32.totalorder %s58, 0
    %s61 = sadd.s32 %s60, 1
    %s62 = scalar_select %p59, %s60, %s61
    %p65 = pneg %p59
    %p66 = scmp.eq.s32.totalorder %s12, 1
    %p67 = por %p65, %p66
    %p68 = scmp.ne.s32.totalorder %s60, %s63
    %p69 = scmp.eq.s32.totalorder %s12, 0
    %p70 = por %p68, %p69
    %p71 = scmp.ne.s32.totalorder %s60, %s63
    %p72 = scmp.eq.s32.totalorder %s17, 1
    %p73 = por %p71, %p72
    %p74 = scmp.ne.s32.totalorder %s63, %s64
    %p75 = scmp.eq.s32.totalorder %s17, 0
    %p76 = por %p74, %p75
    %p77 = scmp.ne.s32.totalorder %s63, %s64
    %p78 = scmp.eq.s32.totalorder %s18, 1
    %p79 = por %p77, %p78
    %p81 = scmp.ne.s32.totalorder %s64, %s80
    %p82 = scmp.eq.s32.totalorder %s18, 0
    %p83 = por %p81, %p82
    %s85 = sadd.s32 %s84, 1
    %p88 = scmp.eq.s32.totalorder %s12, 1
    %p89 = scmp.ne.s32.totalorder %s84, %s86
    %p90 = scmp.eq.s32.totalorder %s12, 0
    %p91 = por %p89, %p90
    %p92 = scmp.ne.s32.totalorder %s84, %s86
    %p93 = scmp.eq.s32.totalorder %s17, 1
    %p94 = por %p92, %p93
    %p95 = scmp.ne.s32.totalorder %s86, %s87
    %p96 = scmp.eq.s32.totalorder %s17, 0
    %p97 = por %p95, %p96
    %p98 = scmp.ne.s32.totalorder %s86, %s87
    %p99 = scmp.eq.s32.totalorder %s18, 1
    %p100 = por %p98, %p99
    %p102 = scmp.ne.s32.totalorder %s87, %s101
    %p103 = scmp.eq.s32.totalorder %s18, 0
    %p104 = por %p102, %p103
    %s106 = sadd.s32 %s105, 1
    %p109 = scmp.eq.s32.totalorder %s12, 1
    %p110 = scmp.ne.s32.totalorder %s105, %s107
    %p111 = scmp.eq.s32.totalorder %s12, 0
    %p112 = por %p110, %p111
    %p113 = scmp.ne.s32.totalorder %s105, %s107
    %p114 = scmp.eq.s32.totalorder %s17, 1
    %p115 = por %p113, %p114
    %p116 = scmp.ne.s32.totalorder %s107, %s108
    %p117 = scmp.eq.s32.totalorder %s17, 0
    %p118 = por %p116, %p117
    %p119 = scmp.ne.s32.totalorder %s107, %s108
    %p120 = scmp.eq.s32.totalorder %s18, 1
    %p121 = por %p119, %p120
    %p123 = scmp.ne.s32.totalorder %s108, %s122
    %p124 = scmp.eq.s32.totalorder %s18, 0
    %p125 = por %p123, %p124
    %s126 = ssub.s32 %s19, %s31
    %s127 = ssub.s32 %s20, %s27
    %s128 = sor.u32 %s126, %s127
    %p129 = scmp.eq.s32.totalorder %s128, 0
    %s131 = sadd.s32 %s130, 1
    %s132 = scalar_select %p129, %s130, %s131
    %p135 = pneg %p129
    %p136 = scmp.eq.s32.totalorder %s12, 1
    %p137 = por %p135, %p136
    %p138 = scmp.ne.s32.totalorder %s130, %s133
    %p139 = scmp.eq.s32.totalorder %s12, 0
    %p140 = por %p138, %p139
    %p141 = scmp.ne.s32.totalorder %s130, %s133
    %p142 = scmp.eq.s32.totalorder %s17, 1
    %p143 = por %p141, %p142
    %p144 = scmp.ne.s32.totalorder %s133, %s134
    %p145 = scmp.eq.s32.totalorder %s17, 0
    %p146 = por %p144, %p145
    %p147 = scmp.ne.s32.totalorder %s133, %s134
    %p148 = scmp.eq.s32.totalorder %s18, 1
    %p149 = por %p147, %p148
    %p151 = scmp.ne.s32.totalorder %s134, %s150
    %p152 = scmp.eq.s32.totalorder %s18, 0
    %p153 = por %p151, %p152
    %s154 = ssub.s32 %s19, %s31
    %s155 = ssub.s32 %s20, %s27
    %s156 = sor.u32 %s154, %s155
    %p157 = scmp.eq.s32.totalorder %s156, 0
    %s159 = sadd.s32 %s158, 1
    %s160 = scalar_select %p157, %s158, %s159
    %p163 = pneg %p157
    %p164 = scmp.eq.s32.totalorder %s12, 1
    %p165 = por %p163, %p164
    %p166 = scmp.ne.s32.totalorder %s158, %s161
    %p167 = scmp.eq.s32.totalorder %s12, 0
    %p168 = por %p166, %p167
    %p169 = scmp.ne.s32.totalorder %s158, %s161
    %p170 = scmp.eq.s32.totalorder %s17, 1
    %p171 = por %p169, %p170
    %p172 = scmp.ne.s32.totalorder %s161, %s162
    %p173 = scmp.eq.s32.totalorder %s17, 0
    %p174 = por %p172, %p173
    %p175 = scmp.ne.s32.totalorder %s161, %s162
    %p176 = scmp.eq.s32.totalorder %s18, 1
    %p177 = por %p175, %p176
    %p179 = scmp.ne.s32.totalorder %s162, %s178
    %p180 = scmp.eq.s32.totalorder %s18, 0
    %p181 = por %p179, %p180
    %p182 = scmp.le.s32.totalorder 1, %s12
    %p183 = scmp.lt.s32.totalorder %s12, 3
    %p184 = pnand %p182, %p183
    %p185 = pneg %p184
    // Predicated region
    $region9: #{double_conv_forward.4} parent=5 // pred_check
      _
    $region10: #{double_conv_forward.4} parent=5 // pred_check_branch
      %187 = sbr.rel (%p184) target = $region12
    $region11: #{double_conv_forward.4} parent=5 // pred_region
      %s188 = ssub.s32 %s12, 1
      // Predicated region
      $region13: #{double_conv_forward.4} parent=11 // pred_check
        %p189 = pneg %p76
      $region14: #{double_conv_forward.4} parent=11 // pred_check_branch
        %191 = sbr.rel (%p189) target = $region16
      $region15: #{double_conv_forward.4} parent=11 // pred_region
        %p192 = scmp.lt.s32.totalorder %s22, 0
        %s193 = scalar_select %p192, %s22, 0
        %s194 = smul.addr %s193, 4
        %s195 = scalar_lea.vmem %s1, %s194
      $region16: #{double_conv_forward.4} parent=11 // pred_fallthru
        _
      // Predicated region
      $region17: #{double_conv_forward.4} parent=11 // pred_check
        %p196 = pneg %p97
      $region18: #{double_conv_forward.4} parent=11 // pred_check_branch
        %198 = sbr.rel (%p196) target = $region20
      $region19: #{double_conv_forward.4} parent=11 // pred_region
        _
      $region20: #{double_conv_forward.4} parent=11 // pred_fallthru
        _
      // Predicated region
      $region21: #{double_conv_forward.4} parent=11 // pred_check
        %p199 = pneg %p118
      $region22: #{double_conv_forward.4} parent=11 // pred_check_branch
        %201 = sbr.rel (%p199) target = $region24
      $region23: #{double_conv_forward.4} parent=11 // pred_region
        _
      $region24: #{double_conv_forward.4} parent=11 // pred_fallthru
        _
    $region12: #{double_conv_forward.4} parent=5 // pred_fallthru
      _
    %p202 = scmp.lt.s32.totalorder %s12, 2
    // Predicated region
    $region25: #{double_conv_forward.4} parent=5 // pred_check
      %p203 = pneg %p202
    $region26: #{double_conv_forward.4} parent=5 // pred_check_branch
      %205 = sbr.rel (%p203) target = $region28
    $region27: #{double_conv_forward.4} parent=5 // pred_region
      // Predicated region
      $region29: #{double_conv_forward.4} parent=27 // pred_check
        %p206 = pneg %p44
      $region30: #{double_conv_forward.4} parent=27 // pred_check_branch
        %208 = sbr.rel (%p206) target = $region32
      $region31: #{double_conv_forward.4} parent=27 // pred_region
        %p209 = scmp.lt.s32.totalorder %s19, 1
        %s210 = scalar_select %p209, %s19, 1
        %s211 = smul.addr %s210, 32
        %s212 = smul.addr %s211, 4
        %s213 = scalar_lea.vmem %s0, %s212
      $region32: #{double_conv_forward.4} parent=27 // pred_fallthru
        _
    $region28: #{double_conv_forward.4} parent=5 // pred_fallthru
      _
    %p214 = scmp.le.s32.totalorder 1, %s12
    %p215 = scmp.lt.s32.totalorder %s12, 3
    %p216 = pnand %p214, %p215
    %p217 = pneg %p216
    // Predicated region
    $region33: #{double_conv_forward.4} parent=5 // pred_check
      _
    $region34: #{double_conv_forward.4} parent=5 // pred_check_branch
      %219 = sbr.rel (%p216) target = $region36
    $region35: #{double_conv_forward.4} parent=5 // pred_region
      %s220 = ssub.s32 %s12, 1
      %p221 = scmp.lt.s32.totalorder %s21, 1
      %s222 = scalar_select %p221, %s21, 1
      %s223 = smul.addr %s222, 32
      %s224 = smul.addr %s223, 4
      %s225 = scalar_lea.vmem %s0, %s224
      %p226 = pneg %p50
      %p227 = pneg %p47
      %p228 = scmp.lt.s32.totalorder %s22, 0
      %s229 = scalar_select %p228, %s22, 0
      %s230 = smul.addr %s229, 4
      %s231 = scalar_lea.vmem %s1, %s230
      %p232 = pneg %p76
      %p233 = pneg %p73
      %p234 = pneg %p97
      %p235 = pneg %p94
      %p236 = pneg %p118
      %p237 = pneg %p115
      %p238 = pneg %p146
      %p239 = pneg %p143
      %p240 = scmp.lt.s32.totalorder %s21, 1
      %s241 = scalar_select %p240, %s21, 1
      %p242 = scmp.lt.s32.totalorder %s22, 0
      %s243 = scalar_select %p242, %s22, 0
      %s244 = smul.addr %s241, 32
      %s245 = sadd.s32 %s243, %s244
      %s246 = smul.addr %s245, 4
      %s247 = scalar_lea.vmem %s4, %s246
      %p248 = pneg %p174
      %p249 = pneg %p171
      %p250 = scmp.lt.s32.totalorder %s21, 1
      %s251 = scalar_select %p250, %s21, 1
      %p252 = scmp.lt.s32.totalorder %s22, 0
      %s253 = scalar_select %p252, %s22, 0
      %s254 = sadd.s32 %s253, %s251
      %s255 = smul.addr %s254, 8
      %s256 = scalar_lea.vmem %s5, %s255
      %p257 = scmp.lt.s32.totalorder %s21, 1
      %s258 = scalar_select %p257, %s21, 1
      %s259 = smul.addr %s258, 32
      %s260 = smul.addr %s259, 4
      %s261 = scalar_lea.vmem %s0, %s260
      %p262 = scmp.lt.s32.totalorder %s22, 0
      %s263 = scalar_select %p262, %s22, 0
      %s264 = smul.addr %s263, 4
      %s265 = scalar_lea.vmem %s1, %s264
      %p266 = scmp.lt.s32.totalorder %s21, 1
      %s267 = scalar_select %p266, %s21, 1
      %p268 = scmp.lt.s32.totalorder %s22, 0
      %s269 = scalar_select %p268, %s22, 0
      %s270 = smul.addr %s267, 32
      %s271 = sadd.s32 %s269, %s270
      %s272 = smul.addr %s271, 4
      %s273 = scalar_lea.vmem %s4, %s272
      %p274 = scmp.lt.s32.totalorder %s21, 1
      %s275 = scalar_select %p274, %s21, 1
      %p276 = scmp.lt.s32.totalorder %s22, 0
      %s277 = scalar_select %p276, %s22, 0
      %s278 = sadd.s32 %s277, %s275
      %s279 = smul.addr %s278, 8
      %s280 = scalar_lea.vmem %s5, %s279
      %p282 = scmp.eq.s32.totalorder %s22, 0
      // Predicated region
      $region37: #{double_conv_forward.4} parent=35 // pred_check
        %p283 = pneg %p282
      $region38: #{double_conv_forward.4} parent=35 // pred_check_branch
        %285 = sbr.rel (%p283) target = $region40
      $region39: #{double_conv_forward.4} parent=35 // pred_region
        %v286 = vld [vmem:[%s261] sm:$0xf]
        %v287 = vld [vmem:[%s261 + $0x4] sm:$0xf]
        %v288 = vld [vmem:[%s261 + $0x8] sm:$0xf]
        %v289 = vld [vmem:[%s261 + $0xc] sm:$0xf]
        %v290 = vld [vmem:[%s261 + $0x10] sm:$0xf]
        %v291 = vld [vmem:[%s261 + $0x14] sm:$0xf]
        %v292 = vld [vmem:[%s261 + $0x18] sm:$0xf]
        %v293 = vld [vmem:[%s261 + $0x1c] sm:$0xf]
        %v294 = vld [vmem:[%s261 + $0x20] sm:$0xf]
        %v295 = vld [vmem:[%s261 + $0x24] sm:$0xf]
        %v296 = vld [vmem:[%s261 + $0x28] sm:$0xf]
        %v297 = vld [vmem:[%s261 + $0x2c] sm:$0xf]
        %v298 = vld [vmem:[%s261 + $0x30] sm:$0xf]
        %v299 = vld [vmem:[%s261 + $0x34] sm:$0xf]
        %v300 = vld [vmem:[%s261 + $0x38] sm:$0xf]
        %v301 = vld [vmem:[%s261 + $0x3c] sm:$0xf]
        %v302 = vld [vmem:[%s261 + $0x40] sm:$0xf]
        %v303 = vld [vmem:[%s261 + $0x44] sm:$0xf]
        %v304 = vld [vmem:[%s261 + $0x48] sm:$0xf]
        %v305 = vld [vmem:[%s261 + $0x4c] sm:$0xf]
        %v306 = vld [vmem:[%s261 + $0x50] sm:$0xf]
        %v307 = vld [vmem:[%s261 + $0x54] sm:$0xf]
        %v308 = vld [vmem:[%s261 + $0x58] sm:$0xf]
        %v309 = vld [vmem:[%s261 + $0x5c] sm:$0xf]
        %v310 = vld [vmem:[%s261 + $0x60] sm:$0xf]
        %v311 = vld [vmem:[%s261 + $0x64] sm:$0xf]
        %v312 = vld [vmem:[%s261 + $0x68] sm:$0xf]
        %v313 = vld [vmem:[%s261 + $0x6c] sm:$0xf]
        %v314 = vld [vmem:[%s261 + $0x70] sm:$0xf]
        %v315 = vld [vmem:[%s261 + $0x74] sm:$0xf]
        %v316 = vld [vmem:[%s261 + $0x78] sm:$0xf]
        %v317 = vld [vmem:[%s261 + $0x7c] sm:$0xf]
        %v318 = vunpack.c.l.bf16 %v286
        %v319 = vunpack.c.l.bf16 %v287
        %v320 = vunpack.c.l.bf16 %v288
        %v321 = vunpack.c.l.bf16 %v289
        %v322 = vunpack.c.l.bf16 %v290
        %v323 = vunpack.c.l.bf16 %v291
        %v324 = vunpack.c.l.bf16 %v292
        %v325 = vunpack.c.l.bf16 %v293
        %v326 = vunpack.c.l.bf16 %v294
        %v327 = vunpack.c.l.bf16 %v295
        %v328 = vunpack.c.l.bf16 %v296
        %v329 = vunpack.c.l.bf16 %v297
        %v330 = vunpack.c.l.bf16 %v298
        %v331 = vunpack.c.l.bf16 %v299
        %v332 = vunpack.c.l.bf16 %v300
        %v333 = vunpack.c.l.bf16 %v301
        %v334 = vunpack.c.l.bf16 %v302
        %v335 = vunpack.c.l.bf16 %v303
        %v336 = vunpack.c.l.bf16 %v304
        %v337 = vunpack.c.l.bf16 %v305
        %v338 = vunpack.c.l.bf16 %v306
        %v339 = vunpack.c.l.bf16 %v307
        %v340 = vunpack.c.l.bf16 %v308
        %v341 = vunpack.c.l.bf16 %v309
        %v342 = vunpack.c.l.bf16 %v310
        %v343 = vunpack.c.l.bf16 %v311
        %v344 = vunpack.c.l.bf16 %v312
        %v345 = vunpack.c.l.bf16 %v313
        %v346 = vunpack.c.l.bf16 %v314
        %v347 = vunpack.c.l.bf16 %v315
        %v348 = vunpack.c.l.bf16 %v316
        %v349 = vunpack.c.l.bf16 %v317
        %v350 = vld [vmem:[%s2] sm:$0x1]
        %v351 = vld [vmem:[%s3] sm:$0x1]
        %v353 = vlaneseq
        %v354 = vshrl.u32 %v353, 7
        %v355 = vsub.s32 0, %v354
        %v356 = vrot.slane %v350, %v355
        %v358 = vmul.f32 %v318, %v356
        %v359 = vmul.f32 %v319, %v356
        %v360 = vmul.f32 %v320, %v356
        %v361 = vmul.f32 %v321, %v356
        %v362 = vmul.f32 %v322, %v356
        %v363 = vmul.f32 %v323, %v356
        %v364 = vmul.f32 %v324, %v356
        %v365 = vmul.f32 %v325, %v356
        %v366 = vmul.f32 %v326, %v356
        %v367 = vmul.f32 %v327, %v356
        %v368 = vmul.f32 %v328, %v356
        %v369 = vmul.f32 %v329, %v356
        %v370 = vmul.f32 %v330, %v356
        %v371 = vmul.f32 %v331, %v356
        %v372 = vmul.f32 %v332, %v356
        %v373 = vmul.f32 %v333, %v356
        %v374 = vmul.f32 %v334, %v356
        %v375 = vmul.f32 %v335, %v356
        %v376 = vmul.f32 %v336, %v356
        %v377 = vmul.f32 %v337, %v356
        %v378 = vmul.f32 %v338, %v356
        %v379 = vmul.f32 %v339, %v356
        %v380 = vmul.f32 %v340, %v356
        %v381 = vmul.f32 %v341, %v356
        %v382 = vmul.f32 %v342, %v356
        %v383 = vmul.f32 %v343, %v356
        %v384 = vmul.f32 %v344, %v356
        %v385 = vmul.f32 %v345, %v356
        %v386 = vmul.f32 %v346, %v356
        %v387 = vmul.f32 %v347, %v356
        %v388 = vmul.f32 %v348, %v356
        %v389 = vmul.f32 %v349, %v356
        %v391 = vlaneseq
        %v392 = vshrl.u32 %v391, 7
        %v393 = vsub.s32 0, %v392
        %v394 = vrot.slane %v351, %v393
        %v396 = vadd.f32 %v358, %v394
        %v397 = vadd.f32 %v359, %v394
        %v398 = vadd.f32 %v360, %v394
        %v399 = vadd.f32 %v361, %v394
        %v400 = vadd.f32 %v362, %v394
        %v401 = vadd.f32 %v363, %v394
        %v402 = vadd.f32 %v364, %v394
        %v403 = vadd.f32 %v365, %v394
        %v404 = vadd.f32 %v366, %v394
        %v405 = vadd.f32 %v367, %v394
        %v406 = vadd.f32 %v368, %v394
        %v407 = vadd.f32 %v369, %v394
        %v408 = vadd.f32 %v370, %v394
        %v409 = vadd.f32 %v371, %v394
        %v410 = vadd.f32 %v372, %v394
        %v411 = vadd.f32 %v373, %v394
        %v412 = vadd.f32 %v374, %v394
        %v413 = vadd.f32 %v375, %v394
        %v414 = vadd.f32 %v376, %v394
        %v415 = vadd.f32 %v377, %v394
        %v416 = vadd.f32 %v378, %v394
        %v417 = vadd.f32 %v379, %v394
        %v418 = vadd.f32 %v380, %v394
        %v419 = vadd.f32 %v381, %v394
        %v420 = vadd.f32 %v382, %v394
        %v421 = vadd.f32 %v383, %v394
        %v422 = vadd.f32 %v384, %v394
        %v423 = vadd.f32 %v385, %v394
        %v424 = vadd.f32 %v386, %v394
        %v425 = vadd.f32 %v387, %v394
        %v426 = vadd.f32 %v388, %v394
        %v427 = vadd.f32 %v389, %v394
        %v428 = vmax.f32 %v396, 0.0
        %v429 = vmax.f32 %v397, 0.0
        %v430 = vmax.f32 %v398, 0.0
        %v431 = vmax.f32 %v399, 0.0
        %v432 = vmax.f32 %v400, 0.0
        %v433 = vmax.f32 %v401, 0.0
        %v434 = vmax.f32 %v402, 0.0
        %v435 = vmax.f32 %v403, 0.0
        %v436 = vmax.f32 %v404, 0.0
        %v437 = vmax.f32 %v405, 0.0
        %v438 = vmax.f32 %v406, 0.0
        %v439 = vmax.f32 %v407, 0.0
        %v440 = vmax.f32 %v408, 0.0
        %v441 = vmax.f32 %v409, 0.0
        %v442 = vmax.f32 %v410, 0.0
        %v443 = vmax.f32 %v411, 0.0
        %v444 = vmax.f32 %v412, 0.0
        %v445 = vmax.f32 %v413, 0.0
        %v446 = vmax.f32 %v414, 0.0
        %v447 = vmax.f32 %v415, 0.0
        %v448 = vmax.f32 %v416, 0.0
        %v449 = vmax.f32 %v417, 0.0
        %v450 = vmax.f32 %v418, 0.0
        %v451 = vmax.f32 %v419, 0.0
        %v452 = vmax.f32 %v420, 0.0
        %v453 = vmax.f32 %v421, 0.0
        %v454 = vmax.f32 %v422, 0.0
        %v455 = vmax.f32 %v423, 0.0
        %v456 = vmax.f32 %v424, 0.0
        %v457 = vmax.f32 %v425, 0.0
        %v458 = vmax.f32 %v426, 0.0
        %v459 = vmax.f32 %v427, 0.0
        %460 = vst [vmem:[#allocation2] sm:$0xff] 0.0
        %461 = vst [vmem:[#allocation2 + $0x8] sm:$0xff] 0.0
        %462 = vst [vmem:[#allocation2 + $0x10] sm:$0x3] 0.0
        %463 = vst [vmem:[#allocation2 + $0x18] sm:$0xff] 0.0
        %464 = vst [vmem:[#allocation2 + $0x20] sm:$0xff] 0.0
        %465 = vst [vmem:[#allocation2 + $0x28] sm:$0x3] 0.0
        %466 = vst [vmem:[#allocation2 + $0x30] sm:$0xff] 0.0
        %467 = vst [vmem:[#allocation2 + $0x38] sm:$0xff] 0.0
        %468 = vst [vmem:[#allocation2 + $0x40] sm:$0x3] 0.0
        %469 = vst [vmem:[#allocation2 + $0x48] sm:$0xff] 0.0
        %470 = vst [vmem:[#allocation2 + $0x50] sm:$0xff] 0.0
        %471 = vst [vmem:[#allocation2 + $0x58] sm:$0x3] 0.0
        %472 = vst [vmem:[#allocation2 + $0x60] sm:$0xff] 0.0
        %473 = vst [vmem:[#allocation2 + $0x68] sm:$0xff] 0.0
        %474 = vst [vmem:[#allocation2 + $0x70] sm:$0x3] 0.0
        %475 = vst [vmem:[#allocation2 + $0x78] sm:$0xff] 0.0
        %476 = vst [vmem:[#allocation2 + $0x80] sm:$0xff] 0.0
        %477 = vst [vmem:[#allocation2 + $0x88] sm:$0x3] 0.0
        %478 = vst [vmem:[#allocation2 + $0x90] sm:$0xff] 0.0
        %479 = vst [vmem:[#allocation2 + $0x98] sm:$0xff] 0.0
        %480 = vst [vmem:[#allocation2 + $0xa0] sm:$0x3] 0.0
        %481 = vst [vmem:[#allocation2 + $0xa8] sm:$0xff] 0.0
        %482 = vst [vmem:[#allocation2 + $0xb0] sm:$0xff] 0.0
        %483 = vst [vmem:[#allocation2 + $0xb8] sm:$0x3] 0.0
        %484 = vst [vmem:[#allocation2 + $0xc0] sm:$0xff] 0.0
        %485 = vst [vmem:[#allocation2 + $0xc8] sm:$0xff] 0.0
        %486 = vst [vmem:[#allocation2 + $0xd0] sm:$0x3] 0.0
        %487 = vst [vmem:[#allocation2 + $0xd8] sm:$0xff] 0.0
        %488 = vst [vmem:[#allocation2 + $0xe0] sm:$0xff] 0.0
        %489 = vst [vmem:[#allocation2 + $0xe8] sm:$0x3] 0.0
        %490 = vst [vmem:[#allocation2 + $0xf0] sm:$0xff] 0.0
        %491 = vst [vmem:[#allocation2 + $0xf8] sm:$0xff] 0.0
        %492 = vst [vmem:[#allocation2 + $0x100] sm:$0x3] 0.0
        %493 = vst [vmem:[#allocation2 + $0x108] sm:$0xff] 0.0
        %494 = vst [vmem:[#allocation2 + $0x110] sm:$0xff] 0.0
        %495 = vst [vmem:[#allocation2 + $0x118] sm:$0x3] 0.0
        %496 = vst [vmem:[#allocation2 + $0x120] sm:$0xff] 0.0
        %497 = vst [vmem:[#allocation2 + $0x128] sm:$0xff] 0.0
        %498 = vst [vmem:[#allocation2 + $0x130] sm:$0x3] 0.0
        %499 = vst [vmem:[#allocation2 + $0x138] sm:$0xff] 0.0
        %500 = vst [vmem:[#allocation2 + $0x140] sm:$0xff] 0.0
        %501 = vst [vmem:[#allocation2 + $0x148] sm:$0x3] 0.0
        %502 = vst [vmem:[#allocation2 + $0x150] sm:$0xff] 0.0
        %503 = vst [vmem:[#allocation2 + $0x158] sm:$0xff] 0.0
        %504 = vst [vmem:[#allocation2 + $0x160] sm:$0x3] 0.0
        %505 = vst [vmem:[#allocation2 + $0x168] sm:$0xff] 0.0
        %506 = vst [vmem:[#allocation2 + $0x170] sm:$0xff] 0.0
        %507 = vst [vmem:[#allocation2 + $0x178] sm:$0x3] 0.0
        %508 = vst [vmem:[#allocation2 + $0x180] sm:$0xff] 0.0
        %509 = vst [vmem:[#allocation2 + $0x188] sm:$0xff] 0.0
        %510 = vst [vmem:[#allocation2 + $0x190] sm:$0x3] 0.0
        %511 = vst [vmem:[#allocation2 + $0x198] sm:$0xff] 0.0
        %512 = vst [vmem:[#allocation2 + $0x1a0] sm:$0xff] 0.0
        %513 = vst [vmem:[#allocation2 + $0x1a8] sm:$0x3] 0.0
        %s514 = scalar_lea.vmem [#allocation2], 24
        %515 = vst [vmem:[%s514 + $0x1] sm:$0xff] %v428
        %516 = vst [vmem:[%s514 + $0x9] sm:$0xff] %v429
        %517 = vst [vmem:[%s514 + $0x19] sm:$0xff] %v430
        %518 = vst [vmem:[%s514 + $0x21] sm:$0xff] %v431
        %519 = vst [vmem:[%s514 + $0x31] sm:$0xff] %v432
        %520 = vst [vmem:[%s514 + $0x39] sm:$0xff] %v433
        %521 = vst [vmem:[%s514 + $0x49] sm:$0xff] %v434
        %522 = vst [vmem:[%s514 + $0x51] sm:$0xff] %v435
        %523 = vst [vmem:[%s514 + $0x61] sm:$0xff] %v436
        %524 = vst [vmem:[%s514 + $0x69] sm:$0xff] %v437
        %525 = vst [vmem:[%s514 + $0x79] sm:$0xff] %v438
        %526 = vst [vmem:[%s514 + $0x81] sm:$0xff] %v439
        %527 = vst [vmem:[%s514 + $0x91] sm:$0xff] %v440
        %528 = vst [vmem:[%s514 + $0x99] sm:$0xff] %v441
        %529 = vst [vmem:[%s514 + $0xa9] sm:$0xff] %v442
        %530 = vst [vmem:[%s514 + $0xb1] sm:$0xff] %v443
        %531 = vst [vmem:[%s514 + $0xc1] sm:$0xff] %v444
        %532 = vst [vmem:[%s514 + $0xc9] sm:$0xff] %v445
        %533 = vst [vmem:[%s514 + $0xd9] sm:$0xff] %v446
        %534 = vst [vmem:[%s514 + $0xe1] sm:$0xff] %v447
        %535 = vst [vmem:[%s514 + $0xf1] sm:$0xff] %v448
        %536 = vst [vmem:[%s514 + $0xf9] sm:$0xff] %v449
        %537 = vst [vmem:[%s514 + $0x109] sm:$0xff] %v450
        %538 = vst [vmem:[%s514 + $0x111] sm:$0xff] %v451
        %539 = vst [vmem:[%s514 + $0x121] sm:$0xff] %v452
        %540 = vst [vmem:[%s514 + $0x129] sm:$0xff] %v453
        %541 = vst [vmem:[%s514 + $0x139] sm:$0xff] %v454
        %542 = vst [vmem:[%s514 + $0x141] sm:$0xff] %v455
        %543 = vst [vmem:[%s514 + $0x151] sm:$0xff] %v456
        %544 = vst [vmem:[%s514 + $0x159] sm:$0xff] %v457
        %545 = vst [vmem:[%s514 + $0x169] sm:$0xff] %v458
        %546 = vst [vmem:[%s514 + $0x171] sm:$0xff] %v459
      $region40: #{double_conv_forward.4} parent=35 // pred_fallthru
        _
      %v547 = vld [vmem:[#allocation2] sm:$0xff]
      %v548 = vld [vmem:[#allocation2 + $0x8] sm:$0xff]
      %v549 = vld [vmem:[#allocation2 + $0x10] sm:$0x3]
      %v550 = vld [vmem:[#allocation2 + $0x18] sm:$0xff]
      %v551 = vld [vmem:[#allocation2 + $0x20] sm:$0xff]
      %v552 = vld [vmem:[#allocation2 + $0x28] sm:$0x3]
      %v553 = vld [vmem:[#allocation2 + $0x30] sm:$0xff]
      %v554 = vld [vmem:[#allocation2 + $0x38] sm:$0xff]
      %v555 = vld [vmem:[#allocation2 + $0x40] sm:$0x3]
      %v556 = vld [vmem:[#allocation2 + $0x48] sm:$0xff]
      %v557 = vld [vmem:[#allocation2 + $0x50] sm:$0xff]
      %v558 = vld [vmem:[#allocation2 + $0x58] sm:$0x3]
      %v559 = vld [vmem:[#allocation2 + $0x60] sm:$0xff]
      %v560 = vld [vmem:[#allocation2 + $0x68] sm:$0xff]
      %v561 = vld [vmem:[#allocation2 + $0x70] sm:$0x3]
      %v562 = vld [vmem:[#allocation2 + $0x78] sm:$0xff]
      %v563 = vld [vmem:[#allocation2 + $0x80] sm:$0xff]
      %v564 = vld [vmem:[#allocation2 + $0x88] sm:$0x3]
      %v565 = vld [vmem:[#allocation2 + $0x90] sm:$0xff]
      %v566 = vld [vmem:[#allocation2 + $0x98] sm:$0xff]
      %v567 = vld [vmem:[#allocation2 + $0xa0] sm:$0x3]
      %v568 = vld [vmem:[#allocation2 + $0xa8] sm:$0xff]
      %v569 = vld [vmem:[#allocation2 + $0xb0] sm:$0xff]
      %v570 = vld [vmem:[#allocation2 + $0xb8] sm:$0x3]
      %v571 = vld [vmem:[#allocation2 + $0xc0] sm:$0xff]
      %v572 = vld [vmem:[#allocation2 + $0xc8] sm:$0xff]
      %v573 = vld [vmem:[#allocation2 + $0xd0] sm:$0x3]
      %v574 = vld [vmem:[#allocation2 + $0xd8] sm:$0xff]
      %v575 = vld [vmem:[#allocation2 + $0xe0] sm:$0xff]
      %v576 = vld [vmem:[#allocation2 + $0xe8] sm:$0x3]
      %v577 = vld [vmem:[#allocation2 + $0xf0] sm:$0xff]
      %v578 = vld [vmem:[#allocation2 + $0xf8] sm:$0xff]
      %v579 = vld [vmem:[#allocation2 + $0x100] sm:$0x3]
      %v580 = vld [vmem:[#allocation2 + $0x108] sm:$0xff]
      %v581 = vld [vmem:[#allocation2 + $0x110] sm:$0xff]
      %v582 = vld [vmem:[#allocation2 + $0x118] sm:$0x3]
      %v583 = vld [vmem:[#allocation2 + $0x120] sm:$0xff]
      %v584 = vld [vmem:[#allocation2 + $0x128] sm:$0xff]
      %v585 = vld [vmem:[#allocation2 + $0x130] sm:$0x3]
      %v586 = vld [vmem:[#allocation2 + $0x138] sm:$0xff]
      %v587 = vld [vmem:[#allocation2 + $0x140] sm:$0xff]
      %v588 = vld [vmem:[#allocation2 + $0x148] sm:$0x3]
      %v589 = vld [vmem:[#allocation2 + $0x150] sm:$0xff]
      %v590 = vld [vmem:[#allocation2 + $0x158] sm:$0xff]
      %v591 = vld [vmem:[#allocation2 + $0x160] sm:$0x3]
      %v592 = vld [vmem:[#allocation2 + $0x168] sm:$0xff]
      %v593 = vld [vmem:[#allocation2 + $0x170] sm:$0xff]
      %v594 = vld [vmem:[#allocation2 + $0x178] sm:$0x3]
      %v595 = vld [vmem:[#allocation2 + $0x180] sm:$0xff]
      %v596 = vld [vmem:[#allocation2 + $0x188] sm:$0xff]
      %v597 = vld [vmem:[#allocation2 + $0x190] sm:$0x3]
      %v598 = vld [vmem:[#allocation2 + $0x198] sm:$0xff]
      %v599 = vld [vmem:[#allocation2 + $0x1a0] sm:$0xff]
      %v600 = vld [vmem:[#allocation2 + $0x1a8] sm:$0x3]
      %v601 = vld [vmem:[%s265] sm:$0xf]
      %v602 = vld [vmem:[%s265 + $0x4] sm:$0xf]
      %v603 = vld [vmem:[%s265 + $0x8] sm:$0xf]
      %v604 = vld [vmem:[%s265 + $0xc] sm:$0xf]
      %v605 = vld [vmem:[%s265 + $0x10] sm:$0xf]
      %v606 = vld [vmem:[%s265 + $0x14] sm:$0xf]
      %v607 = vld [vmem:[%s265 + $0x18] sm:$0xf]
      %v608 = vld [vmem:[%s265 + $0x1c] sm:$0xf]
      %v609 = vld [vmem:[%s265 + $0x20] sm:$0xf]
      %v610 = vld [vmem:[%s265 + $0x24] sm:$0xf]
      %v611 = vld [vmem:[%s265 + $0x28] sm:$0xf]
      %v612 = vld [vmem:[%s265 + $0x2c] sm:$0xf]
      %v613 = vld [vmem:[%s265 + $0x30] sm:$0xf]
      %v614 = vld [vmem:[%s265 + $0x34] sm:$0xf]
      %v615 = vld [vmem:[%s265 + $0x38] sm:$0xf]
      %v616 = vld [vmem:[%s265 + $0x3c] sm:$0xf]
      %v617 = vld [vmem:[%s265 + $0x40] sm:$0xf]
      %v618 = vld [vmem:[%s265 + $0x44] sm:$0xf]
      %v619 = vld [vmem:[%s265 + $0x48] sm:$0xf]
      %v620 = vld [vmem:[%s265 + $0x4c] sm:$0xf]
      %v621 = vld [vmem:[%s265 + $0x50] sm:$0xf]
      %v622 = vld [vmem:[%s265 + $0x54] sm:$0xf]
      %v623 = vld [vmem:[%s265 + $0x58] sm:$0xf]
      %v624 = vld [vmem:[%s265 + $0x5c] sm:$0xf]
      %v625 = vld [vmem:[%s265 + $0x60] sm:$0xf]
      %v626 = vld [vmem:[%s265 + $0x64] sm:$0xf]
      %v627 = vld [vmem:[%s265 + $0x68] sm:$0xf]
      %v628 = vld [vmem:[%s265 + $0x6c] sm:$0xf]
      %v629 = vld [vmem:[%s265 + $0x70] sm:$0xf]
      %v630 = vld [vmem:[%s265 + $0x74] sm:$0xf]
      %v631 = vld [vmem:[%s265 + $0x78] sm:$0xf]
      %v632 = vld [vmem:[%s265 + $0x7c] sm:$0xf]
      %v633 = vld [vmem:[%s265 + $0x80] sm:$0xf]
      %v634 = vld [vmem:[%s265 + $0x84] sm:$0xf]
      %v635 = vld [vmem:[%s265 + $0x88] sm:$0xf]
      %v636 = vld [vmem:[%s265 + $0x8c] sm:$0xf]
      %v637 = vld [vmem:[%s265 + $0x90] sm:$0xf]
      %v638 = vld [vmem:[%s265 + $0x94] sm:$0xf]
      %v639 = vld [vmem:[%s265 + $0x98] sm:$0xf]
      %v640 = vld [vmem:[%s265 + $0x9c] sm:$0xf]
      %v641 = vld [vmem:[%s265 + $0xa0] sm:$0xf]
      %v642 = vld [vmem:[%s265 + $0xa4] sm:$0xf]
      %v643 = vld [vmem:[%s265 + $0xa8] sm:$0xf]
      %v644 = vld [vmem:[%s265 + $0xac] sm:$0xf]
      %v645 = vld [vmem:[%s265 + $0xb0] sm:$0xf]
      %v646 = vld [vmem:[%s265 + $0xb4] sm:$0xf]
      %v647 = vld [vmem:[%s265 + $0xb8] sm:$0xf]
      %v648 = vld [vmem:[%s265 + $0xbc] sm:$0xf]
      %v649 = vld [vmem:[%s265 + $0xc0] sm:$0xf]
      %v650 = vld [vmem:[%s265 + $0xc4] sm:$0xf]
      %v651 = vld [vmem:[%s265 + $0xc8] sm:$0xf]
      %v652 = vld [vmem:[%s265 + $0xcc] sm:$0xf]
      %v653 = vld [vmem:[%s265 + $0xd0] sm:$0xf]
      %v654 = vld [vmem:[%s265 + $0xd4] sm:$0xf]
      %v655 = vld [vmem:[%s265 + $0xd8] sm:$0xf]
      %v656 = vld [vmem:[%s265 + $0xdc] sm:$0xf]
      %v657 = vld [vmem:[%s265 + $0xe0] sm:$0xf]
      %v658 = vld [vmem:[%s265 + $0xe4] sm:$0xf]
      %v659 = vld [vmem:[%s265 + $0xe8] sm:$0xf]
      %v660 = vld [vmem:[%s265 + $0xec] sm:$0xf]
      %v661 = vld [vmem:[%s265 + $0xf0] sm:$0xf]
      %v662 = vld [vmem:[%s265 + $0xf4] sm:$0xf]
      %v663 = vld [vmem:[%s265 + $0xf8] sm:$0xf]
      %v664 = vld [vmem:[%s265 + $0xfc] sm:$0xf]
      %v665 = vld [vmem:[%s265 + $0x100] sm:$0xf]
      %v666 = vld [vmem:[%s265 + $0x104] sm:$0xf]
      %v667 = vld [vmem:[%s265 + $0x108] sm:$0xf]
      %v668 = vld [vmem:[%s265 + $0x10c] sm:$0xf]
      %v669 = vld [vmem:[%s265 + $0x110] sm:$0xf]
      %v670 = vld [vmem:[%s265 + $0x114] sm:$0xf]
      %v671 = vld [vmem:[%s265 + $0x118] sm:$0xf]
      %v672 = vld [vmem:[%s265 + $0x11c] sm:$0xf]
      %v673 = vld [vmem:[%s265 + $0x120] sm:$0xf]
      %v674 = vld [vmem:[%s265 + $0x124] sm:$0xf]
      %v675 = vld [vmem:[%s265 + $0x128] sm:$0xf]
      %v676 = vld [vmem:[%s265 + $0x12c] sm:$0xf]
      %v677 = vld [vmem:[%s265 + $0x130] sm:$0xf]
      %v678 = vld [vmem:[%s265 + $0x134] sm:$0xf]
      %v679 = vld [vmem:[%s265 + $0x138] sm:$0xf]
      %v680 = vld [vmem:[%s265 + $0x13c] sm:$0xf]
      %v681 = vld [vmem:[%s265 + $0x140] sm:$0xf]
      %v682 = vld [vmem:[%s265 + $0x144] sm:$0xf]
      %v683 = vld [vmem:[%s265 + $0x148] sm:$0xf]
      %v684 = vld [vmem:[%s265 + $0x14c] sm:$0xf]
      %v685 = vld [vmem:[%s265 + $0x150] sm:$0xf]
      %v686 = vld [vmem:[%s265 + $0x154] sm:$0xf]
      %v687 = vld [vmem:[%s265 + $0x158] sm:$0xf]
      %v688 = vld [vmem:[%s265 + $0x15c] sm:$0xf]
      %v689 = vld [vmem:[%s265 + $0x160] sm:$0xf]
      %v690 = vld [vmem:[%s265 + $0x164] sm:$0xf]
      %v691 = vld [vmem:[%s265 + $0x168] sm:$0xf]
      %v692 = vld [vmem:[%s265 + $0x16c] sm:$0xf]
      %v693 = vld [vmem:[%s265 + $0x170] sm:$0xf]
      %v694 = vld [vmem:[%s265 + $0x174] sm:$0xf]
      %v695 = vld [vmem:[%s265 + $0x178] sm:$0xf]
      %v696 = vld [vmem:[%s265 + $0x17c] sm:$0xf]
      %v697 = vld [vmem:[%s265 + $0x180] sm:$0xf]
      %v698 = vld [vmem:[%s265 + $0x184] sm:$0xf]
      %v699 = vld [vmem:[%s265 + $0x188] sm:$0xf]
      %v700 = vld [vmem:[%s265 + $0x18c] sm:$0xf]
      %v701 = vld [vmem:[%s265 + $0x190] sm:$0xf]
      %v702 = vld [vmem:[%s265 + $0x194] sm:$0xf]
      %v703 = vld [vmem:[%s265 + $0x198] sm:$0xf]
      %v704 = vld [vmem:[%s265 + $0x19c] sm:$0xf]
      %v705 = vld [vmem:[%s265 + $0x1a0] sm:$0xf]
      %v706 = vld [vmem:[%s265 + $0x1a4] sm:$0xf]
      %v707 = vld [vmem:[%s265 + $0x1a8] sm:$0xf]
      %v708 = vld [vmem:[%s265 + $0x1ac] sm:$0xf]
      %v709 = vld [vmem:[%s265 + $0x1b0] sm:$0xf]
      %v710 = vld [vmem:[%s265 + $0x1b4] sm:$0xf]
      %v711 = vld [vmem:[%s265 + $0x1b8] sm:$0xf]
      %v712 = vld [vmem:[%s265 + $0x1bc] sm:$0xf]
      %v713 = vld [vmem:[%s265 + $0x1c0] sm:$0xf]
      %v714 = vld [vmem:[%s265 + $0x1c4] sm:$0xf]
      %v715 = vld [vmem:[%s265 + $0x1c8] sm:$0xf]
      %v716 = vld [vmem:[%s265 + $0x1cc] sm:$0xf]
      %v717 = vld [vmem:[%s265 + $0x1d0] sm:$0xf]
      %v718 = vld [vmem:[%s265 + $0x1d4] sm:$0xf]
      %v719 = vld [vmem:[%s265 + $0x1d8] sm:$0xf]
      %v720 = vld [vmem:[%s265 + $0x1dc] sm:$0xf]
      %v721 = vld [vmem:[%s265 + $0x1e0] sm:$0xf]
      %v722 = vld [vmem:[%s265 + $0x1e4] sm:$0xf]
      %v723 = vld [vmem:[%s265 + $0x1e8] sm:$0xf]
      %v724 = vld [vmem:[%s265 + $0x1ec] sm:$0xf]
      %v725 = vld [vmem:[%s265 + $0x1f0] sm:$0xf]
      %v726 = vld [vmem:[%s265 + $0x1f4] sm:$0xf]
      %v727 = vld [vmem:[%s265 + $0x1f8] sm:$0xf]
      %v728 = vld [vmem:[%s265 + $0x1fc] sm:$0xf]
      %v729 = vld [vmem:[%s265 + $0x200] sm:$0xf]
      %v730 = vld [vmem:[%s265 + $0x204] sm:$0xf]
      %v731 = vld [vmem:[%s265 + $0x208] sm:$0xf]
      %v732 = vld [vmem:[%s265 + $0x20c] sm:$0xf]
      %v733 = vld [vmem:[%s265 + $0x210] sm:$0xf]
      %v734 = vld [vmem:[%s265 + $0x214] sm:$0xf]
      %v735 = vld [vmem:[%s265 + $0x218] sm:$0xf]
      %v736 = vld [vmem:[%s265 + $0x21c] sm:$0xf]
      %v737 = vld [vmem:[%s265 + $0x220] sm:$0xf]
      %v738 = vld [vmem:[%s265 + $0x224] sm:$0xf]
      %v739 = vld [vmem:[%s265 + $0x228] sm:$0xf]
      %v740 = vld [vmem:[%s265 + $0x22c] sm:$0xf]
      %v741 = vld [vmem:[%s265 + $0x230] sm:$0xf]
      %v742 = vld [vmem:[%s265 + $0x234] sm:$0xf]
      %v743 = vld [vmem:[%s265 + $0x238] sm:$0xf]
      %v744 = vld [vmem:[%s265 + $0x23c] sm:$0xf]
      %v745 = vpack.c.bf16 %v548, %v547
      %v746 = vpack.c.bf16 %v551, %v550
      %v747 = vpack.c.bf16 %v554, %v553
      %v748 = vpack.c.bf16 %v557, %v556
      %v749 = vpack.c.bf16 %v560, %v559
      %v750 = vpack.c.bf16 %v563, %v562
      %v751 = vpack.c.bf16 %v566, %v565
      %v752 = vpack.c.bf16 %v569, %v568
      %v753 = vpack.c.bf16 %v572, %v571
      %v754 = vpack.c.bf16 %v575, %v574
      %v755 = vpack.c.bf16 %v578, %v577
      %v756 = vpack.c.bf16 %v581, %v580
      %v757 = vpack.c.bf16 %v584, %v583
      %v758 = vpack.c.bf16 %v587, %v586
      %v759 = vpack.c.bf16 %v590, %v589
      %v760 = vpack.c.bf16 %v593, %v592
      %vm809 = vcmask 1046528
      %v810 = vrot.slane %v547, 1
      %v811 = vrot.slane %v548, 1
      %v812 = vsel %vm809, %v810, %v811
      %v813 = vrot.slane %v549, 1
      %v814 = vsel %vm809, %v811, %v813
      %v815 = vrot.slane %v550, 1
      %v816 = vrot.slane %v551, 1
      %v817 = vsel %vm809, %v815, %v816
      %v818 = vrot.slane %v552, 1
      %v819 = vsel %vm809, %v816, %v818
      %v820 = vrot.slane %v553, 1
      %v821 = vrot.slane %v554, 1
      %v822 = vsel %vm809, %v820, %v821
      %v823 = vrot.slane %v555, 1
      %v824 = vsel %vm809, %v821, %v823
      %v825 = vrot.slane %v556, 1
      %v826 = vrot.slane %v557, 1
      %v827 = vsel %vm809, %v825, %v826
      %v828 = vrot.slane %v558, 1
      %v829 = vsel %vm809, %v826, %v828
      %v830 = vrot.slane %v559, 1
      %v831 = vrot.slane %v560, 1
      %v832 = vsel %vm809, %v830, %v831
      %v833 = vrot.slane %v561, 1
      %v834 = vsel %vm809, %v831, %v833
      %v835 = vrot.slane %v562, 1
      %v836 = vrot.slane %v563, 1
      %v837 = vsel %vm809, %v835, %v836
      %v838 = vrot.slane %v564, 1
      %v839 = vsel %vm809, %v836, %v838
      %v840 = vrot.slane %v565, 1
      %v841 = vrot.slane %v566, 1
      %v842 = vsel %vm809, %v840, %v841
      %v843 = vrot.slane %v567, 1
      %v844 = vsel %vm809, %v841, %v843
      %v845 = vrot.slane %v568, 1
      %v846 = vrot.slane %v569, 1
      %v847 = vsel %vm809, %v845, %v846
      %v848 = vrot.slane %v570, 1
      %v849 = vsel %vm809, %v846, %v848
      %v850 = vrot.slane %v571, 1
      %v851 = vrot.slane %v572, 1
      %v852 = vsel %vm809, %v850, %v851
      %v853 = vrot.slane %v573, 1
      %v854 = vsel %vm809, %v851, %v853
      %v855 = vrot.slane %v574, 1
      %v856 = vrot.slane %v575, 1
      %v857 = vsel %vm809, %v855, %v856
      %v858 = vrot.slane %v576, 1
      %v859 = vsel %vm809, %v856, %v858
      %v860 = vrot.slane %v577, 1
      %v861 = vrot.slane %v578, 1
      %v862 = vsel %vm809, %v860, %v861
      %v863 = vrot.slane %v579, 1
      %v864 = vsel %vm809, %v861, %v863
      %v865 = vrot.slane %v580, 1
      %v866 = vrot.slane %v581, 1
      %v867 = vsel %vm809, %v865, %v866
      %v868 = vrot.slane %v582, 1
      %v869 = vsel %vm809, %v866, %v868
      %v870 = vrot.slane %v583, 1
      %v871 = vrot.slane %v584, 1
      %v872 = vsel %vm809, %v870, %v871
      %v873 = vrot.slane %v585, 1
      %v874 = vsel %vm809, %v871, %v873
      %v875 = vrot.slane %v586, 1
      %v876 = vrot.slane %v587, 1
      %v877 = vsel %vm809, %v875, %v876
      %v878 = vrot.slane %v588, 1
      %v879 = vsel %vm809, %v876, %v878
      %v880 = vrot.slane %v589, 1
      %v881 = vrot.slane %v590, 1
      %v882 = vsel %vm809, %v880, %v881
      %v883 = vrot.slane %v591, 1
      %v884 = vsel %vm809, %v881, %v883
      %v885 = vrot.slane %v592, 1
      %v886 = vrot.slane %v593, 1
      %v887 = vsel %vm809, %v885, %v886
      %v888 = vrot.slane %v594, 1
      %v889 = vsel %vm809, %v886, %v888
      %v922 = vpack.c.bf16 %v814, %v812
      %v923 = vpack.c.bf16 %v819, %v817
      %v924 = vpack.c.bf16 %v824, %v822
      %v925 = vpack.c.bf16 %v829, %v827
      %v926 = vpack.c.bf16 %v834, %v832
      %v927 = vpack.c.bf16 %v839, %v837
      %v928 = vpack.c.bf16 %v844, %v842
      %v929 = vpack.c.bf16 %v849, %v847
      %v930 = vpack.c.bf16 %v854, %v852
      %v931 = vpack.c.bf16 %v859, %v857
      %v932 = vpack.c.bf16 %v864, %v862
      %v933 = vpack.c.bf16 %v869, %v867
      %v934 = vpack.c.bf16 %v874, %v872
      %v935 = vpack.c.bf16 %v879, %v877
      %v936 = vpack.c.bf16 %v884, %v882
      %v937 = vpack.c.bf16 %v889, %v887
      %v954 = vunpack.c.l.b16 %v617
      %v955 = vunpack.c.l.b16 %v618
      %v956 = vunpack.c.l.b16 %v619
      %v957 = vunpack.c.l.b16 %v620
      %v958 = vunpack.c.l.b16 %v621
      %v959 = vunpack.c.l.b16 %v622
      %v960 = vunpack.c.l.b16 %v623
      %v961 = vunpack.c.l.b16 %v624
      %v962 = vunpack.c.l.b16 %v625
      %v963 = vunpack.c.l.b16 %v626
      %v964 = vunpack.c.l.b16 %v627
      %v965 = vunpack.c.l.b16 %v628
      %v966 = vunpack.c.l.b16 %v629
      %v967 = vunpack.c.l.b16 %v630
      %v968 = vunpack.c.l.b16 %v631
      %v969 = vunpack.c.l.b16 %v632
      %v970 = vpack.c.b16 %v955, %v954
      %v971 = vpack.c.b16 %v957, %v956
      %v972 = vpack.c.b16 %v959, %v958
      %v973 = vpack.c.b16 %v961, %v960
      %v974 = vpack.c.b16 %v963, %v962
      %v975 = vpack.c.b16 %v965, %v964
      %v976 = vpack.c.b16 %v967, %v966
      %v977 = vpack.c.b16 %v969, %v968
      %986 = vmatprep.subr.bf16.mxu0 0
      %987 = vmatpush1.bf16.msra.mxu0 %v970
      %988 = vmatprep.subr.bf16.mxu0 0
      %989 = vmatpush1.bf16.msra.mxu0 %v971
      %990 = vmatprep.subr.bf16.mxu0 0
      %991 = vmatpush1.bf16.msra.mxu0 %v972
      %992 = vmatprep.subr.bf16.mxu0 0
      %993 = vmatpush1.bf16.msra.mxu0 %v973
      %994 = vmatprep.subr.bf16.mxu0 0
      %995 = vmatpush1.bf16.msra.mxu0 %v974
      %996 = vmatprep.subr.bf16.mxu0 0
      %997 = vmatpush1.bf16.msra.mxu0 %v975
      %998 = vmatprep.subr.bf16.mxu0 0
      %999 = vmatpush1.bf16.msra.mxu0 %v976
      %1000 = vmatprep.subr.bf16.mxu0 0
      %1001 = vmatpush1.bf16.msra.mxu0 %v977
      %1002 = vmatprep.subr.bf16.mxu0 0
      %1003 = vmatpush1.bf16.msra.mxu0 0
      %1004 = vmatprep.subr.bf16.mxu0 0
      %1005 = vmatpush1.bf16.msra.mxu0 0
      %1006 = vmatprep.subr.bf16.mxu0 0
      %1007 = vmatpush1.bf16.msra.mxu0 0
      %1008 = vmatprep.subr.bf16.mxu0 0
      %1009 = vmatpush1.bf16.msra.mxu0 0
      %1010 = vmatprep.subr.bf16.mxu0 0
      %1011 = vmatpush1.bf16.msra.mxu0 0
      %1012 = vmatprep.subr.bf16.mxu0 0
      %1013 = vmatpush1.bf16.msra.mxu0 0
      %1014 = vmatprep.subr.bf16.mxu0 0
      %1015 = vmatpush1.bf16.msra.mxu0 0
      %1016 = vmatprep.subr.bf16.mxu0 0
      %1017 = vmatpush1.bf16.msra.mxu0 0
      %1018 = vmatprep.mubr.bf16.mxu0 0
      %1019 = vmatmul.mubr.bf16.gmra.mrb[0].mxu0 %v922
      %v1020 = vpop.f32.mrb[0].mxu0
      %v1021 = vadd.f32 0.0, %v1020
      %v1022 = vpop.f32.mrb[0].mxu0
      %v1023 = vpop.f32.mrb[0].mxu0
      %v1024 = vadd.f32 0.0, %v1023
      %v1025 = vpop.f32.mrb[0].mxu0
      %1026 = vmatprep.mubr.bf16.mxu0 0
      %1027 = vmatmul.mubr.bf16.gmra.mrb[0].mxu0 %v923
      %v1028 = vpop.f32.mrb[0].mxu0
      %v1029 = vadd.f32 0.0, %v1028
      %v1030 = vpop.f32.mrb[0].mxu0
      %v1031 = vpop.f32.mrb[0].mxu0
      %v1032 = vadd.f32 0.0, %v1031
      %v1033 = vpop.f32.mrb[0].mxu0
      %1034 = vmatprep.mubr.bf16.mxu0 0
      %1035 = vmatmul.mubr.bf16.gmra.mrb[0].mxu0 %v924
      %v1036 = vpop.f32.mrb[0].mxu0
      %v1037 = vadd.f32 0.0, %v1036
      %v1038 = vpop.f32.mrb[0].mxu0
      %v1039 = vpop.f32.mrb[0].mxu0
      %v1040 = vadd.f32 0.0, %v1039
      %v1041 = vpop.f32.mrb[0].mxu0
      %1042 = vmatprep.mubr.bf16.mxu0 0
      %1043 = vmatmul.mubr.bf16.gmra.mrb[0].mxu0 %v925
      %v1044 = vpop.f32.mrb[0].mxu0
      %v1045 = vadd.f32 0.0, %v1044
      %v1046 = vpop.f32.mrb[0].mxu0
      %v1047 = vpop.f32.mrb[0].mxu0
      %v1048 = vadd.f32 0.0, %v1047
      %v1049 = vpop.f32.mrb[0].mxu0
      %1050 = vmatprep.mubr.bf16.mxu0 0
      %1051 = vmatmul.mubr.bf16.gmra.mrb[0].mxu0 %v926
      %v1052 = vpop.f32.mrb[0].mxu0
      %v1053 = vadd.f32 0.0, %v1052
      %v1054 = vpop.f32.mrb[0].mxu0
      %v1055 = vpop.f32.mrb[0].mxu0
      %v1056 = vadd.f32 0.0, %v1055
      %v1057 = vpop.f32.mrb[0].mxu0
      %1058 = vmatprep.mubr.bf16.mxu0 0
      %1059 = vmatmul.mubr.bf16.gmra.mrb[0].mxu0 %v927
      %v1060 = vpop.f32.mrb[0].mxu0
      %v1061 = vadd.f32 0.0, %v1060
      %v1062 = vpop.f32.mrb[0].mxu0
      %v1063 = vpop.f32.mrb[0].mxu0
      %v1064 = vadd.f32 0.0, %v1063
      %v1065 = vpop.f32.mrb[0].mxu0
      %1066 = vmatprep.mubr.bf16.mxu0 0
      %1067 = vmatmul.mubr.bf16.gmra.mrb[0].mxu0 %v928
      %v1068 = vpop.f32.mrb[0].mxu0
      %v1069 = vadd.f32 0.0, %v1068
      %v1070 = vpop.f32.mrb[0].mxu0
      %v1071 = vpop.f32.mrb[0].mxu0
      %v1072 = vadd.f32 0.0, %v1071
      %v1073 = vpop.f32.mrb[0].mxu0
      %1074 = vmatprep.mubr.bf16.mxu0 0
      %1075 = vmatmul.mubr.bf16.gmra.mrb[0].mxu0 %v929
      %v1076 = vpop.f32.mrb[0].mxu0
      %v1077 = vadd.f32 0.0, %v1076
      %v1078 = vpop.f32.mrb[0].mxu0
      %v1079 = vpop.f32.mrb[0].mxu0
      %v1080 = vadd.f32 0.0, %v1079
      %v1081 = vpop.f32.mrb[0].mxu0
      %1082 = vmatprep.mubr.bf16.mxu0 0
      %1083 = vmatmul.mubr.bf16.gmra.mrb[0].mxu0 %v930
      %v1084 = vpop.f32.mrb[0].mxu0
      %v1085 = vadd.f32 0.0, %v1084
      %v1086 = vpop.f32.mrb[0].mxu0
      %v1087 = vpop.f32.mrb[0].mxu0
      %v1088 = vadd.f32 0.0, %v1087
      %v1089 = vpop.f32.mrb[0].mxu0
      %1090 = vmatprep.mubr.bf16.mxu0 0
      %1091 = vmatmul.mubr.bf16.gmra.mrb[0].mxu0 %v931
      %v1092 = vpop.f32.mrb[0].mxu0
      %v1093 = vadd.f32 0.0, %v1092
      %v1094 = vpop.f32.mrb[0].mxu0
      %v1095 = vpop.f32.mrb[0].mxu0
      %v1096 = vadd.f32 0.0, %v1095
      %v1097 = vpop.f32.mrb[0].mxu0
      %1098 = vmatprep.mubr.bf16.mxu0 0
      %1099 = vmatmul.mubr.bf16.gmra.mrb[0].mxu0 %v932
      %v1100 = vpop.f32.mrb[0].mxu0
      %v1101 = vadd.f32 0.0, %v1100
      %v1102 = vpop.f32.mrb[0].mxu0
      %v1103 = vpop.f32.mrb[0].mxu0
      %v1104 = vadd.f32 0.0, %v1103
      %v1105 = vpop.f32.mrb[0].mxu0
      %1106 = vmatprep.mubr.bf16.mxu0 0
      %1107 = vmatmul.mubr.bf16.gmra.mrb[0].mxu0 %v933
      %v1108 = vpop.f32.mrb[0].mxu0
      %v1109 = vadd.f32 0.0, %v1108
      %v1110 = vpop.f32.mrb[0].mxu0
      %v1111 = vpop.f32.mrb[0].mxu0
      %v1112 = vadd.f32 0.0, %v1111
      %v1113 = vpop.f32.mrb[0].mxu0
      %1114 = vmatprep.mubr.bf16.mxu0 0
      %1115 = vmatmul.mubr.bf16.gmra.mrb[0].mxu0 %v934
      %v1116 = vpop.f32.mrb[0].mxu0
      %v1117 = vadd.f32 0.0, %v1116
      %v1118 = vpop.f32.mrb[0].mxu0
      %v1119 = vpop.f32.mrb[0].mxu0
      %v1120 = vadd.f32 0.0, %v1119
      %v1121 = vpop.f32.mrb[0].mxu0
      %1122 = vmatprep.mubr.bf16.mxu0 0
      %1123 = vmatmul.mubr.bf16.gmra.mrb[0].mxu0 %v935
      %v1124 = vpop.f32.mrb[0].mxu0
      %v1125 = vadd.f32 0.0, %v1124
      %v1126 = vpop.f32.mrb[0].mxu0
      %v1127 = vpop.f32.mrb[0].mxu0
      %v1128 = vadd.f32 0.0, %v1127
      %v1129 = vpop.f32.mrb[0].mxu0
      %1130 = vmatprep.mubr.bf16.mxu0 0
      %1131 = vmatmul.mubr.bf16.gmra.mrb[0].mxu0 %v936
      %v1132 = vpop.f32.mrb[0].mxu0
      %v1133 = vadd.f32 0.0, %v1132
      %v1134 = vpop.f32.mrb[0].mxu0
      %v1135 = vpop.f32.mrb[0].mxu0
      %v1136 = vadd.f32 0.0, %v1135
      %v1137 = vpop.f32.mrb[0].mxu0
      %1138 = vmatprep.mubr.bf16.mxu0 0
      %1139 = vmatmul.mubr.bf16.gmra.mrb[0].mxu0 %v937
      %v1140 = vpop.f32.mrb[0].mxu0
      %v1141 = vadd.f32 0.0, %v1140
      %v1142 = vpop.f32.mrb[0].mxu0
      %v1143 = vpop.f32.mrb[0].mxu0
      %v1144 = vadd.f32 0.0, %v1143
      %v1145 = vpop.f32.mrb[0].mxu0
      %1146 = vdwg.mxu0
      %v1163 = vunpack.c.l.b16 %v601
      %v1164 = vunpack.c.l.b16 %v602
      %v1165 = vunpack.c.l.b16 %v603
      %v1166 = vunpack.c.l.b16 %v604
      %v1167 = vunpack.c.l.b16 %v605
      %v1168 = vunpack.c.l.b16 %v606
      %v1169 = vunpack.c.l.b16 %v607
      %v1170 = vunpack.c.l.b16 %v608
      %v1171 = vunpack.c.l.b16 %v609
      %v1172 = vunpack.c.l.b16 %v610
      %v1173 = vunpack.c.l.b16 %v611
      %v1174 = vunpack.c.l.b16 %v612
      %v1175 = vunpack.c.l.b16 %v613
      %v1176 = vunpack.c.l.b16 %v614
      %v1177 = vunpack.c.l.b16 %v615
      %v1178 = vunpack.c.l.b16 %v616
      %v1179 = vpack.c.b16 %v1164, %v1163
      %v1180 = vpack.c.b16 %v1166, %v1165
      %v1181 = vpack.c.b16 %v1168, %v1167
      %v1182 = vpack.c.b16 %v1170, %v1169
      %v1183 = vpack.c.b16 %v1172, %v1171
      %v1184 = vpack.c.b16 %v1174, %v1173
      %v1185 = vpack.c.b16 %v1176, %v1175
      %v1186 = vpack.c.b16 %v1178, %v1177
      %1195 = vmatprep.subr.bf16.mxu0 0
      %1196 = vmatpush1.bf16.msra.mxu0 %v1179
      %1197 = vmatprep.subr.bf16.mxu0 0
      %1198 = vmatpush1.bf16.msra.mxu0 %v1180
      %1199 = vmatprep.subr.bf16.mxu0 0
      %1200 = vmatpush1.bf16.msra.mxu0 %v1181
      %1201 = vmatprep.subr.bf16.mxu0 0
      %1202 = vmatpush1.bf16.msra.mxu0 %v1182
      %1203 = vmatprep.subr.bf16.mxu0 0
      %1204 = vmatpush1.bf16.msra.mxu0 %v1183
      %1205 = vmatprep.subr.bf16.mxu0 0
      %1206 = vmatpush1.bf16.msra.mxu0 %v1184
      %1207 = vmatprep.subr.bf16.mxu0 0
      %1208 = vmatpush1.bf16.msra.mxu0 %v1185
      %1209 = vmatprep.subr.bf16.mxu0 0
      %1210 = vmatpush1.bf16.msra.mxu0 %v1186
      %1211 = vmatprep.subr.bf16.mxu0 0
      %1212 = vmatpush1.bf16.msra.mxu0 0
      %1213 = vmatprep.subr.bf16.mxu0 0
      %1214 = vmatpush1.bf16.msra.mxu0 0
      %1215 = vmatprep.subr.bf16.mxu0 0
      %1216 = vmatpush1.bf16.msra.mxu0 0
      %1217 = vmatprep.subr.bf16.mxu0 0
      %1218 = vmatpush1.bf16.msra.mxu0 0
      %1219 = vmatprep.subr.bf16.mxu0 0
      %1220 = vmatpush1.bf16.msra.mxu0 0
      %1221 = vmatprep.subr.bf16.mxu0 0
      %1222 = vmatpush1.bf16.msra.mxu0 0
      %1223 = vmatprep.subr.bf16.mxu0 0
      %1224 = vmatpush1.bf16.msra.mxu0 0
      %1225 = vmatprep.subr.bf16.mxu0 0
      %1226 = vmatpush1.bf16.msra.mxu0 0
      %1227 = vmatprep.mubr.bf16.mxu0 0
      %1228 = vmatmul.mubr.bf16.gmra.mrb[0].mxu0 %v745
      %v1229 = vpop.f32.mrb[0].mxu0
      %v1230 = vadd.f32 %v1021, %v1229
      %v1231 = vpop.f32.mrb[0].mxu0
      %v1232 = vpop.f32.mrb[0].mxu0
      %v1233 = vadd.f32 %v1024, %v1232
      %v1234 = vpop.f32.mrb[0].mxu0
      %1235 = vmatprep.mubr.bf16.mxu0 0
      %1236 = vmatmul.mubr.bf16.gmra.mrb[0].mxu0 %v746
      %v1237 = vpop.f32.mrb[0].mxu0
      %v1238 = vadd.f32 %v1029, %v1237
      %v1239 = vpop.f32.mrb[0].mxu0
      %v1240 = vpop.f32.mrb[0].mxu0
      %v1241 = vadd.f32 %v1032, %v1240
      %v1242 = vpop.f32.mrb[0].mxu0
      %1243 = vmatprep.mubr.bf16.mxu0 0
      %1244 = vmatmul.mubr.bf16.gmra.mrb[0].mxu0 %v747
      %v1245 = vpop.f32.mrb[0].mxu0
      %v1246 = vadd.f32 %v1037, %v1245
      %v1247 = vpop.f32.mrb[0].mxu0
      %v1248 = vpop.f32.mrb[0].mxu0
      %v1249 = vadd.f32 %v1040, %v1248
      %v1250 = vpop.f32.mrb[0].mxu0
      %1251 = vmatprep.mubr.bf16.mxu0 0
      %1252 = vmatmul.mubr.bf16.gmra.mrb[0].mxu0 %v748
      %v1253 = vpop.f32.mrb[0].mxu0
      %v1254 = vadd.f32 %v1045, %v1253
      %v1255 = vpop.f32.mrb[0].mxu0
      %v1256 = vpop.f32.mrb[0].mxu0
      %v1257 = vadd.f32 %v1048, %v1256
      %v1258 = vpop.f32.mrb[0].mxu0
      %1259 = vmatprep.mubr.bf16.mxu0 0
      %1260 = vmatmul.mubr.bf16.gmra.mrb[0].mxu0 %v749
      %v1261 = vpop.f32.mrb[0].mxu0
      %v1262 = vadd.f32 %v1053, %v1261
      %v1263 = vpop.f32.mrb[0].mxu0
      %v1264 = vpop.f32.mrb[0].mxu0
      %v1265 = vadd.f32 %v1056, %v1264
      %v1266 = vpop.f32.mrb[0].mxu0
      %1267 = vmatprep.mubr.bf16.mxu0 0
      %1268 = vmatmul.mubr.bf16.gmra.mrb[0].mxu0 %v750
      %v1269 = vpop.f32.mrb[0].mxu0
      %v1270 = vadd.f32 %v1061, %v1269
      %v1271 = vpop.f32.mrb[0].mxu0
      %v1272 = vpop.f32.mrb[0].mxu0
      %v1273 = vadd.f32 %v1064, %v1272
      %v1274 = vpop.f32.mrb[0].mxu0
      %1275 = vmatprep.mubr.bf16.mxu0 0
      %1276 = vmatmul.mubr.bf16.gmra.mrb[0].mxu0 %v751
      %v1277 = vpop.f32.mrb[0].mxu0
      %v1278 = vadd.f32 %v1069, %v1277
      %v1279 = vpop.f32.mrb[0].mxu0
      %v1280 = vpop.f32.mrb[0].mxu0
      %v1281 = vadd.f32 %v1072, %v1280
      %v1282 = vpop.f32.mrb[0].mxu0
      %1283 = vmatprep.mubr.bf16.mxu0 0
      %1284 = vmatmul.mubr.bf16.gmra.mrb[0].mxu0 %v752
      %v1285 = vpop.f32.mrb[0].mxu0
      %v1286 = vadd.f32 %v1077, %v1285
      %v1287 = vpop.f32.mrb[0].mxu0
      %v1288 = vpop.f32.mrb[0].mxu0
      %v1289 = vadd.f32 %v1080, %v1288
      %v1290 = vpop.f32.mrb[0].mxu0
      %1291 = vmatprep.mubr.bf16.mxu0 0
      %1292 = vmatmul.mubr.bf16.gmra.mrb[0].mxu0 %v753
      %v1293 = vpop.f32.mrb[0].mxu0
      %v1294 = vadd.f32 %v1085, %v1293
      %v1295 = vpop.f32.mrb[0].mxu0
      %v1296 = vpop.f32.mrb[0].mxu0
      %v1297 = vadd.f32 %v1088, %v1296
      %v1298 = vpop.f32.mrb[0].mxu0
      %1299 = vmatprep.mubr.bf16.mxu0 0
      %1300 = vmatmul.mubr.bf16.gmra.mrb[0].mxu0 %v754
      %v1301 = vpop.f32.mrb[0].mxu0
      %v1302 = vadd.f32 %v1093, %v1301
      %v1303 = vpop.f32.mrb[0].mxu0
      %v1304 = vpop.f32.mrb[0].mxu0
      %v1305 = vadd.f32 %v1096, %v1304
      %v1306 = vpop.f32.mrb[0].mxu0
      %1307 = vmatprep.mubr.bf16.mxu0 0
      %1308 = vmatmul.mubr.bf16.gmra.mrb[0].mxu0 %v755
      %v1309 = vpop.f32.mrb[0].mxu0
      %v1310 = vadd.f32 %v1101, %v1309
      %v1311 = vpop.f32.mrb[0].mxu0
      %v1312 = vpop.f32.mrb[0].mxu0
      %v1313 = vadd.f32 %v1104, %v1312
      %v1314 = vpop.f32.mrb[0].mxu0
      %1315 = vmatprep.mubr.bf16.mxu0 0
      %1316 = vmatmul.mubr.bf16.gmra.mrb[0].mxu0 %v756
      %v1317 = vpop.f32.mrb[0].mxu0
      %v1318 = vadd.f32 %v1109, %v1317
      %v1319 = vpop.f32.mrb[0].mxu0
      %v1320 = vpop.f32.mrb[0].mxu0
      %v1321 = vadd.f32 %v1112, %v1320
      %v1322 = vpop.f32.mrb[0].mxu0
      %1323 = vmatprep.mubr.bf16.mxu0 0
      %1324 = vmatmul.mubr.bf16.gmra.mrb[0].mxu0 %v757
      %v1325 = vpop.f32.mrb[0].mxu0
      %v1326 = vadd.f32 %v1117, %v1325
      %v1327 = vpop.f32.mrb[0].mxu0
      %v1328 = vpop.f32.mrb[0].mxu0
      %v1329 = vadd.f32 %v1120, %v1328
      %v1330 = vpop.f32.mrb[0].mxu0
      %1331 = vmatprep.mubr.bf16.mxu0 0
      %1332 = vmatmul.mubr.bf16.gmra.mrb[0].mxu0 %v758
      %v1333 = vpop.f32.mrb[0].mxu0
      %v1334 = vadd.f32 %v1125, %v1333
      %v1335 = vpop.f32.mrb[0].mxu0
      %v1336 = vpop.f32.mrb[0].mxu0
      %v1337 = vadd.f32 %v1128, %v1336
      %v1338 = vpop.f32.mrb[0].mxu0
      %1339 = vmatprep.mubr.bf16.mxu0 0
      %1340 = vmatmul.mubr.bf16.gmra.mrb[0].mxu0 %v759
      %v1341 = vpop.f32.mrb[0].mxu0
      %v1342 = vadd.f32 %v1133, %v1341
      %v1343 = vpop.f32.mrb[0].mxu0
      %v1344 = vpop.f32.mrb[0].mxu0
      %v1345 = vadd.f32 %v1136, %v1344
      %v1346 = vpop.f32.mrb[0].mxu0
      %1347 = vmatprep.mubr.bf16.mxu0 0
      %1348 = vmatmul.mubr.bf16.gmra.mrb[0].mxu0 %v760
      %v1349 = vpop.f32.mrb[0].mxu0
      %v1350 = vadd.f32 %v1141, %v1349
      %v1351 = vpop.f32.mrb[0].mxu0
      %v1352 = vpop.f32.mrb[0].mxu0
      %v1353 = vadd.f32 %v1144, %v1352
      %v1354 = vpop.f32.mrb[0].mxu0
      %1355 = vdwg.mxu0
      %vm1356 = vcmask 1045504
      %v1357 = vrot.slane %v547, 2
      %v1358 = vrot.slane %v548, 2
      %v1359 = vsel %vm1356, %v1357, %v1358
      %v1360 = vrot.slane %v549, 2
      %v1361 = vsel %vm1356, %v1358, %v1360
      %v1362 = vrot.slane %v550, 2
      %v1363 = vrot.slane %v551, 2
      %v1364 = vsel %vm1356, %v1362, %v1363
      %v1365 = vrot.slane %v552, 2
      %v1366 = vsel %vm1356, %v1363, %v1365
      %v1367 = vrot.slane %v553, 2
      %v1368 = vrot.slane %v554, 2
      %v1369 = vsel %vm1356, %v1367, %v1368
      %v1370 = vrot.slane %v555, 2
      %v1371 = vsel %vm1356, %v1368, %v1370
      %v1372 = vrot.slane %v556, 2
      %v1373 = vrot.slane %v557, 2
      %v1374 = vsel %vm1356, %v1372, %v1373
      %v1375 = vrot.slane %v558, 2
      %v1376 = vsel %vm1356, %v1373, %v1375
      %v1377 = vrot.slane %v559, 2
      %v1378 = vrot.slane %v560, 2
      %v1379 = vsel %vm1356, %v1377, %v1378
      %v1380 = vrot.slane %v561, 2
      %v1381 = vsel %vm1356, %v1378, %v1380
      %v1382 = vrot.slane %v562, 2
      %v1383 = vrot.slane %v563, 2
      %v1384 = vsel %vm1356, %v1382, %v1383
      %v1385 = vrot.slane %v564, 2
      %v1386 = vsel %vm1356, %v1383, %v1385
      %v1387 = vrot.slane %v565, 2
      %v1388 = vrot.slane %v566, 2
      %v1389 = vsel %vm1356, %v1387, %v1388
      %v1390 = vrot.slane %v567, 2
      %v1391 = vsel %vm1356, %v1388, %v1390
      %v1392 = vrot.slane %v568, 2
      %v1393 = vrot.slane %v569, 2
      %v1394 = vsel %vm1356, %v1392, %v1393
      %v1395 = vrot.slane %v570, 2
      %v1396 = vsel %vm1356, %v1393, %v1395
      %v1397 = vrot.slane %v571, 2
      %v1398 = vrot.slane %v572, 2
      %v1399 = vsel %vm1356, %v1397, %v1398
      %v1400 = vrot.slane %v573, 2
      %v1401 = vsel %vm1356, %v1398, %v1400
      %v1402 = vrot.slane %v574, 2
      %v1403 = vrot.slane %v575, 2
      %v1404 = vsel %vm1356, %v1402, %v1403
      %v1405 = vrot.slane %v576, 2
      %v1406 = vsel %vm1356, %v1403, %v1405
      %v1407 = vrot.slane %v577, 2
      %v1408 = vrot.slane %v578, 2
      %v1409 = vsel %vm1356, %v1407, %v1408
      %v1410 = vrot.slane %v579, 2
      %v1411 = vsel %vm1356, %v1408, %v1410
      %v1412 = vrot.slane %v580, 2
      %v1413 = vrot.slane %v581, 2
      %v1414 = vsel %vm1356, %v1412, %v1413
      %v1415 = vrot.slane %v582, 2
      %v1416 = vsel %vm1356, %v1413, %v1415
      %v1417 = vrot.slane %v583, 2
      %v1418 = vrot.slane %v584, 2
      %v1419 = vsel %vm1356, %v1417, %v1418
      %v1420 = vrot.slane %v585, 2
      %v1421 = vsel %vm1356, %v1418, %v1420
      %v1422 = vrot.slane %v586, 2
      %v1423 = vrot.slane %v587, 2
      %v1424 = vsel %vm1356, %v1422, %v1423
      %v1425 = vrot.slane %v588, 2
      %v1426 = vsel %vm1356, %v1423, %v1425
      %v1427 = vrot.slane %v589, 2
      %v1428 = vrot.slane %v590, 2
      %v1429 = vsel %vm1356, %v1427, %v1428
      %v1430 = vrot.slane %v591, 2
      %v1431 = vsel %vm1356, %v1428, %v1430
      %v1432 = vrot.slane %v592, 2
      %v1433 = vrot.slane %v593, 2
      %v1434 = vsel %vm1356, %v1432, %v1433
      %v1435 = vrot.slane %v594, 2
      %v1436 = vsel %vm1356, %v1433, %v1435
      %v1469 = vpack.c.bf16 %v1361, %v1359
      %v1470 = vpack.c.bf16 %v1366, %v1364
      %v1471 = vpack.c.bf16 %v1371, %v1369
      %v1472 = vpack.c.bf16 %v1376, %v1374
      %v1473 = vpack.c.bf16 %v1381, %v1379
      %v1474 = vpack.c.bf16 %v1386, %v1384
      %v1475 = vpack.c.bf16 %v1391, %v1389
      %v1476 = vpack.c.bf16 %v1396, %v1394
      %v1477 = vpack.c.bf16 %v1401, %v1399
      %v1478 = vpack.c.bf16 %v1406, %v1404
      %v1479 = vpack.c.bf16 %v1411, %v1409
      %v1480 = vpack.c.bf16 %v1416, %v1414
      %v1481 = vpack.c.bf16 %v1421, %v1419
      %v1482 = vpack.c.bf16 %v1426, %v1424
      %v1483 = vpack.c.bf16 %v1431, %v1429
      %v1484 = vpack.c.bf16 %v1436, %v1434
      %v1501 = vunpack.c.l.b16 %v633
      %v1502 = vunpack.c.l.b16 %v634
      %v1503 = vunpack.c.l.b16 %v635
      %v1504 = vunpack.c.l.b16 %v636
      %v1505 = vunpack.c.l.b16 %v637
      %v1506 = vunpack.c.l.b16 %v638
      %v1507 = vunpack.c.l.b16 %v639
      %v1508 = vunpack.c.l.b16 %v640
      %v1509 = vunpack.c.l.b16 %v641
      %v1510 = vunpack.c.l.b16 %v642
      %v1511 = vunpack.c.l.b16 %v643
      %v1512 = vunpack.c.l.b16 %v644
      %v1513 = vunpack.c.l.b16 %v645
      %v1514 = vunpack.c.l.b16 %v646
      %v1515 = vunpack.c.l.b16 %v647
      %v1516 = vunpack.c.l.b16 %v648
      %v1517 = vpack.c.b16 %v1502, %v1501
      %v1518 = vpack.c.b16 %v1504, %v1503
      %v1519 = vpack.c.b16 %v1506, %v1505
      %v1520 = vpack.c.b16 %v1508, %v1507
      %v1521 = vpack.c.b16 %v1510, %v1509
      %v1522 = vpack.c.b16 %v1512, %v1511
      %v1523 = vpack.c.b16 %v1514, %v1513
      %v1524 = vpack.c.b16 %v1516, %v1515
      %1533 = vmatprep.subr.bf16.mxu0 0
      %1534 = vmatpush1.bf16.msra.mxu0 %v1517
      %1535 = vmatprep.subr.bf16.mxu0 0
      %1536 = vmatpush1.bf16.msra.mxu0 %v1518
      %1537 = vmatprep.subr.bf16.mxu0 0
      %1538 = vmatpush1.bf16.msra.mxu0 %v1519
      %1539 = vmatprep.subr.bf16.mxu0 0
      %1540 = vmatpush1.bf16.msra.mxu0 %v1520
      %1541 = vmatprep.subr.bf16.mxu0 0
      %1542 = vmatpush1.bf16.msra.mxu0 %v1521
      %1543 = vmatprep.subr.bf16.mxu0 0
      %1544 = vmatpush1.bf16.msra.mxu0 %v1522
      %1545 = vmatprep.subr.bf16.mxu0 0
      %1546 = vmatpush1.bf16.msra.mxu0 %v1523
      %1547 = vmatprep.subr.bf16.mxu0 0
      %1548 = vmatpush1.bf16.msra.mxu0 %v1524
      %1549 = vmatprep.subr.bf16.mxu0 0
      %1550 = vmatpush1.bf16.msra.mxu0 0
      %1551 = vmatprep.subr.bf16.mxu0 0
      %1552 = vmatpush1.bf16.msra.mxu0 0
      %1553 = vmatprep.subr.bf16.mxu0 0
      %1554 = vmatpush1.bf16.msra.mxu0 0
      %1555 = vmatprep.subr.bf16.mxu0 0
      %1556 = vmatpush1.bf16.msra.mxu0 0
      %1557 = vmatprep.subr.bf16.mxu0 0
      %1558 = vmatpush1.bf16.msra.mxu0 0
      %1559 = vmatprep.subr.bf16.mxu0 0
      %1560 = vmatpush1.bf16.msra.mxu0 0
      %1561 = vmatprep.subr.bf16.mxu0 0
      %1562 = vmatpush1.bf16.msra.mxu0 0
      %1563 = vmatprep.subr.bf16.mxu0 0
      %1564 = vmatpush1.bf16.msra.mxu0 0
      %1565 = vmatprep.mubr.bf16.mxu0 0
      %1566 = vmatmul.mubr.bf16.gmra.mrb[0].mxu0 %v1469
      %v1567 = vpop.f32.mrb[0].mxu0
      %v1568 = vadd.f32 0.0, %v1567
      %v1569 = vpop.f32.mrb[0].mxu0
      %v1570 = vpop.f32.mrb[0].mxu0
      %v1571 = vadd.f32 0.0, %v1570
      %v1572 = vpop.f32.mrb[0].mxu0
      %1573 = vmatprep.mubr.bf16.mxu0 0
      %1574 = vmatmul.mubr.bf16.gmra.mrb[0].mxu0 %v1470
      %v1575 = vpop.f32.mrb[0].mxu0
      %v1576 = vadd.f32 0.0, %v1575
      %v1577 = vpop.f32.mrb[0].mxu0
      %v1578 = vpop.f32.mrb[0].mxu0
      %v1579 = vadd.f32 0.0, %v1578
      %v1580 = vpop.f32.mrb[0].mxu0
      %1581 = vmatprep.mubr.bf16.mxu0 0
      %1582 = vmatmul.mubr.bf16.gmra.mrb[0].mxu0 %v1471
      %v1583 = vpop.f32.mrb[0].mxu0
      %v1584 = vadd.f32 0.0, %v1583
      %v1585 = vpop.f32.mrb[0].mxu0
      %v1586 = vpop.f32.mrb[0].mxu0
      %v1587 = vadd.f32 0.0, %v1586
      %v1588 = vpop.f32.mrb[0].mxu0
      %1589 = vmatprep.mubr.bf16.mxu0 0
      %1590 = vmatmul.mubr.bf16.gmra.mrb[0].mxu0 %v1472
      %v1591 = vpop.f32.mrb[0].mxu0
      %v1592 = vadd.f32 0.0, %v1591
      %v1593 = vpop.f32.mrb[0].mxu0
      %v1594 = vpop.f32.mrb[0].mxu0
      %v1595 = vadd.f32 0.0, %v1594
      %v1596 = vpop.f32.mrb[0].mxu0
      %1597 = vmatprep.mubr.bf16.mxu0 0
      %1598 = vmatmul.mubr.bf16.gmra.mrb[0].mxu0 %v1473
      %v1599 = vpop.f32.mrb[0].mxu0
      %v1600 = vadd.f32 0.0, %v1599
      %v1601 = vpop.f32.mrb[0].mxu0
      %v1602 = vpop.f32.mrb[0].mxu0
      %v1603 = vadd.f32 0.0, %v1602
      %v1604 = vpop.f32.mrb[0].mxu0
      %1605 = vmatprep.mubr.bf16.mxu0 0
      %1606 = vmatmul.mubr.bf16.gmra.mrb[0].mxu0 %v1474
      %v1607 = vpop.f32.mrb[0].mxu0
      %v1608 = vadd.f32 0.0, %v1607
      %v1609 = vpop.f32.mrb[0].mxu0
      %v1610 = vpop.f32.mrb[0].mxu0
      %v1611 = vadd.f32 0.0, %v1610
      %v1612 = vpop.f32.mrb[0].mxu0
      %1613 = vmatprep.mubr.bf16.mxu0 0
      %1614 = vmatmul.mubr.bf16.gmra.mrb[0].mxu0 %v1475
      %v1615 = vpop.f32.mrb[0].mxu0
      %v1616 = vadd.f32 0.0, %v1615
      %v1617 = vpop.f32.mrb[0].mxu0
      %v1618 = vpop.f32.mrb[0].mxu0
      %v1619 = vadd.f32 0.0, %v1618
      %v1620 = vpop.f32.mrb[0].mxu0
      %1621 = vmatprep.mubr.bf16.mxu0 0
      %1622 = vmatmul.mubr.bf16.gmra.mrb[0].mxu0 %v1476
      %v1623 = vpop.f32.mrb[0].mxu0
      %v1624 = vadd.f32 0.0, %v1623
      %v1625 = vpop.f32.mrb[0].mxu0
      %v1626 = vpop.f32.mrb[0].mxu0
      %v1627 = vadd.f32 0.0, %v1626
      %v1628 = vpop.f32.mrb[0].mxu0
      %1629 = vmatprep.mubr.bf16.mxu0 0
      %1630 = vmatmul.mubr.bf16.gmra.mrb[0].mxu0 %v1477
      %v1631 = vpop.f32.mrb[0].mxu0
      %v1632 = vadd.f32 0.0, %v1631
      %v1633 = vpop.f32.mrb[0].mxu0
      %v1634 = vpop.f32.mrb[0].mxu0
      %v1635 = vadd.f32 0.0, %v1634
      %v1636 = vpop.f32.mrb[0].mxu0
      %1637 = vmatprep.mubr.bf16.mxu0 0
      %1638 = vmatmul.mubr.bf16.gmra.mrb[0].mxu0 %v1478
      %v1639 = vpop.f32.mrb[0].mxu0
      %v1640 = vadd.f32 0.0, %v1639
      %v1641 = vpop.f32.mrb[0].mxu0
      %v1642 = vpop.f32.mrb[0].mxu0
      %v1643 = vadd.f32 0.0, %v1642
      %v1644 = vpop.f32.mrb[0].mxu0
      %1645 = vmatprep.mubr.bf16.mxu0 0
      %1646 = vmatmul.mubr.bf16.gmra.mrb[0].mxu0 %v1479
      %v1647 = vpop.f32.mrb[0].mxu0
      %v1648 = vadd.f32 0.0, %v1647
      %v1649 = vpop.f32.mrb[0].mxu0
      %v1650 = vpop.f32.mrb[0].mxu0
      %v1651 = vadd.f32 0.0, %v1650
      %v1652 = vpop.f32.mrb[0].mxu0
      %1653 = vmatprep.mubr.bf16.mxu0 0
      %1654 = vmatmul.mubr.bf16.gmra.mrb[0].mxu0 %v1480
      %v1655 = vpop.f32.mrb[0].mxu0
      %v1656 = vadd.f32 0.0, %v1655
      %v1657 = vpop.f32.mrb[0].mxu0
      %v1658 = vpop.f32.mrb[0].mxu0
      %v1659 = vadd.f32 0.0, %v1658
      %v1660 = vpop.f32.mrb[0].mxu0
      %1661 = vmatprep.mubr.bf16.mxu0 0
      %1662 = vmatmul.mubr.bf16.gmra.mrb[0].mxu0 %v1481
      %v1663 = vpop.f32.mrb[0].mxu0
      %v1664 = vadd.f32 0.0, %v1663
      %v1665 = vpop.f32.mrb[0].mxu0
      %v1666 = vpop.f32.mrb[0].mxu0
      %v1667 = vadd.f32 0.0, %v1666
      %v1668 = vpop.f32.mrb[0].mxu0
      %1669 = vmatprep.mubr.bf16.mxu0 0
      %1670 = vmatmul.mubr.bf16.gmra.mrb[0].mxu0 %v1482
      %v1671 = vpop.f32.mrb[0].mxu0
      %v1672 = vadd.f32 0.0, %v1671
      %v1673 = vpop.f32.mrb[0].mxu0
      %v1674 = vpop.f32.mrb[0].mxu0
      %v1675 = vadd.f32 0.0, %v1674
      %v1676 = vpop.f32.mrb[0].mxu0
      %1677 = vmatprep.mubr.bf16.mxu0 0
      %1678 = vmatmul.mubr.bf16.gmra.mrb[0].mxu0 %v1483
      %v1679 = vpop.f32.mrb[0].mxu0
      %v1680 = vadd.f32 0.0, %v1679
      %v1681 = vpop.f32.mrb[0].mxu0
      %v1682 = vpop.f32.mrb[0].mxu0
      %v1683 = vadd.f32 0.0, %v1682
      %v1684 = vpop.f32.mrb[0].mxu0
      %1685 = vmatprep.mubr.bf16.mxu0 0
      %1686 = vmatmul.mubr.bf16.gmra.mrb[0].mxu0 %v1484
      %v1687 = vpop.f32.mrb[0].mxu0
      %v1688 = vadd.f32 0.0, %v1687
      %v1689 = vpop.f32.mrb[0].mxu0
      %v1690 = vpop.f32.mrb[0].mxu0
      %v1691 = vadd.f32 0.0, %v1690
      %v1692 = vpop.f32.mrb[0].mxu0
      %1693 = vdwg.mxu0
      %v1694 = vadd.f32 %v1230, %v1568
      %v1695 = vadd.f32 %v1233, %v1571
      %v1696 = vadd.f32 %v1238, %v1576
      %v1697 = vadd.f32 %v1241, %v1579
      %v1698 = vadd.f32 %v1246, %v1584
      %v1699 = vadd.f32 %v1249, %v1587
      %v1700 = vadd.f32 %v1254, %v1592
      %v1701 = vadd.f32 %v1257, %v1595
      %v1702 = vadd.f32 %v1262, %v1600
      %v1703 = vadd.f32 %v1265, %v1603
      %v1704 = vadd.f32 %v1270, %v1608
      %v1705 = vadd.f32 %v1273, %v1611
      %v1706 = vadd.f32 %v1278, %v1616
      %v1707 = vadd.f32 %v1281, %v1619
      %v1708 = vadd.f32 %v1286, %v1624
      %v1709 = vadd.f32 %v1289, %v1627
      %v1710 = vadd.f32 %v1294, %v1632
      %v1711 = vadd.f32 %v1297, %v1635
      %v1712 = vadd.f32 %v1302, %v1640
      %v1713 = vadd.f32 %v1305, %v1643
      %v1714 = vadd.f32 %v1310, %v1648
      %v1715 = vadd.f32 %v1313, %v1651
      %v1716 = vadd.f32 %v1318, %v1656
      %v1717 = vadd.f32 %v1321, %v1659
      %v1718 = vadd.f32 %v1326, %v1664
      %v1719 = vadd.f32 %v1329, %v1667
      %v1720 = vadd.f32 %v1334, %v1672
      %v1721 = vadd.f32 %v1337, %v1675
      %v1722 = vadd.f32 %v1342, %v1680
      %v1723 = vadd.f32 %v1345, %v1683
      %v1724 = vadd.f32 %v1350, %v1688
      %v1725 = vadd.f32 %v1353, %v1691
      %v1726 = vpack.c.bf16 %v596, %v595
      %v1743 = vunpack.c.l.b16 %v649
      %v1744 = vunpack.c.l.b16 %v650
      %v1745 = vunpack.c.l.b16 %v651
      %v1746 = vunpack.c.l.b16 %v652
      %v1747 = vunpack.c.l.b16 %v653
      %v1748 = vunpack.c.l.b16 %v654
      %v1749 = vunpack.c.l.b16 %v655
      %v1750 = vunpack.c.l.b16 %v656
      %v1751 = vunpack.c.l.b16 %v657
      %v1752 = vunpack.c.l.b16 %v658
      %v1753 = vunpack.c.l.b16 %v659
      %v1754 = vunpack.c.l.b16 %v660
      %v1755 = vunpack.c.l.b16 %v661
      %v1756 = vunpack.c.l.b16 %v662
      %v1757 = vunpack.c.l.b16 %v663
      %v1758 = vunpack.c.l.b16 %v664
      %v1759 = vpack.c.b16 %v1744, %v1743
      %v1760 = vpack.c.b16 %v1746, %v1745
      %v1761 = vpack.c.b16 %v1748, %v1747
      %v1762 = vpack.c.b16 %v1750, %v1749
      %v1763 = vpack.c.b16 %v1752, %v1751
      %v1764 = vpack.c.b16 %v1754, %v1753
      %v1765 = vpack.c.b16 %v1756, %v1755
      %v1766 = vpack.c.b16 %v1758, %v1757
      %1775 = vmatprep.subr.bf16.mxu0 0
      %1776 = vmatpush1.bf16.msra.mxu0 %v1759
      %1777 = vmatprep.subr.bf16.mxu0 0
      %1778 = vmatpush1.bf16.msra.mxu0 %v1760
      %1779 = vmatprep.subr.bf16.mxu0 0
      %1780 = vmatpush1.bf16.msra.mxu0 %v1761
      %1781 = vmatprep.subr.bf16.mxu0 0
      %1782 = vmatpush1.bf16.msra.mxu0 %v1762
      %1783 = vmatprep.subr.bf16.mxu0 0
      %1784 = vmatpush1.bf16.msra.mxu0 %v1763
      %1785 = vmatprep.subr.bf16.mxu0 0
      %1786 = vmatpush1.bf16.msra.mxu0 %v1764
      %1787 = vmatprep.subr.bf16.mxu0 0
      %1788 = vmatpush1.bf16.msra.mxu0 %v1765
      %1789 = vmatprep.subr.bf16.mxu0 0
      %1790 = vmatpush1.bf16.msra.mxu0 %v1766
      %1791 = vmatprep.subr.bf16.mxu0 0
      %1792 = vmatpush1.bf16.msra.mxu0 0
      %1793 = vmatprep.subr.bf16.mxu0 0
      %1794 = vmatpush1.bf16.msra.mxu0 0
      %1795 = vmatprep.subr.bf16.mxu0 0
      %1796 = vmatpush1.bf16.msra.mxu0 0
      %1797 = vmatprep.subr.bf16.mxu0 0
      %1798 = vmatpush1.bf16.msra.mxu0 0
      %1799 = vmatprep.subr.bf16.mxu0 0
      %1800 = vmatpush1.bf16.msra.mxu0 0
      %1801 = vmatprep.subr.bf16.mxu0 0
      %1802 = vmatpush1.bf16.msra.mxu0 0
      %1803 = vmatprep.subr.bf16.mxu0 0
      %1804 = vmatpush1.bf16.msra.mxu0 0
      %1805 = vmatprep.subr.bf16.mxu0 0
      %1806 = vmatpush1.bf16.msra.mxu0 0
      %1807 = vmatprep.mubr.bf16.mxu0 0
      %1808 = vmatmul.mubr.bf16.gmra.mrb[0].mxu0 %v746
      %v1809 = vpop.f32.mrb[0].mxu0
      %v1810 = vadd.f32 0.0, %v1809
      %v1811 = vpop.f32.mrb[0].mxu0
      %v1812 = vpop.f32.mrb[0].mxu0
      %v1813 = vadd.f32 0.0, %v1812
      %v1814 = vpop.f32.mrb[0].mxu0
      %1815 = vmatprep.mubr.bf16.mxu0 0
      %1816 = vmatmul.mubr.bf16.gmra.mrb[0].mxu0 %v747
      %v1817 = vpop.f32.mrb[0].mxu0
      %v1818 = vadd.f32 0.0, %v1817
      %v1819 = vpop.f32.mrb[0].mxu0
      %v1820 = vpop.f32.mrb[0].mxu0
      %v1821 = vadd.f32 0.0, %v1820
      %v1822 = vpop.f32.mrb[0].mxu0
      %1823 = vmatprep.mubr.bf16.mxu0 0
      %1824 = vmatmul.mubr.bf16.gmra.mrb[0].mxu0 %v748
      %v1825 = vpop.f32.mrb[0].mxu0
      %v1826 = vadd.f32 0.0, %v1825
      %v1827 = vpop.f32.mrb[0].mxu0
      %v1828 = vpop.f32.mrb[0].mxu0
      %v1829 = vadd.f32 0.0, %v1828
      %v1830 = vpop.f32.mrb[0].mxu0
      %1831 = vmatprep.mubr.bf16.mxu0 0
      %1832 = vmatmul.mubr.bf16.gmra.mrb[0].mxu0 %v749
      %v1833 = vpop.f32.mrb[0].mxu0
      %v1834 = vadd.f32 0.0, %v1833
      %v1835 = vpop.f32.mrb[0].mxu0
      %v1836 = vpop.f32.mrb[0].mxu0
      %v1837 = vadd.f32 0.0, %v1836
      %v1838 = vpop.f32.mrb[0].mxu0
      %1839 = vmatprep.mubr.bf16.mxu0 0
      %1840 = vmatmul.mubr.bf16.gmra.mrb[0].mxu0 %v750
      %v1841 = vpop.f32.mrb[0].mxu0
      %v1842 = vadd.f32 0.0, %v1841
      %v1843 = vpop.f32.mrb[0].mxu0
      %v1844 = vpop.f32.mrb[0].mxu0
      %v1845 = vadd.f32 0.0, %v1844
      %v1846 = vpop.f32.mrb[0].mxu0
      %1847 = vmatprep.mubr.bf16.mxu0 0
      %1848 = vmatmul.mubr.bf16.gmra.mrb[0].mxu0 %v751
      %v1849 = vpop.f32.mrb[0].mxu0
      %v1850 = vadd.f32 0.0, %v1849
      %v1851 = vpop.f32.mrb[0].mxu0
      %v1852 = vpop.f32.mrb[0].mxu0
      %v1853 = vadd.f32 0.0, %v1852
      %v1854 = vpop.f32.mrb[0].mxu0
      %1855 = vmatprep.mubr.bf16.mxu0 0
      %1856 = vmatmul.mubr.bf16.gmra.mrb[0].mxu0 %v752
      %v1857 = vpop.f32.mrb[0].mxu0
      %v1858 = vadd.f32 0.0, %v1857
      %v1859 = vpop.f32.mrb[0].mxu0
      %v1860 = vpop.f32.mrb[0].mxu0
      %v1861 = vadd.f32 0.0, %v1860
      %v1862 = vpop.f32.mrb[0].mxu0
      %1863 = vmatprep.mubr.bf16.mxu0 0
      %1864 = vmatmul.mubr.bf16.gmra.mrb[0].mxu0 %v753
      %v1865 = vpop.f32.mrb[0].mxu0
      %v1866 = vadd.f32 0.0, %v1865
      %v1867 = vpop.f32.mrb[0].mxu0
      %v1868 = vpop.f32.mrb[0].mxu0
      %v1869 = vadd.f32 0.0, %v1868
      %v1870 = vpop.f32.mrb[0].mxu0
      %1871 = vmatprep.mubr.bf16.mxu0 0
      %1872 = vmatmul.mubr.bf16.gmra.mrb[0].mxu0 %v754
      %v1873 = vpop.f32.mrb[0].mxu0
      %v1874 = vadd.f32 0.0, %v1873
      %v1875 = vpop.f32.mrb[0].mxu0
      %v1876 = vpop.f32.mrb[0].mxu0
      %v1877 = vadd.f32 0.0, %v1876
      %v1878 = vpop.f32.mrb[0].mxu0
      %1879 = vmatprep.mubr.bf16.mxu0 0
      %1880 = vmatmul.mubr.bf16.gmra.mrb[0].mxu0 %v755
      %v1881 = vpop.f32.mrb[0].mxu0
      %v1882 = vadd.f32 0.0, %v1881
      %v1883 = vpop.f32.mrb[0].mxu0
      %v1884 = vpop.f32.mrb[0].mxu0
      %v1885 = vadd.f32 0.0, %v1884
      %v1886 = vpop.f32.mrb[0].mxu0
      %1887 = vmatprep.mubr.bf16.mxu0 0
      %1888 = vmatmul.mubr.bf16.gmra.mrb[0].mxu0 %v756
      %v1889 = vpop.f32.mrb[0].mxu0
      %v1890 = vadd.f32 0.0, %v1889
      %v1891 = vpop.f32.mrb[0].mxu0
      %v1892 = vpop.f32.mrb[0].mxu0
      %v1893 = vadd.f32 0.0, %v1892
      %v1894 = vpop.f32.mrb[0].mxu0
      %1895 = vmatprep.mubr.bf16.mxu0 0
      %1896 = vmatmul.mubr.bf16.gmra.mrb[0].mxu0 %v757
      %v1897 = vpop.f32.mrb[0].mxu0
      %v1898 = vadd.f32 0.0, %v1897
      %v1899 = vpop.f32.mrb[0].mxu0
      %v1900 = vpop.f32.mrb[0].mxu0
      %v1901 = vadd.f32 0.0, %v1900
      %v1902 = vpop.f32.mrb[0].mxu0
      %1903 = vmatprep.mubr.bf16.mxu0 0
      %1904 = vmatmul.mubr.bf16.gmra.mrb[0].mxu0 %v758
      %v1905 = vpop.f32.mrb[0].mxu0
      %v1906 = vadd.f32 0.0, %v1905
      %v1907 = vpop.f32.mrb[0].mxu0
      %v1908 = vpop.f32.mrb[0].mxu0
      %v1909 = vadd.f32 0.0, %v1908
      %v1910 = vpop.f32.mrb[0].mxu0
      %1911 = vmatprep.mubr.bf16.mxu0 0
      %1912 = vmatmul.mubr.bf16.gmra.mrb[0].mxu0 %v759
      %v1913 = vpop.f32.mrb[0].mxu0
      %v1914 = vadd.f32 0.0, %v1913
      %v1915 = vpop.f32.mrb[0].mxu0
      %v1916 = vpop.f32.mrb[0].mxu0
      %v1917 = vadd.f32 0.0, %v1916
      %v1918 = vpop.f32.mrb[0].mxu0
      %1919 = vmatprep.mubr.bf16.mxu0 0
      %1920 = vmatmul.mubr.bf16.gmra.mrb[0].mxu0 %v760
      %v1921 = vpop.f32.mrb[0].mxu0
      %v1922 = vadd.f32 0.0, %v1921
      %v1923 = vpop.f32.mrb[0].mxu0
      %v1924 = vpop.f32.mrb[0].mxu0
      %v1925 = vadd.f32 0.0, %v1924
      %v1926 = vpop.f32.mrb[0].mxu0
      %1927 = vmatprep.mubr.bf16.mxu0 0
      %1928 = vmatmul.mubr.bf16.gmra.mrb[0].mxu0 %v1726
      %v1929 = vpop.f32.mrb[0].mxu0
      %v1930 = vadd.f32 0.0, %v1929
      %v1931 = vpop.f32.mrb[0].mxu0
      %v1932 = vpop.f32.mrb[0].mxu0
      %v1933 = vadd.f32 0.0, %v1932
      %v1934 = vpop.f32.mrb[0].mxu0
      %1935 = vdwg.mxu0
      %v1936 = vadd.f32 %v1694, %v1810
      %v1937 = vadd.f32 %v1695, %v1813
      %v1938 = vadd.f32 %v1696, %v1818
      %v1939 = vadd.f32 %v1697, %v1821
      %v1940 = vadd.f32 %v1698, %v1826
      %v1941 = vadd.f32 %v1699, %v1829
      %v1942 = vadd.f32 %v1700, %v1834
      %v1943 = vadd.f32 %v1701, %v1837
      %v1944 = vadd.f32 %v1702, %v1842
      %v1945 = vadd.f32 %v1703, %v1845
      %v1946 = vadd.f32 %v1704, %v1850
      %v1947 = vadd.f32 %v1705, %v1853
      %v1948 = vadd.f32 %v1706, %v1858
      %v1949 = vadd.f32 %v1707, %v1861
      %v1950 = vadd.f32 %v1708, %v1866
      %v1951 = vadd.f32 %v1709, %v1869
      %v1952 = vadd.f32 %v1710, %v1874
      %v1953 = vadd.f32 %v1711, %v1877
      %v1954 = vadd.f32 %v1712, %v1882
      %v1955 = vadd.f32 %v1713, %v1885
      %v1956 = vadd.f32 %v1714, %v1890
      %v1957 = vadd.f32 %v1715, %v1893
      %v1958 = vadd.f32 %v1716, %v1898
      %v1959 = vadd.f32 %v1717, %v1901
      %v1960 = vadd.f32 %v1718, %v1906
      %v1961 = vadd.f32 %v1719, %v1909
      %v1962 = vadd.f32 %v1720, %v1914
      %v1963 = vadd.f32 %v1721, %v1917
      %v1964 = vadd.f32 %v1722, %v1922
      %v1965 = vadd.f32 %v1723, %v1925
      %v1966 = vadd.f32 %v1724, %v1930
      %v1967 = vadd.f32 %v1725, %v1933
      %v1971 = vrot.slane %v595, 1
      %v1972 = vrot.slane %v596, 1
      %v1973 = vsel %vm809, %v1971, %v1972
      %v1974 = vrot.slane %v597, 1
      %v1975 = vsel %vm809, %v1972, %v1974
      %v1978 = vpack.c.bf16 %v1975, %v1973
      %v1995 = vunpack.c.l.b16 %v665
      %v1996 = vunpack.c.l.b16 %v666
      %v1997 = vunpack.c.l.b16 %v667
      %v1998 = vunpack.c.l.b16 %v668
      %v1999 = vunpack.c.l.b16 %v669
      %v2000 = vunpack.c.l.b16 %v670
      %v2001 = vunpack.c.l.b16 %v671
      %v2002 = vunpack.c.l.b16 %v672
      %v2003 = vunpack.c.l.b16 %v673
      %v2004 = vunpack.c.l.b16 %v674
      %v2005 = vunpack.c.l.b16 %v675
      %v2006 = vunpack.c.l.b16 %v676
      %v2007 = vunpack.c.l.b16 %v677
      %v2008 = vunpack.c.l.b16 %v678
      %v2009 = vunpack.c.l.b16 %v679
      %v2010 = vunpack.c.l.b16 %v680
      %v2011 = vpack.c.b16 %v1996, %v1995
      %v2012 = vpack.c.b16 %v1998, %v1997
      %v2013 = vpack.c.b16 %v2000, %v1999
      %v2014 = vpack.c.b16 %v2002, %v2001
      %v2015 = vpack.c.b16 %v2004, %v2003
      %v2016 = vpack.c.b16 %v2006, %v2005
      %v2017 = vpack.c.b16 %v2008, %v2007
      %v2018 = vpack.c.b16 %v2010, %v2009
      %2027 = vmatprep.subr.bf16.mxu0 0
      %2028 = vmatpush1.bf16.msra.mxu0 %v2011
      %2029 = vmatprep.subr.bf16.mxu0 0
      %2030 = vmatpush1.bf16.msra.mxu0 %v2012
      %2031 = vmatprep.subr.bf16.mxu0 0
      %2032 = vmatpush1.bf16.msra.mxu0 %v2013
      %2033 = vmatprep.subr.bf16.mxu0 0
      %2034 = vmatpush1.bf16.msra.mxu0 %v2014
      %2035 = vmatprep.subr.bf16.mxu0 0
      %2036 = vmatpush1.bf16.msra.mxu0 %v2015
      %2037 = vmatprep.subr.bf16.mxu0 0
      %2038 = vmatpush1.bf16.msra.mxu0 %v2016
      %2039 = vmatprep.subr.bf16.mxu0 0
      %2040 = vmatpush1.bf16.msra.mxu0 %v2017
      %2041 = vmatprep.subr.bf16.mxu0 0
      %2042 = vmatpush1.bf16.msra.mxu0 %v2018
      %2043 = vmatprep.subr.bf16.mxu0 0
      %2044 = vmatpush1.bf16.msra.mxu0 0
      %2045 = vmatprep.subr.bf16.mxu0 0
      %2046 = vmatpush1.bf16.msra.mxu0 0
      %2047 = vmatprep.subr.bf16.mxu0 0
      %2048 = vmatpush1.bf16.msra.mxu0 0
      %2049 = vmatprep.subr.bf16.mxu0 0
      %2050 = vmatpush1.bf16.msra.mxu0 0
      %2051 = vmatprep.subr.bf16.mxu0 0
      %2052 = vmatpush1.bf16.msra.mxu0 0
      %2053 = vmatprep.subr.bf16.mxu0 0
      %2054 = vmatpush1.bf16.msra.mxu0 0
      %2055 = vmatprep.subr.bf16.mxu0 0
      %2056 = vmatpush1.bf16.msra.mxu0 0
      %2057 = vmatprep.subr.bf16.mxu0 0
      %2058 = vmatpush1.bf16.msra.mxu0 0
      %2059 = vmatprep.mubr.bf16.mxu0 0
      %2060 = vmatmul.mubr.bf16.gmra.mrb[0].mxu0 %v923
      %v2061 = vpop.f32.mrb[0].mxu0
      %v2062 = vadd.f32 0.0, %v2061
      %v2063 = vpop.f32.mrb[0].mxu0
      %v2064 = vpop.f32.mrb[0].mxu0
      %v2065 = vadd.f32 0.0, %v2064
      %v2066 = vpop.f32.mrb[0].mxu0
      %2067 = vmatprep.mubr.bf16.mxu0 0
      %2068 = vmatmul.mubr.bf16.gmra.mrb[0].mxu0 %v924
      %v2069 = vpop.f32.mrb[0].mxu0
      %v2070 = vadd.f32 0.0, %v2069
      %v2071 = vpop.f32.mrb[0].mxu0
      %v2072 = vpop.f32.mrb[0].mxu0
      %v2073 = vadd.f32 0.0, %v2072
      %v2074 = vpop.f32.mrb[0].mxu0
      %2075 = vmatprep.mubr.bf16.mxu0 0
      %2076 = vmatmul.mubr.bf16.gmra.mrb[0].mxu0 %v925
      %v2077 = vpop.f32.mrb[0].mxu0
      %v2078 = vadd.f32 0.0, %v2077
      %v2079 = vpop.f32.mrb[0].mxu0
      %v2080 = vpop.f32.mrb[0].mxu0
      %v2081 = vadd.f32 0.0, %v2080
      %v2082 = vpop.f32.mrb[0].mxu0
      %2083 = vmatprep.mubr.bf16.mxu0 0
      %2084 = vmatmul.mubr.bf16.gmra.mrb[0].mxu0 %v926
      %v2085 = vpop.f32.mrb[0].mxu0
      %v2086 = vadd.f32 0.0, %v2085
      %v2087 = vpop.f32.mrb[0].mxu0
      %v2088 = vpop.f32.mrb[0].mxu0
      %v2089 = vadd.f32 0.0, %v2088
      %v2090 = vpop.f32.mrb[0].mxu0
      %2091 = vmatprep.mubr.bf16.mxu0 0
      %2092 = vmatmul.mubr.bf16.gmra.mrb[0].mxu0 %v927
      %v2093 = vpop.f32.mrb[0].mxu0
      %v2094 = vadd.f32 0.0, %v2093
      %v2095 = vpop.f32.mrb[0].mxu0
      %v2096 = vpop.f32.mrb[0].mxu0
      %v2097 = vadd.f32 0.0, %v2096
      %v2098 = vpop.f32.mrb[0].mxu0
      %2099 = vmatprep.mubr.bf16.mxu0 0
      %2100 = vmatmul.mubr.bf16.gmra.mrb[0].mxu0 %v928
      %v2101 = vpop.f32.mrb[0].mxu0
      %v2102 = vadd.f32 0.0, %v2101
      %v2103 = vpop.f32.mrb[0].mxu0
      %v2104 = vpop.f32.mrb[0].mxu0
      %v2105 = vadd.f32 0.0, %v2104
      %v2106 = vpop.f32.mrb[0].mxu0
      %2107 = vmatprep.mubr.bf16.mxu0 0
      %2108 = vmatmul.mubr.bf16.gmra.mrb[0].mxu0 %v929
      %v2109 = vpop.f32.mrb[0].mxu0
      %v2110 = vadd.f32 0.0, %v2109
      %v2111 = vpop.f32.mrb[0].mxu0
      %v2112 = vpop.f32.mrb[0].mxu0
      %v2113 = vadd.f32 0.0, %v2112
      %v2114 = vpop.f32.mrb[0].mxu0
      %2115 = vmatprep.mubr.bf16.mxu0 0
      %2116 = vmatmul.mubr.bf16.gmra.mrb[0].mxu0 %v930
      %v2117 = vpop.f32.mrb[0].mxu0
      %v2118 = vadd.f32 0.0, %v2117
      %v2119 = vpop.f32.mrb[0].mxu0
      %v2120 = vpop.f32.mrb[0].mxu0
      %v2121 = vadd.f32 0.0, %v2120
      %v2122 = vpop.f32.mrb[0].mxu0
      %2123 = vmatprep.mubr.bf16.mxu0 0
      %2124 = vmatmul.mubr.bf16.gmra.mrb[0].mxu0 %v931
      %v2125 = vpop.f32.mrb[0].mxu0
      %v2126 = vadd.f32 0.0, %v2125
      %v2127 = vpop.f32.mrb[0].mxu0
      %v2128 = vpop.f32.mrb[0].mxu0
      %v2129 = vadd.f32 0.0, %v2128
      %v2130 = vpop.f32.mrb[0].mxu0
      %2131 = vmatprep.mubr.bf16.mxu0 0
      %2132 = vmatmul.mubr.bf16.gmra.mrb[0].mxu0 %v932
      %v2133 = vpop.f32.mrb[0].mxu0
      %v2134 = vadd.f32 0.0, %v2133
      %v2135 = vpop.f32.mrb[0].mxu0
      %v2136 = vpop.f32.mrb[0].mxu0
      %v2137 = vadd.f32 0.0, %v2136
      %v2138 = vpop.f32.mrb[0].mxu0
      %2139 = vmatprep.mubr.bf16.mxu0 0
      %2140 = vmatmul.mubr.bf16.gmra.mrb[0].mxu0 %v933
      %v2141 = vpop.f32.mrb[0].mxu0
      %v2142 = vadd.f32 0.0, %v2141
      %v2143 = vpop.f32.mrb[0].mxu0
      %v2144 = vpop.f32.mrb[0].mxu0
      %v2145 = vadd.f32 0.0, %v2144
      %v2146 = vpop.f32.mrb[0].mxu0
      %2147 = vmatprep.mubr.bf16.mxu0 0
      %2148 = vmatmul.mubr.bf16.gmra.mrb[0].mxu0 %v934
      %v2149 = vpop.f32.mrb[0].mxu0
      %v2150 = vadd.f32 0.0, %v2149
      %v2151 = vpop.f32.mrb[0].mxu0
      %v2152 = vpop.f32.mrb[0].mxu0
      %v2153 = vadd.f32 0.0, %v2152
      %v2154 = vpop.f32.mrb[0].mxu0
      %2155 = vmatprep.mubr.bf16.mxu0 0
      %2156 = vmatmul.mubr.bf16.gmra.mrb[0].mxu0 %v935
      %v2157 = vpop.f32.mrb[0].mxu0
      %v2158 = vadd.f32 0.0, %v2157
      %v2159 = vpop.f32.mrb[0].mxu0
      %v2160 = vpop.f32.mrb[0].mxu0
      %v2161 = vadd.f32 0.0, %v2160
      %v2162 = vpop.f32.mrb[0].mxu0
      %2163 = vmatprep.mubr.bf16.mxu0 0
      %2164 = vmatmul.mubr.bf16.gmra.mrb[0].mxu0 %v936
      %v2165 = vpop.f32.mrb[0].mxu0
      %v2166 = vadd.f32 0.0, %v2165
      %v2167 = vpop.f32.mrb[0].mxu0
      %v2168 = vpop.f32.mrb[0].mxu0
      %v2169 = vadd.f32 0.0, %v2168
      %v2170 = vpop.f32.mrb[0].mxu0
      %2171 = vmatprep.mubr.bf16.mxu0 0
      %2172 = vmatmul.mubr.bf16.gmra.mrb[0].mxu0 %v937
      %v2173 = vpop.f32.mrb[0].mxu0
      %v2174 = vadd.f32 0.0, %v2173
      %v2175 = vpop.f32.mrb[0].mxu0
      %v2176 = vpop.f32.mrb[0].mxu0
      %v2177 = vadd.f32 0.0, %v2176
      %v2178 = vpop.f32.mrb[0].mxu0
      %2179 = vmatprep.mubr.bf16.mxu0 0
      %2180 = vmatmul.mubr.bf16.gmra.mrb[0].mxu0 %v1978
      %v2181 = vpop.f32.mrb[0].mxu0
      %v2182 = vadd.f32 0.0, %v2181
      %v2183 = vpop.f32.mrb[0].mxu0
      %v2184 = vpop.f32.mrb[0].mxu0
      %v2185 = vadd.f32 0.0, %v2184
      %v2186 = vpop.f32.mrb[0].mxu0
      %2187 = vdwg.mxu0
      %v2188 = vadd.f32 %v1936, %v2062
      %v2189 = vadd.f32 %v1937, %v2065
      %v2190 = vadd.f32 %v1938, %v2070
      %v2191 = vadd.f32 %v1939, %v2073
      %v2192 = vadd.f32 %v1940, %v2078
      %v2193 = vadd.f32 %v1941, %v2081
      %v2194 = vadd.f32 %v1942, %v2086
      %v2195 = vadd.f32 %v1943, %v2089
      %v2196 = vadd.f32 %v1944, %v2094
      %v2197 = vadd.f32 %v1945, %v2097
      %v2198 = vadd.f32 %v1946, %v2102
      %v2199 = vadd.f32 %v1947, %v2105
      %v2200 = vadd.f32 %v1948, %v2110
      %v2201 = vadd.f32 %v1949, %v2113
      %v2202 = vadd.f32 %v1950, %v2118
      %v2203 = vadd.f32 %v1951, %v2121
      %v2204 = vadd.f32 %v1952, %v2126
      %v2205 = vadd.f32 %v1953, %v2129
      %v2206 = vadd.f32 %v1954, %v2134
      %v2207 = vadd.f32 %v1955, %v2137
      %v2208 = vadd.f32 %v1956, %v2142
      %v2209 = vadd.f32 %v1957, %v2145
      %v2210 = vadd.f32 %v1958, %v2150
      %v2211 = vadd.f32 %v1959, %v2153
      %v2212 = vadd.f32 %v1960, %v2158
      %v2213 = vadd.f32 %v1961, %v2161
      %v2214 = vadd.f32 %v1962, %v2166
      %v2215 = vadd.f32 %v1963, %v2169
      %v2216 = vadd.f32 %v1964, %v2174
      %v2217 = vadd.f32 %v1965, %v2177
      %v2218 = vadd.f32 %v1966, %v2182
      %v2219 = vadd.f32 %v1967, %v2185
      %v2220 = vrot.slane %v595, 2
      %v2221 = vrot.slane %v596, 2
      %v2222 = vsel %vm1356, %v2220, %v2221
      %v2223 = vrot.slane %v597, 2
      %v2224 = vsel %vm1356, %v2221, %v2223
      %v2227 = vpack.c.bf16 %v2224, %v2222
      %v2244 = vunpack.c.l.b16 %v681
      %v2245 = vunpack.c.l.b16 %v682
      %v2246 = vunpack.c.l.b16 %v683
      %v2247 = vunpack.c.l.b16 %v684
      %v2248 = vunpack.c.l.b16 %v685
      %v2249 = vunpack.c.l.b16 %v686
      %v2250 = vunpack.c.l.b16 %v687
      %v2251 = vunpack.c.l.b16 %v688
      %v2252 = vunpack.c.l.b16 %v689
      %v2253 = vunpack.c.l.b16 %v690
      %v2254 = vunpack.c.l.b16 %v691
      %v2255 = vunpack.c.l.b16 %v692
      %v2256 = vunpack.c.l.b16 %v693
      %v2257 = vunpack.c.l.b16 %v694
      %v2258 = vunpack.c.l.b16 %v695
      %v2259 = vunpack.c.l.b16 %v696
      %v2260 = vpack.c.b16 %v2245, %v2244
      %v2261 = vpack.c.b16 %v2247, %v2246
      %v2262 = vpack.c.b16 %v2249, %v2248
      %v2263 = vpack.c.b16 %v2251, %v2250
      %v2264 = vpack.c.b16 %v2253, %v2252
      %v2265 = vpack.c.b16 %v2255, %v2254
      %v2266 = vpack.c.b16 %v2257, %v2256
      %v2267 = vpack.c.b16 %v2259, %v2258
      %2276 = vmatprep.subr.bf16.mxu0 0
      %2277 = vmatpush1.bf16.msra.mxu0 %v2260
      %2278 = vmatprep.subr.bf16.mxu0 0
      %2279 = vmatpush1.bf16.msra.mxu0 %v2261
      %2280 = vmatprep.subr.bf16.mxu0 0
      %2281 = vmatpush1.bf16.msra.mxu0 %v2262
      %2282 = vmatprep.subr.bf16.mxu0 0
      %2283 = vmatpush1.bf16.msra.mxu0 %v2263
      %2284 = vmatprep.subr.bf16.mxu0 0
      %2285 = vmatpush1.bf16.msra.mxu0 %v2264
      %2286 = vmatprep.subr.bf16.mxu0 0
      %2287 = vmatpush1.bf16.msra.mxu0 %v2265
      %2288 = vmatprep.subr.bf16.mxu0 0
      %2289 = vmatpush1.bf16.msra.mxu0 %v2266
      %2290 = vmatprep.subr.bf16.mxu0 0
      %2291 = vmatpush1.bf16.msra.mxu0 %v2267
      %2292 = vmatprep.subr.bf16.mxu0 0
      %2293 = vmatpush1.bf16.msra.mxu0 0
      %2294 = vmatprep.subr.bf16.mxu0 0
      %2295 = vmatpush1.bf16.msra.mxu0 0
      %2296 = vmatprep.subr.bf16.mxu0 0
      %2297 = vmatpush1.bf16.msra.mxu0 0
      %2298 = vmatprep.subr.bf16.mxu0 0
      %2299 = vmatpush1.bf16.msra.mxu0 0
      %2300 = vmatprep.subr.bf16.mxu0 0
      %2301 = vmatpush1.bf16.msra.mxu0 0
      %2302 = vmatprep.subr.bf16.mxu0 0
      %2303 = vmatpush1.bf16.msra.mxu0 0
      %2304 = vmatprep.subr.bf16.mxu0 0
      %2305 = vmatpush1.bf16.msra.mxu0 0
      %2306 = vmatprep.subr.bf16.mxu0 0
      %2307 = vmatpush1.bf16.msra.mxu0 0
      %2308 = vmatprep.mubr.bf16.mxu0 0
      %2309 = vmatmul.mubr.bf16.gmra.mrb[0].mxu0 %v1470
      %v2310 = vpop.f32.mrb[0].mxu0
      %v2311 = vadd.f32 0.0, %v2310
      %v2312 = vpop.f32.mrb[0].mxu0
      %v2313 = vpop.f32.mrb[0].mxu0
      %v2314 = vadd.f32 0.0, %v2313
      %v2315 = vpop.f32.mrb[0].mxu0
      %2316 = vmatprep.mubr.bf16.mxu0 0
      %2317 = vmatmul.mubr.bf16.gmra.mrb[0].mxu0 %v1471
      %v2318 = vpop.f32.mrb[0].mxu0
      %v2319 = vadd.f32 0.0, %v2318
      %v2320 = vpop.f32.mrb[0].mxu0
      %v2321 = vpop.f32.mrb[0].mxu0
      %v2322 = vadd.f32 0.0, %v2321
      %v2323 = vpop.f32.mrb[0].mxu0
      %2324 = vmatprep.mubr.bf16.mxu0 0
      %2325 = vmatmul.mubr.bf16.gmra.mrb[0].mxu0 %v1472
      %v2326 = vpop.f32.mrb[0].mxu0
      %v2327 = vadd.f32 0.0, %v2326
      %v2328 = vpop.f32.mrb[0].mxu0
      %v2329 = vpop.f32.mrb[0].mxu0
      %v2330 = vadd.f32 0.0, %v2329
      %v2331 = vpop.f32.mrb[0].mxu0
      %2332 = vmatprep.mubr.bf16.mxu0 0
      %2333 = vmatmul.mubr.bf16.gmra.mrb[0].mxu0 %v1473
      %v2334 = vpop.f32.mrb[0].mxu0
      %v2335 = vadd.f32 0.0, %v2334
      %v2336 = vpop.f32.mrb[0].mxu0
      %v2337 = vpop.f32.mrb[0].mxu0
      %v2338 = vadd.f32 0.0, %v2337
      %v2339 = vpop.f32.mrb[0].mxu0
      %2340 = vmatprep.mubr.bf16.mxu0 0
      %2341 = vmatmul.mubr.bf16.gmra.mrb[0].mxu0 %v1474
      %v2342 = vpop.f32.mrb[0].mxu0
      %v2343 = vadd.f32 0.0, %v2342
      %v2344 = vpop.f32.mrb[0].mxu0
      %v2345 = vpop.f32.mrb[0].mxu0
      %v2346 = vadd.f32 0.0, %v2345
      %v2347 = vpop.f32.mrb[0].mxu0
      %2348 = vmatprep.mubr.bf16.mxu0 0
      %2349 = vmatmul.mubr.bf16.gmra.mrb[0].mxu0 %v1475
      %v2350 = vpop.f32.mrb[0].mxu0
      %v2351 = vadd.f32 0.0, %v2350
      %v2352 = vpop.f32.mrb[0].mxu0
      %v2353 = vpop.f32.mrb[0].mxu0
      %v2354 = vadd.f32 0.0, %v2353
      %v2355 = vpop.f32.mrb[0].mxu0
      %2356 = vmatprep.mubr.bf16.mxu0 0
      %2357 = vmatmul.mubr.bf16.gmra.mrb[0].mxu0 %v1476
      %v2358 = vpop.f32.mrb[0].mxu0
      %v2359 = vadd.f32 0.0, %v2358
      %v2360 = vpop.f32.mrb[0].mxu0
      %v2361 = vpop.f32.mrb[0].mxu0
      %v2362 = vadd.f32 0.0, %v2361
      %v2363 = vpop.f32.mrb[0].mxu0
      %2364 = vmatprep.mubr.bf16.mxu0 0
      %2365 = vmatmul.mubr.bf16.gmra.mrb[0].mxu0 %v1477
      %v2366 = vpop.f32.mrb[0].mxu0
      %v2367 = vadd.f32 0.0, %v2366
      %v2368 = vpop.f32.mrb[0].mxu0
      %v2369 = vpop.f32.mrb[0].mxu0
      %v2370 = vadd.f32 0.0, %v2369
      %v2371 = vpop.f32.mrb[0].mxu0
      %2372 = vmatprep.mubr.bf16.mxu0 0
      %2373 = vmatmul.mubr.bf16.gmra.mrb[0].mxu0 %v1478
      %v2374 = vpop.f32.mrb[0].mxu0
      %v2375 = vadd.f32 0.0, %v2374
      %v2376 = vpop.f32.mrb[0].mxu0
      %v2377 = vpop.f32.mrb[0].mxu0
      %v2378 = vadd.f32 0.0, %v2377
      %v2379 = vpop.f32.mrb[0].mxu0
      %2380 = vmatprep.mubr.bf16.mxu0 0
      %2381 = vmatmul.mubr.bf16.gmra.mrb[0].mxu0 %v1479
      %v2382 = vpop.f32.mrb[0].mxu0
      %v2383 = vadd.f32 0.0, %v2382
      %v2384 = vpop.f32.mrb[0].mxu0
      %v2385 = vpop.f32.mrb[0].mxu0
      %v2386 = vadd.f32 0.0, %v2385
      %v2387 = vpop.f32.mrb[0].mxu0
      %2388 = vmatprep.mubr.bf16.mxu0 0
      %2389 = vmatmul.mubr.bf16.gmra.mrb[0].mxu0 %v1480
      %v2390 = vpop.f32.mrb[0].mxu0
      %v2391 = vadd.f32 0.0, %v2390
      %v2392 = vpop.f32.mrb[0].mxu0
      %v2393 = vpop.f32.mrb[0].mxu0
      %v2394 = vadd.f32 0.0, %v2393
      %v2395 = vpop.f32.mrb[0].mxu0
      %2396 = vmatprep.mubr.bf16.mxu0 0
      %2397 = vmatmul.mubr.bf16.gmra.mrb[0].mxu0 %v1481
      %v2398 = vpop.f32.mrb[0].mxu0
      %v2399 = vadd.f32 0.0, %v2398
      %v2400 = vpop.f32.mrb[0].mxu0
      %v2401 = vpop.f32.mrb[0].mxu0
      %v2402 = vadd.f32 0.0, %v2401
      %v2403 = vpop.f32.mrb[0].mxu0
      %2404 = vmatprep.mubr.bf16.mxu0 0
      %2405 = vmatmul.mubr.bf16.gmra.mrb[0].mxu0 %v1482
      %v2406 = vpop.f32.mrb[0].mxu0
      %v2407 = vadd.f32 0.0, %v2406
      %v2408 = vpop.f32.mrb[0].mxu0
      %v2409 = vpop.f32.mrb[0].mxu0
      %v2410 = vadd.f32 0.0, %v2409
      %v2411 = vpop.f32.mrb[0].mxu0
      %2412 = vmatprep.mubr.bf16.mxu0 0
      %2413 = vmatmul.mubr.bf16.gmra.mrb[0].mxu0 %v1483
      %v2414 = vpop.f32.mrb[0].mxu0
      %v2415 = vadd.f32 0.0, %v2414
      %v2416 = vpop.f32.mrb[0].mxu0
      %v2417 = vpop.f32.mrb[0].mxu0
      %v2418 = vadd.f32 0.0, %v2417
      %v2419 = vpop.f32.mrb[0].mxu0
      %2420 = vmatprep.mubr.bf16.mxu0 0
      %2421 = vmatmul.mubr.bf16.gmra.mrb[0].mxu0 %v1484
      %v2422 = vpop.f32.mrb[0].mxu0
      %v2423 = vadd.f32 0.0, %v2422
      %v2424 = vpop.f32.mrb[0].mxu0
      %v2425 = vpop.f32.mrb[0].mxu0
      %v2426 = vadd.f32 0.0, %v2425
      %v2427 = vpop.f32.mrb[0].mxu0
      %2428 = vmatprep.mubr.bf16.mxu0 0
      %2429 = vmatmul.mubr.bf16.gmra.mrb[0].mxu0 %v2227
      %v2430 = vpop.f32.mrb[0].mxu0
      %v2431 = vadd.f32 0.0, %v2430
      %v2432 = vpop.f32.mrb[0].mxu0
      %v2433 = vpop.f32.mrb[0].mxu0
      %v2434 = vadd.f32 0.0, %v2433
      %v2435 = vpop.f32.mrb[0].mxu0
      %2436 = vdwg.mxu0
      %v2437 = vadd.f32 %v2188, %v2311
      %v2438 = vadd.f32 %v2189, %v2314
      %v2439 = vadd.f32 %v2190, %v2319
      %v2440 = vadd.f32 %v2191, %v2322
      %v2441 = vadd.f32 %v2192, %v2327
      %v2442 = vadd.f32 %v2193, %v2330
      %v2443 = vadd.f32 %v2194, %v2335
      %v2444 = vadd.f32 %v2195, %v2338
      %v2445 = vadd.f32 %v2196, %v2343
      %v2446 = vadd.f32 %v2197, %v2346
      %v2447 = vadd.f32 %v2198, %v2351
      %v2448 = vadd.f32 %v2199, %v2354
      %v2449 = vadd.f32 %v2200, %v2359
      %v2450 = vadd.f32 %v2201, %v2362
      %v2451 = vadd.f32 %v2202, %v2367
      %v2452 = vadd.f32 %v2203, %v2370
      %v2453 = vadd.f32 %v2204, %v2375
      %v2454 = vadd.f32 %v2205, %v2378
      %v2455 = vadd.f32 %v2206, %v2383
      %v2456 = vadd.f32 %v2207, %v2386
      %v2457 = vadd.f32 %v2208, %v2391
      %v2458 = vadd.f32 %v2209, %v2394
      %v2459 = vadd.f32 %v2210, %v2399
      %v2460 = vadd.f32 %v2211, %v2402
      %v2461 = vadd.f32 %v2212, %v2407
      %v2462 = vadd.f32 %v2213, %v2410
      %v2463 = vadd.f32 %v2214, %v2415
      %v2464 = vadd.f32 %v2215, %v2418
      %v2465 = vadd.f32 %v2216, %v2423
      %v2466 = vadd.f32 %v2217, %v2426
      %v2467 = vadd.f32 %v2218, %v2431
      %v2468 = vadd.f32 %v2219, %v2434
      %v2469 = vpack.c.bf16 %v599, %v598
      %v2486 = vunpack.c.l.b16 %v697
      %v2487 = vunpack.c.l.b16 %v698
      %v2488 = vunpack.c.l.b16 %v699
      %v2489 = vunpack.c.l.b16 %v700
      %v2490 = vunpack.c.l.b16 %v701
      %v2491 = vunpack.c.l.b16 %v702
      %v2492 = vunpack.c.l.b16 %v703
      %v2493 = vunpack.c.l.b16 %v704
      %v2494 = vunpack.c.l.b16 %v705
      %v2495 = vunpack.c.l.b16 %v706
      %v2496 = vunpack.c.l.b16 %v707
      %v2497 = vunpack.c.l.b16 %v708
      %v2498 = vunpack.c.l.b16 %v709
      %v2499 = vunpack.c.l.b16 %v710
      %v2500 = vunpack.c.l.b16 %v711
      %v2501 = vunpack.c.l.b16 %v712
      %v2502 = vpack.c.b16 %v2487, %v2486
      %v2503 = vpack.c.b16 %v2489, %v2488
      %v2504 = vpack.c.b16 %v2491, %v2490
      %v2505 = vpack.c.b16 %v2493, %v2492
      %v2506 = vpack.c.b16 %v2495, %v2494
      %v2507 = vpack.c.b16 %v2497, %v2496
      %v2508 = vpack.c.b16 %v2499, %v2498
      %v2509 = vpack.c.b16 %v2501, %v2500
      %2518 = vmatprep.subr.bf16.mxu0 0
      %2519 = vmatpush1.bf16.msra.mxu0 %v2502
      %2520 = vmatprep.subr.bf16.mxu0 0
      %2521 = vmatpush1.bf16.msra.mxu0 %v2503
      %2522 = vmatprep.subr.bf16.mxu0 0
      %2523 = vmatpush1.bf16.msra.mxu0 %v2504
      %2524 = vmatprep.subr.bf16.mxu0 0
      %2525 = vmatpush1.bf16.msra.mxu0 %v2505
      %2526 = vmatprep.subr.bf16.mxu0 0
      %2527 = vmatpush1.bf16.msra.mxu0 %v2506
      %2528 = vmatprep.subr.bf16.mxu0 0
      %2529 = vmatpush1.bf16.msra.mxu0 %v2507
      %2530 = vmatprep.subr.bf16.mxu0 0
      %2531 = vmatpush1.bf16.msra.mxu0 %v2508
      %2532 = vmatprep.subr.bf16.mxu0 0
      %2533 = vmatpush1.bf16.msra.mxu0 %v2509
      %2534 = vmatprep.subr.bf16.mxu0 0
      %2535 = vmatpush1.bf16.msra.mxu0 0
      %2536 = vmatprep.subr.bf16.mxu0 0
      %2537 = vmatpush1.bf16.msra.mxu0 0
      %2538 = vmatprep.subr.bf16.mxu0 0
      %2539 = vmatpush1.bf16.msra.mxu0 0
      %2540 = vmatprep.subr.bf16.mxu0 0
      %2541 = vmatpush1.bf16.msra.mxu0 0
      %2542 = vmatprep.subr.bf16.mxu0 0
      %2543 = vmatpush1.bf16.msra.mxu0 0
      %2544 = vmatprep.subr.bf16.mxu0 0
      %2545 = vmatpush1.bf16.msra.mxu0 0
      %2546 = vmatprep.subr.bf16.mxu0 0
      %2547 = vmatpush1.bf16.msra.mxu0 0
      %2548 = vmatprep.subr.bf16.mxu0 0
      %2549 = vmatpush1.bf16.msra.mxu0 0
      %2550 = vmatprep.mubr.bf16.mxu0 0
      %2551 = vmatmul.mubr.bf16.gmra.mrb[0].mxu0 %v747
      %v2552 = vpop.f32.mrb[0].mxu0
      %v2553 = vadd.f32 0.0, %v2552
      %v2554 = vpop.f32.mrb[0].mxu0
      %v2555 = vpop.f32.mrb[0].mxu0
      %v2556 = vadd.f32 0.0, %v2555
      %v2557 = vpop.f32.mrb[0].mxu0
      %2558 = vmatprep.mubr.bf16.mxu0 0
      %2559 = vmatmul.mubr.bf16.gmra.mrb[0].mxu0 %v748
      %v2560 = vpop.f32.mrb[0].mxu0
      %v2561 = vadd.f32 0.0, %v2560
      %v2562 = vpop.f32.mrb[0].mxu0
      %v2563 = vpop.f32.mrb[0].mxu0
      %v2564 = vadd.f32 0.0, %v2563
      %v2565 = vpop.f32.mrb[0].mxu0
      %2566 = vmatprep.mubr.bf16.mxu0 0
      %2567 = vmatmul.mubr.bf16.gmra.mrb[0].mxu0 %v749
      %v2568 = vpop.f32.mrb[0].mxu0
      %v2569 = vadd.f32 0.0, %v2568
      %v2570 = vpop.f32.mrb[0].mxu0
      %v2571 = vpop.f32.mrb[0].mxu0
      %v2572 = vadd.f32 0.0, %v2571
      %v2573 = vpop.f32.mrb[0].mxu0
      %2574 = vmatprep.mubr.bf16.mxu0 0
      %2575 = vmatmul.mubr.bf16.gmra.mrb[0].mxu0 %v750
      %v2576 = vpop.f32.mrb[0].mxu0
      %v2577 = vadd.f32 0.0, %v2576
      %v2578 = vpop.f32.mrb[0].mxu0
      %v2579 = vpop.f32.mrb[0].mxu0
      %v2580 = vadd.f32 0.0, %v2579
      %v2581 = vpop.f32.mrb[0].mxu0
      %2582 = vmatprep.mubr.bf16.mxu0 0
      %2583 = vmatmul.mubr.bf16.gmra.mrb[0].mxu0 %v751
      %v2584 = vpop.f32.mrb[0].mxu0
      %v2585 = vadd.f32 0.0, %v2584
      %v2586 = vpop.f32.mrb[0].mxu0
      %v2587 = vpop.f32.mrb[0].mxu0
      %v2588 = vadd.f32 0.0, %v2587
      %v2589 = vpop.f32.mrb[0].mxu0
      %2590 = vmatprep.mubr.bf16.mxu0 0
      %2591 = vmatmul.mubr.bf16.gmra.mrb[0].mxu0 %v752
      %v2592 = vpop.f32.mrb[0].mxu0
      %v2593 = vadd.f32 0.0, %v2592
      %v2594 = vpop.f32.mrb[0].mxu0
      %v2595 = vpop.f32.mrb[0].mxu0
      %v2596 = vadd.f32 0.0, %v2595
      %v2597 = vpop.f32.mrb[0].mxu0
      %2598 = vmatprep.mubr.bf16.mxu0 0
      %2599 = vmatmul.mubr.bf16.gmra.mrb[0].mxu0 %v753
      %v2600 = vpop.f32.mrb[0].mxu0
      %v2601 = vadd.f32 0.0, %v2600
      %v2602 = vpop.f32.mrb[0].mxu0
      %v2603 = vpop.f32.mrb[0].mxu0
      %v2604 = vadd.f32 0.0, %v2603
      %v2605 = vpop.f32.mrb[0].mxu0
      %2606 = vmatprep.mubr.bf16.mxu0 0
      %2607 = vmatmul.mubr.bf16.gmra.mrb[0].mxu0 %v754
      %v2608 = vpop.f32.mrb[0].mxu0
      %v2609 = vadd.f32 0.0, %v2608
      %v2610 = vpop.f32.mrb[0].mxu0
      %v2611 = vpop.f32.mrb[0].mxu0
      %v2612 = vadd.f32 0.0, %v2611
      %v2613 = vpop.f32.mrb[0].mxu0
      %2614 = vmatprep.mubr.bf16.mxu0 0
      %2615 = vmatmul.mubr.bf16.gmra.mrb[0].mxu0 %v755
      %v2616 = vpop.f32.mrb[0].mxu0
      %v2617 = vadd.f32 0.0, %v2616
      %v2618 = vpop.f32.mrb[0].mxu0
      %v2619 = vpop.f32.mrb[0].mxu0
      %v2620 = vadd.f32 0.0, %v2619
      %v2621 = vpop.f32.mrb[0].mxu0
      %2622 = vmatprep.mubr.bf16.mxu0 0
      %2623 = vmatmul.mubr.bf16.gmra.mrb[0].mxu0 %v756
      %v2624 = vpop.f32.mrb[0].mxu0
      %v2625 = vadd.f32 0.0, %v2624
      %v2626 = vpop.f32.mrb[0].mxu0
      %v2627 = vpop.f32.mrb[0].mxu0
      %v2628 = vadd.f32 0.0, %v2627
      %v2629 = vpop.f32.mrb[0].mxu0
      %2630 = vmatprep.mubr.bf16.mxu0 0
      %2631 = vmatmul.mubr.bf16.gmra.mrb[0].mxu0 %v757
      %v2632 = vpop.f32.mrb[0].mxu0
      %v2633 = vadd.f32 0.0, %v2632
      %v2634 = vpop.f32.mrb[0].mxu0
      %v2635 = vpop.f32.mrb[0].mxu0
      %v2636 = vadd.f32 0.0, %v2635
      %v2637 = vpop.f32.mrb[0].mxu0
      %2638 = vmatprep.mubr.bf16.mxu0 0
      %2639 = vmatmul.mubr.bf16.gmra.mrb[0].mxu0 %v758
      %v2640 = vpop.f32.mrb[0].mxu0
      %v2641 = vadd.f32 0.0, %v2640
      %v2642 = vpop.f32.mrb[0].mxu0
      %v2643 = vpop.f32.mrb[0].mxu0
      %v2644 = vadd.f32 0.0, %v2643
      %v2645 = vpop.f32.mrb[0].mxu0
      %2646 = vmatprep.mubr.bf16.mxu0 0
      %2647 = vmatmul.mubr.bf16.gmra.mrb[0].mxu0 %v759
      %v2648 = vpop.f32.mrb[0].mxu0
      %v2649 = vadd.f32 0.0, %v2648
      %v2650 = vpop.f32.mrb[0].mxu0
      %v2651 = vpop.f32.mrb[0].mxu0
      %v2652 = vadd.f32 0.0, %v2651
      %v2653 = vpop.f32.mrb[0].mxu0
      %2654 = vmatprep.mubr.bf16.mxu0 0
      %2655 = vmatmul.mubr.bf16.gmra.mrb[0].mxu0 %v760
      %v2656 = vpop.f32.mrb[0].mxu0
      %v2657 = vadd.f32 0.0, %v2656
      %v2658 = vpop.f32.mrb[0].mxu0
      %v2659 = vpop.f32.mrb[0].mxu0
      %v2660 = vadd.f32 0.0, %v2659
      %v2661 = vpop.f32.mrb[0].mxu0
      %2662 = vmatprep.mubr.bf16.mxu0 0
      %2663 = vmatmul.mubr.bf16.gmra.mrb[0].mxu0 %v1726
      %v2664 = vpop.f32.mrb[0].mxu0
      %v2665 = vadd.f32 0.0, %v2664
      %v2666 = vpop.f32.mrb[0].mxu0
      %v2667 = vpop.f32.mrb[0].mxu0
      %v2668 = vadd.f32 0.0, %v2667
      %v2669 = vpop.f32.mrb[0].mxu0
      %2670 = vmatprep.mubr.bf16.mxu0 0
      %2671 = vmatmul.mubr.bf16.gmra.mrb[0].mxu0 %v2469
      %v2672 = vpop.f32.mrb[0].mxu0
      %v2673 = vadd.f32 0.0, %v2672
      %v2674 = vpop.f32.mrb[0].mxu0
      %v2675 = vpop.f32.mrb[0].mxu0
      %v2676 = vadd.f32 0.0, %v2675
      %v2677 = vpop.f32.mrb[0].mxu0
      %2678 = vdwg.mxu0
      %v2679 = vadd.f32 %v2437, %v2553
      %v2680 = vadd.f32 %v2438, %v2556
      %v2681 = vadd.f32 %v2439, %v2561
      %v2682 = vadd.f32 %v2440, %v2564
      %v2683 = vadd.f32 %v2441, %v2569
      %v2684 = vadd.f32 %v2442, %v2572
      %v2685 = vadd.f32 %v2443, %v2577
      %v2686 = vadd.f32 %v2444, %v2580
      %v2687 = vadd.f32 %v2445, %v2585
      %v2688 = vadd.f32 %v2446, %v2588
      %v2689 = vadd.f32 %v2447, %v2593
      %v2690 = vadd.f32 %v2448, %v2596
      %v2691 = vadd.f32 %v2449, %v2601
      %v2692 = vadd.f32 %v2450, %v2604
      %v2693 = vadd.f32 %v2451, %v2609
      %v2694 = vadd.f32 %v2452, %v2612
      %v2695 = vadd.f32 %v2453, %v2617
      %v2696 = vadd.f32 %v2454, %v2620
      %v2697 = vadd.f32 %v2455, %v2625
      %v2698 = vadd.f32 %v2456, %v2628
      %v2699 = vadd.f32 %v2457, %v2633
      %v2700 = vadd.f32 %v2458, %v2636
      %v2701 = vadd.f32 %v2459, %v2641
      %v2702 = vadd.f32 %v2460, %v2644
      %v2703 = vadd.f32 %v2461, %v2649
      %v2704 = vadd.f32 %v2462, %v2652
      %v2705 = vadd.f32 %v2463, %v2657
      %v2706 = vadd.f32 %v2464, %v2660
      %v2707 = vadd.f32 %v2465, %v2665
      %v2708 = vadd.f32 %v2466, %v2668
      %v2709 = vadd.f32 %v2467, %v2673
      %v2710 = vadd.f32 %v2468, %v2676
      %v2714 = vrot.slane %v598, 1
      %v2715 = vrot.slane %v599, 1
      %v2716 = vsel %vm809, %v2714, %v2715
      %v2717 = vrot.slane %v600, 1
      %v2718 = vsel %vm809, %v2715, %v2717
      %v2721 = vpack.c.bf16 %v2718, %v2716
      %v2738 = vunpack.c.l.b16 %v713
      %v2739 = vunpack.c.l.b16 %v714
      %v2740 = vunpack.c.l.b16 %v715
      %v2741 = vunpack.c.l.b16 %v716
      %v2742 = vunpack.c.l.b16 %v717
      %v2743 = vunpack.c.l.b16 %v718
      %v2744 = vunpack.c.l.b16 %v719
      %v2745 = vunpack.c.l.b16 %v720
      %v2746 = vunpack.c.l.b16 %v721
      %v2747 = vunpack.c.l.b16 %v722
      %v2748 = vunpack.c.l.b16 %v723
      %v2749 = vunpack.c.l.b16 %v724
      %v2750 = vunpack.c.l.b16 %v725
      %v2751 = vunpack.c.l.b16 %v726
      %v2752 = vunpack.c.l.b16 %v727
      %v2753 = vunpack.c.l.b16 %v728
      %v2754 = vpack.c.b16 %v2739, %v2738
      %v2755 = vpack.c.b16 %v2741, %v2740
      %v2756 = vpack.c.b16 %v2743, %v2742
      %v2757 = vpack.c.b16 %v2745, %v2744
      %v2758 = vpack.c.b16 %v2747, %v2746
      %v2759 = vpack.c.b16 %v2749, %v2748
      %v2760 = vpack.c.b16 %v2751, %v2750
      %v2761 = vpack.c.b16 %v2753, %v2752
      %2770 = vmatprep.subr.bf16.mxu0 0
      %2771 = vmatpush1.bf16.msra.mxu0 %v2754
      %2772 = vmatprep.subr.bf16.mxu0 0
      %2773 = vmatpush1.bf16.msra.mxu0 %v2755
      %2774 = vmatprep.subr.bf16.mxu0 0
      %2775 = vmatpush1.bf16.msra.mxu0 %v2756
      %2776 = vmatprep.subr.bf16.mxu0 0
      %2777 = vmatpush1.bf16.msra.mxu0 %v2757
      %2778 = vmatprep.subr.bf16.mxu0 0
      %2779 = vmatpush1.bf16.msra.mxu0 %v2758
      %2780 = vmatprep.subr.bf16.mxu0 0
      %2781 = vmatpush1.bf16.msra.mxu0 %v2759
      %2782 = vmatprep.subr.bf16.mxu0 0
      %2783 = vmatpush1.bf16.msra.mxu0 %v2760
      %2784 = vmatprep.subr.bf16.mxu0 0
      %2785 = vmatpush1.bf16.msra.mxu0 %v2761
      %2786 = vmatprep.subr.bf16.mxu0 0
      %2787 = vmatpush1.bf16.msra.mxu0 0
      %2788 = vmatprep.subr.bf16.mxu0 0
      %2789 = vmatpush1.bf16.msra.mxu0 0
      %2790 = vmatprep.subr.bf16.mxu0 0
      %2791 = vmatpush1.bf16.msra.mxu0 0
      %2792 = vmatprep.subr.bf16.mxu0 0
      %2793 = vmatpush1.bf16.msra.mxu0 0
      %2794 = vmatprep.subr.bf16.mxu0 0
      %2795 = vmatpush1.bf16.msra.mxu0 0
      %2796 = vmatprep.subr.bf16.mxu0 0
      %2797 = vmatpush1.bf16.msra.mxu0 0
      %2798 = vmatprep.subr.bf16.mxu0 0
      %2799 = vmatpush1.bf16.msra.mxu0 0
      %2800 = vmatprep.subr.bf16.mxu0 0
      %2801 = vmatpush1.bf16.msra.mxu0 0
      %2802 = vmatprep.mubr.bf16.mxu0 0
      %2803 = vmatmul.mubr.bf16.gmra.mrb[0].mxu0 %v924
      %v2804 = vpop.f32.mrb[0].mxu0
      %v2805 = vadd.f32 0.0, %v2804
      %v2806 = vpop.f32.mrb[0].mxu0
      %v2807 = vpop.f32.mrb[0].mxu0
      %v2808 = vadd.f32 0.0, %v2807
      %v2809 = vpop.f32.mrb[0].mxu0
      %2810 = vmatprep.mubr.bf16.mxu0 0
      %2811 = vmatmul.mubr.bf16.gmra.mrb[0].mxu0 %v925
      %v2812 = vpop.f32.mrb[0].mxu0
      %v2813 = vadd.f32 0.0, %v2812
      %v2814 = vpop.f32.mrb[0].mxu0
      %v2815 = vpop.f32.mrb[0].mxu0
      %v2816 = vadd.f32 0.0, %v2815
      %v2817 = vpop.f32.mrb[0].mxu0
      %2818 = vmatprep.mubr.bf16.mxu0 0
      %2819 = vmatmul.mubr.bf16.gmra.mrb[0].mxu0 %v926
      %v2820 = vpop.f32.mrb[0].mxu0
      %v2821 = vadd.f32 0.0, %v2820
      %v2822 = vpop.f32.mrb[0].mxu0
      %v2823 = vpop.f32.mrb[0].mxu0
      %v2824 = vadd.f32 0.0, %v2823
      %v2825 = vpop.f32.mrb[0].mxu0
      %2826 = vmatprep.mubr.bf16.mxu0 0
      %2827 = vmatmul.mubr.bf16.gmra.mrb[0].mxu0 %v927
      %v2828 = vpop.f32.mrb[0].mxu0
      %v2829 = vadd.f32 0.0, %v2828
      %v2830 = vpop.f32.mrb[0].mxu0
      %v2831 = vpop.f32.mrb[0].mxu0
      %v2832 = vadd.f32 0.0, %v2831
      %v2833 = vpop.f32.mrb[0].mxu0
      %2834 = vmatprep.mubr.bf16.mxu0 0
      %2835 = vmatmul.mubr.bf16.gmra.mrb[0].mxu0 %v928
      %v2836 = vpop.f32.mrb[0].mxu0
      %v2837 = vadd.f32 0.0, %v2836
      %v2838 = vpop.f32.mrb[0].mxu0
      %v2839 = vpop.f32.mrb[0].mxu0
      %v2840 = vadd.f32 0.0, %v2839
      %v2841 = vpop.f32.mrb[0].mxu0
      %2842 = vmatprep.mubr.bf16.mxu0 0
      %2843 = vmatmul.mubr.bf16.gmra.mrb[0].mxu0 %v929
      %v2844 = vpop.f32.mrb[0].mxu0
      %v2845 = vadd.f32 0.0, %v2844
      %v2846 = vpop.f32.mrb[0].mxu0
      %v2847 = vpop.f32.mrb[0].mxu0
      %v2848 = vadd.f32 0.0, %v2847
      %v2849 = vpop.f32.mrb[0].mxu0
      %2850 = vmatprep.mubr.bf16.mxu0 0
      %2851 = vmatmul.mubr.bf16.gmra.mrb[0].mxu0 %v930
      %v2852 = vpop.f32.mrb[0].mxu0
      %v2853 = vadd.f32 0.0, %v2852
      %v2854 = vpop.f32.mrb[0].mxu0
      %v2855 = vpop.f32.mrb[0].mxu0
      %v2856 = vadd.f32 0.0, %v2855
      %v2857 = vpop.f32.mrb[0].mxu0
      %2858 = vmatprep.mubr.bf16.mxu0 0
      %2859 = vmatmul.mubr.bf16.gmra.mrb[0].mxu0 %v931
      %v2860 = vpop.f32.mrb[0].mxu0
      %v2861 = vadd.f32 0.0, %v2860
      %v2862 = vpop.f32.mrb[0].mxu0
      %v2863 = vpop.f32.mrb[0].mxu0
      %v2864 = vadd.f32 0.0, %v2863
      %v2865 = vpop.f32.mrb[0].mxu0
      %2866 = vmatprep.mubr.bf16.mxu0 0
      %2867 = vmatmul.mubr.bf16.gmra.mrb[0].mxu0 %v932
      %v2868 = vpop.f32.mrb[0].mxu0
      %v2869 = vadd.f32 0.0, %v2868
      %v2870 = vpop.f32.mrb[0].mxu0
      %v2871 = vpop.f32.mrb[0].mxu0
      %v2872 = vadd.f32 0.0, %v2871
      %v2873 = vpop.f32.mrb[0].mxu0
      %2874 = vmatprep.mubr.bf16.mxu0 0
      %2875 = vmatmul.mubr.bf16.gmra.mrb[0].mxu0 %v933
      %v2876 = vpop.f32.mrb[0].mxu0
      %v2877 = vadd.f32 0.0, %v2876
      %v2878 = vpop.f32.mrb[0].mxu0
      %v2879 = vpop.f32.mrb[0].mxu0
      %v2880 = vadd.f32 0.0, %v2879
      %v2881 = vpop.f32.mrb[0].mxu0
      %2882 = vmatprep.mubr.bf16.mxu0 0
      %2883 = vmatmul.mubr.bf16.gmra.mrb[0].mxu0 %v934
      %v2884 = vpop.f32.mrb[0].mxu0
      %v2885 = vadd.f32 0.0, %v2884
      %v2886 = vpop.f32.mrb[0].mxu0
      %v2887 = vpop.f32.mrb[0].mxu0
      %v2888 = vadd.f32 0.0, %v2887
      %v2889 = vpop.f32.mrb[0].mxu0
      %2890 = vmatprep.mubr.bf16.mxu0 0
      %2891 = vmatmul.mubr.bf16.gmra.mrb[0].mxu0 %v935
      %v2892 = vpop.f32.mrb[0].mxu0
      %v2893 = vadd.f32 0.0, %v2892
      %v2894 = vpop.f32.mrb[0].mxu0
      %v2895 = vpop.f32.mrb[0].mxu0
      %v2896 = vadd.f32 0.0, %v2895
      %v2897 = vpop.f32.mrb[0].mxu0
      %2898 = vmatprep.mubr.bf16.mxu0 0
      %2899 = vmatmul.mubr.bf16.gmra.mrb[0].mxu0 %v936
      %v2900 = vpop.f32.mrb[0].mxu0
      %v2901 = vadd.f32 0.0, %v2900
      %v2902 = vpop.f32.mrb[0].mxu0
      %v2903 = vpop.f32.mrb[0].mxu0
      %v2904 = vadd.f32 0.0, %v2903
      %v2905 = vpop.f32.mrb[0].mxu0
      %2906 = vmatprep.mubr.bf16.mxu0 0
      %2907 = vmatmul.mubr.bf16.gmra.mrb[0].mxu0 %v937
      %v2908 = vpop.f32.mrb[0].mxu0
      %v2909 = vadd.f32 0.0, %v2908
      %v2910 = vpop.f32.mrb[0].mxu0
      %v2911 = vpop.f32.mrb[0].mxu0
      %v2912 = vadd.f32 0.0, %v2911
      %v2913 = vpop.f32.mrb[0].mxu0
      %2914 = vmatprep.mubr.bf16.mxu0 0
      %2915 = vmatmul.mubr.bf16.gmra.mrb[0].mxu0 %v1978
      %v2916 = vpop.f32.mrb[0].mxu0
      %v2917 = vadd.f32 0.0, %v2916
      %v2918 = vpop.f32.mrb[0].mxu0
      %v2919 = vpop.f32.mrb[0].mxu0
      %v2920 = vadd.f32 0.0, %v2919
      %v2921 = vpop.f32.mrb[0].mxu0
      %2922 = vmatprep.mubr.bf16.mxu0 0
      %2923 = vmatmul.mubr.bf16.gmra.mrb[0].mxu0 %v2721
      %v2924 = vpop.f32.mrb[0].mxu0
      %v2925 = vadd.f32 0.0, %v2924
      %v2926 = vpop.f32.mrb[0].mxu0
      %v2927 = vpop.f32.mrb[0].mxu0
      %v2928 = vadd.f32 0.0, %v2927
      %v2929 = vpop.f32.mrb[0].mxu0
      %2930 = vdwg.mxu0
      %v2931 = vadd.f32 %v2679, %v2805
      %v2932 = vadd.f32 %v2680, %v2808
      %v2933 = vadd.f32 %v2681, %v2813
      %v2934 = vadd.f32 %v2682, %v2816
      %v2935 = vadd.f32 %v2683, %v2821
      %v2936 = vadd.f32 %v2684, %v2824
      %v2937 = vadd.f32 %v2685, %v2829
      %v2938 = vadd.f32 %v2686, %v2832
      %v2939 = vadd.f32 %v2687, %v2837
      %v2940 = vadd.f32 %v2688, %v2840
      %v2941 = vadd.f32 %v2689, %v2845
      %v2942 = vadd.f32 %v2690, %v2848
      %v2943 = vadd.f32 %v2691, %v2853
      %v2944 = vadd.f32 %v2692, %v2856
      %v2945 = vadd.f32 %v2693, %v2861
      %v2946 = vadd.f32 %v2694, %v2864
      %v2947 = vadd.f32 %v2695, %v2869
      %v2948 = vadd.f32 %v2696, %v2872
      %v2949 = vadd.f32 %v2697, %v2877
      %v2950 = vadd.f32 %v2698, %v2880
      %v2951 = vadd.f32 %v2699, %v2885
      %v2952 = vadd.f32 %v2700, %v2888
      %v2953 = vadd.f32 %v2701, %v2893
      %v2954 = vadd.f32 %v2702, %v2896
      %v2955 = vadd.f32 %v2703, %v2901
      %v2956 = vadd.f32 %v2704, %v2904
      %v2957 = vadd.f32 %v2705, %v2909
      %v2958 = vadd.f32 %v2706, %v2912
      %v2959 = vadd.f32 %v2707, %v2917
      %v2960 = vadd.f32 %v2708, %v2920
      %v2961 = vadd.f32 %v2709, %v2925
      %v2962 = vadd.f32 %v2710, %v2928
      %v2963 = vrot.slane %v598, 2
      %v2964 = vrot.slane %v599, 2
      %v2965 = vsel %vm1356, %v2963, %v2964
      %v2966 = vrot.slane %v600, 2
      %v2967 = vsel %vm1356, %v2964, %v2966
      %v2970 = vpack.c.bf16 %v2967, %v2965
      %v2987 = vunpack.c.l.b16 %v729
      %v2988 = vunpack.c.l.b16 %v730
      %v2989 = vunpack.c.l.b16 %v731
      %v2990 = vunpack.c.l.b16 %v732
      %v2991 = vunpack.c.l.b16 %v733
      %v2992 = vunpack.c.l.b16 %v734
      %v2993 = vunpack.c.l.b16 %v735
      %v2994 = vunpack.c.l.b16 %v736
      %v2995 = vunpack.c.l.b16 %v737
      %v2996 = vunpack.c.l.b16 %v738
      %v2997 = vunpack.c.l.b16 %v739
      %v2998 = vunpack.c.l.b16 %v740
      %v2999 = vunpack.c.l.b16 %v741
      %v3000 = vunpack.c.l.b16 %v742
      %v3001 = vunpack.c.l.b16 %v743
      %v3002 = vunpack.c.l.b16 %v744
      %v3003 = vpack.c.b16 %v2988, %v2987
      %v3004 = vpack.c.b16 %v2990, %v2989
      %v3005 = vpack.c.b16 %v2992, %v2991
      %v3006 = vpack.c.b16 %v2994, %v2993
      %v3007 = vpack.c.b16 %v2996, %v2995
      %v3008 = vpack.c.b16 %v2998, %v2997
      %v3009 = vpack.c.b16 %v3000, %v2999
      %v3010 = vpack.c.b16 %v3002, %v3001
      %3019 = vmatprep.subr.bf16.mxu0 0
      %3020 = vmatpush1.bf16.msra.mxu0 %v3003
      %3021 = vmatprep.subr.bf16.mxu0 0
      %3022 = vmatpush1.bf16.msra.mxu0 %v3004
      %3023 = vmatprep.subr.bf16.mxu0 0
      %3024 = vmatpush1.bf16.msra.mxu0 %v3005
      %3025 = vmatprep.subr.bf16.mxu0 0
      %3026 = vmatpush1.bf16.msra.mxu0 %v3006
      %3027 = vmatprep.subr.bf16.mxu0 0
      %3028 = vmatpush1.bf16.msra.mxu0 %v3007
      %3029 = vmatprep.subr.bf16.mxu0 0
      %3030 = vmatpush1.bf16.msra.mxu0 %v3008
      %3031 = vmatprep.subr.bf16.mxu0 0
      %3032 = vmatpush1.bf16.msra.mxu0 %v3009
      %3033 = vmatprep.subr.bf16.mxu0 0
      %3034 = vmatpush1.bf16.msra.mxu0 %v3010
      %3035 = vmatprep.subr.bf16.mxu0 0
      %3036 = vmatpush1.bf16.msra.mxu0 0
      %3037 = vmatprep.subr.bf16.mxu0 0
      %3038 = vmatpush1.bf16.msra.mxu0 0
      %3039 = vmatprep.subr.bf16.mxu0 0
      %3040 = vmatpush1.bf16.msra.mxu0 0
      %3041 = vmatprep.subr.bf16.mxu0 0
      %3042 = vmatpush1.bf16.msra.mxu0 0
      %3043 = vmatprep.subr.bf16.mxu0 0
      %3044 = vmatpush1.bf16.msra.mxu0 0
      %3045 = vmatprep.subr.bf16.mxu0 0
      %3046 = vmatpush1.bf16.msra.mxu0 0
      %3047 = vmatprep.subr.bf16.mxu0 0
      %3048 = vmatpush1.bf16.msra.mxu0 0
      %3049 = vmatprep.subr.bf16.mxu0 0
      %3050 = vmatpush1.bf16.msra.mxu0 0
      %3051 = vmatprep.mubr.bf16.mxu0 0
      %3052 = vmatmul.mubr.bf16.gmra.mrb[0].mxu0 %v1471
      %v3053 = vpop.f32.mrb[0].mxu0
      %v3054 = vadd.f32 0.0, %v3053
      %v3055 = vpop.f32.mrb[0].mxu0
      %v3056 = vpop.f32.mrb[0].mxu0
      %v3057 = vadd.f32 0.0, %v3056
      %v3058 = vpop.f32.mrb[0].mxu0
      %3059 = vmatprep.mubr.bf16.mxu0 0
      %3060 = vmatmul.mubr.bf16.gmra.mrb[0].mxu0 %v1472
      %v3061 = vpop.f32.mrb[0].mxu0
      %v3062 = vadd.f32 0.0, %v3061
      %v3063 = vpop.f32.mrb[0].mxu0
      %v3064 = vpop.f32.mrb[0].mxu0
      %v3065 = vadd.f32 0.0, %v3064
      %v3066 = vpop.f32.mrb[0].mxu0
      %3067 = vmatprep.mubr.bf16.mxu0 0
      %3068 = vmatmul.mubr.bf16.gmra.mrb[0].mxu0 %v1473
      %v3069 = vpop.f32.mrb[0].mxu0
      %v3070 = vadd.f32 0.0, %v3069
      %v3071 = vpop.f32.mrb[0].mxu0
      %v3072 = vpop.f32.mrb[0].mxu0
      %v3073 = vadd.f32 0.0, %v3072
      %v3074 = vpop.f32.mrb[0].mxu0
      %3075 = vmatprep.mubr.bf16.mxu0 0
      %3076 = vmatmul.mubr.bf16.gmra.mrb[0].mxu0 %v1474
      %v3077 = vpop.f32.mrb[0].mxu0
      %v3078 = vadd.f32 0.0, %v3077
      %v3079 = vpop.f32.mrb[0].mxu0
      %v3080 = vpop.f32.mrb[0].mxu0
      %v3081 = vadd.f32 0.0, %v3080
      %v3082 = vpop.f32.mrb[0].mxu0
      %3083 = vmatprep.mubr.bf16.mxu0 0
      %3084 = vmatmul.mubr.bf16.gmra.mrb[0].mxu0 %v1475
      %v3085 = vpop.f32.mrb[0].mxu0
      %v3086 = vadd.f32 0.0, %v3085
      %v3087 = vpop.f32.mrb[0].mxu0
      %v3088 = vpop.f32.mrb[0].mxu0
      %v3089 = vadd.f32 0.0, %v3088
      %v3090 = vpop.f32.mrb[0].mxu0
      %3091 = vmatprep.mubr.bf16.mxu0 0
      %3092 = vmatmul.mubr.bf16.gmra.mrb[0].mxu0 %v1476
      %v3093 = vpop.f32.mrb[0].mxu0
      %v3094 = vadd.f32 0.0, %v3093
      %v3095 = vpop.f32.mrb[0].mxu0
      %v3096 = vpop.f32.mrb[0].mxu0
      %v3097 = vadd.f32 0.0, %v3096
      %v3098 = vpop.f32.mrb[0].mxu0
      %3099 = vmatprep.mubr.bf16.mxu0 0
      %3100 = vmatmul.mubr.bf16.gmra.mrb[0].mxu0 %v1477
      %v3101 = vpop.f32.mrb[0].mxu0
      %v3102 = vadd.f32 0.0, %v3101
      %v3103 = vpop.f32.mrb[0].mxu0
      %v3104 = vpop.f32.mrb[0].mxu0
      %v3105 = vadd.f32 0.0, %v3104
      %v3106 = vpop.f32.mrb[0].mxu0
      %3107 = vmatprep.mubr.bf16.mxu0 0
      %3108 = vmatmul.mubr.bf16.gmra.mrb[0].mxu0 %v1478
      %v3109 = vpop.f32.mrb[0].mxu0
      %v3110 = vadd.f32 0.0, %v3109
      %v3111 = vpop.f32.mrb[0].mxu0
      %v3112 = vpop.f32.mrb[0].mxu0
      %v3113 = vadd.f32 0.0, %v3112
      %v3114 = vpop.f32.mrb[0].mxu0
      %3115 = vmatprep.mubr.bf16.mxu0 0
      %3116 = vmatmul.mubr.bf16.gmra.mrb[0].mxu0 %v1479
      %v3117 = vpop.f32.mrb[0].mxu0
      %v3118 = vadd.f32 0.0, %v3117
      %v3119 = vpop.f32.mrb[0].mxu0
      %v3120 = vpop.f32.mrb[0].mxu0
      %v3121 = vadd.f32 0.0, %v3120
      %v3122 = vpop.f32.mrb[0].mxu0
      %3123 = vmatprep.mubr.bf16.mxu0 0
      %3124 = vmatmul.mubr.bf16.gmra.mrb[0].mxu0 %v1480
      %v3125 = vpop.f32.mrb[0].mxu0
      %v3126 = vadd.f32 0.0, %v3125
      %v3127 = vpop.f32.mrb[0].mxu0
      %v3128 = vpop.f32.mrb[0].mxu0
      %v3129 = vadd.f32 0.0, %v3128
      %v3130 = vpop.f32.mrb[0].mxu0
      %3131 = vmatprep.mubr.bf16.mxu0 0
      %3132 = vmatmul.mubr.bf16.gmra.mrb[0].mxu0 %v1481
      %v3133 = vpop.f32.mrb[0].mxu0
      %v3134 = vadd.f32 0.0, %v3133
      %v3135 = vpop.f32.mrb[0].mxu0
      %v3136 = vpop.f32.mrb[0].mxu0
      %v3137 = vadd.f32 0.0, %v3136
      %v3138 = vpop.f32.mrb[0].mxu0
      %3139 = vmatprep.mubr.bf16.mxu0 0
      %3140 = vmatmul.mubr.bf16.gmra.mrb[0].mxu0 %v1482
      %v3141 = vpop.f32.mrb[0].mxu0
      %v3142 = vadd.f32 0.0, %v3141
      %v3143 = vpop.f32.mrb[0].mxu0
      %v3144 = vpop.f32.mrb[0].mxu0
      %v3145 = vadd.f32 0.0, %v3144
      %v3146 = vpop.f32.mrb[0].mxu0
      %3147 = vmatprep.mubr.bf16.mxu0 0
      %3148 = vmatmul.mubr.bf16.gmra.mrb[0].mxu0 %v1483
      %v3149 = vpop.f32.mrb[0].mxu0
      %v3150 = vadd.f32 0.0, %v3149
      %v3151 = vpop.f32.mrb[0].mxu0
      %v3152 = vpop.f32.mrb[0].mxu0
      %v3153 = vadd.f32 0.0, %v3152
      %v3154 = vpop.f32.mrb[0].mxu0
      %3155 = vmatprep.mubr.bf16.mxu0 0
      %3156 = vmatmul.mubr.bf16.gmra.mrb[0].mxu0 %v1484
      %v3157 = vpop.f32.mrb[0].mxu0
      %v3158 = vadd.f32 0.0, %v3157
      %v3159 = vpop.f32.mrb[0].mxu0
      %v3160 = vpop.f32.mrb[0].mxu0
      %v3161 = vadd.f32 0.0, %v3160
      %v3162 = vpop.f32.mrb[0].mxu0
      %3163 = vmatprep.mubr.bf16.mxu0 0
      %3164 = vmatmul.mubr.bf16.gmra.mrb[0].mxu0 %v2227
      %v3165 = vpop.f32.mrb[0].mxu0
      %v3166 = vadd.f32 0.0, %v3165
      %v3167 = vpop.f32.mrb[0].mxu0
      %v3168 = vpop.f32.mrb[0].mxu0
      %v3169 = vadd.f32 0.0, %v3168
      %v3170 = vpop.f32.mrb[0].mxu0
      %3171 = vmatprep.mubr.bf16.mxu0 0
      %3172 = vmatmul.mubr.bf16.gmra.mrb[0].mxu0 %v2970
      %v3173 = vpop.f32.mrb[0].mxu0
      %v3174 = vadd.f32 0.0, %v3173
      %v3175 = vpop.f32.mrb[0].mxu0
      %v3176 = vpop.f32.mrb[0].mxu0
      %v3177 = vadd.f32 0.0, %v3176
      %v3178 = vpop.f32.mrb[0].mxu0
      %3179 = vdwg.mxu0
      %v3180 = vadd.f32 %v2931, %v3054
      %v3181 = vadd.f32 %v2932, %v3057
      %v3182 = vadd.f32 %v2933, %v3062
      %v3183 = vadd.f32 %v2934, %v3065
      %v3184 = vadd.f32 %v2935, %v3070
      %v3185 = vadd.f32 %v2936, %v3073
      %v3186 = vadd.f32 %v2937, %v3078
      %v3187 = vadd.f32 %v2938, %v3081
      %v3188 = vadd.f32 %v2939, %v3086
      %v3189 = vadd.f32 %v2940, %v3089
      %v3190 = vadd.f32 %v2941, %v3094
      %v3191 = vadd.f32 %v2942, %v3097
      %v3192 = vadd.f32 %v2943, %v3102
      %v3193 = vadd.f32 %v2944, %v3105
      %v3194 = vadd.f32 %v2945, %v3110
      %v3195 = vadd.f32 %v2946, %v3113
      %v3196 = vadd.f32 %v2947, %v3118
      %v3197 = vadd.f32 %v2948, %v3121
      %v3198 = vadd.f32 %v2949, %v3126
      %v3199 = vadd.f32 %v2950, %v3129
      %v3200 = vadd.f32 %v2951, %v3134
      %v3201 = vadd.f32 %v2952, %v3137
      %v3202 = vadd.f32 %v2953, %v3142
      %v3203 = vadd.f32 %v2954, %v3145
      %v3204 = vadd.f32 %v2955, %v3150
      %v3205 = vadd.f32 %v2956, %v3153
      %v3206 = vadd.f32 %v2957, %v3158
      %v3207 = vadd.f32 %v2958, %v3161
      %v3208 = vadd.f32 %v2959, %v3166
      %v3209 = vadd.f32 %v2960, %v3169
      %v3210 = vadd.f32 %v2961, %v3174
      %v3211 = vadd.f32 %v2962, %v3177
      %v3212 = vadd.f32 %v3180, %v3181
      %v3213 = vadd.f32 %v3212, %v3182
      %v3214 = vadd.f32 %v3213, %v3183
      %v3215 = vadd.f32 %v3214, %v3184
      %v3216 = vadd.f32 %v3215, %v3185
      %v3217 = vadd.f32 %v3216, %v3186
      %v3218 = vadd.f32 %v3217, %v3187
      %v3219 = vadd.f32 %v3218, %v3188
      %v3220 = vadd.f32 %v3219, %v3189
      %v3221 = vadd.f32 %v3220, %v3190
      %v3222 = vadd.f32 %v3221, %v3191
      %v3223 = vadd.f32 %v3222, %v3192
      %v3224 = vadd.f32 %v3223, %v3193
      %v3225 = vadd.f32 %v3224, %v3194
      %v3226 = vadd.f32 %v3225, %v3195
      %v3227 = vadd.f32 %v3226, %v3196
      %v3228 = vadd.f32 %v3227, %v3197
      %v3229 = vadd.f32 %v3228, %v3198
      %v3230 = vadd.f32 %v3229, %v3199
      %v3231 = vadd.f32 %v3230, %v3200
      %v3232 = vadd.f32 %v3231, %v3201
      %v3233 = vadd.f32 %v3232, %v3202
      %v3234 = vadd.f32 %v3233, %v3203
      %v3235 = vadd.f32 %v3234, %v3204
      %v3236 = vadd.f32 %v3235, %v3205
      %v3237 = vadd.f32 %v3236, %v3206
      %v3238 = vadd.f32 %v3237, %v3207
      %v3239 = vadd.f32 %v3238, %v3208
      %v3240 = vadd.f32 %v3239, %v3209
      %v3241 = vadd.f32 %v3240, %v3210
      %v3242 = vadd.f32 %v3241, %v3211
      %v3243 = vrot.slane %v3242, 4
      %v3244 = vadd.f32 %v3242, %v3243
      %v3245 = vrot.slane %v3244, 2
      %v3246 = vadd.f32 %v3244, %v3245
      %v3247 = vrot.slane %v3246, 1
      %v3248 = vadd.f32 %v3246, %v3247
      %v3249 = vmul.f32 %v3180, %v3180
      %v3250 = vmul.f32 %v3181, %v3181
      %v3251 = vmul.f32 %v3182, %v3182
      %v3252 = vmul.f32 %v3183, %v3183
      %v3253 = vmul.f32 %v3184, %v3184
      %v3254 = vmul.f32 %v3185, %v3185
      %v3255 = vmul.f32 %v3186, %v3186
      %v3256 = vmul.f32 %v3187, %v3187
      %v3257 = vmul.f32 %v3188, %v3188
      %v3258 = vmul.f32 %v3189, %v3189
      %v3259 = vmul.f32 %v3190, %v3190
      %v3260 = vmul.f32 %v3191, %v3191
      %v3261 = vmul.f32 %v3192, %v3192
      %v3262 = vmul.f32 %v3193, %v3193
      %v3263 = vmul.f32 %v3194, %v3194
      %v3264 = vmul.f32 %v3195, %v3195
      %v3265 = vmul.f32 %v3196, %v3196
      %v3266 = vmul.f32 %v3197, %v3197
      %v3267 = vmul.f32 %v3198, %v3198
      %v3268 = vmul.f32 %v3199, %v3199
      %v3269 = vmul.f32 %v3200, %v3200
      %v3270 = vmul.f32 %v3201, %v3201
      %v3271 = vmul.f32 %v3202, %v3202
      %v3272 = vmul.f32 %v3203, %v3203
      %v3273 = vmul.f32 %v3204, %v3204
      %v3274 = vmul.f32 %v3205, %v3205
      %v3275 = vmul.f32 %v3206, %v3206
      %v3276 = vmul.f32 %v3207, %v3207
      %v3277 = vmul.f32 %v3208, %v3208
      %v3278 = vmul.f32 %v3209, %v3209
      %v3279 = vmul.f32 %v3210, %v3210
      %v3280 = vmul.f32 %v3211, %v3211
      %v3281 = vadd.f32 %v3249, %v3250
      %v3282 = vadd.f32 %v3281, %v3251
      %v3283 = vadd.f32 %v3282, %v3252
      %v3284 = vadd.f32 %v3283, %v3253
      %v3285 = vadd.f32 %v3284, %v3254
      %v3286 = vadd.f32 %v3285, %v3255
      %v3287 = vadd.f32 %v3286, %v3256
      %v3288 = vadd.f32 %v3287, %v3257
      %v3289 = vadd.f32 %v3288, %v3258
      %v3290 = vadd.f32 %v3289, %v3259
      %v3291 = vadd.f32 %v3290, %v3260
      %v3292 = vadd.f32 %v3291, %v3261
      %v3293 = vadd.f32 %v3292, %v3262
      %v3294 = vadd.f32 %v3293, %v3263
      %v3295 = vadd.f32 %v3294, %v3264
      %v3296 = vadd.f32 %v3295, %v3265
      %v3297 = vadd.f32 %v3296, %v3266
      %v3298 = vadd.f32 %v3297, %v3267
      %v3299 = vadd.f32 %v3298, %v3268
      %v3300 = vadd.f32 %v3299, %v3269
      %v3301 = vadd.f32 %v3300, %v3270
      %v3302 = vadd.f32 %v3301, %v3271
      %v3303 = vadd.f32 %v3302, %v3272
      %v3304 = vadd.f32 %v3303, %v3273
      %v3305 = vadd.f32 %v3304, %v3274
      %v3306 = vadd.f32 %v3305, %v3275
      %v3307 = vadd.f32 %v3306, %v3276
      %v3308 = vadd.f32 %v3307, %v3277
      %v3309 = vadd.f32 %v3308, %v3278
      %v3310 = vadd.f32 %v3309, %v3279
      %v3311 = vadd.f32 %v3310, %v3280
      %v3312 = vrot.slane %v3311, 4
      %v3313 = vadd.f32 %v3311, %v3312
      %v3314 = vrot.slane %v3313, 2
      %v3315 = vadd.f32 %v3313, %v3314
      %v3316 = vrot.slane %v3315, 1
      %v3317 = vadd.f32 %v3315, %v3316
      %vm3318 = vcmask 1040384
      %v3319 = vsel %vm3318, %v3248, %v3317
      %vm3320 = vcmask 1041408
      %v3321 = vsel %vm3320, %v3319, 0.0
      %3322 = vst [vmem:[%s280] sm:$0xff] %v3321
      %v3323 = vpack.c.bf16 %v3181, %v3180
      %v3324 = vpack.c.bf16 %v3183, %v3182
      %v3325 = vpack.c.bf16 %v3185, %v3184
      %v3326 = vpack.c.bf16 %v3187, %v3186
      %v3327 = vpack.c.bf16 %v3189, %v3188
      %v3328 = vpack.c.bf16 %v3191, %v3190
      %v3329 = vpack.c.bf16 %v3193, %v3192
      %v3330 = vpack.c.bf16 %v3195, %v3194
      %v3331 = vpack.c.bf16 %v3197, %v3196
      %v3332 = vpack.c.bf16 %v3199, %v3198
      %v3333 = vpack.c.bf16 %v3201, %v3200
      %v3334 = vpack.c.bf16 %v3203, %v3202
      %v3335 = vpack.c.bf16 %v3205, %v3204
      %v3336 = vpack.c.bf16 %v3207, %v3206
      %v3337 = vpack.c.bf16 %v3209, %v3208
      %v3338 = vpack.c.bf16 %v3211, %v3210
      %v3355 = vunpack.c.l.b16 %v3323
      %v3356 = vunpack.c.h.b16 %v3323
      %v3357 = vunpack.c.l.b16 %v3324
      %v3358 = vunpack.c.h.b16 %v3324
      %v3359 = vunpack.c.l.b16 %v3325
      %v3360 = vunpack.c.h.b16 %v3325
      %v3361 = vunpack.c.l.b16 %v3326
      %v3362 = vunpack.c.h.b16 %v3326
      %v3363 = vunpack.c.l.b16 %v3327
      %v3364 = vunpack.c.h.b16 %v3327
      %v3365 = vunpack.c.l.b16 %v3328
      %v3366 = vunpack.c.h.b16 %v3328
      %v3367 = vunpack.c.l.b16 %v3329
      %v3368 = vunpack.c.h.b16 %v3329
      %v3369 = vunpack.c.l.b16 %v3330
      %v3370 = vunpack.c.h.b16 %v3330
      %v3371 = vunpack.c.l.b16 %v3331
      %v3372 = vunpack.c.h.b16 %v3331
      %v3373 = vunpack.c.l.b16 %v3332
      %v3374 = vunpack.c.h.b16 %v3332
      %v3375 = vunpack.c.l.b16 %v3333
      %v3376 = vunpack.c.h.b16 %v3333
      %v3377 = vunpack.c.l.b16 %v3334
      %v3378 = vunpack.c.h.b16 %v3334
      %v3379 = vunpack.c.l.b16 %v3335
      %v3380 = vunpack.c.h.b16 %v3335
      %v3381 = vunpack.c.l.b16 %v3336
      %v3382 = vunpack.c.h.b16 %v3336
      %v3383 = vunpack.c.l.b16 %v3337
      %v3384 = vunpack.c.h.b16 %v3337
      %v3385 = vunpack.c.l.b16 %v3338
      %v3386 = vunpack.c.h.b16 %v3338
      %v3387 = vpack.c.b16 %v3355, %v3355
      %v3388 = vpack.c.b16 %v3356, %v3356
      %v3389 = vpack.c.b16 %v3357, %v3357
      %v3390 = vpack.c.b16 %v3358, %v3358
      %v3391 = vpack.c.b16 %v3359, %v3359
      %v3392 = vpack.c.b16 %v3360, %v3360
      %v3393 = vpack.c.b16 %v3361, %v3361
      %v3394 = vpack.c.b16 %v3362, %v3362
      %v3395 = vpack.c.b16 %v3363, %v3363
      %v3396 = vpack.c.b16 %v3364, %v3364
      %v3397 = vpack.c.b16 %v3365, %v3365
      %v3398 = vpack.c.b16 %v3366, %v3366
      %v3399 = vpack.c.b16 %v3367, %v3367
      %v3400 = vpack.c.b16 %v3368, %v3368
      %v3401 = vpack.c.b16 %v3369, %v3369
      %v3402 = vpack.c.b16 %v3370, %v3370
      %v3403 = vpack.c.b16 %v3371, %v3371
      %v3404 = vpack.c.b16 %v3372, %v3372
      %v3405 = vpack.c.b16 %v3373, %v3373
      %v3406 = vpack.c.b16 %v3374, %v3374
      %v3407 = vpack.c.b16 %v3375, %v3375
      %v3408 = vpack.c.b16 %v3376, %v3376
      %v3409 = vpack.c.b16 %v3377, %v3377
      %v3410 = vpack.c.b16 %v3378, %v3378
      %v3411 = vpack.c.b16 %v3379, %v3379
      %v3412 = vpack.c.b16 %v3380, %v3380
      %v3413 = vpack.c.b16 %v3381, %v3381
      %v3414 = vpack.c.b16 %v3382, %v3382
      %v3415 = vpack.c.b16 %v3383, %v3383
      %v3416 = vpack.c.b16 %v3384, %v3384
      %v3417 = vpack.c.b16 %v3385, %v3385
      %v3418 = vpack.c.b16 %v3386, %v3386
      %3451 = vst [vmem:[%s273] sm:$0xf] %v3387
      %3452 = vst [vmem:[%s273 + $0x4] sm:$0xf] %v3388
      %3453 = vst [vmem:[%s273 + $0x8] sm:$0xf] %v3389
      %3454 = vst [vmem:[%s273 + $0xc] sm:$0xf] %v3390
      %3455 = vst [vmem:[%s273 + $0x10] sm:$0xf] %v3391
      %3456 = vst [vmem:[%s273 + $0x14] sm:$0xf] %v3392
      %3457 = vst [vmem:[%s273 + $0x18] sm:$0xf] %v3393
      %3458 = vst [vmem:[%s273 + $0x1c] sm:$0xf] %v3394
      %3459 = vst [vmem:[%s273 + $0x20] sm:$0xf] %v3395
      %3460 = vst [vmem:[%s273 + $0x24] sm:$0xf] %v3396
      %3461 = vst [vmem:[%s273 + $0x28] sm:$0xf] %v3397
      %3462 = vst [vmem:[%s273 + $0x2c] sm:$0xf] %v3398
      %3463 = vst [vmem:[%s273 + $0x30] sm:$0xf] %v3399
      %3464 = vst [vmem:[%s273 + $0x34] sm:$0xf] %v3400
      %3465 = vst [vmem:[%s273 + $0x38] sm:$0xf] %v3401
      %3466 = vst [vmem:[%s273 + $0x3c] sm:$0xf] %v3402
      %3467 = vst [vmem:[%s273 + $0x40] sm:$0xf] %v3403
      %3468 = vst [vmem:[%s273 + $0x44] sm:$0xf] %v3404
      %3469 = vst [vmem:[%s273 + $0x48] sm:$0xf] %v3405
      %3470 = vst [vmem:[%s273 + $0x4c] sm:$0xf] %v3406
      %3471 = vst [vmem:[%s273 + $0x50] sm:$0xf] %v3407
      %3472 = vst [vmem:[%s273 + $0x54] sm:$0xf] %v3408
      %3473 = vst [vmem:[%s273 + $0x58] sm:$0xf] %v3409
      %3474 = vst [vmem:[%s273 + $0x5c] sm:$0xf] %v3410
      %3475 = vst [vmem:[%s273 + $0x60] sm:$0xf] %v3411
      %3476 = vst [vmem:[%s273 + $0x64] sm:$0xf] %v3412
      %3477 = vst [vmem:[%s273 + $0x68] sm:$0xf] %v3413
      %3478 = vst [vmem:[%s273 + $0x6c] sm:$0xf] %v3414
      %3479 = vst [vmem:[%s273 + $0x70] sm:$0xf] %v3415
      %3480 = vst [vmem:[%s273 + $0x74] sm:$0xf] %v3416
      %3481 = vst [vmem:[%s273 + $0x78] sm:$0xf] %v3417
      %3482 = vst [vmem:[%s273 + $0x7c] sm:$0xf] %v3418
      %p3483 = scmp.lt.s32.totalorder %s21, 1
      %s3484 = scalar_select %p3483, %s21, 1
      %p3485 = scmp.lt.s32.totalorder %s22, 0
      %s3486 = scalar_select %p3485, %s22, 0
      %s3487 = smul.addr %s3484, 32
      %s3488 = sadd.s32 %s3486, %s3487
      %s3489 = smul.addr %s3488, 4
      %s3490 = scalar_lea.vmem %s4, %s3489
      %p3491 = scmp.lt.s32.totalorder %s21, 1
      %s3492 = scalar_select %p3491, %s21, 1
      %p3493 = scmp.lt.s32.totalorder %s22, 0
      %s3494 = scalar_select %p3493, %s22, 0
      %s3495 = sadd.s32 %s3494, %s3492
      %s3496 = smul.addr %s3495, 8
      %s3497 = scalar_lea.vmem %s5, %s3496
      // Predicated region
      $region41: #{double_conv_forward.4} parent=35 // pred_check
        %p3498 = pneg %p143
      $region42: #{double_conv_forward.4} parent=35 // pred_check_branch
        %3500 = sbr.rel (%p3498) target = $region44
      $region43: #{double_conv_forward.4} parent=35 // pred_region
        _
      $region44: #{double_conv_forward.4} parent=35 // pred_fallthru
        _
      // Predicated region
      $region45: #{double_conv_forward.4} parent=35 // pred_check
        %p3501 = pneg %p171
      $region46: #{double_conv_forward.4} parent=35 // pred_check_branch
        %3503 = sbr.rel (%p3501) target = $region48
      $region47: #{double_conv_forward.4} parent=35 // pred_region
        _
      $region48: #{double_conv_forward.4} parent=35 // pred_fallthru
        _
    $region36: #{double_conv_forward.4} parent=5 // pred_fallthru
      _
    %p3504 = scmp.le.s32.totalorder 2, %s12
    // Predicated region
    $region49: #{double_conv_forward.4} parent=5 // pred_check
      %p3505 = pneg %p3504
    $region50: #{double_conv_forward.4} parent=5 // pred_check_branch
      %3507 = sbr.rel (%p3505) target = $region52
    $region51: #{double_conv_forward.4} parent=5 // pred_region
      %s3508 = ssub.s32 %s12, 2
      // Predicated region
      $region53: #{double_conv_forward.4} parent=51 // pred_check
        %p3509 = pneg %p149
      $region54: #{double_conv_forward.4} parent=51 // pred_check_branch
        %3511 = sbr.rel (%p3509) target = $region56
      $region55: #{double_conv_forward.4} parent=51 // pred_region
        %p3512 = scmp.lt.s32.totalorder %s23, 1
        %s3513 = scalar_select %p3512, %s23, 1
        %p3514 = scmp.lt.s32.totalorder %s24, 0
        %s3515 = scalar_select %p3514, %s24, 0
        %s3516 = smul.addr %s3513, 32
        %s3517 = sadd.s32 %s3515, %s3516
        %s3518 = smul.addr %s3517, 4
        %s3519 = scalar_lea.vmem %s4, %s3518
      $region56: #{double_conv_forward.4} parent=51 // pred_fallthru
        _
      // Predicated region
      $region57: #{double_conv_forward.4} parent=51 // pred_check
        %p3520 = pneg %p177
      $region58: #{double_conv_forward.4} parent=51 // pred_check_branch
        %3522 = sbr.rel (%p3520) target = $region60
      $region59: #{double_conv_forward.4} parent=51 // pred_region
        %p3523 = scmp.lt.s32.totalorder %s23, 1
        %s3524 = scalar_select %p3523, %s23, 1
        %p3525 = scmp.lt.s32.totalorder %s24, 0
        %s3526 = scalar_select %p3525, %s24, 0
        %s3527 = sadd.s32 %s3526, %s3524
        %s3528 = smul.addr %s3527, 8
        %s3529 = scalar_lea.vmem %s5, %s3528
      $region60: #{double_conv_forward.4} parent=51 // pred_fallthru
        _
    $region52: #{double_conv_forward.4} parent=5 // pred_fallthru
      _
  $region6: #{double_conv_forward.4} parent=0 // loop_footer
    %s16 = sadd.s32 1, %s12
  $region7: #{double_conv_forward.4} parent=0 // loop_footer_branch
    %11 = sbr.rel target = $region3
  $region8: #{double_conv_forward.4} parent=0 // loop_exit
    _

</llo_original>
